<compile_context>
chip_gen: v7x
topology: tpu7x:2x2x1
jax: 0.10.0
libtpu: 0.0.40
codegen_flags: <defaults>
</compile_context>

<pallas_src>
import jax
import jax.numpy as jnp
from jax.experimental import pallas as pl
from jax.experimental.pallas import tpu as pltpu

EPS = 1e-5
_CPAD = 128   # lane-dense internal channel width (layer-1 output 64 -> 128)


# ---------------------------------------------------------------------------
# tiling helpers
# ---------------------------------------------------------------------------

def _pick_tile_h(H, W, target_rows=512):
    """Largest row-tile TH dividing H with TH*W <= target_rows (else best fit)."""
    if H * W <= target_rows:
        return H
    cap = max(1, target_rows // W)
    for th in range(min(H, cap), 0, -1):
        if H % th == 0:
            return th
    return H


def _pick_tile_rows(R, cap=1024):
    """Largest multiple-of-8 row tile dividing R, capped (else one full tile)."""
    if R <= cap:
        return R
    start = cap - (cap % 8)
    for tr in range(start, 7, -8):
        if R % tr == 0:
            return tr
    return R


def _pair_conv2_taps():
    # K=256 tap pairing helps 256-deep MXUs (v6e, v7x); 128-deep MXUs
    # (v4/v5e/v5p) are already saturated at K=128, where pairing only adds
    # concat overhead.
    try:
        kind = jax.devices()[0].device_kind.lower()
    except Exception:
        return False
    return any(tag in kind for tag in ("v6", "v7", "7x"))


_PAIR_CONV2_TAPS = _pair_conv2_taps()


# ---------------------------------------------------------------------------
# kernels
# ---------------------------------------------------------------------------

def _conv1_packed_kernel(x_ref, w_ref, y_ref, s_ref):
    """Layer-1 3x3 conv as ONE matmul over K-packed taps + BN partial moments.

    x_ref: (1, TH, W, KP)  bf16  taps packed along channels (K = 9*Cin -> KP)
    w_ref: (KP, C)         bf16  packed conv1 weights (Cout zero-padded to 128)
    y_ref: (1, TH, W, C)   bf16  pre-BN conv output tile
    s_ref: (1, 1, 2, C)    f32   row 0: tile sum ; row 1: tile centered M2
    """
    _, th, wo, kp = x_ref.shape
    c = y_ref.shape[-1]
    rows = th * wo
    acc = jnp.dot(x_ref[...].reshape(rows, kp), w_ref[...],
                  preferred_element_type=jnp.float32)
    y_ref[...] = acc.reshape(1, th, wo, c).astype(y_ref.dtype)
    # Per-tile moments (centered -> numerically stable combine outside).
    ssum = jnp.sum(acc, axis=0, keepdims=True)             # (1, C)
    cen = acc - ssum * (1.0 / rows)
    m2 = jnp.sum(cen * cen, axis=0, keepdims=True)         # (1, C)
    s_ref[0, 0, 0:1, :] = ssum                              # direct row stores
    s_ref[0, 0, 1:2, :] = m2


def _make_bn_relu_conv2_kernel(tap_groups, TH, H, W, CIN, COUT):
    """Fused: BN1 affine + ReLU on the layer-1 image (into a zero-halo VMEM
    scratch, filled once per image), then 3x3 conv2 as one MXU matmul per tap
    group (K=128 single taps, or K=256 paired taps on v6e/v7x) + BN2 moments.
    """
    rows = TH * W

    def kernel(y1_ref, w_ref, sc_ref, sh_ref, y2_ref, s_ref, xpad_ref):
        i = pl.program_id(1)

        # Fill the padded activation scratch once per image (row-tile i == 0).
        @pl.when(i == 0)
        def _():
            xpad_ref[...] = jnp.zeros_like(xpad_ref)                 # zero halo
            a = y1_ref[0].astype(jnp.float32)                        # (H, W, CIN)
            a = a * sc_ref[...].reshape(1, 1, CIN) + sh_ref[...].reshape(1, 1, CIN)
            xpad_ref[1:H + 1, 1:W + 1, :] = jnp.maximum(a, 0.0).astype(xpad_ref.dtype)

        h0 = i * TH
        if TH % 8 == 0:
            h0 = pl.multiple_of(h0, 8)

        acc = jnp.zeros((rows, COUT), jnp.float32)
        for g, taps in enumerate(tap_groups):
            parts = []
            for t in taps:
                kh, kw = t // 3, t % 3
                p = xpad_ref[pl.ds(h0 + kh, TH), pl.ds(kw, W), :]    # (TH, W, CIN)
                parts.append(p.reshape(rows, CIN))
            patch = parts[0] if len(parts) == 1 else jnp.concatenate(parts, axis=-1)
            acc = acc + jnp.dot(patch, w_ref[g, 0:CIN * len(taps), :],
                                preferred_element_type=jnp.float32)

        y2_ref[...] = acc.reshape(1, TH, W, COUT).astype(y2_ref.dtype)
        ssum = jnp.sum(acc, axis=0, keepdims=True)
        cen = acc - ssum * (1.0 / rows)
        m2 = jnp.sum(cen * cen, axis=0, keepdims=True)
        s_ref[0, 0, 0:1, :] = ssum
        s_ref[0, 0, 1:2, :] = m2

    return kernel


def _bn_relu_rows_kernel(y_ref, sc_ref, sh_ref, o_ref):
    """Folded BatchNorm affine + ReLU over lane-dense (rows, C) tiles."""
    o_ref[...] = jnp.maximum(
        y_ref[...].astype(jnp.float32) * sc_ref[...] + sh_ref[...], 0.0
    ).astype(o_ref.dtype)


# ---------------------------------------------------------------------------
# wrapper-side packing + moment combination
# ---------------------------------------------------------------------------

def _pack_conv1(x_nhwc, w1):
    """im2col-pack the 3x3 taps of the tiny-Cin layer-1 input along K."""
    N, H, W, Cin = x_nhwc.shape
    Cout = w1.shape[-1]
    xp = jnp.pad(x_nhwc, ((0, 0), (1, 1), (1, 1), (0, 0)))
    taps = [xp[:, kh:kh + H, kw:kw + W, :] for kh in range(3) for kw in range(3)]
    xpk = jnp.concatenate(taps, axis=-1)                    # (N, H, W, 9*Cin)
    k = 9 * Cin
    kp = -(-k // 32) * 32                                    # 27 -> 32
    xpk = jnp.pad(xpk, ((0, 0), (0, 0), (0, 0), (0, kp - k)))
    wk = jnp.pad(w1.reshape(k, Cout), ((0, kp - k), (0, _CPAD - Cout)))
    return xpk.astype(jnp.bfloat16), wk.astype(jnp.bfloat16)


def _pack_conv2(w2, pair_taps):
    """Group the 9 conv2 taps along K (pairs -> K=256 on 256-deep MXUs)."""
    cin, cout = w2.shape[2], w2.shape[3]
    taps_w = w2.reshape(9, cin, cout)
    groups = ((0, 1), (2, 3), (4, 5), (6, 7), (8,)) if pair_taps \
        else tuple((t,) for t in range(9))
    gkmax = max(len(g) for g in groups) * cin
    mats = []
    for g in groups:
        m = jnp.concatenate([taps_w[t] for t in g], axis=0)
        mats.append(jnp.pad(m, ((0, gkmax - m.shape[0]), (0, 0))))
    return jnp.stack(mats, axis=0).astype(jnp.bfloat16), groups


def _batch_mean_var(stats, rows_per_tile, total):
    """Chan parallel-variance combine of per-tile (sum, centered M2) moments."""
    sums = stats[:, :, 0, :]
    m2s = stats[:, :, 1, :]
    mean = jnp.sum(sums, axis=(0, 1)) / total
    tile_mean = sums / rows_per_tile
    var = (jnp.sum(m2s, axis=(0, 1))
           + rows_per_tile * jnp.sum((tile_mean - mean) ** 2, axis=(0, 1))) / total
    return mean, jnp.maximum(var, 0.0)


def _bn_scale_shift(mean, var, gamma, beta):
    scale = gamma * jax.lax.rsqrt(var + EPS)
    return scale.astype(jnp.float32), (beta - mean * scale).astype(jnp.float32)


# ---------------------------------------------------------------------------
# pallas_call wrappers
# ---------------------------------------------------------------------------

def _conv1_layer(xpk, w1k, N, H, W):
    TH = _pick_tile_h(H, W)
    n_ht = H // TH
    KP = xpk.shape[-1]
    C = w1k.shape[-1]
    y1, stats = pl.pallas_call(
        _conv1_packed_kernel,
        grid=(N, n_ht),
        in_specs=[
            pl.BlockSpec((1, TH, W, KP), lambda n, i: (n, i, 0, 0)),
            pl.BlockSpec((KP, C), lambda n, i: (0, 0)),
        ],
        out_specs=[
            pl.BlockSpec((1, TH, W, C), lambda n, i: (n, i, 0, 0)),
            pl.BlockSpec((1, 1, 2, C), lambda n, i: (n, i, 0, 0)),
        ],
        out_shape=[
            jax.ShapeDtypeStruct((N, H, W, C), jnp.bfloat16),
            jax.ShapeDtypeStruct((N, n_ht, 2, C), jnp.float32),
        ],
        compiler_params=pltpu.CompilerParams(
            dimension_semantics=("parallel", "parallel")),
    )(xpk, w1k)
    return y1, stats, TH


def _bn_relu_conv2_layer(y1, w2g, tap_groups, scale1, shift1):
    N, H, W, CIN = y1.shape
    COUT = w2g.shape[-1]
    TH = _pick_tile_h(H, W)
    n_ht = H // TH
    kernel = _make_bn_relu_conv2_kernel(tap_groups, TH, H, W, CIN, COUT)
    y2, stats = pl.pallas_call(
        kernel,
        grid=(N, n_ht),
        in_specs=[
            # Per-image block; constant over the row-tile axis => stays resident.
            pl.BlockSpec((1, H, W, CIN), lambda n, i: (n, 0, 0, 0)),
            pl.BlockSpec(w2g.shape, lambda n, i: (0, 0, 0)),
            pl.BlockSpec((1, CIN), lambda n, i: (0, 0)),
            pl.BlockSpec((1, CIN), lambda n, i: (0, 0)),
        ],
        out_specs=[
            pl.BlockSpec((1, TH, W, COUT), lambda n, i: (n, i, 0, 0)),
            pl.BlockSpec((1, 1, 2, COUT), lambda n, i: (n, i, 0, 0)),
        ],
        out_shape=[
            jax.ShapeDtypeStruct((N, H, W, COUT), jnp.bfloat16),
            jax.ShapeDtypeStruct((N, n_ht, 2, COUT), jnp.float32),
        ],
        scratch_shapes=[pltpu.VMEM((H + 2, W + 2, CIN), jnp.bfloat16)],
        compiler_params=pltpu.CompilerParams(
            # Row-tile axis is "arbitrary": tile i==0 fills the halo scratch
            # that later tiles of the same image reuse.
            dimension_semantics=("parallel", "arbitrary")),
    )(y1, w2g, scale1, shift1)
    return y2, stats, TH


def _bn_relu_layer(y2, scale2, shift2, out_dtype):
    N, H, W, C = y2.shape
    R = N * H * W
    TR = _pick_tile_rows(R)
    out = pl.pallas_call(
        _bn_relu_rows_kernel,
        grid=(R // TR,),
        in_specs=[
            pl.BlockSpec((TR, C), lambda r: (r, 0)),
            pl.BlockSpec((1, C), lambda r: (0, 0)),
            pl.BlockSpec((1, C), lambda r: (0, 0)),
        ],
        out_specs=pl.BlockSpec((TR, C), lambda r: (r, 0)),
        out_shape=jax.ShapeDtypeStruct((R, C), out_dtype),
        compiler_params=pltpu.CompilerParams(dimension_semantics=("parallel",)),
    )(y2.reshape(R, C), scale2.reshape(1, C), shift2.reshape(1, C))
    return out.reshape(N, H, W, C)


# ---------------------------------------------------------------------------
# model
# ---------------------------------------------------------------------------

def init_params(key):
    k1, k2, k3, k4 = jax.random.split(key, 4)
    # Conv weights stored directly in HWIO (KH, KW, Cin, Cout).
    return {
        "w1": 0.1 * jax.random.normal(k1, (3, 3, 3, 64), jnp.float32),
        "b1": 0.05 * jax.random.normal(k2, (64,), jnp.float32),   # cancelled by BN
        "g1": jnp.ones((64,), jnp.float32),
        "beta1": jnp.zeros((64,), jnp.float32),
        "w2": 0.1 * jax.random.normal(k3, (3, 3, 64, 128), jnp.float32),
        "b2": 0.05 * jax.random.normal(k4, (128,), jnp.float32),  # cancelled by BN
        "g2": jnp.ones((128,), jnp.float32),
        "beta2": jnp.zeros((128,), jnp.float32),
    }


@jax.jit
def simple_model_forward(x_nchw, params):
    # NCHW (PyTorch) -> NHWC internally -> NCHW out.
    # TODO(synk): for large activations fold these boundary transposes into the
    # kernels' index_maps instead of separate XLA HBM passes.
    x = jnp.transpose(x_nchw, (0, 2, 3, 1))
    N, H, W, _ = x.shape

    c1 = params["w1"].shape[-1]                       # 64
    pad = _CPAD - c1
    # Zero-pad layer-1 output channels 64 -> 128: lane-dense stores everywhere
    # and MXU-aligned K for conv2. Exact: padded channels stay identically 0.
    g1p = jnp.pad(params["g1"], ((0, pad),), constant_values=1.0)
    bt1p = jnp.pad(params["beta1"], ((0, pad),))
    w2p = jnp.pad(params["w2"], ((0, 0), (0, 0), (0, pad), (0, 0)))

    # ---- layer 1: conv1 (taps K-packed -> one matmul/tile) + BN1 moments ----
    xpk, w1k = _pack_conv1(x, params["w1"])
    y1, stats1, th1 = _conv1_layer(xpk, w1k, N, H, W)
    mean1, var1 = _batch_mean_var(stats1, th1 * W, N * H * W)
    scale1, shift1 = _bn_scale_shift(mean1, var1, g1p, bt1p)

    # ---- layer 2: fused BN1 + ReLU -> conv2 (+ BN2 moments) ----
    w2g, tap_groups = _pack_conv2(w2p, _PAIR_CONV2_TAPS)
    y2, stats2, th2 = _bn_relu_conv2_layer(
        y1, w2g, tap_groups, scale1.reshape(1, -1), shift1.reshape(1, -1))
    mean2, var2 = _batch_mean_var(stats2, th2 * W, N * H * W)
    scale2, shift2 = _bn_scale_shift(mean2, var2, params["g2"], params["beta2"])

    # ---- final BN2 + ReLU over flattened lane-dense rows ----
    out = _bn_relu_layer(y2, scale2, shift2, jnp.float32)

    # b1 / b2 intentionally unused: training-mode BatchNorm cancels them.
    return jnp.transpose(out, (0, 3, 1, 2))


def _reference_forward(x_nchw, params):
    """Pure-JAX f32 reference (includes conv bias; BN cancels it)."""
    x = jnp.transpose(x_nchw, (0, 2, 3, 1))

    def layer(h, w, b, g, bt):
        y = jax.lax.conv_general_dilated(
            h, w, window_strides=(1, 1), padding="SAME",
            dimension_numbers=("NHWC", "HWIO", "NHWC")) + b
        m = jnp.mean(y, axis=(0, 1, 2))
        v = jnp.mean((y - m) ** 2, axis=(0, 1, 2))
        return jnp.maximum((y - m) * jax.lax.rsqrt(v + EPS) * g + bt, 0.0)

    h = layer(x, params["w1"], params["b1"], params["g1"], params["beta1"])
    y = layer(h, params["w2"], params["b2"], params["g2"], params["beta2"])
    return jnp.transpose(y, (0, 3, 1, 2))


if __name__ == "__main__":
    key = jax.random.PRNGKey(0)
    kx, kp = jax.random.split(key)
    x = jax.random.normal(kx, (2, 3, 16, 16), jnp.float32)  # NCHW, like PyTorch
    params = init_params(kp)

    out = simple_model_forward(x, params)
    jax.block_until_ready(out)

    assert out.shape == (2, 128, 16, 16), out.shape
    assert out.dtype == jnp.float32
    assert bool(jnp.all(out >= 0.0))  # post-ReLU

    ref = _reference_forward(x, params)
    err = float(jnp.max(jnp.abs(out - ref)))
    assert err < 0.15, f"max abs err vs f32 reference: {err}"
    print("KERNEL_OK")
</pallas_src>

<mosaic_0001>
module attributes {stable_mosaic.version = 11 : i64} {
  func.func @_conv1_packed_kernel(%arg0: i32, %arg1: i32, %arg2: memref<1x16x16x32xbf16, #tpu.memory_space<vmem>>, %arg3: memref<32x128xbf16, #tpu.memory_space<vmem>>, %arg4: memref<1x16x16x128xbf16, #tpu.memory_space<vmem>>, %arg5: memref<1x1x2x128xf32, #tpu.memory_space<vmem>>) attributes {dimension_semantics = [#tpu.dimension_semantics<parallel>, #tpu.dimension_semantics<parallel>], iteration_bounds = array<i64: 2, 1>, scalar_prefetch = 0 : i64, scratch_operands = 0 : i64, tpu.core_type = #tpu.core_type<tc>, window_params = [{transform_indices = @transform_0, window_bounds = array<i64: 1, 16, 16, 32>}, {pipeline_mode = #tpu.pipeline_mode<synchronous>, transform_indices = @transform_1, window_bounds = array<i64: 32, 128>}, {transform_indices = @transform_2, window_bounds = array<i64: 1, 16, 16, 128>}, {transform_indices = @transform_3, window_bounds = array<i64: 1, 1, 2, 128>}]} {
    %c0 = arith.constant 0 : index
    %c0_0 = arith.constant 0 : index
    %c0_1 = arith.constant 0 : index
    %c0_2 = arith.constant 0 : index
    %0 = vector.load %arg2[%c0, %c0_0, %c0_1, %c0_2] : memref<1x16x16x32xbf16, #tpu.memory_space<vmem>>, vector<1x16x16x32xbf16>
    %1 = vector.shape_cast %0 : vector<1x16x16x32xbf16> to vector<256x32xbf16>
    %c0_3 = arith.constant 0 : index
    %c0_4 = arith.constant 0 : index
    %2 = vector.load %arg3[%c0_3, %c0_4] : memref<32x128xbf16, #tpu.memory_space<vmem>>, vector<32x128xbf16>
    %cst = arith.constant dense<0.000000e+00> : vector<256x128xf32>
    %3 = tpu.matmul %1, %2, %cst {dimension_numbers = #tpu.dot_dimension_numbers<[1], [0], [0], [1], [0, 0, 1, 1], [], []>} : vector<256x32xbf16>, vector<32x128xbf16>, vector<256x128xf32> -> vector<256x128xf32>
    %4 = vector.shape_cast %3 : vector<256x128xf32> to vector<1x16x16x128xf32>
    %5 = arith.truncf %4 : vector<1x16x16x128xf32> to vector<1x16x16x128xbf16>
    %c0_5 = arith.constant 0 : index
    %c0_6 = arith.constant 0 : index
    %c0_7 = arith.constant 0 : index
    %c0_8 = arith.constant 0 : index
    %6 = vector.load %arg4[%c0_5, %c0_6, %c0_7, %c0_8] : memref<1x16x16x128xbf16, #tpu.memory_space<vmem>>, vector<1x16x16x128xbf16>
    tpu.vector_store %arg4[%c0_5, %c0_6, %c0_7, %c0_8], %5 {strides = array<i32>} : memref<1x16x16x128xbf16, #tpu.memory_space<vmem>>, vector<1x16x16x128xbf16>,
    %cst_9 = arith.constant dense<0.000000e+00> : vector<128xf32>
    %7 = vector.multi_reduction <add>, %3, %cst_9 [0] : vector<256x128xf32> to vector<128xf32>
    %8 = vector.shape_cast %7 : vector<128xf32> to vector<1x128xf32>
    %cst_10 = arith.constant 3.906250e-03 : f32
    %9 = vector.broadcast %cst_10 : f32 to vector<1x128xf32>
    %10 = arith.mulf %8, %9 : vector<1x128xf32>
    %11 = vector.broadcast %10 : vector<1x128xf32> to vector<256x128xf32>
    %12 = arith.subf %3, %11 : vector<256x128xf32>
    %13 = arith.mulf %12, %12 : vector<256x128xf32>
    %cst_11 = arith.constant dense<0.000000e+00> : vector<128xf32>
    %14 = vector.multi_reduction <add>, %13, %cst_11 [0] : vector<256x128xf32> to vector<128xf32>
    %15 = vector.shape_cast %14 : vector<128xf32> to vector<1x128xf32>
    %c0_12 = arith.constant 0 : index
    %c0_13 = arith.constant 0 : index
    %c0_14 = arith.constant 0 : index
    %c0_15 = arith.constant 0 : index
    %16 = vector.load %arg5[%c0_12, %c0_13, %c0_14, %c0_15] : memref<1x1x2x128xf32, #tpu.memory_space<vmem>>, vector<1x1x1x128xf32>
    %17 = vector.shape_cast %16 : vector<1x1x1x128xf32> to vector<1x128xf32>
    %18 = vector.shape_cast %8 : vector<1x128xf32> to vector<1x1x1x128xf32>
    tpu.vector_store %arg5[%c0_12, %c0_13, %c0_14, %c0_15], %18 {strides = array<i32>} : memref<1x1x2x128xf32, #tpu.memory_space<vmem>>, vector<1x1x1x128xf32>,
    %c0_16 = arith.constant 0 : index
    %c0_17 = arith.constant 0 : index
    %c1 = arith.constant 1 : index
    %c0_18 = arith.constant 0 : index
    %19 = vector.load %arg5[%c0_16, %c0_17, %c1, %c0_18] : memref<1x1x2x128xf32, #tpu.memory_space<vmem>>, vector<1x1x1x128xf32>
    %20 = vector.shape_cast %19 : vector<1x1x1x128xf32> to vector<1x128xf32>
    %21 = vector.shape_cast %15 : vector<1x128xf32> to vector<1x1x1x128xf32>
    tpu.vector_store %arg5[%c0_16, %c0_17, %c1, %c0_18], %21 {strides = array<i32>} : memref<1x1x2x128xf32, #tpu.memory_space<vmem>>, vector<1x1x1x128xf32>,
    return
  }
  func.func @transform_0(%arg0: i32, %arg1: i32) -> (i32, i32, i32, i32) {
    %c0_i32 = arith.constant 0 : i32
    %c0_i32_0 = arith.constant 0 : i32
    %c0_i32_1 = arith.constant 0 : i32
    return %arg0, %arg1, %c0_i32, %c0_i32_0 : i32, i32, i32, i32
  }
  func.func @transform_1(%arg0: i32, %arg1: i32) -> (i32, i32) {
    %c0_i32 = arith.constant 0 : i32
    %c0_i32_0 = arith.constant 0 : i32
    %c0_i32_1 = arith.constant 0 : i32
    return %c0_i32, %c0_i32_0 : i32, i32
  }
  func.func @transform_2(%arg0: i32, %arg1: i32) -> (i32, i32, i32, i32) {
    %c0_i32 = arith.constant 0 : i32
    %c0_i32_0 = arith.constant 0 : i32
    %c0_i32_1 = arith.constant 0 : i32
    return %arg0, %arg1, %c0_i32, %c0_i32_0 : i32, i32, i32, i32
  }
  func.func @transform_3(%arg0: i32, %arg1: i32) -> (i32, i32, i32, i32) {
    %c0_i32 = arith.constant 0 : i32
    %c0_i32_0 = arith.constant 0 : i32
    %c0_i32_1 = arith.constant 0 : i32
    return %arg0, %arg1, %c0_i32, %c0_i32_0 : i32, i32, i32, i32
  }
}

module attributes {stable_mosaic.version = 11 : i64} {
  func.func @kernel(%arg0: i32, %arg1: i32, %arg2: memref<1x16x16x128xbf16, #tpu.memory_space<vmem>>, %arg3: memref<9x128x128xbf16, #tpu.memory_space<vmem>>, %arg4: memref<1x128xf32, #tpu.memory_space<vmem>>, %arg5: memref<1x128xf32, #tpu.memory_space<vmem>>, %arg6: memref<1x16x16x128xbf16, #tpu.memory_space<vmem>>, %arg7: memref<1x1x2x128xf32, #tpu.memory_space<vmem>>, %arg8: memref<18x18x128xbf16, #tpu.memory_space<vmem>>) attributes {dimension_semantics = [#tpu.dimension_semantics<parallel>, #tpu.dimension_semantics<arbitrary>], iteration_bounds = array<i64: 2, 1>, scalar_prefetch = 0 : i64, scratch_operands = 1 : i64, tpu.core_type = #tpu.core_type<tc>, window_params = [{transform_indices = @transform_0, window_bounds = array<i64: 1, 16, 16, 128>}, {pipeline_mode = #tpu.pipeline_mode<synchronous>, transform_indices = @transform_1, window_bounds = array<i64: 9, 128, 128>}, {pipeline_mode = #tpu.pipeline_mode<synchronous>, transform_indices = @transform_2, window_bounds = array<i64: 1, 128>}, {pipeline_mode = #tpu.pipeline_mode<synchronous>, transform_indices = @transform_3, window_bounds = array<i64: 1, 128>}, {transform_indices = @transform_4, window_bounds = array<i64: 1, 16, 16, 128>}, {transform_indices = @transform_5, window_bounds = array<i64: 1, 1, 2, 128>}]} {
    %c0_i32 = arith.constant 0 : i32
    %0 = arith.cmpi eq, %arg1, %c0_i32 : i32
    %1 = arith.extui %0 : i1 to i32
    %c0_i32_0 = arith.constant 0 : i32
    %2 = arith.cmpi ne, %1, %c0_i32_0 : i32
    scf.if %2 {
      %cst_68 = arith.constant 0.000000e+00 : bf16
      %96 = vector.broadcast %cst_68 : bf16 to vector<18x18x128xbf16>
      %c0_69 = arith.constant 0 : index
      %c0_70 = arith.constant 0 : index
      %c0_71 = arith.constant 0 : index
      %97 = vector.load %arg8[%c0_69, %c0_70, %c0_71] : memref<18x18x128xbf16, #tpu.memory_space<vmem>>, vector<18x18x128xbf16>
      tpu.vector_store %arg8[%c0_69, %c0_70, %c0_71], %96 {strides = array<i32>} : memref<18x18x128xbf16, #tpu.memory_space<vmem>>, vector<18x18x128xbf16>,
      %c0_72 = arith.constant 0 : index
      %c0_73 = arith.constant 0 : index
      %c0_74 = arith.constant 0 : index
      %c0_75 = arith.constant 0 : index
      %98 = vector.load %arg2[%c0_72, %c0_73, %c0_74, %c0_75] : memref<1x16x16x128xbf16, #tpu.memory_space<vmem>>, vector<1x16x16x128xbf16>
      %99 = vector.shape_cast %98 : vector<1x16x16x128xbf16> to vector<16x16x128xbf16>
      %100 = arith.extf %99 : vector<16x16x128xbf16> to vector<16x16x128xf32>
      %c0_76 = arith.constant 0 : index
      %c0_77 = arith.constant 0 : index
      %101 = vector.load %arg4[%c0_76, %c0_77] : memref<1x128xf32, #tpu.memory_space<vmem>>, vector<1x128xf32>
      %102 = vector.shape_cast %101 : vector<1x128xf32> to vector<1x1x128xf32>
      %103 = vector.broadcast %102 : vector<1x1x128xf32> to vector<16x16x128xf32>
      %104 = arith.mulf %100, %103 : vector<16x16x128xf32>
      %c0_78 = arith.constant 0 : index
      %c0_79 = arith.constant 0 : index
      %105 = vector.load %arg5[%c0_78, %c0_79] : memref<1x128xf32, #tpu.memory_space<vmem>>, vector<1x128xf32>
      %106 = vector.shape_cast %105 : vector<1x128xf32> to vector<1x1x128xf32>
      %107 = vector.broadcast %106 : vector<1x1x128xf32> to vector<16x16x128xf32>
      %108 = arith.addf %104, %107 : vector<16x16x128xf32>
      %cst_80 = arith.constant 0.000000e+00 : f32
      %109 = vector.broadcast %cst_80 : f32 to vector<16x16x128xf32>
      %110 = arith.maximumf %108, %109 : vector<16x16x128xf32>
      %111 = arith.truncf %110 : vector<16x16x128xf32> to vector<16x16x128xbf16>
      %c1_81 = arith.constant 1 : index
      %c1_82 = arith.constant 1 : index
      %c0_83 = arith.constant 0 : index
      %112 = vector.load %arg8[%c1_81, %c1_82, %c0_83] : memref<18x18x128xbf16, #tpu.memory_space<vmem>>, vector<16x16x128xbf16>
      tpu.vector_store %arg8[%c1_81, %c1_82, %c0_83], %111 {strides = array<i32>} : memref<18x18x128xbf16, #tpu.memory_space<vmem>>, vector<16x16x128xbf16>,
    } else {
    }
    %c16_i32 = arith.constant 16 : i32
    %3 = arith.muli %arg1, %c16_i32 : i32
    %4 = tpu.assume_multiple %3, 8 : i32
    %cst = arith.constant 0.000000e+00 : f32
    %5 = vector.broadcast %cst : f32 to vector<256x128xf32>
    %c0_i32_1 = arith.constant 0 : i32
    %6 = arith.addi %4, %c0_i32_1 : i32
    %7 = arith.index_cast %6 : i32 to index
    %c0 = arith.constant 0 : index
    %c0_2 = arith.constant 0 : index
    %8 = vector.load %arg8[%7, %c0, %c0_2] : memref<18x18x128xbf16, #tpu.memory_space<vmem>>, vector<16x16x128xbf16>
    %9 = vector.shape_cast %8 : vector<16x16x128xbf16> to vector<256x128xbf16>
    %c0_3 = arith.constant 0 : index
    %c0_4 = arith.constant 0 : index
    %c0_5 = arith.constant 0 : index
    %10 = vector.load %arg3[%c0_3, %c0_4, %c0_5] : memref<9x128x128xbf16, #tpu.memory_space<vmem>>, vector<1x128x128xbf16>
    %11 = vector.shape_cast %10 : vector<1x128x128xbf16> to vector<128x128xbf16>
    %cst_6 = arith.constant dense<0.000000e+00> : vector<256x128xf32>
    %12 = tpu.matmul %9, %11, %cst_6 {dimension_numbers = #tpu.dot_dimension_numbers<[1], [0], [0], [1], [0, 0, 1, 1], [], []>} : vector<256x128xbf16>, vector<128x128xbf16>, vector<256x128xf32> -> vector<256x128xf32>
    %13 = arith.addf %5, %12 : vector<256x128xf32>
    %c0_i32_7 = arith.constant 0 : i32
    %14 = arith.addi %4, %c0_i32_7 : i32
    %15 = arith.index_cast %14 : i32 to index
    %c1 = arith.constant 1 : index
    %c0_8 = arith.constant 0 : index
    %16 = vector.load %arg8[%15, %c1, %c0_8] : memref<18x18x128xbf16, #tpu.memory_space<vmem>>, vector<16x16x128xbf16>
    %17 = vector.shape_cast %16 : vector<16x16x128xbf16> to vector<256x128xbf16>
    %c1_9 = arith.constant 1 : index
    %c0_10 = arith.constant 0 : index
    %c0_11 = arith.constant 0 : index
    %18 = vector.load %arg3[%c1_9, %c0_10, %c0_11] : memref<9x128x128xbf16, #tpu.memory_space<vmem>>, vector<1x128x128xbf16>
    %19 = vector.shape_cast %18 : vector<1x128x128xbf16> to vector<128x128xbf16>
    %cst_12 = arith.constant dense<0.000000e+00> : vector<256x128xf32>
    %20 = tpu.matmul %17, %19, %cst_12 {dimension_numbers = #tpu.dot_dimension_numbers<[1], [0], [0], [1], [0, 0, 1, 1], [], []>} : vector<256x128xbf16>, vector<128x128xbf16>, vector<256x128xf32> -> vector<256x128xf32>
    %21 = arith.addf %13, %20 : vector<256x128xf32>
    %c0_i32_13 = arith.constant 0 : i32
    %22 = arith.addi %4, %c0_i32_13 : i32
    %23 = arith.index_cast %22 : i32 to index
    %c2 = arith.constant 2 : index
    %c0_14 = arith.constant 0 : index
    %24 = vector.load %arg8[%23, %c2, %c0_14] : memref<18x18x128xbf16, #tpu.memory_space<vmem>>, vector<16x16x128xbf16>
    %25 = vector.shape_cast %24 : vector<16x16x128xbf16> to vector<256x128xbf16>
    %c2_15 = arith.constant 2 : index
    %c0_16 = arith.constant 0 : index
    %c0_17 = arith.constant 0 : index
    %26 = vector.load %arg3[%c2_15, %c0_16, %c0_17] : memref<9x128x128xbf16, #tpu.memory_space<vmem>>, vector<1x128x128xbf16>
    %27 = vector.shape_cast %26 : vector<1x128x128xbf16> to vector<128x128xbf16>
    %cst_18 = arith.constant dense<0.000000e+00> : vector<256x128xf32>
    %28 = tpu.matmul %25, %27, %cst_18 {dimension_numbers = #tpu.dot_dimension_numbers<[1], [0], [0], [1], [0, 0, 1, 1], [], []>} : vector<256x128xbf16>, vector<128x128xbf16>, vector<256x128xf32> -> vector<256x128xf32>
    %29 = arith.addf %21, %28 : vector<256x128xf32>
    %c1_i32 = arith.constant 1 : i32
    %30 = arith.addi %4, %c1_i32 : i32
    %31 = arith.index_cast %30 : i32 to index
    %c0_19 = arith.constant 0 : index
    %c0_20 = arith.constant 0 : index
    %32 = vector.load %arg8[%31, %c0_19, %c0_20] : memref<18x18x128xbf16, #tpu.memory_space<vmem>>, vector<16x16x128xbf16>
    %33 = vector.shape_cast %32 : vector<16x16x128xbf16> to vector<256x128xbf16>
    %c3 = arith.constant 3 : index
    %c0_21 = arith.constant 0 : index
    %c0_22 = arith.constant 0 : index
    %34 = vector.load %arg3[%c3, %c0_21, %c0_22] : memref<9x128x128xbf16, #tpu.memory_space<vmem>>, vector<1x128x128xbf16>
    %35 = vector.shape_cast %34 : vector<1x128x128xbf16> to vector<128x128xbf16>
    %cst_23 = arith.constant dense<0.000000e+00> : vector<256x128xf32>
    %36 = tpu.matmul %33, %35, %cst_23 {dimension_numbers = #tpu.dot_dimension_numbers<[1], [0], [0], [1], [0, 0, 1, 1], [], []>} : vector<256x128xbf16>, vector<128x128xbf16>, vector<256x128xf32> -> vector<256x128xf32>
    %37 = arith.addf %29, %36 : vector<256x128xf32>
    %c1_i32_24 = arith.constant 1 : i32
    %38 = arith.addi %4, %c1_i32_24 : i32
    %39 = arith.index_cast %38 : i32 to index
    %c1_25 = arith.constant 1 : index
    %c0_26 = arith.constant 0 : index
    %40 = vector.load %arg8[%39, %c1_25, %c0_26] : memref<18x18x128xbf16, #tpu.memory_space<vmem>>, vector<16x16x128xbf16>
    %41 = vector.shape_cast %40 : vector<16x16x128xbf16> to vector<256x128xbf16>
    %c4 = arith.constant 4 : index
    %c0_27 = arith.constant 0 : index
    %c0_28 = arith.constant 0 : index
    %42 = vector.load %arg3[%c4, %c0_27, %c0_28] : memref<9x128x128xbf16, #tpu.memory_space<vmem>>, vector<1x128x128xbf16>
    %43 = vector.shape_cast %42 : vector<1x128x128xbf16> to vector<128x128xbf16>
    %cst_29 = arith.constant dense<0.000000e+00> : vector<256x128xf32>
    %44 = tpu.matmul %41, %43, %cst_29 {dimension_numbers = #tpu.dot_dimension_numbers<[1], [0], [0], [1], [0, 0, 1, 1], [], []>} : vector<256x128xbf16>, vector<128x128xbf16>, vector<256x128xf32> -> vector<256x128xf32>
    %45 = arith.addf %37, %44 : vector<256x128xf32>
    %c1_i32_30 = arith.constant 1 : i32
    %46 = arith.addi %4, %c1_i32_30 : i32
    %47 = arith.index_cast %46 : i32 to index
    %c2_31 = arith.constant 2 : index
    %c0_32 = arith.constant 0 : index
    %48 = vector.load %arg8[%47, %c2_31, %c0_32] : memref<18x18x128xbf16, #tpu.memory_space<vmem>>, vector<16x16x128xbf16>
    %49 = vector.shape_cast %48 : vector<16x16x128xbf16> to vector<256x128xbf16>
    %c5 = arith.constant 5 : index
    %c0_33 = arith.constant 0 : index
    %c0_34 = arith.constant 0 : index
    %50 = vector.load %arg3[%c5, %c0_33, %c0_34] : memref<9x128x128xbf16, #tpu.memory_space<vmem>>, vector<1x128x128xbf16>
    %51 = vector.shape_cast %50 : vector<1x128x128xbf16> to vector<128x128xbf16>
    %cst_35 = arith.constant dense<0.000000e+00> : vector<256x128xf32>
    %52 = tpu.matmul %49, %51, %cst_35 {dimension_numbers = #tpu.dot_dimension_numbers<[1], [0], [0], [1], [0, 0, 1, 1], [], []>} : vector<256x128xbf16>, vector<128x128xbf16>, vector<256x128xf32> -> vector<256x128xf32>
    %53 = arith.addf %45, %52 : vector<256x128xf32>
    %c2_i32 = arith.constant 2 : i32
    %54 = arith.addi %4, %c2_i32 : i32
    %55 = arith.index_cast %54 : i32 to index
    %c0_36 = arith.constant 0 : index
    %c0_37 = arith.constant 0 : index
    %56 = vector.load %arg8[%55, %c0_36, %c0_37] : memref<18x18x128xbf16, #tpu.memory_space<vmem>>, vector<16x16x128xbf16>
    %57 = vector.shape_cast %56 : vector<16x16x128xbf16> to vector<256x128xbf16>
    %c6 = arith.constant 6 : index
    %c0_38 = arith.constant 0 : index
    %c0_39 = arith.constant 0 : index
    %58 = vector.load %arg3[%c6, %c0_38, %c0_39] : memref<9x128x128xbf16, #tpu.memory_space<vmem>>, vector<1x128x128xbf16>
    %59 = vector.shape_cast %58 : vector<1x128x128xbf16> to vector<128x128xbf16>
    %cst_40 = arith.constant dense<0.000000e+00> : vector<256x128xf32>
    %60 = tpu.matmul %57, %59, %cst_40 {dimension_numbers = #tpu.dot_dimension_numbers<[1], [0], [0], [1], [0, 0, 1, 1], [], []>} : vector<256x128xbf16>, vector<128x128xbf16>, vector<256x128xf32> -> vector<256x128xf32>
    %61 = arith.addf %53, %60 : vector<256x128xf32>
    %c2_i32_41 = arith.constant 2 : i32
    %62 = arith.addi %4, %c2_i32_41 : i32
    %63 = arith.index_cast %62 : i32 to index
    %c1_42 = arith.constant 1 : index
    %c0_43 = arith.constant 0 : index
    %64 = vector.load %arg8[%63, %c1_42, %c0_43] : memref<18x18x128xbf16, #tpu.memory_space<vmem>>, vector<16x16x128xbf16>
    %65 = vector.shape_cast %64 : vector<16x16x128xbf16> to vector<256x128xbf16>
    %c7 = arith.constant 7 : index
    %c0_44 = arith.constant 0 : index
    %c0_45 = arith.constant 0 : index
    %66 = vector.load %arg3[%c7, %c0_44, %c0_45] : memref<9x128x128xbf16, #tpu.memory_space<vmem>>, vector<1x128x128xbf16>
    %67 = vector.shape_cast %66 : vector<1x128x128xbf16> to vector<128x128xbf16>
    %cst_46 = arith.constant dense<0.000000e+00> : vector<256x128xf32>
    %68 = tpu.matmul %65, %67, %cst_46 {dimension_numbers = #tpu.dot_dimension_numbers<[1], [0], [0], [1], [0, 0, 1, 1], [], []>} : vector<256x128xbf16>, vector<128x128xbf16>, vector<256x128xf32> -> vector<256x128xf32>
    %69 = arith.addf %61, %68 : vector<256x128xf32>
    %c2_i32_47 = arith.constant 2 : i32
    %70 = arith.addi %4, %c2_i32_47 : i32
    %71 = arith.index_cast %70 : i32 to index
    %c2_48 = arith.constant 2 : index
    %c0_49 = arith.constant 0 : index
    %72 = vector.load %arg8[%71, %c2_48, %c0_49] : memref<18x18x128xbf16, #tpu.memory_space<vmem>>, vector<16x16x128xbf16>
    %73 = vector.shape_cast %72 : vector<16x16x128xbf16> to vector<256x128xbf16>
    %c8 = arith.constant 8 : index
    %c0_50 = arith.constant 0 : index
    %c0_51 = arith.constant 0 : index
    %74 = vector.load %arg3[%c8, %c0_50, %c0_51] : memref<9x128x128xbf16, #tpu.memory_space<vmem>>, vector<1x128x128xbf16>
    %75 = vector.shape_cast %74 : vector<1x128x128xbf16> to vector<128x128xbf16>
    %cst_52 = arith.constant dense<0.000000e+00> : vector<256x128xf32>
    %76 = tpu.matmul %73, %75, %cst_52 {dimension_numbers = #tpu.dot_dimension_numbers<[1], [0], [0], [1], [0, 0, 1, 1], [], []>} : vector<256x128xbf16>, vector<128x128xbf16>, vector<256x128xf32> -> vector<256x128xf32>
    %77 = arith.addf %69, %76 : vector<256x128xf32>
    %78 = vector.shape_cast %77 : vector<256x128xf32> to vector<1x16x16x128xf32>
    %79 = arith.truncf %78 : vector<1x16x16x128xf32> to vector<1x16x16x128xbf16>
    %c0_53 = arith.constant 0 : index
    %c0_54 = arith.constant 0 : index
    %c0_55 = arith.constant 0 : index
    %c0_56 = arith.constant 0 : index
    %80 = vector.load %arg6[%c0_53, %c0_54, %c0_55, %c0_56] : memref<1x16x16x128xbf16, #tpu.memory_space<vmem>>, vector<1x16x16x128xbf16>
    tpu.vector_store %arg6[%c0_53, %c0_54, %c0_55, %c0_56], %79 {strides = array<i32>} : memref<1x16x16x128xbf16, #tpu.memory_space<vmem>>, vector<1x16x16x128xbf16>,
    %cst_57 = arith.constant dense<0.000000e+00> : vector<128xf32>
    %81 = vector.multi_reduction <add>, %77, %cst_57 [0] : vector<256x128xf32> to vector<128xf32>
    %82 = vector.shape_cast %81 : vector<128xf32> to vector<1x128xf32>
    %cst_58 = arith.constant 3.906250e-03 : f32
    %83 = vector.broadcast %cst_58 : f32 to vector<1x128xf32>
    %84 = arith.mulf %82, %83 : vector<1x128xf32>
    %85 = vector.broadcast %84 : vector<1x128xf32> to vector<256x128xf32>
    %86 = arith.subf %77, %85 : vector<256x128xf32>
    %87 = arith.mulf %86, %86 : vector<256x128xf32>
    %cst_59 = arith.constant dense<0.000000e+00> : vector<128xf32>
    %88 = vector.multi_reduction <add>, %87, %cst_59 [0] : vector<256x128xf32> to vector<128xf32>
    %89 = vector.shape_cast %88 : vector<128xf32> to vector<1x128xf32>
    %c0_60 = arith.constant 0 : index
    %c0_61 = arith.constant 0 : index
    %c0_62 = arith.constant 0 : index
    %c0_63 = arith.constant 0 : index
    %90 = vector.load %arg7[%c0_60, %c0_61, %c0_62, %c0_63] : memref<1x1x2x128xf32, #tpu.memory_space<vmem>>, vector<1x1x1x128xf32>
    %91 = vector.shape_cast %90 : vector<1x1x1x128xf32> to vector<1x128xf32>
    %92 = vector.shape_cast %82 : vector<1x128xf32> to vector<1x1x1x128xf32>
    tpu.vector_store %arg7[%c0_60, %c0_61, %c0_62, %c0_63], %92 {strides = array<i32>} : memref<1x1x2x128xf32, #tpu.memory_space<vmem>>, vector<1x1x1x128xf32>,
    %c0_64 = arith.constant 0 : index
    %c0_65 = arith.constant 0 : index
    %c1_66 = arith.constant 1 : index
    %c0_67 = arith.constant 0 : index
    %93 = vector.load %arg7[%c0_64, %c0_65, %c1_66, %c0_67] : memref<1x1x2x128xf32, #tpu.memory_space<vmem>>, vector<1x1x1x128xf32>
    %94 = vector.shape_cast %93 : vector<1x1x1x128xf32> to vector<1x128xf32>
    %95 = vector.shape_cast %89 : vector<1x128xf32> to vector<1x1x1x128xf32>
    tpu.vector_store %arg7[%c0_64, %c0_65, %c1_66, %c0_67], %95 {strides = array<i32>} : memref<1x1x2x128xf32, #tpu.memory_space<vmem>>, vector<1x1x1x128xf32>,
    return
  }
  func.func @transform_0(%arg0: i32, %arg1: i32) -> (i32, i32, i32, i32) {
    %c0_i32 = arith.constant 0 : i32
    %c0_i32_0 = arith.constant 0 : i32
    %c0_i32_1 = arith.constant 0 : i32
    %c0_i32_2 = arith.constant 0 : i32
    return %arg0, %c0_i32, %c0_i32_0, %c0_i32_1 : i32, i32, i32, i32
  }
  func.func @transform_1(%arg0: i32, %arg1: i32) -> (i32, i32, i32) {
    %c0_i32 = arith.constant 0 : i32
    %c0_i32_0 = arith.constant 0 : i32
    %c0_i32_1 = arith.constant 0 : i32
    %c0_i32_2 = arith.constant 0 : i32
    return %c0_i32, %c0_i32_0, %c0_i32_1 : i32, i32, i32
  }
  func.func @transform_2(%arg0: i32, %arg1: i32) -> (i32, i32) {
    %c0_i32 = arith.constant 0 : i32
    %c0_i32_0 = arith.constant 0 : i32
    %c0_i32_1 = arith.constant 0 : i32
    return %c0_i32, %c0_i32_0 : i32, i32
  }
  func.func @transform_3(%arg0: i32, %arg1: i32) -> (i32, i32) {
    %c0_i32 = arith.constant 0 : i32
    %c0_i32_0 = arith.constant 0 : i32
    %c0_i32_1 = arith.constant 0 : i32
    return %c0_i32, %c0_i32_0 : i32, i32
  }
  func.func @transform_4(%arg0: i32, %arg1: i32) -> (i32, i32, i32, i32) {
    %c0_i32 = arith.constant 0 : i32
    %c0_i32_0 = arith.constant 0 : i32
    %c0_i32_1 = arith.constant 0 : i32
    return %arg0, %arg1, %c0_i32, %c0_i32_0 : i32, i32, i32, i32
  }
  func.func @transform_5(%arg0: i32, %arg1: i32) -> (i32, i32, i32, i32) {
    %c0_i32 = arith.constant 0 : i32
    %c0_i32_0 = arith.constant 0 : i32
    %c0_i32_1 = arith.constant 0 : i32
    return %arg0, %arg1, %c0_i32, %c0_i32_0 : i32, i32, i32, i32
  }
}

module attributes {stable_mosaic.version = 11 : i64} {
  func.func @_bn_relu_rows_kernel(%arg0: i32, %arg1: memref<512x128xbf16, #tpu.memory_space<vmem>>, %arg2: memref<1x128xf32, #tpu.memory_space<vmem>>, %arg3: memref<1x128xf32, #tpu.memory_space<vmem>>, %arg4: memref<512x128xf32, #tpu.memory_space<vmem>>) attributes {dimension_semantics = [#tpu.dimension_semantics<parallel>], iteration_bounds = array<i64: 1>, scalar_prefetch = 0 : i64, scratch_operands = 0 : i64, tpu.core_type = #tpu.core_type<tc>, window_params = [{transform_indices = @transform_0, window_bounds = array<i64: 512, 128>}, {pipeline_mode = #tpu.pipeline_mode<synchronous>, transform_indices = @transform_1, window_bounds = array<i64: 1, 128>}, {pipeline_mode = #tpu.pipeline_mode<synchronous>, transform_indices = @transform_2, window_bounds = array<i64: 1, 128>}, {transform_indices = @transform_3, window_bounds = array<i64: 512, 128>}]} {
    %c0 = arith.constant 0 : index
    %c0_0 = arith.constant 0 : index
    %0 = vector.load %arg1[%c0, %c0_0] : memref<512x128xbf16, #tpu.memory_space<vmem>>, vector<512x128xbf16>
    %1 = arith.extf %0 : vector<512x128xbf16> to vector<512x128xf32>
    %c0_1 = arith.constant 0 : index
    %c0_2 = arith.constant 0 : index
    %2 = vector.load %arg2[%c0_1, %c0_2] : memref<1x128xf32, #tpu.memory_space<vmem>>, vector<1x128xf32>
    %3 = vector.broadcast %2 : vector<1x128xf32> to vector<512x128xf32>
    %4 = arith.mulf %1, %3 : vector<512x128xf32>
    %c0_3 = arith.constant 0 : index
    %c0_4 = arith.constant 0 : index
    %5 = vector.load %arg3[%c0_3, %c0_4] : memref<1x128xf32, #tpu.memory_space<vmem>>, vector<1x128xf32>
    %6 = vector.broadcast %5 : vector<1x128xf32> to vector<512x128xf32>
    %7 = arith.addf %4, %6 : vector<512x128xf32>
    %cst = arith.constant 0.000000e+00 : f32
    %8 = vector.broadcast %cst : f32 to vector<512x128xf32>
    %9 = arith.maximumf %7, %8 : vector<512x128xf32>
    %c0_5 = arith.constant 0 : index
    %c0_6 = arith.constant 0 : index
    %10 = vector.load %arg4[%c0_5, %c0_6] : memref<512x128xf32, #tpu.memory_space<vmem>>, vector<512x128xf32>
    tpu.vector_store %arg4[%c0_5, %c0_6], %9 {strides = array<i32>} : memref<512x128xf32, #tpu.memory_space<vmem>>, vector<512x128xf32>,
    return
  }
  func.func @transform_0(%arg0: i32) -> (i32, i32) {
    %c0_i32 = arith.constant 0 : i32
    %c0_i32_0 = arith.constant 0 : i32
    return %arg0, %c0_i32 : i32, i32
  }
  func.func @transform_1(%arg0: i32) -> (i32, i32) {
    %c0_i32 = arith.constant 0 : i32
    %c0_i32_0 = arith.constant 0 : i32
    %c0_i32_1 = arith.constant 0 : i32
    return %c0_i32, %c0_i32_0 : i32, i32
  }
  func.func @transform_2(%arg0: i32) -> (i32, i32) {
    %c0_i32 = arith.constant 0 : i32
    %c0_i32_0 = arith.constant 0 : i32
    %c0_i32_1 = arith.constant 0 : i32
    return %c0_i32, %c0_i32_0 : i32, i32
  }
  func.func @transform_3(%arg0: i32) -> (i32, i32) {
    %c0_i32 = arith.constant 0 : i32
    %c0_i32_0 = arith.constant 0 : i32
    return %arg0, %c0_i32 : i32, i32
  }
}

</mosaic_0001>

<llo_original>
// kernel: simple_model_forward.3
$region0: #{simple_model_forward.3}
  #allocation0 [shape = 'u32[]', space=smem, size = 0x4, offset = 0x4, fixed_abs, tag = 'smem constant byte address 0x4 - core index']
  #allocation1 [shape = 'u32[144,128]{1,0:T(1,128)}', space=vmem, size = 0x12000, scoped, tag = 'internal scratch']
  %s0 = inlined_call_operand.vmem [shape: bf16[2,16,16,32], index: 0, kind: input, shape index: {}]
  %s1 = inlined_call_operand.vmem [shape: bf16[32,128], index: 1, kind: input, shape index: {}]
  %s2 = inlined_call_operand.vmem [shape: bf16[2,16,16,128], index: 2, kind: output, shape index: {0}]
  %s3 = inlined_call_operand.vmem [shape: f32[2,1,2,128], index: 3, kind: output, shape index: {1}]
  %4 = xla_tuple %s2, %s3
  %s5 = sld [smem:[#allocation0]]
  $region49: #{simple_model_forward.3} parent=0
    _
  %s7 = ssub.s32 1, %s5
  %s8 = scalar_select 0, %s7, %s5
  loop: start=0, step=1, limit=4
  $region2: #{simple_model_forward.3} parent=0 // loop_pre_header
    _
  $region3: #{simple_model_forward.3} parent=0 // loop_header
    %s10 = sphi 0, %s14
    %p11 = scmp.ge.s32.totalorder %s10, 4
    %s17 = sphi 0, %s29
    %s18 = sphi 0, %s25
    %s19 = sphi 0, %s17
    %s20 = sphi 0, %s18
    %s21 = sphi 0, %s19
    %s22 = sphi 0, %s20
    %s34 = sphi 0, %s36
    %s37 = sphi 0, %s34
    %s38 = sphi 0, %s37
    %s54 = sphi 0, %s38
    %s58 = sphi 0, %s58
    %s60 = sphi 0, %s58
    %s61 = sphi 0, %s60
    %s75 = sphi 0, %s61
    %s83 = sphi 0, %s85
    %s86 = sphi 0, %s83
    %s87 = sphi 0, %s86
    %s103 = sphi 0, %s87
    %s111 = sphi 0, %s113
    %s114 = sphi 0, %s111
    %s115 = sphi 0, %s114
    %s131 = sphi 0, %s115
  $region4: #{simple_model_forward.3} parent=0 // loop_header_branch
    %13 = sbr.rel (%p11) target = $region8
  $region5: #{simple_model_forward.3} parent=0 // loop_body
    %s15 = ssub.s32 %s10, 1
    %s16 = ssub.s32 %s10, 2
    %s23 = sadd.s32 1, %s18
    %p24 = scmp.ge.s32.totalorder %s23, 1
    %s25 = scalar_select %p24, 0, %s23
    %s26 = sadd.s32 1, %s17
    %s27 = scalar_select %p24, %s26, %s17
    %p28 = scmp.ge.s32.totalorder %s27, 2
    %s29 = scalar_select %p28, 0, %s27
    %s30 = ssub.s32 %s17, %s29
    %s31 = ssub.s32 %s18, %s25
    %s32 = sor.u32 %s30, %s31
    %p33 = scmp.eq.s32.totalorder %s32, 0
    %s35 = sadd.s32 %s34, 1
    %s36 = scalar_select %p33, %s34, %s35
    %p39 = pneg %p33
    %p40 = scmp.eq.s32.totalorder %s10, 1
    %p41 = por %p39, %p40
    %p42 = scmp.ne.s32.totalorder %s34, %s37
    %p43 = scmp.eq.s32.totalorder %s10, 0
    %p44 = por %p42, %p43
    %p45 = scmp.ne.s32.totalorder %s34, %s37
    %p46 = scmp.eq.s32.totalorder %s15, 1
    %p47 = por %p45, %p46
    %p48 = scmp.ne.s32.totalorder %s37, %s38
    %p49 = scmp.eq.s32.totalorder %s15, 0
    %p50 = por %p48, %p49
    %p51 = scmp.ne.s32.totalorder %s37, %s38
    %p52 = scmp.eq.s32.totalorder %s16, 1
    %p53 = por %p51, %p52
    %p55 = scmp.ne.s32.totalorder %s38, %s54
    %p56 = scmp.eq.s32.totalorder %s16, 0
    %p57 = por %p55, %p56
    %s59 = sadd.s32 %s58, 1
    %p62 = scmp.eq.s32.totalorder %s10, 1
    %p63 = scmp.ne.s32.totalorder %s58, %s60
    %p64 = scmp.eq.s32.totalorder %s10, 0
    %p65 = por %p63, %p64
    %p66 = scmp.ne.s32.totalorder %s58, %s60
    %p67 = scmp.eq.s32.totalorder %s15, 1
    %p68 = por %p66, %p67
    %p69 = scmp.ne.s32.totalorder %s60, %s61
    %p70 = scmp.eq.s32.totalorder %s15, 0
    %p71 = por %p69, %p70
    %p72 = scmp.ne.s32.totalorder %s60, %s61
    %p73 = scmp.eq.s32.totalorder %s16, 1
    %p74 = por %p72, %p73
    %p76 = scmp.ne.s32.totalorder %s61, %s75
    %p77 = scmp.eq.s32.totalorder %s16, 0
    %p78 = por %p76, %p77
    %s79 = ssub.s32 %s17, %s29
    %s80 = ssub.s32 %s18, %s25
    %s81 = sor.u32 %s79, %s80
    %p82 = scmp.eq.s32.totalorder %s81, 0
    %s84 = sadd.s32 %s83, 1
    %s85 = scalar_select %p82, %s83, %s84
    %p88 = pneg %p82
    %p89 = scmp.eq.s32.totalorder %s10, 1
    %p90 = por %p88, %p89
    %p91 = scmp.ne.s32.totalorder %s83, %s86
    %p92 = scmp.eq.s32.totalorder %s10, 0
    %p93 = por %p91, %p92
    %p94 = scmp.ne.s32.totalorder %s83, %s86
    %p95 = scmp.eq.s32.totalorder %s15, 1
    %p96 = por %p94, %p95
    %p97 = scmp.ne.s32.totalorder %s86, %s87
    %p98 = scmp.eq.s32.totalorder %s15, 0
    %p99 = por %p97, %p98
    %p100 = scmp.ne.s32.totalorder %s86, %s87
    %p101 = scmp.eq.s32.totalorder %s16, 1
    %p102 = por %p100, %p101
    %p104 = scmp.ne.s32.totalorder %s87, %s103
    %p105 = scmp.eq.s32.totalorder %s16, 0
    %p106 = por %p104, %p105
    %s107 = ssub.s32 %s17, %s29
    %s108 = ssub.s32 %s18, %s25
    %s109 = sor.u32 %s107, %s108
    %p110 = scmp.eq.s32.totalorder %s109, 0
    %s112 = sadd.s32 %s111, 1
    %s113 = scalar_select %p110, %s111, %s112
    %p116 = pneg %p110
    %p117 = scmp.eq.s32.totalorder %s10, 1
    %p118 = por %p116, %p117
    %p119 = scmp.ne.s32.totalorder %s111, %s114
    %p120 = scmp.eq.s32.totalorder %s10, 0
    %p121 = por %p119, %p120
    %p122 = scmp.ne.s32.totalorder %s111, %s114
    %p123 = scmp.eq.s32.totalorder %s15, 1
    %p124 = por %p122, %p123
    %p125 = scmp.ne.s32.totalorder %s114, %s115
    %p126 = scmp.eq.s32.totalorder %s15, 0
    %p127 = por %p125, %p126
    %p128 = scmp.ne.s32.totalorder %s114, %s115
    %p129 = scmp.eq.s32.totalorder %s16, 1
    %p130 = por %p128, %p129
    %p132 = scmp.ne.s32.totalorder %s115, %s131
    %p133 = scmp.eq.s32.totalorder %s16, 0
    %p134 = por %p132, %p133
    %p135 = scmp.le.s32.totalorder 1, %s10
    %p136 = scmp.lt.s32.totalorder %s10, 3
    %p137 = pnand %p135, %p136
    %p138 = pneg %p137
    // Predicated region
    $region9: #{simple_model_forward.3} parent=5 // pred_check
      _
    $region10: #{simple_model_forward.3} parent=5 // pred_check_branch
      %140 = sbr.rel (%p137) target = $region12
    $region11: #{simple_model_forward.3} parent=5 // pred_region
      %s141 = ssub.s32 %s10, 1
      // Predicated region
      $region13: #{simple_model_forward.3} parent=11 // pred_check
        %p142 = pneg %p71
      $region14: #{simple_model_forward.3} parent=11 // pred_check_branch
        %144 = sbr.rel (%p142) target = $region16
      $region15: #{simple_model_forward.3} parent=11 // pred_region
        _
      $region16: #{simple_model_forward.3} parent=11 // pred_fallthru
        _
    $region12: #{simple_model_forward.3} parent=5 // pred_fallthru
      _
    %p145 = scmp.lt.s32.totalorder %s10, 2
    // Predicated region
    $region17: #{simple_model_forward.3} parent=5 // pred_check
      %p146 = pneg %p145
    $region18: #{simple_model_forward.3} parent=5 // pred_check_branch
      %148 = sbr.rel (%p146) target = $region20
    $region19: #{simple_model_forward.3} parent=5 // pred_region
      // Predicated region
      $region21: #{simple_model_forward.3} parent=19 // pred_check
        %p149 = pneg %p44
      $region22: #{simple_model_forward.3} parent=19 // pred_check_branch
        %151 = sbr.rel (%p149) target = $region24
      $region23: #{simple_model_forward.3} parent=19 // pred_region
        %s152 = smul.u32 16, %s18
        %p153 = scmp.lt.s32.totalorder %s17, 1
        %s154 = scalar_select %p153, %s17, 1
        %p155 = scmp.lt.s32.totalorder %s152, 15
        %s156 = scalar_select %p155, %s152, 15
        %s157 = smul.addr %s156, 2
        %s158 = smul.addr %s154, 32
        %s159 = sadd.s32 %s157, %s158
        %s160 = smul.addr %s159, 4
        %s161 = scalar_lea.vmem %s0, %s160
        %s162 = smul.u32 16, %s18
      $region24: #{simple_model_forward.3} parent=19 // pred_fallthru
        _
    $region20: #{simple_model_forward.3} parent=5 // pred_fallthru
      _
    %p163 = scmp.le.s32.totalorder 1, %s10
    %p164 = scmp.lt.s32.totalorder %s10, 3
    %p165 = pnand %p163, %p164
    %p166 = pneg %p165
    // Predicated region
    $region25: #{simple_model_forward.3} parent=5 // pred_check
      _
    $region26: #{simple_model_forward.3} parent=5 // pred_check_branch
      %168 = sbr.rel (%p165) target = $region28
    $region27: #{simple_model_forward.3} parent=5 // pred_region
      %s169 = ssub.s32 %s10, 1
      %s170 = smul.u32 16, %s20
      %p171 = scmp.lt.s32.totalorder %s19, 1
      %s172 = scalar_select %p171, %s19, 1
      %p173 = scmp.lt.s32.totalorder %s170, 15
      %s174 = scalar_select %p173, %s170, 15
      %s175 = smul.addr %s174, 2
      %s176 = smul.addr %s172, 32
      %s177 = sadd.s32 %s175, %s176
      %s178 = smul.addr %s177, 4
      %s179 = scalar_lea.vmem %s0, %s178
      %p180 = pneg %p50
      %p181 = pneg %p47
      %p182 = pneg %p71
      %p183 = pneg %p68
      %p184 = pneg %p99
      %p185 = pneg %p96
      %s186 = smul.u32 16, %s20
      %p187 = scmp.lt.s32.totalorder %s19, 1
      %s188 = scalar_select %p187, %s19, 1
      %p189 = scmp.lt.s32.totalorder %s186, 15
      %s190 = scalar_select %p189, %s186, 15
      %s191 = smul.addr %s190, 2
      %s192 = smul.addr %s188, 32
      %s193 = sadd.s32 %s191, %s192
      %s194 = smul.addr %s193, 4
      %s195 = scalar_lea.vmem %s2, %s194
      %p196 = pneg %p127
      %p197 = pneg %p124
      %p198 = scmp.lt.s32.totalorder %s19, 1
      %s199 = scalar_select %p198, %s19, 1
      %p200 = scmp.lt.s32.totalorder %s20, 0
      %s201 = scalar_select %p200, %s20, 0
      %s202 = sadd.s32 %s201, %s199
      %s203 = smul.addr %s202, 2
      %s204 = scalar_lea.vmem %s3, %s203
      %s205 = smul.u32 16, %s20
      %p206 = scmp.lt.s32.totalorder %s19, 1
      %s207 = scalar_select %p206, %s19, 1
      %p208 = scmp.lt.s32.totalorder %s205, 15
      %s209 = scalar_select %p208, %s205, 15
      %s210 = smul.addr %s209, 2
      %s211 = smul.addr %s207, 32
      %s212 = sadd.s32 %s210, %s211
      %s213 = smul.addr %s212, 4
      %s214 = scalar_lea.vmem %s0, %s213
      %s215 = smul.u32 16, %s20
      %s216 = smul.u32 16, %s20
      %p217 = scmp.lt.s32.totalorder %s19, 1
      %s218 = scalar_select %p217, %s19, 1
      %p219 = scmp.lt.s32.totalorder %s216, 15
      %s220 = scalar_select %p219, %s216, 15
      %s221 = smul.addr %s220, 2
      %s222 = smul.addr %s218, 32
      %s223 = sadd.s32 %s221, %s222
      %s224 = smul.addr %s223, 4
      %s225 = scalar_lea.vmem %s2, %s224
      %s226 = smul.u32 16, %s20
      %p227 = scmp.lt.s32.totalorder %s19, 1
      %s228 = scalar_select %p227, %s19, 1
      %p229 = scmp.lt.s32.totalorder %s20, 0
      %s230 = scalar_select %p229, %s20, 0
      %s231 = sadd.s32 %s230, %s228
      %s232 = smul.addr %s231, 2
      %s233 = scalar_lea.vmem %s3, %s232
      %v235 = vld [vmem:[%s214] sm:$0xf]
      %v236 = vld [vmem:[%s214 + $0x4] sm:$0xf]
      %v237 = vld [vmem:[%s214 + $0x8] sm:$0xf]
      %v238 = vld [vmem:[%s214 + $0xc] sm:$0xf]
      %v239 = vld [vmem:[%s214 + $0x10] sm:$0xf]
      %v240 = vld [vmem:[%s214 + $0x14] sm:$0xf]
      %v241 = vld [vmem:[%s214 + $0x18] sm:$0xf]
      %v242 = vld [vmem:[%s214 + $0x1c] sm:$0xf]
      %v243 = vld [vmem:[%s214 + $0x20] sm:$0xf]
      %v244 = vld [vmem:[%s214 + $0x24] sm:$0xf]
      %v245 = vld [vmem:[%s214 + $0x28] sm:$0xf]
      %v246 = vld [vmem:[%s214 + $0x2c] sm:$0xf]
      %v247 = vld [vmem:[%s214 + $0x30] sm:$0xf]
      %v248 = vld [vmem:[%s214 + $0x34] sm:$0xf]
      %v249 = vld [vmem:[%s214 + $0x38] sm:$0xf]
      %v250 = vld [vmem:[%s214 + $0x3c] sm:$0xf]
      %v251 = vld [vmem:[%s214 + $0x40] sm:$0xf]
      %v252 = vld [vmem:[%s214 + $0x44] sm:$0xf]
      %v253 = vld [vmem:[%s214 + $0x48] sm:$0xf]
      %v254 = vld [vmem:[%s214 + $0x4c] sm:$0xf]
      %v255 = vld [vmem:[%s214 + $0x50] sm:$0xf]
      %v256 = vld [vmem:[%s214 + $0x54] sm:$0xf]
      %v257 = vld [vmem:[%s214 + $0x58] sm:$0xf]
      %v258 = vld [vmem:[%s214 + $0x5c] sm:$0xf]
      %v259 = vld [vmem:[%s214 + $0x60] sm:$0xf]
      %v260 = vld [vmem:[%s214 + $0x64] sm:$0xf]
      %v261 = vld [vmem:[%s214 + $0x68] sm:$0xf]
      %v262 = vld [vmem:[%s214 + $0x6c] sm:$0xf]
      %v263 = vld [vmem:[%s214 + $0x70] sm:$0xf]
      %v264 = vld [vmem:[%s214 + $0x74] sm:$0xf]
      %v265 = vld [vmem:[%s214 + $0x78] sm:$0xf]
      %v266 = vld [vmem:[%s214 + $0x7c] sm:$0xf]
      %v267 = vld [vmem:[%s1] sm:$0xf]
      %v268 = vld [vmem:[%s1 + $0x4] sm:$0xf]
      %v269 = vld [vmem:[%s1 + $0x8] sm:$0xf]
      %v270 = vld [vmem:[%s1 + $0xc] sm:$0xf]
      %v303 = vunpack.c.l.b16 %v235
      %v304 = vunpack.c.l.b16 %v236
      %v305 = vunpack.c.l.b16 %v237
      %v306 = vunpack.c.l.b16 %v238
      %v307 = vunpack.c.l.b16 %v239
      %v308 = vunpack.c.l.b16 %v240
      %v309 = vunpack.c.l.b16 %v241
      %v310 = vunpack.c.l.b16 %v242
      %v311 = vunpack.c.l.b16 %v243
      %v312 = vunpack.c.l.b16 %v244
      %v313 = vunpack.c.l.b16 %v245
      %v314 = vunpack.c.l.b16 %v246
      %v315 = vunpack.c.l.b16 %v247
      %v316 = vunpack.c.l.b16 %v248
      %v317 = vunpack.c.l.b16 %v249
      %v318 = vunpack.c.l.b16 %v250
      %v319 = vunpack.c.l.b16 %v251
      %v320 = vunpack.c.l.b16 %v252
      %v321 = vunpack.c.l.b16 %v253
      %v322 = vunpack.c.l.b16 %v254
      %v323 = vunpack.c.l.b16 %v255
      %v324 = vunpack.c.l.b16 %v256
      %v325 = vunpack.c.l.b16 %v257
      %v326 = vunpack.c.l.b16 %v258
      %v327 = vunpack.c.l.b16 %v259
      %v328 = vunpack.c.l.b16 %v260
      %v329 = vunpack.c.l.b16 %v261
      %v330 = vunpack.c.l.b16 %v262
      %v331 = vunpack.c.l.b16 %v263
      %v332 = vunpack.c.l.b16 %v264
      %v333 = vunpack.c.l.b16 %v265
      %v334 = vunpack.c.l.b16 %v266
      %v335 = vpack.c.b16 %v304, %v303
      %v336 = vpack.c.b16 %v306, %v305
      %v337 = vpack.c.b16 %v308, %v307
      %v338 = vpack.c.b16 %v310, %v309
      %v339 = vpack.c.b16 %v312, %v311
      %v340 = vpack.c.b16 %v314, %v313
      %v341 = vpack.c.b16 %v316, %v315
      %v342 = vpack.c.b16 %v318, %v317
      %v343 = vpack.c.b16 %v320, %v319
      %v344 = vpack.c.b16 %v322, %v321
      %v345 = vpack.c.b16 %v324, %v323
      %v346 = vpack.c.b16 %v326, %v325
      %v347 = vpack.c.b16 %v328, %v327
      %v348 = vpack.c.b16 %v330, %v329
      %v349 = vpack.c.b16 %v332, %v331
      %v350 = vpack.c.b16 %v334, %v333
      %v355 = vunpack.c.l.b16 %v267
      %v356 = vunpack.c.l.b16 %v268
      %v357 = vunpack.c.l.b16 %v269
      %v358 = vunpack.c.l.b16 %v270
      %v359 = vpack.c.b16 %v356, %v355
      %v360 = vpack.c.b16 %v358, %v357
      %vm363 = vcmask 261120
      %v365 = vsel %vm363, %v335, 0
      %v368 = vsel %vm363, %v336, 0
      %v371 = vsel %vm363, %v337, 0
      %v374 = vsel %vm363, %v338, 0
      %v377 = vsel %vm363, %v339, 0
      %v380 = vsel %vm363, %v340, 0
      %v383 = vsel %vm363, %v341, 0
      %v386 = vsel %vm363, %v342, 0
      %v389 = vsel %vm363, %v343, 0
      %v392 = vsel %vm363, %v344, 0
      %v395 = vsel %vm363, %v345, 0
      %v398 = vsel %vm363, %v346, 0
      %v401 = vsel %vm363, %v347, 0
      %v404 = vsel %vm363, %v348, 0
      %v407 = vsel %vm363, %v349, 0
      %v410 = vsel %vm363, %v350, 0
      %412 = vmatprep.subr.bf16.mxu0 0
      %413 = vmatpush1.bf16.msra.mxu0 %v359
      %414 = vmatprep.subr.bf16.mxu0 0
      %415 = vmatpush1.bf16.msra.mxu0 %v360
      %416 = vmatprep.subr.bf16.mxu0 0
      %417 = vmatpush1.bf16.msra.mxu0 0
      %418 = vmatprep.subr.bf16.mxu0 0
      %419 = vmatpush1.bf16.msra.mxu0 0
      %420 = vmatprep.subr.bf16.mxu0 0
      %421 = vmatpush1.bf16.msra.mxu0 0
      %422 = vmatprep.subr.bf16.mxu0 0
      %423 = vmatpush1.bf16.msra.mxu0 0
      %424 = vmatprep.subr.bf16.mxu0 0
      %425 = vmatpush1.bf16.msra.mxu0 0
      %426 = vmatprep.subr.bf16.mxu0 0
      %427 = vmatpush1.bf16.msra.mxu0 0
      %428 = vmatprep.subr.bf16.mxu0 0
      %429 = vmatpush1.bf16.msra.mxu0 0
      %430 = vmatprep.subr.bf16.mxu0 0
      %431 = vmatpush1.bf16.msra.mxu0 0
      %432 = vmatprep.subr.bf16.mxu0 0
      %433 = vmatpush1.bf16.msra.mxu0 0
      %434 = vmatprep.subr.bf16.mxu0 0
      %435 = vmatpush1.bf16.msra.mxu0 0
      %436 = vmatprep.subr.bf16.mxu0 0
      %437 = vmatpush1.bf16.msra.mxu0 0
      %438 = vmatprep.subr.bf16.mxu0 0
      %439 = vmatpush1.bf16.msra.mxu0 0
      %440 = vmatprep.subr.bf16.mxu0 0
      %441 = vmatpush1.bf16.msra.mxu0 0
      %442 = vmatprep.subr.bf16.mxu0 0
      %443 = vmatpush1.bf16.msra.mxu0 0
      %444 = vmatprep.mubr.bf16.mxu0 0
      %445 = vmatmul.mubr.bf16.gmra.mrb[0].mxu0 %v365
      %v446 = vpop.f32.mrb[0].mxu0
      %v447 = vadd.f32 0.0, %v446
      %v448 = vpop.f32.mrb[0].mxu0
      %v449 = vpop.f32.mrb[0].mxu0
      %v450 = vadd.f32 0.0, %v449
      %v451 = vpop.f32.mrb[0].mxu0
      %452 = vmatprep.mubr.bf16.mxu0 0
      %453 = vmatmul.mubr.bf16.gmra.mrb[0].mxu0 %v368
      %v454 = vpop.f32.mrb[0].mxu0
      %v455 = vadd.f32 0.0, %v454
      %v456 = vpop.f32.mrb[0].mxu0
      %v457 = vpop.f32.mrb[0].mxu0
      %v458 = vadd.f32 0.0, %v457
      %v459 = vpop.f32.mrb[0].mxu0
      %460 = vmatprep.mubr.bf16.mxu0 0
      %461 = vmatmul.mubr.bf16.gmra.mrb[0].mxu0 %v371
      %v462 = vpop.f32.mrb[0].mxu0
      %v463 = vadd.f32 0.0, %v462
      %v464 = vpop.f32.mrb[0].mxu0
      %v465 = vpop.f32.mrb[0].mxu0
      %v466 = vadd.f32 0.0, %v465
      %v467 = vpop.f32.mrb[0].mxu0
      %468 = vmatprep.mubr.bf16.mxu0 0
      %469 = vmatmul.mubr.bf16.gmra.mrb[0].mxu0 %v374
      %v470 = vpop.f32.mrb[0].mxu0
      %v471 = vadd.f32 0.0, %v470
      %v472 = vpop.f32.mrb[0].mxu0
      %v473 = vpop.f32.mrb[0].mxu0
      %v474 = vadd.f32 0.0, %v473
      %v475 = vpop.f32.mrb[0].mxu0
      %476 = vmatprep.mubr.bf16.mxu0 0
      %477 = vmatmul.mubr.bf16.gmra.mrb[0].mxu0 %v377
      %v478 = vpop.f32.mrb[0].mxu0
      %v479 = vadd.f32 0.0, %v478
      %v480 = vpop.f32.mrb[0].mxu0
      %v481 = vpop.f32.mrb[0].mxu0
      %v482 = vadd.f32 0.0, %v481
      %v483 = vpop.f32.mrb[0].mxu0
      %484 = vmatprep.mubr.bf16.mxu0 0
      %485 = vmatmul.mubr.bf16.gmra.mrb[0].mxu0 %v380
      %v486 = vpop.f32.mrb[0].mxu0
      %v487 = vadd.f32 0.0, %v486
      %v488 = vpop.f32.mrb[0].mxu0
      %v489 = vpop.f32.mrb[0].mxu0
      %v490 = vadd.f32 0.0, %v489
      %v491 = vpop.f32.mrb[0].mxu0
      %492 = vmatprep.mubr.bf16.mxu0 0
      %493 = vmatmul.mubr.bf16.gmra.mrb[0].mxu0 %v383
      %v494 = vpop.f32.mrb[0].mxu0
      %v495 = vadd.f32 0.0, %v494
      %v496 = vpop.f32.mrb[0].mxu0
      %v497 = vpop.f32.mrb[0].mxu0
      %v498 = vadd.f32 0.0, %v497
      %v499 = vpop.f32.mrb[0].mxu0
      %500 = vmatprep.mubr.bf16.mxu0 0
      %501 = vmatmul.mubr.bf16.gmra.mrb[0].mxu0 %v386
      %v502 = vpop.f32.mrb[0].mxu0
      %v503 = vadd.f32 0.0, %v502
      %v504 = vpop.f32.mrb[0].mxu0
      %v505 = vpop.f32.mrb[0].mxu0
      %v506 = vadd.f32 0.0, %v505
      %v507 = vpop.f32.mrb[0].mxu0
      %508 = vmatprep.mubr.bf16.mxu0 0
      %509 = vmatmul.mubr.bf16.gmra.mrb[0].mxu0 %v389
      %v510 = vpop.f32.mrb[0].mxu0
      %v511 = vadd.f32 0.0, %v510
      %v512 = vpop.f32.mrb[0].mxu0
      %v513 = vpop.f32.mrb[0].mxu0
      %v514 = vadd.f32 0.0, %v513
      %v515 = vpop.f32.mrb[0].mxu0
      %516 = vmatprep.mubr.bf16.mxu0 0
      %517 = vmatmul.mubr.bf16.gmra.mrb[0].mxu0 %v392
      %v518 = vpop.f32.mrb[0].mxu0
      %v519 = vadd.f32 0.0, %v518
      %v520 = vpop.f32.mrb[0].mxu0
      %v521 = vpop.f32.mrb[0].mxu0
      %v522 = vadd.f32 0.0, %v521
      %v523 = vpop.f32.mrb[0].mxu0
      %524 = vmatprep.mubr.bf16.mxu0 0
      %525 = vmatmul.mubr.bf16.gmra.mrb[0].mxu0 %v395
      %v526 = vpop.f32.mrb[0].mxu0
      %v527 = vadd.f32 0.0, %v526
      %v528 = vpop.f32.mrb[0].mxu0
      %v529 = vpop.f32.mrb[0].mxu0
      %v530 = vadd.f32 0.0, %v529
      %v531 = vpop.f32.mrb[0].mxu0
      %532 = vmatprep.mubr.bf16.mxu0 0
      %533 = vmatmul.mubr.bf16.gmra.mrb[0].mxu0 %v398
      %v534 = vpop.f32.mrb[0].mxu0
      %v535 = vadd.f32 0.0, %v534
      %v536 = vpop.f32.mrb[0].mxu0
      %v537 = vpop.f32.mrb[0].mxu0
      %v538 = vadd.f32 0.0, %v537
      %v539 = vpop.f32.mrb[0].mxu0
      %540 = vmatprep.mubr.bf16.mxu0 0
      %541 = vmatmul.mubr.bf16.gmra.mrb[0].mxu0 %v401
      %v542 = vpop.f32.mrb[0].mxu0
      %v543 = vadd.f32 0.0, %v542
      %v544 = vpop.f32.mrb[0].mxu0
      %v545 = vpop.f32.mrb[0].mxu0
      %v546 = vadd.f32 0.0, %v545
      %v547 = vpop.f32.mrb[0].mxu0
      %548 = vmatprep.mubr.bf16.mxu0 0
      %549 = vmatmul.mubr.bf16.gmra.mrb[0].mxu0 %v404
      %v550 = vpop.f32.mrb[0].mxu0
      %v551 = vadd.f32 0.0, %v550
      %v552 = vpop.f32.mrb[0].mxu0
      %v553 = vpop.f32.mrb[0].mxu0
      %v554 = vadd.f32 0.0, %v553
      %v555 = vpop.f32.mrb[0].mxu0
      %556 = vmatprep.mubr.bf16.mxu0 0
      %557 = vmatmul.mubr.bf16.gmra.mrb[0].mxu0 %v407
      %v558 = vpop.f32.mrb[0].mxu0
      %v559 = vadd.f32 0.0, %v558
      %v560 = vpop.f32.mrb[0].mxu0
      %v561 = vpop.f32.mrb[0].mxu0
      %v562 = vadd.f32 0.0, %v561
      %v563 = vpop.f32.mrb[0].mxu0
      %564 = vmatprep.mubr.bf16.mxu0 0
      %565 = vmatmul.mubr.bf16.gmra.mrb[0].mxu0 %v410
      %v566 = vpop.f32.mrb[0].mxu0
      %v567 = vadd.f32 0.0, %v566
      %v568 = vpop.f32.mrb[0].mxu0
      %v569 = vpop.f32.mrb[0].mxu0
      %v570 = vadd.f32 0.0, %v569
      %v571 = vpop.f32.mrb[0].mxu0
      %572 = vdwg.mxu0
      %v573 = vpack.c.bf16 %v450, %v447
      %v574 = vpack.c.bf16 %v458, %v455
      %v575 = vpack.c.bf16 %v466, %v463
      %v576 = vpack.c.bf16 %v474, %v471
      %v577 = vpack.c.bf16 %v482, %v479
      %v578 = vpack.c.bf16 %v490, %v487
      %v579 = vpack.c.bf16 %v498, %v495
      %v580 = vpack.c.bf16 %v506, %v503
      %v581 = vpack.c.bf16 %v514, %v511
      %v582 = vpack.c.bf16 %v522, %v519
      %v583 = vpack.c.bf16 %v530, %v527
      %v584 = vpack.c.bf16 %v538, %v535
      %v585 = vpack.c.bf16 %v546, %v543
      %v586 = vpack.c.bf16 %v554, %v551
      %v587 = vpack.c.bf16 %v562, %v559
      %v588 = vpack.c.bf16 %v570, %v567
      %v605 = vunpack.c.l.b16 %v573
      %v606 = vunpack.c.h.b16 %v573
      %v607 = vunpack.c.l.b16 %v574
      %v608 = vunpack.c.h.b16 %v574
      %v609 = vunpack.c.l.b16 %v575
      %v610 = vunpack.c.h.b16 %v575
      %v611 = vunpack.c.l.b16 %v576
      %v612 = vunpack.c.h.b16 %v576
      %v613 = vunpack.c.l.b16 %v577
      %v614 = vunpack.c.h.b16 %v577
      %v615 = vunpack.c.l.b16 %v578
      %v616 = vunpack.c.h.b16 %v578
      %v617 = vunpack.c.l.b16 %v579
      %v618 = vunpack.c.h.b16 %v579
      %v619 = vunpack.c.l.b16 %v580
      %v620 = vunpack.c.h.b16 %v580
      %v621 = vunpack.c.l.b16 %v581
      %v622 = vunpack.c.h.b16 %v581
      %v623 = vunpack.c.l.b16 %v582
      %v624 = vunpack.c.h.b16 %v582
      %v625 = vunpack.c.l.b16 %v583
      %v626 = vunpack.c.h.b16 %v583
      %v627 = vunpack.c.l.b16 %v584
      %v628 = vunpack.c.h.b16 %v584
      %v629 = vunpack.c.l.b16 %v585
      %v630 = vunpack.c.h.b16 %v585
      %v631 = vunpack.c.l.b16 %v586
      %v632 = vunpack.c.h.b16 %v586
      %v633 = vunpack.c.l.b16 %v587
      %v634 = vunpack.c.h.b16 %v587
      %v635 = vunpack.c.l.b16 %v588
      %v636 = vunpack.c.h.b16 %v588
      %v637 = vpack.c.b16 %v605, %v605
      %v638 = vpack.c.b16 %v606, %v606
      %v639 = vpack.c.b16 %v607, %v607
      %v640 = vpack.c.b16 %v608, %v608
      %v641 = vpack.c.b16 %v609, %v609
      %v642 = vpack.c.b16 %v610, %v610
      %v643 = vpack.c.b16 %v611, %v611
      %v644 = vpack.c.b16 %v612, %v612
      %v645 = vpack.c.b16 %v613, %v613
      %v646 = vpack.c.b16 %v614, %v614
      %v647 = vpack.c.b16 %v615, %v615
      %v648 = vpack.c.b16 %v616, %v616
      %v649 = vpack.c.b16 %v617, %v617
      %v650 = vpack.c.b16 %v618, %v618
      %v651 = vpack.c.b16 %v619, %v619
      %v652 = vpack.c.b16 %v620, %v620
      %v653 = vpack.c.b16 %v621, %v621
      %v654 = vpack.c.b16 %v622, %v622
      %v655 = vpack.c.b16 %v623, %v623
      %v656 = vpack.c.b16 %v624, %v624
      %v657 = vpack.c.b16 %v625, %v625
      %v658 = vpack.c.b16 %v626, %v626
      %v659 = vpack.c.b16 %v627, %v627
      %v660 = vpack.c.b16 %v628, %v628
      %v661 = vpack.c.b16 %v629, %v629
      %v662 = vpack.c.b16 %v630, %v630
      %v663 = vpack.c.b16 %v631, %v631
      %v664 = vpack.c.b16 %v632, %v632
      %v665 = vpack.c.b16 %v633, %v633
      %v666 = vpack.c.b16 %v634, %v634
      %v667 = vpack.c.b16 %v635, %v635
      %v668 = vpack.c.b16 %v636, %v636
      %701 = vst [vmem:[%s225] sm:$0xf] %v637
      %702 = vst [vmem:[%s225 + $0x4] sm:$0xf] %v638
      %703 = vst [vmem:[%s225 + $0x8] sm:$0xf] %v639
      %704 = vst [vmem:[%s225 + $0xc] sm:$0xf] %v640
      %705 = vst [vmem:[%s225 + $0x10] sm:$0xf] %v641
      %706 = vst [vmem:[%s225 + $0x14] sm:$0xf] %v642
      %707 = vst [vmem:[%s225 + $0x18] sm:$0xf] %v643
      %708 = vst [vmem:[%s225 + $0x1c] sm:$0xf] %v644
      %709 = vst [vmem:[%s225 + $0x20] sm:$0xf] %v645
      %710 = vst [vmem:[%s225 + $0x24] sm:$0xf] %v646
      %711 = vst [vmem:[%s225 + $0x28] sm:$0xf] %v647
      %712 = vst [vmem:[%s225 + $0x2c] sm:$0xf] %v648
      %713 = vst [vmem:[%s225 + $0x30] sm:$0xf] %v649
      %714 = vst [vmem:[%s225 + $0x34] sm:$0xf] %v650
      %715 = vst [vmem:[%s225 + $0x38] sm:$0xf] %v651
      %716 = vst [vmem:[%s225 + $0x3c] sm:$0xf] %v652
      %717 = vst [vmem:[%s225 + $0x40] sm:$0xf] %v653
      %718 = vst [vmem:[%s225 + $0x44] sm:$0xf] %v654
      %719 = vst [vmem:[%s225 + $0x48] sm:$0xf] %v655
      %720 = vst [vmem:[%s225 + $0x4c] sm:$0xf] %v656
      %721 = vst [vmem:[%s225 + $0x50] sm:$0xf] %v657
      %722 = vst [vmem:[%s225 + $0x54] sm:$0xf] %v658
      %723 = vst [vmem:[%s225 + $0x58] sm:$0xf] %v659
      %724 = vst [vmem:[%s225 + $0x5c] sm:$0xf] %v660
      %725 = vst [vmem:[%s225 + $0x60] sm:$0xf] %v661
      %726 = vst [vmem:[%s225 + $0x64] sm:$0xf] %v662
      %727 = vst [vmem:[%s225 + $0x68] sm:$0xf] %v663
      %728 = vst [vmem:[%s225 + $0x6c] sm:$0xf] %v664
      %729 = vst [vmem:[%s225 + $0x70] sm:$0xf] %v665
      %730 = vst [vmem:[%s225 + $0x74] sm:$0xf] %v666
      %731 = vst [vmem:[%s225 + $0x78] sm:$0xf] %v667
      %732 = vst [vmem:[%s225 + $0x7c] sm:$0xf] %v668
      %v733 = vadd.f32 %v447, %v450
      %v734 = vadd.f32 %v733, %v455
      %v735 = vadd.f32 %v734, %v458
      %v736 = vadd.f32 %v735, %v463
      %v737 = vadd.f32 %v736, %v466
      %v738 = vadd.f32 %v737, %v471
      %v739 = vadd.f32 %v738, %v474
      %v740 = vadd.f32 %v739, %v479
      %v741 = vadd.f32 %v740, %v482
      %v742 = vadd.f32 %v741, %v487
      %v743 = vadd.f32 %v742, %v490
      %v744 = vadd.f32 %v743, %v495
      %v745 = vadd.f32 %v744, %v498
      %v746 = vadd.f32 %v745, %v503
      %v747 = vadd.f32 %v746, %v506
      %v748 = vadd.f32 %v747, %v511
      %v749 = vadd.f32 %v748, %v514
      %v750 = vadd.f32 %v749, %v519
      %v751 = vadd.f32 %v750, %v522
      %v752 = vadd.f32 %v751, %v527
      %v753 = vadd.f32 %v752, %v530
      %v754 = vadd.f32 %v753, %v535
      %v755 = vadd.f32 %v754, %v538
      %v756 = vadd.f32 %v755, %v543
      %v757 = vadd.f32 %v756, %v546
      %v758 = vadd.f32 %v757, %v551
      %v759 = vadd.f32 %v758, %v554
      %v760 = vadd.f32 %v759, %v559
      %v761 = vadd.f32 %v760, %v562
      %v762 = vadd.f32 %v761, %v567
      %v763 = vadd.f32 %v762, %v570
      %v764 = vrot.slane %v763, 4
      %v765 = vadd.f32 %v763, %v764
      %v766 = vrot.slane %v765, 2
      %v767 = vadd.f32 %v765, %v766
      %v768 = vrot.slane %v767, 1
      %v769 = vadd.f32 %v767, %v768
      %v770 = vmul.f32 %v769, 0.00390625
      %v771 = vsub.f32 %v447, %v770
      %v772 = vsub.f32 %v450, %v770
      %v773 = vsub.f32 %v455, %v770
      %v774 = vsub.f32 %v458, %v770
      %v775 = vsub.f32 %v463, %v770
      %v776 = vsub.f32 %v466, %v770
      %v777 = vsub.f32 %v471, %v770
      %v778 = vsub.f32 %v474, %v770
      %v779 = vsub.f32 %v479, %v770
      %v780 = vsub.f32 %v482, %v770
      %v781 = vsub.f32 %v487, %v770
      %v782 = vsub.f32 %v490, %v770
      %v783 = vsub.f32 %v495, %v770
      %v784 = vsub.f32 %v498, %v770
      %v785 = vsub.f32 %v503, %v770
      %v786 = vsub.f32 %v506, %v770
      %v787 = vsub.f32 %v511, %v770
      %v788 = vsub.f32 %v514, %v770
      %v789 = vsub.f32 %v519, %v770
      %v790 = vsub.f32 %v522, %v770
      %v791 = vsub.f32 %v527, %v770
      %v792 = vsub.f32 %v530, %v770
      %v793 = vsub.f32 %v535, %v770
      %v794 = vsub.f32 %v538, %v770
      %v795 = vsub.f32 %v543, %v770
      %v796 = vsub.f32 %v546, %v770
      %v797 = vsub.f32 %v551, %v770
      %v798 = vsub.f32 %v554, %v770
      %v799 = vsub.f32 %v559, %v770
      %v800 = vsub.f32 %v562, %v770
      %v801 = vsub.f32 %v567, %v770
      %v802 = vsub.f32 %v570, %v770
      %v803 = vmul.f32 %v771, %v771
      %v804 = vmul.f32 %v772, %v772
      %v805 = vmul.f32 %v773, %v773
      %v806 = vmul.f32 %v774, %v774
      %v807 = vmul.f32 %v775, %v775
      %v808 = vmul.f32 %v776, %v776
      %v809 = vmul.f32 %v777, %v777
      %v810 = vmul.f32 %v778, %v778
      %v811 = vmul.f32 %v779, %v779
      %v812 = vmul.f32 %v780, %v780
      %v813 = vmul.f32 %v781, %v781
      %v814 = vmul.f32 %v782, %v782
      %v815 = vmul.f32 %v783, %v783
      %v816 = vmul.f32 %v784, %v784
      %v817 = vmul.f32 %v785, %v785
      %v818 = vmul.f32 %v786, %v786
      %v819 = vmul.f32 %v787, %v787
      %v820 = vmul.f32 %v788, %v788
      %v821 = vmul.f32 %v789, %v789
      %v822 = vmul.f32 %v790, %v790
      %v823 = vmul.f32 %v791, %v791
      %v824 = vmul.f32 %v792, %v792
      %v825 = vmul.f32 %v793, %v793
      %v826 = vmul.f32 %v794, %v794
      %v827 = vmul.f32 %v795, %v795
      %v828 = vmul.f32 %v796, %v796
      %v829 = vmul.f32 %v797, %v797
      %v830 = vmul.f32 %v798, %v798
      %v831 = vmul.f32 %v799, %v799
      %v832 = vmul.f32 %v800, %v800
      %v833 = vmul.f32 %v801, %v801
      %v834 = vmul.f32 %v802, %v802
      %v835 = vadd.f32 %v803, %v804
      %v836 = vadd.f32 %v835, %v805
      %v837 = vadd.f32 %v836, %v806
      %v838 = vadd.f32 %v837, %v807
      %v839 = vadd.f32 %v838, %v808
      %v840 = vadd.f32 %v839, %v809
      %v841 = vadd.f32 %v840, %v810
      %v842 = vadd.f32 %v841, %v811
      %v843 = vadd.f32 %v842, %v812
      %v844 = vadd.f32 %v843, %v813
      %v845 = vadd.f32 %v844, %v814
      %v846 = vadd.f32 %v845, %v815
      %v847 = vadd.f32 %v846, %v816
      %v848 = vadd.f32 %v847, %v817
      %v849 = vadd.f32 %v848, %v818
      %v850 = vadd.f32 %v849, %v819
      %v851 = vadd.f32 %v850, %v820
      %v852 = vadd.f32 %v851, %v821
      %v853 = vadd.f32 %v852, %v822
      %v854 = vadd.f32 %v853, %v823
      %v855 = vadd.f32 %v854, %v824
      %v856 = vadd.f32 %v855, %v825
      %v857 = vadd.f32 %v856, %v826
      %v858 = vadd.f32 %v857, %v827
      %v859 = vadd.f32 %v858, %v828
      %v860 = vadd.f32 %v859, %v829
      %v861 = vadd.f32 %v860, %v830
      %v862 = vadd.f32 %v861, %v831
      %v863 = vadd.f32 %v862, %v832
      %v864 = vadd.f32 %v863, %v833
      %v865 = vadd.f32 %v864, %v834
      %v866 = vrot.slane %v865, 4
      %v867 = vadd.f32 %v865, %v866
      %v868 = vrot.slane %v867, 2
      %v869 = vadd.f32 %v867, %v868
      %v870 = vrot.slane %v869, 1
      %v871 = vadd.f32 %v869, %v870
      %872 = vst [vmem:[%s233] sm:$0x1] %v769
      %873 = vst [vmem:[%s233 + $0x1] sm:$0x1] %v871
      %s874 = smul.u32 16, %s20
      %p875 = scmp.lt.s32.totalorder %s19, 1
      %s876 = scalar_select %p875, %s19, 1
      %p877 = scmp.lt.s32.totalorder %s874, 15
      %s878 = scalar_select %p877, %s874, 15
      %s879 = smul.addr %s878, 2
      %s880 = smul.addr %s876, 32
      %s881 = sadd.s32 %s879, %s880
      %s882 = smul.addr %s881, 4
      %s883 = scalar_lea.vmem %s2, %s882
      %p884 = scmp.lt.s32.totalorder %s19, 1
      %s885 = scalar_select %p884, %s19, 1
      %p886 = scmp.lt.s32.totalorder %s20, 0
      %s887 = scalar_select %p886, %s20, 0
      %s888 = sadd.s32 %s887, %s885
      %s889 = smul.addr %s888, 2
      %s890 = scalar_lea.vmem %s3, %s889
      // Predicated region
      $region29: #{simple_model_forward.3} parent=27 // pred_check
        %p891 = pneg %p96
      $region30: #{simple_model_forward.3} parent=27 // pred_check_branch
        %893 = sbr.rel (%p891) target = $region32
      $region31: #{simple_model_forward.3} parent=27 // pred_region
        %s894 = smul.u32 16, %s20
      $region32: #{simple_model_forward.3} parent=27 // pred_fallthru
        _
      // Predicated region
      $region33: #{simple_model_forward.3} parent=27 // pred_check
        %p895 = pneg %p124
      $region34: #{simple_model_forward.3} parent=27 // pred_check_branch
        %897 = sbr.rel (%p895) target = $region36
      $region35: #{simple_model_forward.3} parent=27 // pred_region
        _
      $region36: #{simple_model_forward.3} parent=27 // pred_fallthru
        _
    $region28: #{simple_model_forward.3} parent=5 // pred_fallthru
      _
    %p898 = scmp.le.s32.totalorder 2, %s10
    // Predicated region
    $region37: #{simple_model_forward.3} parent=5 // pred_check
      %p899 = pneg %p898
    $region38: #{simple_model_forward.3} parent=5 // pred_check_branch
      %901 = sbr.rel (%p899) target = $region40
    $region39: #{simple_model_forward.3} parent=5 // pred_region
      %s902 = ssub.s32 %s10, 2
      // Predicated region
      $region41: #{simple_model_forward.3} parent=39 // pred_check
        %p903 = pneg %p102
      $region42: #{simple_model_forward.3} parent=39 // pred_check_branch
        %905 = sbr.rel (%p903) target = $region44
      $region43: #{simple_model_forward.3} parent=39 // pred_region
        %s906 = smul.u32 16, %s22
        %p907 = scmp.lt.s32.totalorder %s21, 1
        %s908 = scalar_select %p907, %s21, 1
        %p909 = scmp.lt.s32.totalorder %s906, 15
        %s910 = scalar_select %p909, %s906, 15
        %s911 = smul.addr %s910, 2
        %s912 = smul.addr %s908, 32
        %s913 = sadd.s32 %s911, %s912
        %s914 = smul.addr %s913, 4
        %s915 = scalar_lea.vmem %s2, %s914
      $region44: #{simple_model_forward.3} parent=39 // pred_fallthru
        _
      // Predicated region
      $region45: #{simple_model_forward.3} parent=39 // pred_check
        %p916 = pneg %p130
      $region46: #{simple_model_forward.3} parent=39 // pred_check_branch
        %918 = sbr.rel (%p916) target = $region48
      $region47: #{simple_model_forward.3} parent=39 // pred_region
        %p919 = scmp.lt.s32.totalorder %s21, 1
        %s920 = scalar_select %p919, %s21, 1
        %p921 = scmp.lt.s32.totalorder %s22, 0
        %s922 = scalar_select %p921, %s22, 0
        %s923 = sadd.s32 %s922, %s920
        %s924 = smul.addr %s923, 2
        %s925 = scalar_lea.vmem %s3, %s924
      $region48: #{simple_model_forward.3} parent=39 // pred_fallthru
        _
    $region40: #{simple_model_forward.3} parent=5 // pred_fallthru
      _
  $region6: #{simple_model_forward.3} parent=0 // loop_footer
    %s14 = sadd.s32 1, %s10
  $region7: #{simple_model_forward.3} parent=0 // loop_footer_branch
    %9 = sbr.rel target = $region3
  $region8: #{simple_model_forward.3} parent=0 // loop_exit
    _

// kernel: simple_model_forward.5
$region0: #{simple_model_forward.5}
  #allocation0 [shape = 'u32[]', space=smem, size = 0x4, offset = 0x4, fixed_abs, tag = 'smem constant byte address 0x4 - core index']
  #allocation1 [shape = 'u32[144,128]{1,0:T(1,128)}', space=vmem, size = 0x12000, scoped, tag = 'internal scratch']
  %s0 = inlined_call_operand.vmem [shape: bf16[512,128], index: 0, kind: input, shape index: {}]
  %s1 = inlined_call_operand.vmem [shape: f32[1,128], index: 1, kind: input, shape index: {}]
  %s2 = inlined_call_operand.vmem [shape: f32[1,128], index: 2, kind: input, shape index: {}]
  %s3 = inlined_call_operand.hbm [shape: f32[512,128], index: 3, kind: output, shape index: {}]
  %s4 = sld [smem:[#allocation0]]
  $region22: #{simple_model_forward.5} parent=0
    _
  %s6 = ssub.s32 1, %s4
  %s7 = scalar_select 0, %s6, %s4
  $region1: #{simple_model_forward.5} parent=0
    #allocation2 [shape = 'u8[262144]{0}', space=vmem, size = 0x40000, scoped, tag = 'output window, operand 0, single buffered']
    #allocation3 [shape = 's32[1]{0}', space=sflag, size = 0x4, scoped, tag = 'scoped memory for simple_model_forward.5']
    %8 = vsyncpa [#allocation3], 0
    // Predicated region
    $region2: #{simple_model_forward.5} parent=1 // pred_check
      _
    $region3: #{simple_model_forward.5} parent=1 // pred_check_branch
      %10 = sbr.rel (0) target = $region5
    $region4: #{simple_model_forward.5} parent=1 // pred_region
      _
    $region5: #{simple_model_forward.5} parent=1 // pred_fallthru
      _
    // Predicated region
    $region6: #{simple_model_forward.5} parent=1 // pred_check
      _
    $region7: #{simple_model_forward.5} parent=1 // pred_check_branch
      %12 = sbr.rel (0) target = $region9
    $region8: #{simple_model_forward.5} parent=1 // pred_region
      _
    $region9: #{simple_model_forward.5} parent=1 // pred_fallthru
      _
    // Predicated region
    $region10: #{simple_model_forward.5} parent=1 // pred_check
      _
    $region11: #{simple_model_forward.5} parent=1 // pred_check_branch
      %14 = sbr.rel (0) target = $region13
    $region12: #{simple_model_forward.5} parent=1 // pred_region
      _
    $region13: #{simple_model_forward.5} parent=1 // pred_fallthru
      _
    %v15 = vld [vmem:[%s0] sm:$0xf]
    %v16 = vld [vmem:[%s0 + $0x4] sm:$0xf]
    %v17 = vld [vmem:[%s0 + $0x8] sm:$0xf]
    %v18 = vld [vmem:[%s0 + $0xc] sm:$0xf]
    %v19 = vld [vmem:[%s0 + $0x10] sm:$0xf]
    %v20 = vld [vmem:[%s0 + $0x14] sm:$0xf]
    %v21 = vld [vmem:[%s0 + $0x18] sm:$0xf]
    %v22 = vld [vmem:[%s0 + $0x1c] sm:$0xf]
    %v23 = vld [vmem:[%s0 + $0x20] sm:$0xf]
    %v24 = vld [vmem:[%s0 + $0x24] sm:$0xf]
    %v25 = vld [vmem:[%s0 + $0x28] sm:$0xf]
    %v26 = vld [vmem:[%s0 + $0x2c] sm:$0xf]
    %v27 = vld [vmem:[%s0 + $0x30] sm:$0xf]
    %v28 = vld [vmem:[%s0 + $0x34] sm:$0xf]
    %v29 = vld [vmem:[%s0 + $0x38] sm:$0xf]
    %v30 = vld [vmem:[%s0 + $0x3c] sm:$0xf]
    %v31 = vld [vmem:[%s0 + $0x40] sm:$0xf]
    %v32 = vld [vmem:[%s0 + $0x44] sm:$0xf]
    %v33 = vld [vmem:[%s0 + $0x48] sm:$0xf]
    %v34 = vld [vmem:[%s0 + $0x4c] sm:$0xf]
    %v35 = vld [vmem:[%s0 + $0x50] sm:$0xf]
    %v36 = vld [vmem:[%s0 + $0x54] sm:$0xf]
    %v37 = vld [vmem:[%s0 + $0x58] sm:$0xf]
    %v38 = vld [vmem:[%s0 + $0x5c] sm:$0xf]
    %v39 = vld [vmem:[%s0 + $0x60] sm:$0xf]
    %v40 = vld [vmem:[%s0 + $0x64] sm:$0xf]
    %v41 = vld [vmem:[%s0 + $0x68] sm:$0xf]
    %v42 = vld [vmem:[%s0 + $0x6c] sm:$0xf]
    %v43 = vld [vmem:[%s0 + $0x70] sm:$0xf]
    %v44 = vld [vmem:[%s0 + $0x74] sm:$0xf]
    %v45 = vld [vmem:[%s0 + $0x78] sm:$0xf]
    %v46 = vld [vmem:[%s0 + $0x7c] sm:$0xf]
    %v47 = vld [vmem:[%s0 + $0x80] sm:$0xf]
    %v48 = vld [vmem:[%s0 + $0x84] sm:$0xf]
    %v49 = vld [vmem:[%s0 + $0x88] sm:$0xf]
    %v50 = vld [vmem:[%s0 + $0x8c] sm:$0xf]
    %v51 = vld [vmem:[%s0 + $0x90] sm:$0xf]
    %v52 = vld [vmem:[%s0 + $0x94] sm:$0xf]
    %v53 = vld [vmem:[%s0 + $0x98] sm:$0xf]
    %v54 = vld [vmem:[%s0 + $0x9c] sm:$0xf]
    %v55 = vld [vmem:[%s0 + $0xa0] sm:$0xf]
    %v56 = vld [vmem:[%s0 + $0xa4] sm:$0xf]
    %v57 = vld [vmem:[%s0 + $0xa8] sm:$0xf]
    %v58 = vld [vmem:[%s0 + $0xac] sm:$0xf]
    %v59 = vld [vmem:[%s0 + $0xb0] sm:$0xf]
    %v60 = vld [vmem:[%s0 + $0xb4] sm:$0xf]
    %v61 = vld [vmem:[%s0 + $0xb8] sm:$0xf]
    %v62 = vld [vmem:[%s0 + $0xbc] sm:$0xf]
    %v63 = vld [vmem:[%s0 + $0xc0] sm:$0xf]
    %v64 = vld [vmem:[%s0 + $0xc4] sm:$0xf]
    %v65 = vld [vmem:[%s0 + $0xc8] sm:$0xf]
    %v66 = vld [vmem:[%s0 + $0xcc] sm:$0xf]
    %v67 = vld [vmem:[%s0 + $0xd0] sm:$0xf]
    %v68 = vld [vmem:[%s0 + $0xd4] sm:$0xf]
    %v69 = vld [vmem:[%s0 + $0xd8] sm:$0xf]
    %v70 = vld [vmem:[%s0 + $0xdc] sm:$0xf]
    %v71 = vld [vmem:[%s0 + $0xe0] sm:$0xf]
    %v72 = vld [vmem:[%s0 + $0xe4] sm:$0xf]
    %v73 = vld [vmem:[%s0 + $0xe8] sm:$0xf]
    %v74 = vld [vmem:[%s0 + $0xec] sm:$0xf]
    %v75 = vld [vmem:[%s0 + $0xf0] sm:$0xf]
    %v76 = vld [vmem:[%s0 + $0xf4] sm:$0xf]
    %v77 = vld [vmem:[%s0 + $0xf8] sm:$0xf]
    %v78 = vld [vmem:[%s0 + $0xfc] sm:$0xf]
    %v79 = vunpack.c.l.bf16 %v15
    %v80 = vunpack.c.l.bf16 %v16
    %v81 = vunpack.c.l.bf16 %v17
    %v82 = vunpack.c.l.bf16 %v18
    %v83 = vunpack.c.l.bf16 %v19
    %v84 = vunpack.c.l.bf16 %v20
    %v85 = vunpack.c.l.bf16 %v21
    %v86 = vunpack.c.l.bf16 %v22
    %v87 = vunpack.c.l.bf16 %v23
    %v88 = vunpack.c.l.bf16 %v24
    %v89 = vunpack.c.l.bf16 %v25
    %v90 = vunpack.c.l.bf16 %v26
    %v91 = vunpack.c.l.bf16 %v27
    %v92 = vunpack.c.l.bf16 %v28
    %v93 = vunpack.c.l.bf16 %v29
    %v94 = vunpack.c.l.bf16 %v30
    %v95 = vunpack.c.l.bf16 %v31
    %v96 = vunpack.c.l.bf16 %v32
    %v97 = vunpack.c.l.bf16 %v33
    %v98 = vunpack.c.l.bf16 %v34
    %v99 = vunpack.c.l.bf16 %v35
    %v100 = vunpack.c.l.bf16 %v36
    %v101 = vunpack.c.l.bf16 %v37
    %v102 = vunpack.c.l.bf16 %v38
    %v103 = vunpack.c.l.bf16 %v39
    %v104 = vunpack.c.l.bf16 %v40
    %v105 = vunpack.c.l.bf16 %v41
    %v106 = vunpack.c.l.bf16 %v42
    %v107 = vunpack.c.l.bf16 %v43
    %v108 = vunpack.c.l.bf16 %v44
    %v109 = vunpack.c.l.bf16 %v45
    %v110 = vunpack.c.l.bf16 %v46
    %v111 = vunpack.c.l.bf16 %v47
    %v112 = vunpack.c.l.bf16 %v48
    %v113 = vunpack.c.l.bf16 %v49
    %v114 = vunpack.c.l.bf16 %v50
    %v115 = vunpack.c.l.bf16 %v51
    %v116 = vunpack.c.l.bf16 %v52
    %v117 = vunpack.c.l.bf16 %v53
    %v118 = vunpack.c.l.bf16 %v54
    %v119 = vunpack.c.l.bf16 %v55
    %v120 = vunpack.c.l.bf16 %v56
    %v121 = vunpack.c.l.bf16 %v57
    %v122 = vunpack.c.l.bf16 %v58
    %v123 = vunpack.c.l.bf16 %v59
    %v124 = vunpack.c.l.bf16 %v60
    %v125 = vunpack.c.l.bf16 %v61
    %v126 = vunpack.c.l.bf16 %v62
    %v127 = vunpack.c.l.bf16 %v63
    %v128 = vunpack.c.l.bf16 %v64
    %v129 = vunpack.c.l.bf16 %v65
    %v130 = vunpack.c.l.bf16 %v66
    %v131 = vunpack.c.l.bf16 %v67
    %v132 = vunpack.c.l.bf16 %v68
    %v133 = vunpack.c.l.bf16 %v69
    %v134 = vunpack.c.l.bf16 %v70
    %v135 = vunpack.c.l.bf16 %v71
    %v136 = vunpack.c.l.bf16 %v72
    %v137 = vunpack.c.l.bf16 %v73
    %v138 = vunpack.c.l.bf16 %v74
    %v139 = vunpack.c.l.bf16 %v75
    %v140 = vunpack.c.l.bf16 %v76
    %v141 = vunpack.c.l.bf16 %v77
    %v142 = vunpack.c.l.bf16 %v78
    %v143 = vld [vmem:[%s1] sm:$0x1]
    %v145 = vlaneseq
    %v146 = vshrl.u32 %v145, 7
    %v147 = vsub.s32 0, %v146
    %v148 = vrot.slane %v143, %v147
    %v150 = vmul.f32 %v79, %v148
    %v151 = vmul.f32 %v80, %v148
    %v152 = vmul.f32 %v81, %v148
    %v153 = vmul.f32 %v82, %v148
    %v154 = vmul.f32 %v83, %v148
    %v155 = vmul.f32 %v84, %v148
    %v156 = vmul.f32 %v85, %v148
    %v157 = vmul.f32 %v86, %v148
    %v158 = vmul.f32 %v87, %v148
    %v159 = vmul.f32 %v88, %v148
    %v160 = vmul.f32 %v89, %v148
    %v161 = vmul.f32 %v90, %v148
    %v162 = vmul.f32 %v91, %v148
    %v163 = vmul.f32 %v92, %v148
    %v164 = vmul.f32 %v93, %v148
    %v165 = vmul.f32 %v94, %v148
    %v166 = vmul.f32 %v95, %v148
    %v167 = vmul.f32 %v96, %v148
    %v168 = vmul.f32 %v97, %v148
    %v169 = vmul.f32 %v98, %v148
    %v170 = vmul.f32 %v99, %v148
    %v171 = vmul.f32 %v100, %v148
    %v172 = vmul.f32 %v101, %v148
    %v173 = vmul.f32 %v102, %v148
    %v174 = vmul.f32 %v103, %v148
    %v175 = vmul.f32 %v104, %v148
    %v176 = vmul.f32 %v105, %v148
    %v177 = vmul.f32 %v106, %v148
    %v178 = vmul.f32 %v107, %v148
    %v179 = vmul.f32 %v108, %v148
    %v180 = vmul.f32 %v109, %v148
    %v181 = vmul.f32 %v110, %v148
    %v182 = vmul.f32 %v111, %v148
    %v183 = vmul.f32 %v112, %v148
    %v184 = vmul.f32 %v113, %v148
    %v185 = vmul.f32 %v114, %v148
    %v186 = vmul.f32 %v115, %v148
    %v187 = vmul.f32 %v116, %v148
    %v188 = vmul.f32 %v117, %v148
    %v189 = vmul.f32 %v118, %v148
    %v190 = vmul.f32 %v119, %v148
    %v191 = vmul.f32 %v120, %v148
    %v192 = vmul.f32 %v121, %v148
    %v193 = vmul.f32 %v122, %v148
    %v194 = vmul.f32 %v123, %v148
    %v195 = vmul.f32 %v124, %v148
    %v196 = vmul.f32 %v125, %v148
    %v197 = vmul.f32 %v126, %v148
    %v198 = vmul.f32 %v127, %v148
    %v199 = vmul.f32 %v128, %v148
    %v200 = vmul.f32 %v129, %v148
    %v201 = vmul.f32 %v130, %v148
    %v202 = vmul.f32 %v131, %v148
    %v203 = vmul.f32 %v132, %v148
    %v204 = vmul.f32 %v133, %v148
    %v205 = vmul.f32 %v134, %v148
    %v206 = vmul.f32 %v135, %v148
    %v207 = vmul.f32 %v136, %v148
    %v208 = vmul.f32 %v137, %v148
    %v209 = vmul.f32 %v138, %v148
    %v210 = vmul.f32 %v139, %v148
    %v211 = vmul.f32 %v140, %v148
    %v212 = vmul.f32 %v141, %v148
    %v213 = vmul.f32 %v142, %v148
    %v214 = vld [vmem:[%s2] sm:$0x1]
    %v216 = vlaneseq
    %v217 = vshrl.u32 %v216, 7
    %v218 = vsub.s32 0, %v217
    %v219 = vrot.slane %v214, %v218
    %v221 = vadd.f32 %v150, %v219
    %v222 = vadd.f32 %v151, %v219
    %v223 = vadd.f32 %v152, %v219
    %v224 = vadd.f32 %v153, %v219
    %v225 = vadd.f32 %v154, %v219
    %v226 = vadd.f32 %v155, %v219
    %v227 = vadd.f32 %v156, %v219
    %v228 = vadd.f32 %v157, %v219
    %v229 = vadd.f32 %v158, %v219
    %v230 = vadd.f32 %v159, %v219
    %v231 = vadd.f32 %v160, %v219
    %v232 = vadd.f32 %v161, %v219
    %v233 = vadd.f32 %v162, %v219
    %v234 = vadd.f32 %v163, %v219
    %v235 = vadd.f32 %v164, %v219
    %v236 = vadd.f32 %v165, %v219
    %v237 = vadd.f32 %v166, %v219
    %v238 = vadd.f32 %v167, %v219
    %v239 = vadd.f32 %v168, %v219
    %v240 = vadd.f32 %v169, %v219
    %v241 = vadd.f32 %v170, %v219
    %v242 = vadd.f32 %v171, %v219
    %v243 = vadd.f32 %v172, %v219
    %v244 = vadd.f32 %v173, %v219
    %v245 = vadd.f32 %v174, %v219
    %v246 = vadd.f32 %v175, %v219
    %v247 = vadd.f32 %v176, %v219
    %v248 = vadd.f32 %v177, %v219
    %v249 = vadd.f32 %v178, %v219
    %v250 = vadd.f32 %v179, %v219
    %v251 = vadd.f32 %v180, %v219
    %v252 = vadd.f32 %v181, %v219
    %v253 = vadd.f32 %v182, %v219
    %v254 = vadd.f32 %v183, %v219
    %v255 = vadd.f32 %v184, %v219
    %v256 = vadd.f32 %v185, %v219
    %v257 = vadd.f32 %v186, %v219
    %v258 = vadd.f32 %v187, %v219
    %v259 = vadd.f32 %v188, %v219
    %v260 = vadd.f32 %v189, %v219
    %v261 = vadd.f32 %v190, %v219
    %v262 = vadd.f32 %v191, %v219
    %v263 = vadd.f32 %v192, %v219
    %v264 = vadd.f32 %v193, %v219
    %v265 = vadd.f32 %v194, %v219
    %v266 = vadd.f32 %v195, %v219
    %v267 = vadd.f32 %v196, %v219
    %v268 = vadd.f32 %v197, %v219
    %v269 = vadd.f32 %v198, %v219
    %v270 = vadd.f32 %v199, %v219
    %v271 = vadd.f32 %v200, %v219
    %v272 = vadd.f32 %v201, %v219
    %v273 = vadd.f32 %v202, %v219
    %v274 = vadd.f32 %v203, %v219
    %v275 = vadd.f32 %v204, %v219
    %v276 = vadd.f32 %v205, %v219
    %v277 = vadd.f32 %v206, %v219
    %v278 = vadd.f32 %v207, %v219
    %v279 = vadd.f32 %v208, %v219
    %v280 = vadd.f32 %v209, %v219
    %v281 = vadd.f32 %v210, %v219
    %v282 = vadd.f32 %v211, %v219
    %v283 = vadd.f32 %v212, %v219
    %v284 = vadd.f32 %v213, %v219
    %v285 = vmax.f32 %v221, 0.0
    %v286 = vmax.f32 %v222, 0.0
    %v287 = vmax.f32 %v223, 0.0
    %v288 = vmax.f32 %v224, 0.0
    %v289 = vmax.f32 %v225, 0.0
    %v290 = vmax.f32 %v226, 0.0
    %v291 = vmax.f32 %v227, 0.0
    %v292 = vmax.f32 %v228, 0.0
    %v293 = vmax.f32 %v229, 0.0
    %v294 = vmax.f32 %v230, 0.0
    %v295 = vmax.f32 %v231, 0.0
    %v296 = vmax.f32 %v232, 0.0
    %v297 = vmax.f32 %v233, 0.0
    %v298 = vmax.f32 %v234, 0.0
    %v299 = vmax.f32 %v235, 0.0
    %v300 = vmax.f32 %v236, 0.0
    %v301 = vmax.f32 %v237, 0.0
    %v302 = vmax.f32 %v238, 0.0
    %v303 = vmax.f32 %v239, 0.0
    %v304 = vmax.f32 %v240, 0.0
    %v305 = vmax.f32 %v241, 0.0
    %v306 = vmax.f32 %v242, 0.0
    %v307 = vmax.f32 %v243, 0.0
    %v308 = vmax.f32 %v244, 0.0
    %v309 = vmax.f32 %v245, 0.0
    %v310 = vmax.f32 %v246, 0.0
    %v311 = vmax.f32 %v247, 0.0
    %v312 = vmax.f32 %v248, 0.0
    %v313 = vmax.f32 %v249, 0.0
    %v314 = vmax.f32 %v250, 0.0
    %v315 = vmax.f32 %v251, 0.0
    %v316 = vmax.f32 %v252, 0.0
    %v317 = vmax.f32 %v253, 0.0
    %v318 = vmax.f32 %v254, 0.0
    %v319 = vmax.f32 %v255, 0.0
    %v320 = vmax.f32 %v256, 0.0
    %v321 = vmax.f32 %v257, 0.0
    %v322 = vmax.f32 %v258, 0.0
    %v323 = vmax.f32 %v259, 0.0
    %v324 = vmax.f32 %v260, 0.0
    %v325 = vmax.f32 %v261, 0.0
    %v326 = vmax.f32 %v262, 0.0
    %v327 = vmax.f32 %v263, 0.0
    %v328 = vmax.f32 %v264, 0.0
    %v329 = vmax.f32 %v265, 0.0
    %v330 = vmax.f32 %v266, 0.0
    %v331 = vmax.f32 %v267, 0.0
    %v332 = vmax.f32 %v268, 0.0
    %v333 = vmax.f32 %v269, 0.0
    %v334 = vmax.f32 %v270, 0.0
    %v335 = vmax.f32 %v271, 0.0
    %v336 = vmax.f32 %v272, 0.0
    %v337 = vmax.f32 %v273, 0.0
    %v338 = vmax.f32 %v274, 0.0
    %v339 = vmax.f32 %v275, 0.0
    %v340 = vmax.f32 %v276, 0.0
    %v341 = vmax.f32 %v277, 0.0
    %v342 = vmax.f32 %v278, 0.0
    %v343 = vmax.f32 %v279, 0.0
    %v344 = vmax.f32 %v280, 0.0
    %v345 = vmax.f32 %v281, 0.0
    %v346 = vmax.f32 %v282, 0.0
    %v347 = vmax.f32 %v283, 0.0
    %v348 = vmax.f32 %v284, 0.0
    %349 = vst [vmem:[#allocation2] sm:$0xff] %v285
    %350 = vst [vmem:[#allocation2 + $0x8] sm:$0xff] %v286
    %351 = vst [vmem:[#allocation2 + $0x10] sm:$0xff] %v287
    %352 = vst [vmem:[#allocation2 + $0x18] sm:$0xff] %v288
    %353 = vst [vmem:[#allocation2 + $0x20] sm:$0xff] %v289
    %354 = vst [vmem:[#allocation2 + $0x28] sm:$0xff] %v290
    %355 = vst [vmem:[#allocation2 + $0x30] sm:$0xff] %v291
    %356 = vst [vmem:[#allocation2 + $0x38] sm:$0xff] %v292
    %357 = vst [vmem:[#allocation2 + $0x40] sm:$0xff] %v293
    %358 = vst [vmem:[#allocation2 + $0x48] sm:$0xff] %v294
    %359 = vst [vmem:[#allocation2 + $0x50] sm:$0xff] %v295
    %360 = vst [vmem:[#allocation2 + $0x58] sm:$0xff] %v296
    %361 = vst [vmem:[#allocation2 + $0x60] sm:$0xff] %v297
    %362 = vst [vmem:[#allocation2 + $0x68] sm:$0xff] %v298
    %363 = vst [vmem:[#allocation2 + $0x70] sm:$0xff] %v299
    %364 = vst [vmem:[#allocation2 + $0x78] sm:$0xff] %v300
    %365 = vst [vmem:[#allocation2 + $0x80] sm:$0xff] %v301
    %366 = vst [vmem:[#allocation2 + $0x88] sm:$0xff] %v302
    %367 = vst [vmem:[#allocation2 + $0x90] sm:$0xff] %v303
    %368 = vst [vmem:[#allocation2 + $0x98] sm:$0xff] %v304
    %369 = vst [vmem:[#allocation2 + $0xa0] sm:$0xff] %v305
    %370 = vst [vmem:[#allocation2 + $0xa8] sm:$0xff] %v306
    %371 = vst [vmem:[#allocation2 + $0xb0] sm:$0xff] %v307
    %372 = vst [vmem:[#allocation2 + $0xb8] sm:$0xff] %v308
    %373 = vst [vmem:[#allocation2 + $0xc0] sm:$0xff] %v309
    %374 = vst [vmem:[#allocation2 + $0xc8] sm:$0xff] %v310
    %375 = vst [vmem:[#allocation2 + $0xd0] sm:$0xff] %v311
    %376 = vst [vmem:[#allocation2 + $0xd8] sm:$0xff] %v312
    %377 = vst [vmem:[#allocation2 + $0xe0] sm:$0xff] %v313
    %378 = vst [vmem:[#allocation2 + $0xe8] sm:$0xff] %v314
    %379 = vst [vmem:[#allocation2 + $0xf0] sm:$0xff] %v315
    %380 = vst [vmem:[#allocation2 + $0xf8] sm:$0xff] %v316
    %381 = vst [vmem:[#allocation2 + $0x100] sm:$0xff] %v317
    %382 = vst [vmem:[#allocation2 + $0x108] sm:$0xff] %v318
    %383 = vst [vmem:[#allocation2 + $0x110] sm:$0xff] %v319
    %384 = vst [vmem:[#allocation2 + $0x118] sm:$0xff] %v320
    %385 = vst [vmem:[#allocation2 + $0x120] sm:$0xff] %v321
    %386 = vst [vmem:[#allocation2 + $0x128] sm:$0xff] %v322
    %387 = vst [vmem:[#allocation2 + $0x130] sm:$0xff] %v323
    %388 = vst [vmem:[#allocation2 + $0x138] sm:$0xff] %v324
    %389 = vst [vmem:[#allocation2 + $0x140] sm:$0xff] %v325
    %390 = vst [vmem:[#allocation2 + $0x148] sm:$0xff] %v326
    %391 = vst [vmem:[#allocation2 + $0x150] sm:$0xff] %v327
    %392 = vst [vmem:[#allocation2 + $0x158] sm:$0xff] %v328
    %393 = vst [vmem:[#allocation2 + $0x160] sm:$0xff] %v329
    %394 = vst [vmem:[#allocation2 + $0x168] sm:$0xff] %v330
    %395 = vst [vmem:[#allocation2 + $0x170] sm:$0xff] %v331
    %396 = vst [vmem:[#allocation2 + $0x178] sm:$0xff] %v332
    %397 = vst [vmem:[#allocation2 + $0x180] sm:$0xff] %v333
    %398 = vst [vmem:[#allocation2 + $0x188] sm:$0xff] %v334
    %399 = vst [vmem:[#allocation2 + $0x190] sm:$0xff] %v335
    %400 = vst [vmem:[#allocation2 + $0x198] sm:$0xff] %v336
    %401 = vst [vmem:[#allocation2 + $0x1a0] sm:$0xff] %v337
    %402 = vst [vmem:[#allocation2 + $0x1a8] sm:$0xff] %v338
    %403 = vst [vmem:[#allocation2 + $0x1b0] sm:$0xff] %v339
    %404 = vst [vmem:[#allocation2 + $0x1b8] sm:$0xff] %v340
    %405 = vst [vmem:[#allocation2 + $0x1c0] sm:$0xff] %v341
    %406 = vst [vmem:[#allocation2 + $0x1c8] sm:$0xff] %v342
    %407 = vst [vmem:[#allocation2 + $0x1d0] sm:$0xff] %v343
    %408 = vst [vmem:[#allocation2 + $0x1d8] sm:$0xff] %v344
    %409 = vst [vmem:[#allocation2 + $0x1e0] sm:$0xff] %v345
    %410 = vst [vmem:[#allocation2 + $0x1e8] sm:$0xff] %v346
    %411 = vst [vmem:[#allocation2 + $0x1f0] sm:$0xff] %v347
    %412 = vst [vmem:[#allocation2 + $0x1f8] sm:$0xff] %v348
    // Predicated region
    $region14: #{simple_model_forward.5} parent=1 // pred_check
      _
    $region15: #{simple_model_forward.5} parent=1 // pred_check_branch
      %414 = sbr.rel (0) target = $region17
    $region16: #{simple_model_forward.5} parent=1 // pred_region
      %s416 = ssub.s32 8192, 8192
      %417 = vsyncadd [#allocation3], %s416
      %s418 = sshll.u32 [#allocation2], 4
      %s419 = int_to_ptr.vmem [resolvable:$true] %s418
      %424 = dma.vmem_to_hbm [thread:$0]  %s419, 8192, %s3, [#allocation3], 128, 128, 8
    $region17: #{simple_model_forward.5} parent=1 // pred_fallthru
      _
    // Predicated region
    $region18: #{simple_model_forward.5} parent=1 // pred_check
      _
    $region19: #{simple_model_forward.5} parent=1 // pred_check_branch
      %426 = sbr.rel (0) target = $region21
    $region20: #{simple_model_forward.5} parent=1 // pred_region
      %427 = dma.done [#allocation3], 8192
    $region21: #{simple_model_forward.5} parent=1 // pred_fallthru
      _
    %428 = vsyncpa [#allocation3], 1

// kernel: simple_model_forward.4
$region0: #{simple_model_forward.4}
  #allocation0 [shape = 'u32[]', space=smem, size = 0x4, offset = 0x4, fixed_abs, tag = 'smem constant byte address 0x4 - core index']
  #allocation1 [shape = 'u32[144,128]{1,0:T(1,128)}', space=vmem, size = 0x12000, scoped, tag = 'internal scratch']
  #allocation2 [shape = 'bf16[18,18,128]{2,1,0:T(8,128)(2,1)}', space=vmem, size = 0x1b000, scoped, tag = 'scratch operand']
  %s0 = inlined_call_operand.vmem [shape: bf16[2,16,16,128], index: 0, kind: input, shape index: {}]
  %s1 = inlined_call_operand.vmem [shape: bf16[9,128,128], index: 1, kind: input, shape index: {}]
  %s2 = inlined_call_operand.vmem [shape: f32[1,128], index: 2, kind: input, shape index: {}]
  %s3 = inlined_call_operand.vmem [shape: f32[1,128], index: 3, kind: input, shape index: {}]
  %s4 = inlined_call_operand.vmem [shape: bf16[2,16,16,128], index: 4, kind: output, shape index: {0}]
  %s5 = inlined_call_operand.vmem [shape: f32[2,1,2,128], index: 5, kind: output, shape index: {1}]
  %6 = xla_tuple %s4, %s5
  %s7 = sld [smem:[#allocation0]]
  $region61: #{simple_model_forward.4} parent=0
    _
  %s9 = ssub.s32 1, %s7
  %s10 = scalar_select 0, %s9, %s7
  loop: start=0, step=1, limit=4
  $region2: #{simple_model_forward.4} parent=0 // loop_pre_header
    _
  $region3: #{simple_model_forward.4} parent=0 // loop_header
    %s12 = sphi 0, %s16
    %p13 = scmp.ge.s32.totalorder %s12, 4
    %s19 = sphi 0, %s31
    %s20 = sphi 0, %s27
    %s21 = sphi 0, %s19
    %s22 = sphi 0, %s20
    %s23 = sphi 0, %s21
    %s24 = sphi 0, %s22
    %s34 = sphi 0, %s36
    %s37 = sphi 0, %s34
    %s38 = sphi 0, %s37
    %s54 = sphi 0, %s38
    %s58 = sphi 0, %s58
    %s60 = sphi 0, %s58
    %s61 = sphi 0, %s60
    %s75 = sphi 0, %s61
    %s79 = sphi 0, %s79
    %s81 = sphi 0, %s79
    %s82 = sphi 0, %s81
    %s96 = sphi 0, %s82
    %s100 = sphi 0, %s100
    %s102 = sphi 0, %s100
    %s103 = sphi 0, %s102
    %s117 = sphi 0, %s103
    %s125 = sphi 0, %s127
    %s128 = sphi 0, %s125
    %s129 = sphi 0, %s128
    %s145 = sphi 0, %s129
    %s153 = sphi 0, %s155
    %s156 = sphi 0, %s153
    %s157 = sphi 0, %s156
    %s173 = sphi 0, %s157
  $region4: #{simple_model_forward.4} parent=0 // loop_header_branch
    %15 = sbr.rel (%p13) target = $region8
  $region5: #{simple_model_forward.4} parent=0 // loop_body
    %s17 = ssub.s32 %s12, 1
    %s18 = ssub.s32 %s12, 2
    %s25 = sadd.s32 1, %s20
    %p26 = scmp.ge.s32.totalorder %s25, 1
    %s27 = scalar_select %p26, 0, %s25
    %s28 = sadd.s32 1, %s19
    %s29 = scalar_select %p26, %s28, %s19
    %p30 = scmp.ge.s32.totalorder %s29, 2
    %s31 = scalar_select %p30, 0, %s29
    %s32 = ssub.s32 %s19, %s31
    %p33 = scmp.eq.s32.totalorder %s32, 0
    %s35 = sadd.s32 %s34, 1
    %s36 = scalar_select %p33, %s34, %s35
    %p39 = pneg %p33
    %p40 = scmp.eq.s32.totalorder %s12, 1
    %p41 = por %p39, %p40
    %p42 = scmp.ne.s32.totalorder %s34, %s37
    %p43 = scmp.eq.s32.totalorder %s12, 0
    %p44 = por %p42, %p43
    %p45 = scmp.ne.s32.totalorder %s34, %s37
    %p46 = scmp.eq.s32.totalorder %s17, 1
    %p47 = por %p45, %p46
    %p48 = scmp.ne.s32.totalorder %s37, %s38
    %p49 = scmp.eq.s32.totalorder %s17, 0
    %p50 = por %p48, %p49
    %p51 = scmp.ne.s32.totalorder %s37, %s38
    %p52 = scmp.eq.s32.totalorder %s18, 1
    %p53 = por %p51, %p52
    %p55 = scmp.ne.s32.totalorder %s38, %s54
    %p56 = scmp.eq.s32.totalorder %s18, 0
    %p57 = por %p55, %p56
    %s59 = sadd.s32 %s58, 1
    %p62 = scmp.eq.s32.totalorder %s12, 1
    %p63 = scmp.ne.s32.totalorder %s58, %s60
    %p64 = scmp.eq.s32.totalorder %s12, 0
    %p65 = por %p63, %p64
    %p66 = scmp.ne.s32.totalorder %s58, %s60
    %p67 = scmp.eq.s32.totalorder %s17, 1
    %p68 = por %p66, %p67
    %p69 = scmp.ne.s32.totalorder %s60, %s61
    %p70 = scmp.eq.s32.totalorder %s17, 0
    %p71 = por %p69, %p70
    %p72 = scmp.ne.s32.totalorder %s60, %s61
    %p73 = scmp.eq.s32.totalorder %s18, 1
    %p74 = por %p72, %p73
    %p76 = scmp.ne.s32.totalorder %s61, %s75
    %p77 = scmp.eq.s32.totalorder %s18, 0
    %p78 = por %p76, %p77
    %s80 = sadd.s32 %s79, 1
    %p83 = scmp.eq.s32.totalorder %s12, 1
    %p84 = scmp.ne.s32.totalorder %s79, %s81
    %p85 = scmp.eq.s32.totalorder %s12, 0
    %p86 = por %p84, %p85
    %p87 = scmp.ne.s32.totalorder %s79, %s81
    %p88 = scmp.eq.s32.totalorder %s17, 1
    %p89 = por %p87, %p88
    %p90 = scmp.ne.s32.totalorder %s81, %s82
    %p91 = scmp.eq.s32.totalorder %s17, 0
    %p92 = por %p90, %p91
    %p93 = scmp.ne.s32.totalorder %s81, %s82
    %p94 = scmp.eq.s32.totalorder %s18, 1
    %p95 = por %p93, %p94
    %p97 = scmp.ne.s32.totalorder %s82, %s96
    %p98 = scmp.eq.s32.totalorder %s18, 0
    %p99 = por %p97, %p98
    %s101 = sadd.s32 %s100, 1
    %p104 = scmp.eq.s32.totalorder %s12, 1
    %p105 = scmp.ne.s32.totalorder %s100, %s102
    %p106 = scmp.eq.s32.totalorder %s12, 0
    %p107 = por %p105, %p106
    %p108 = scmp.ne.s32.totalorder %s100, %s102
    %p109 = scmp.eq.s32.totalorder %s17, 1
    %p110 = por %p108, %p109
    %p111 = scmp.ne.s32.totalorder %s102, %s103
    %p112 = scmp.eq.s32.totalorder %s17, 0
    %p113 = por %p111, %p112
    %p114 = scmp.ne.s32.totalorder %s102, %s103
    %p115 = scmp.eq.s32.totalorder %s18, 1
    %p116 = por %p114, %p115
    %p118 = scmp.ne.s32.totalorder %s103, %s117
    %p119 = scmp.eq.s32.totalorder %s18, 0
    %p120 = por %p118, %p119
    %s121 = ssub.s32 %s19, %s31
    %s122 = ssub.s32 %s20, %s27
    %s123 = sor.u32 %s121, %s122
    %p124 = scmp.eq.s32.totalorder %s123, 0
    %s126 = sadd.s32 %s125, 1
    %s127 = scalar_select %p124, %s125, %s126
    %p130 = pneg %p124
    %p131 = scmp.eq.s32.totalorder %s12, 1
    %p132 = por %p130, %p131
    %p133 = scmp.ne.s32.totalorder %s125, %s128
    %p134 = scmp.eq.s32.totalorder %s12, 0
    %p135 = por %p133, %p134
    %p136 = scmp.ne.s32.totalorder %s125, %s128
    %p137 = scmp.eq.s32.totalorder %s17, 1
    %p138 = por %p136, %p137
    %p139 = scmp.ne.s32.totalorder %s128, %s129
    %p140 = scmp.eq.s32.totalorder %s17, 0
    %p141 = por %p139, %p140
    %p142 = scmp.ne.s32.totalorder %s128, %s129
    %p143 = scmp.eq.s32.totalorder %s18, 1
    %p144 = por %p142, %p143
    %p146 = scmp.ne.s32.totalorder %s129, %s145
    %p147 = scmp.eq.s32.totalorder %s18, 0
    %p148 = por %p146, %p147
    %s149 = ssub.s32 %s19, %s31
    %s150 = ssub.s32 %s20, %s27
    %s151 = sor.u32 %s149, %s150
    %p152 = scmp.eq.s32.totalorder %s151, 0
    %s154 = sadd.s32 %s153, 1
    %s155 = scalar_select %p152, %s153, %s154
    %p158 = pneg %p152
    %p159 = scmp.eq.s32.totalorder %s12, 1
    %p160 = por %p158, %p159
    %p161 = scmp.ne.s32.totalorder %s153, %s156
    %p162 = scmp.eq.s32.totalorder %s12, 0
    %p163 = por %p161, %p162
    %p164 = scmp.ne.s32.totalorder %s153, %s156
    %p165 = scmp.eq.s32.totalorder %s17, 1
    %p166 = por %p164, %p165
    %p167 = scmp.ne.s32.totalorder %s156, %s157
    %p168 = scmp.eq.s32.totalorder %s17, 0
    %p169 = por %p167, %p168
    %p170 = scmp.ne.s32.totalorder %s156, %s157
    %p171 = scmp.eq.s32.totalorder %s18, 1
    %p172 = por %p170, %p171
    %p174 = scmp.ne.s32.totalorder %s157, %s173
    %p175 = scmp.eq.s32.totalorder %s18, 0
    %p176 = por %p174, %p175
    %p177 = scmp.le.s32.totalorder 1, %s12
    %p178 = scmp.lt.s32.totalorder %s12, 3
    %p179 = pnand %p177, %p178
    %p180 = pneg %p179
    // Predicated region
    $region9: #{simple_model_forward.4} parent=5 // pred_check
      _
    $region10: #{simple_model_forward.4} parent=5 // pred_check_branch
      %182 = sbr.rel (%p179) target = $region12
    $region11: #{simple_model_forward.4} parent=5 // pred_region
      %s183 = ssub.s32 %s12, 1
      // Predicated region
      $region13: #{simple_model_forward.4} parent=11 // pred_check
        %p184 = pneg %p71
      $region14: #{simple_model_forward.4} parent=11 // pred_check_branch
        %186 = sbr.rel (%p184) target = $region16
      $region15: #{simple_model_forward.4} parent=11 // pred_region
        _
      $region16: #{simple_model_forward.4} parent=11 // pred_fallthru
        _
      // Predicated region
      $region17: #{simple_model_forward.4} parent=11 // pred_check
        %p187 = pneg %p92
      $region18: #{simple_model_forward.4} parent=11 // pred_check_branch
        %189 = sbr.rel (%p187) target = $region20
      $region19: #{simple_model_forward.4} parent=11 // pred_region
        _
      $region20: #{simple_model_forward.4} parent=11 // pred_fallthru
        _
      // Predicated region
      $region21: #{simple_model_forward.4} parent=11 // pred_check
        %p190 = pneg %p113
      $region22: #{simple_model_forward.4} parent=11 // pred_check_branch
        %192 = sbr.rel (%p190) target = $region24
      $region23: #{simple_model_forward.4} parent=11 // pred_region
        _
      $region24: #{simple_model_forward.4} parent=11 // pred_fallthru
        _
    $region12: #{simple_model_forward.4} parent=5 // pred_fallthru
      _
    %p193 = scmp.lt.s32.totalorder %s12, 2
    // Predicated region
    $region25: #{simple_model_forward.4} parent=5 // pred_check
      %p194 = pneg %p193
    $region26: #{simple_model_forward.4} parent=5 // pred_check_branch
      %196 = sbr.rel (%p194) target = $region28
    $region27: #{simple_model_forward.4} parent=5 // pred_region
      // Predicated region
      $region29: #{simple_model_forward.4} parent=27 // pred_check
        %p197 = pneg %p44
      $region30: #{simple_model_forward.4} parent=27 // pred_check_branch
        %199 = sbr.rel (%p197) target = $region32
      $region31: #{simple_model_forward.4} parent=27 // pred_region
        %p200 = scmp.lt.s32.totalorder %s19, 1
        %s201 = scalar_select %p200, %s19, 1
        %s202 = smul.addr %s201, 32
        %s203 = smul.addr %s202, 4
        %s204 = scalar_lea.vmem %s0, %s203
      $region32: #{simple_model_forward.4} parent=27 // pred_fallthru
        _
    $region28: #{simple_model_forward.4} parent=5 // pred_fallthru
      _
    %p205 = scmp.le.s32.totalorder 1, %s12
    %p206 = scmp.lt.s32.totalorder %s12, 3
    %p207 = pnand %p205, %p206
    %p208 = pneg %p207
    // Predicated region
    $region33: #{simple_model_forward.4} parent=5 // pred_check
      _
    $region34: #{simple_model_forward.4} parent=5 // pred_check_branch
      %210 = sbr.rel (%p207) target = $region36
    $region35: #{simple_model_forward.4} parent=5 // pred_region
      %s211 = ssub.s32 %s12, 1
      %p212 = scmp.lt.s32.totalorder %s21, 1
      %s213 = scalar_select %p212, %s21, 1
      %s214 = smul.addr %s213, 32
      %s215 = smul.addr %s214, 4
      %s216 = scalar_lea.vmem %s0, %s215
      %p217 = pneg %p50
      %p218 = pneg %p47
      %p219 = pneg %p71
      %p220 = pneg %p68
      %p221 = pneg %p92
      %p222 = pneg %p89
      %p223 = pneg %p113
      %p224 = pneg %p110
      %p225 = pneg %p141
      %p226 = pneg %p138
      %s227 = smul.u32 16, %s22
      %p228 = scmp.lt.s32.totalorder %s21, 1
      %s229 = scalar_select %p228, %s21, 1
      %p230 = scmp.lt.s32.totalorder %s227, 15
      %s231 = scalar_select %p230, %s227, 15
      %s232 = smul.addr %s231, 2
      %s233 = smul.addr %s229, 32
      %s234 = sadd.s32 %s232, %s233
      %s235 = smul.addr %s234, 4
      %s236 = scalar_lea.vmem %s4, %s235
      %p237 = pneg %p169
      %p238 = pneg %p166
      %p239 = scmp.lt.s32.totalorder %s21, 1
      %s240 = scalar_select %p239, %s21, 1
      %p241 = scmp.lt.s32.totalorder %s22, 0
      %s242 = scalar_select %p241, %s22, 0
      %s243 = sadd.s32 %s242, %s240
      %s244 = smul.addr %s243, 2
      %s245 = scalar_lea.vmem %s5, %s244
      %p246 = scmp.lt.s32.totalorder %s21, 1
      %s247 = scalar_select %p246, %s21, 1
      %s248 = smul.addr %s247, 32
      %s249 = smul.addr %s248, 4
      %s250 = scalar_lea.vmem %s0, %s249
      %s251 = smul.u32 16, %s22
      %p252 = scmp.lt.s32.totalorder %s21, 1
      %s253 = scalar_select %p252, %s21, 1
      %p254 = scmp.lt.s32.totalorder %s251, 15
      %s255 = scalar_select %p254, %s251, 15
      %s256 = smul.addr %s255, 2
      %s257 = smul.addr %s253, 32
      %s258 = sadd.s32 %s256, %s257
      %s259 = smul.addr %s258, 4
      %s260 = scalar_lea.vmem %s4, %s259
      %s261 = smul.u32 16, %s22
      %p262 = scmp.lt.s32.totalorder %s21, 1
      %s263 = scalar_select %p262, %s21, 1
      %p264 = scmp.lt.s32.totalorder %s22, 0
      %s265 = scalar_select %p264, %s22, 0
      %s266 = sadd.s32 %s265, %s263
      %s267 = smul.addr %s266, 2
      %s268 = scalar_lea.vmem %s5, %s267
      %p270 = scmp.eq.s32.totalorder %s22, 0
      // Predicated region
      $region37: #{simple_model_forward.4} parent=35 // pred_check
        %p271 = pneg %p270
      $region38: #{simple_model_forward.4} parent=35 // pred_check_branch
        %273 = sbr.rel (%p271) target = $region40
      $region39: #{simple_model_forward.4} parent=35 // pred_region
        %274 = vst [vmem:[#allocation2] sm:$0xf] 0
        %275 = vst [vmem:[#allocation2 + $0x4] sm:$0xf] 0
        %276 = vst [vmem:[#allocation2 + $0x8] sm:$0x1] 0
        %277 = vst [vmem:[#allocation2 + $0xc] sm:$0xf] 0
        %278 = vst [vmem:[#allocation2 + $0x10] sm:$0xf] 0
        %279 = vst [vmem:[#allocation2 + $0x14] sm:$0x1] 0
        %280 = vst [vmem:[#allocation2 + $0x18] sm:$0xf] 0
        %281 = vst [vmem:[#allocation2 + $0x1c] sm:$0xf] 0
        %282 = vst [vmem:[#allocation2 + $0x20] sm:$0x1] 0
        %283 = vst [vmem:[#allocation2 + $0x24] sm:$0xf] 0
        %284 = vst [vmem:[#allocation2 + $0x28] sm:$0xf] 0
        %285 = vst [vmem:[#allocation2 + $0x2c] sm:$0x1] 0
        %286 = vst [vmem:[#allocation2 + $0x30] sm:$0xf] 0
        %287 = vst [vmem:[#allocation2 + $0x34] sm:$0xf] 0
        %288 = vst [vmem:[#allocation2 + $0x38] sm:$0x1] 0
        %289 = vst [vmem:[#allocation2 + $0x3c] sm:$0xf] 0
        %290 = vst [vmem:[#allocation2 + $0x40] sm:$0xf] 0
        %291 = vst [vmem:[#allocation2 + $0x44] sm:$0x1] 0
        %292 = vst [vmem:[#allocation2 + $0x48] sm:$0xf] 0
        %293 = vst [vmem:[#allocation2 + $0x4c] sm:$0xf] 0
        %294 = vst [vmem:[#allocation2 + $0x50] sm:$0x1] 0
        %295 = vst [vmem:[#allocation2 + $0x54] sm:$0xf] 0
        %296 = vst [vmem:[#allocation2 + $0x58] sm:$0xf] 0
        %297 = vst [vmem:[#allocation2 + $0x5c] sm:$0x1] 0
        %298 = vst [vmem:[#allocation2 + $0x60] sm:$0xf] 0
        %299 = vst [vmem:[#allocation2 + $0x64] sm:$0xf] 0
        %300 = vst [vmem:[#allocation2 + $0x68] sm:$0x1] 0
        %301 = vst [vmem:[#allocation2 + $0x6c] sm:$0xf] 0
        %302 = vst [vmem:[#allocation2 + $0x70] sm:$0xf] 0
        %303 = vst [vmem:[#allocation2 + $0x74] sm:$0x1] 0
        %304 = vst [vmem:[#allocation2 + $0x78] sm:$0xf] 0
        %305 = vst [vmem:[#allocation2 + $0x7c] sm:$0xf] 0
        %306 = vst [vmem:[#allocation2 + $0x80] sm:$0x1] 0
        %307 = vst [vmem:[#allocation2 + $0x84] sm:$0xf] 0
        %308 = vst [vmem:[#allocation2 + $0x88] sm:$0xf] 0
        %309 = vst [vmem:[#allocation2 + $0x8c] sm:$0x1] 0
        %310 = vst [vmem:[#allocation2 + $0x90] sm:$0xf] 0
        %311 = vst [vmem:[#allocation2 + $0x94] sm:$0xf] 0
        %312 = vst [vmem:[#allocation2 + $0x98] sm:$0x1] 0
        %313 = vst [vmem:[#allocation2 + $0x9c] sm:$0xf] 0
        %314 = vst [vmem:[#allocation2 + $0xa0] sm:$0xf] 0
        %315 = vst [vmem:[#allocation2 + $0xa4] sm:$0x1] 0
        %316 = vst [vmem:[#allocation2 + $0xa8] sm:$0xf] 0
        %317 = vst [vmem:[#allocation2 + $0xac] sm:$0xf] 0
        %318 = vst [vmem:[#allocation2 + $0xb0] sm:$0x1] 0
        %319 = vst [vmem:[#allocation2 + $0xb4] sm:$0xf] 0
        %320 = vst [vmem:[#allocation2 + $0xb8] sm:$0xf] 0
        %321 = vst [vmem:[#allocation2 + $0xbc] sm:$0x1] 0
        %322 = vst [vmem:[#allocation2 + $0xc0] sm:$0xf] 0
        %323 = vst [vmem:[#allocation2 + $0xc4] sm:$0xf] 0
        %324 = vst [vmem:[#allocation2 + $0xc8] sm:$0x1] 0
        %325 = vst [vmem:[#allocation2 + $0xcc] sm:$0xf] 0
        %326 = vst [vmem:[#allocation2 + $0xd0] sm:$0xf] 0
        %327 = vst [vmem:[#allocation2 + $0xd4] sm:$0x1] 0
        %v328 = vld [vmem:[%s250] sm:$0xf]
        %v329 = vld [vmem:[%s250 + $0x4] sm:$0xf]
        %v330 = vld [vmem:[%s250 + $0x8] sm:$0xf]
        %v331 = vld [vmem:[%s250 + $0xc] sm:$0xf]
        %v332 = vld [vmem:[%s250 + $0x10] sm:$0xf]
        %v333 = vld [vmem:[%s250 + $0x14] sm:$0xf]
        %v334 = vld [vmem:[%s250 + $0x18] sm:$0xf]
        %v335 = vld [vmem:[%s250 + $0x1c] sm:$0xf]
        %v336 = vld [vmem:[%s250 + $0x20] sm:$0xf]
        %v337 = vld [vmem:[%s250 + $0x24] sm:$0xf]
        %v338 = vld [vmem:[%s250 + $0x28] sm:$0xf]
        %v339 = vld [vmem:[%s250 + $0x2c] sm:$0xf]
        %v340 = vld [vmem:[%s250 + $0x30] sm:$0xf]
        %v341 = vld [vmem:[%s250 + $0x34] sm:$0xf]
        %v342 = vld [vmem:[%s250 + $0x38] sm:$0xf]
        %v343 = vld [vmem:[%s250 + $0x3c] sm:$0xf]
        %v344 = vld [vmem:[%s250 + $0x40] sm:$0xf]
        %v345 = vld [vmem:[%s250 + $0x44] sm:$0xf]
        %v346 = vld [vmem:[%s250 + $0x48] sm:$0xf]
        %v347 = vld [vmem:[%s250 + $0x4c] sm:$0xf]
        %v348 = vld [vmem:[%s250 + $0x50] sm:$0xf]
        %v349 = vld [vmem:[%s250 + $0x54] sm:$0xf]
        %v350 = vld [vmem:[%s250 + $0x58] sm:$0xf]
        %v351 = vld [vmem:[%s250 + $0x5c] sm:$0xf]
        %v352 = vld [vmem:[%s250 + $0x60] sm:$0xf]
        %v353 = vld [vmem:[%s250 + $0x64] sm:$0xf]
        %v354 = vld [vmem:[%s250 + $0x68] sm:$0xf]
        %v355 = vld [vmem:[%s250 + $0x6c] sm:$0xf]
        %v356 = vld [vmem:[%s250 + $0x70] sm:$0xf]
        %v357 = vld [vmem:[%s250 + $0x74] sm:$0xf]
        %v358 = vld [vmem:[%s250 + $0x78] sm:$0xf]
        %v359 = vld [vmem:[%s250 + $0x7c] sm:$0xf]
        %v360 = vunpack.c.l.bf16 %v328
        %v361 = vunpack.c.l.bf16 %v329
        %v362 = vunpack.c.l.bf16 %v330
        %v363 = vunpack.c.l.bf16 %v331
        %v364 = vunpack.c.l.bf16 %v332
        %v365 = vunpack.c.l.bf16 %v333
        %v366 = vunpack.c.l.bf16 %v334
        %v367 = vunpack.c.l.bf16 %v335
        %v368 = vunpack.c.l.bf16 %v336
        %v369 = vunpack.c.l.bf16 %v337
        %v370 = vunpack.c.l.bf16 %v338
        %v371 = vunpack.c.l.bf16 %v339
        %v372 = vunpack.c.l.bf16 %v340
        %v373 = vunpack.c.l.bf16 %v341
        %v374 = vunpack.c.l.bf16 %v342
        %v375 = vunpack.c.l.bf16 %v343
        %v376 = vunpack.c.l.bf16 %v344
        %v377 = vunpack.c.l.bf16 %v345
        %v378 = vunpack.c.l.bf16 %v346
        %v379 = vunpack.c.l.bf16 %v347
        %v380 = vunpack.c.l.bf16 %v348
        %v381 = vunpack.c.l.bf16 %v349
        %v382 = vunpack.c.l.bf16 %v350
        %v383 = vunpack.c.l.bf16 %v351
        %v384 = vunpack.c.l.bf16 %v352
        %v385 = vunpack.c.l.bf16 %v353
        %v386 = vunpack.c.l.bf16 %v354
        %v387 = vunpack.c.l.bf16 %v355
        %v388 = vunpack.c.l.bf16 %v356
        %v389 = vunpack.c.l.bf16 %v357
        %v390 = vunpack.c.l.bf16 %v358
        %v391 = vunpack.c.l.bf16 %v359
        %v392 = vld [vmem:[%s2] sm:$0x1]
        %v394 = vlaneseq
        %v395 = vshrl.u32 %v394, 7
        %v396 = vsub.s32 0, %v395
        %v397 = vrot.slane %v392, %v396
        %v399 = vmul.f32 %v360, %v397
        %v400 = vmul.f32 %v361, %v397
        %v401 = vmul.f32 %v362, %v397
        %v402 = vmul.f32 %v363, %v397
        %v403 = vmul.f32 %v364, %v397
        %v404 = vmul.f32 %v365, %v397
        %v405 = vmul.f32 %v366, %v397
        %v406 = vmul.f32 %v367, %v397
        %v407 = vmul.f32 %v368, %v397
        %v408 = vmul.f32 %v369, %v397
        %v409 = vmul.f32 %v370, %v397
        %v410 = vmul.f32 %v371, %v397
        %v411 = vmul.f32 %v372, %v397
        %v412 = vmul.f32 %v373, %v397
        %v413 = vmul.f32 %v374, %v397
        %v414 = vmul.f32 %v375, %v397
        %v415 = vmul.f32 %v376, %v397
        %v416 = vmul.f32 %v377, %v397
        %v417 = vmul.f32 %v378, %v397
        %v418 = vmul.f32 %v379, %v397
        %v419 = vmul.f32 %v380, %v397
        %v420 = vmul.f32 %v381, %v397
        %v421 = vmul.f32 %v382, %v397
        %v422 = vmul.f32 %v383, %v397
        %v423 = vmul.f32 %v384, %v397
        %v424 = vmul.f32 %v385, %v397
        %v425 = vmul.f32 %v386, %v397
        %v426 = vmul.f32 %v387, %v397
        %v427 = vmul.f32 %v388, %v397
        %v428 = vmul.f32 %v389, %v397
        %v429 = vmul.f32 %v390, %v397
        %v430 = vmul.f32 %v391, %v397
        %v431 = vld [vmem:[%s3] sm:$0x1]
        %v433 = vlaneseq
        %v434 = vshrl.u32 %v433, 7
        %v435 = vsub.s32 0, %v434
        %v436 = vrot.slane %v431, %v435
        %v438 = vadd.f32 %v399, %v436
        %v439 = vadd.f32 %v400, %v436
        %v440 = vadd.f32 %v401, %v436
        %v441 = vadd.f32 %v402, %v436
        %v442 = vadd.f32 %v403, %v436
        %v443 = vadd.f32 %v404, %v436
        %v444 = vadd.f32 %v405, %v436
        %v445 = vadd.f32 %v406, %v436
        %v446 = vadd.f32 %v407, %v436
        %v447 = vadd.f32 %v408, %v436
        %v448 = vadd.f32 %v409, %v436
        %v449 = vadd.f32 %v410, %v436
        %v450 = vadd.f32 %v411, %v436
        %v451 = vadd.f32 %v412, %v436
        %v452 = vadd.f32 %v413, %v436
        %v453 = vadd.f32 %v414, %v436
        %v454 = vadd.f32 %v415, %v436
        %v455 = vadd.f32 %v416, %v436
        %v456 = vadd.f32 %v417, %v436
        %v457 = vadd.f32 %v418, %v436
        %v458 = vadd.f32 %v419, %v436
        %v459 = vadd.f32 %v420, %v436
        %v460 = vadd.f32 %v421, %v436
        %v461 = vadd.f32 %v422, %v436
        %v462 = vadd.f32 %v423, %v436
        %v463 = vadd.f32 %v424, %v436
        %v464 = vadd.f32 %v425, %v436
        %v465 = vadd.f32 %v426, %v436
        %v466 = vadd.f32 %v427, %v436
        %v467 = vadd.f32 %v428, %v436
        %v468 = vadd.f32 %v429, %v436
        %v469 = vadd.f32 %v430, %v436
        %v470 = vmax.f32 %v438, 0.0
        %v471 = vmax.f32 %v439, 0.0
        %v472 = vmax.f32 %v440, 0.0
        %v473 = vmax.f32 %v441, 0.0
        %v474 = vmax.f32 %v442, 0.0
        %v475 = vmax.f32 %v443, 0.0
        %v476 = vmax.f32 %v444, 0.0
        %v477 = vmax.f32 %v445, 0.0
        %v478 = vmax.f32 %v446, 0.0
        %v479 = vmax.f32 %v447, 0.0
        %v480 = vmax.f32 %v448, 0.0
        %v481 = vmax.f32 %v449, 0.0
        %v482 = vmax.f32 %v450, 0.0
        %v483 = vmax.f32 %v451, 0.0
        %v484 = vmax.f32 %v452, 0.0
        %v485 = vmax.f32 %v453, 0.0
        %v486 = vmax.f32 %v454, 0.0
        %v487 = vmax.f32 %v455, 0.0
        %v488 = vmax.f32 %v456, 0.0
        %v489 = vmax.f32 %v457, 0.0
        %v490 = vmax.f32 %v458, 0.0
        %v491 = vmax.f32 %v459, 0.0
        %v492 = vmax.f32 %v460, 0.0
        %v493 = vmax.f32 %v461, 0.0
        %v494 = vmax.f32 %v462, 0.0
        %v495 = vmax.f32 %v463, 0.0
        %v496 = vmax.f32 %v464, 0.0
        %v497 = vmax.f32 %v465, 0.0
        %v498 = vmax.f32 %v466, 0.0
        %v499 = vmax.f32 %v467, 0.0
        %v500 = vmax.f32 %v468, 0.0
        %v501 = vmax.f32 %v469, 0.0
        %v502 = vpack.c.bf16 %v471, %v470
        %v503 = vpack.c.bf16 %v473, %v472
        %v504 = vpack.c.bf16 %v475, %v474
        %v505 = vpack.c.bf16 %v477, %v476
        %v506 = vpack.c.bf16 %v479, %v478
        %v507 = vpack.c.bf16 %v481, %v480
        %v508 = vpack.c.bf16 %v483, %v482
        %v509 = vpack.c.bf16 %v485, %v484
        %v510 = vpack.c.bf16 %v487, %v486
        %v511 = vpack.c.bf16 %v489, %v488
        %v512 = vpack.c.bf16 %v491, %v490
        %v513 = vpack.c.bf16 %v493, %v492
        %v514 = vpack.c.bf16 %v495, %v494
        %v515 = vpack.c.bf16 %v497, %v496
        %v516 = vpack.c.bf16 %v499, %v498
        %v517 = vpack.c.bf16 %v501, %v500
        %v534 = vunpack.c.l.b16 %v502
        %v535 = vunpack.c.h.b16 %v502
        %v536 = vunpack.c.l.b16 %v503
        %v537 = vunpack.c.h.b16 %v503
        %v538 = vunpack.c.l.b16 %v504
        %v539 = vunpack.c.h.b16 %v504
        %v540 = vunpack.c.l.b16 %v505
        %v541 = vunpack.c.h.b16 %v505
        %v542 = vunpack.c.l.b16 %v506
        %v543 = vunpack.c.h.b16 %v506
        %v544 = vunpack.c.l.b16 %v507
        %v545 = vunpack.c.h.b16 %v507
        %v546 = vunpack.c.l.b16 %v508
        %v547 = vunpack.c.h.b16 %v508
        %v548 = vunpack.c.l.b16 %v509
        %v549 = vunpack.c.h.b16 %v509
        %v550 = vunpack.c.l.b16 %v510
        %v551 = vunpack.c.h.b16 %v510
        %v552 = vunpack.c.l.b16 %v511
        %v553 = vunpack.c.h.b16 %v511
        %v554 = vunpack.c.l.b16 %v512
        %v555 = vunpack.c.h.b16 %v512
        %v556 = vunpack.c.l.b16 %v513
        %v557 = vunpack.c.h.b16 %v513
        %v558 = vunpack.c.l.b16 %v514
        %v559 = vunpack.c.h.b16 %v514
        %v560 = vunpack.c.l.b16 %v515
        %v561 = vunpack.c.h.b16 %v515
        %v562 = vunpack.c.l.b16 %v516
        %v563 = vunpack.c.h.b16 %v516
        %v564 = vunpack.c.l.b16 %v517
        %v565 = vunpack.c.h.b16 %v517
        %v566 = vpack.c.b16 %v534, %v534
        %v567 = vpack.c.b16 %v535, %v535
        %v568 = vpack.c.b16 %v536, %v536
        %v569 = vpack.c.b16 %v537, %v537
        %v570 = vpack.c.b16 %v538, %v538
        %v571 = vpack.c.b16 %v539, %v539
        %v572 = vpack.c.b16 %v540, %v540
        %v573 = vpack.c.b16 %v541, %v541
        %v574 = vpack.c.b16 %v542, %v542
        %v575 = vpack.c.b16 %v543, %v543
        %v576 = vpack.c.b16 %v544, %v544
        %v577 = vpack.c.b16 %v545, %v545
        %v578 = vpack.c.b16 %v546, %v546
        %v579 = vpack.c.b16 %v547, %v547
        %v580 = vpack.c.b16 %v548, %v548
        %v581 = vpack.c.b16 %v549, %v549
        %v582 = vpack.c.b16 %v550, %v550
        %v583 = vpack.c.b16 %v551, %v551
        %v584 = vpack.c.b16 %v552, %v552
        %v585 = vpack.c.b16 %v553, %v553
        %v586 = vpack.c.b16 %v554, %v554
        %v587 = vpack.c.b16 %v555, %v555
        %v588 = vpack.c.b16 %v556, %v556
        %v589 = vpack.c.b16 %v557, %v557
        %v590 = vpack.c.b16 %v558, %v558
        %v591 = vpack.c.b16 %v559, %v559
        %v592 = vpack.c.b16 %v560, %v560
        %v593 = vpack.c.b16 %v561, %v561
        %v594 = vpack.c.b16 %v562, %v562
        %v595 = vpack.c.b16 %v563, %v563
        %v596 = vpack.c.b16 %v564, %v564
        %v597 = vpack.c.b16 %v565, %v565
        %vm598 = vsmask.f32 256
        %vm599 = vsmask.f32 4368
        %vm600 = vmor %vm598, %vm599
        %v602 = vshrl.u32 %v566, 16
        %v604 = vrot.slane %v602, 7
        %v605 = vshll.u32 %v566, 16
        %v607 = vor.u32 %v604, %v605
        %v608 = vrot.slane %v604, 4
        %v610 = vshrl.u32 %v567, 16
        %v612 = vrot.slane %v610, 7
        %v613 = vshll.u32 %v567, 16
        %v615 = vor.u32 %v612, %v613
        %v616 = vsel %vm600, %v608, %v615
        %v617 = vrot.slane %v612, 4
        %v619 = vshrl.u32 %v568, 16
        %v621 = vrot.slane %v619, 7
        %v622 = vshll.u32 %v568, 16
        %v624 = vor.u32 %v621, %v622
        %v625 = vrot.slane %v621, 4
        %v627 = vshrl.u32 %v569, 16
        %v629 = vrot.slane %v627, 7
        %v630 = vshll.u32 %v569, 16
        %v632 = vor.u32 %v629, %v630
        %v633 = vsel %vm600, %v625, %v632
        %v634 = vrot.slane %v629, 4
        %v636 = vshrl.u32 %v570, 16
        %v638 = vrot.slane %v636, 7
        %v639 = vshll.u32 %v570, 16
        %v641 = vor.u32 %v638, %v639
        %v642 = vrot.slane %v638, 4
        %v644 = vshrl.u32 %v571, 16
        %v646 = vrot.slane %v644, 7
        %v647 = vshll.u32 %v571, 16
        %v649 = vor.u32 %v646, %v647
        %v650 = vsel %vm600, %v642, %v649
        %v651 = vrot.slane %v646, 4
        %v653 = vshrl.u32 %v572, 16
        %v655 = vrot.slane %v653, 7
        %v656 = vshll.u32 %v572, 16
        %v658 = vor.u32 %v655, %v656
        %v659 = vrot.slane %v655, 4
        %v661 = vshrl.u32 %v573, 16
        %v663 = vrot.slane %v661, 7
        %v664 = vshll.u32 %v573, 16
        %v666 = vor.u32 %v663, %v664
        %v667 = vsel %vm600, %v659, %v666
        %v668 = vrot.slane %v663, 4
        %v670 = vshrl.u32 %v574, 16
        %v672 = vrot.slane %v670, 7
        %v673 = vshll.u32 %v574, 16
        %v675 = vor.u32 %v672, %v673
        %v676 = vrot.slane %v672, 4
        %v678 = vshrl.u32 %v575, 16
        %v680 = vrot.slane %v678, 7
        %v681 = vshll.u32 %v575, 16
        %v683 = vor.u32 %v680, %v681
        %v684 = vsel %vm600, %v676, %v683
        %v685 = vrot.slane %v680, 4
        %v687 = vshrl.u32 %v576, 16
        %v689 = vrot.slane %v687, 7
        %v690 = vshll.u32 %v576, 16
        %v692 = vor.u32 %v689, %v690
        %v693 = vrot.slane %v689, 4
        %v695 = vshrl.u32 %v577, 16
        %v697 = vrot.slane %v695, 7
        %v698 = vshll.u32 %v577, 16
        %v700 = vor.u32 %v697, %v698
        %v701 = vsel %vm600, %v693, %v700
        %v702 = vrot.slane %v697, 4
        %v704 = vshrl.u32 %v578, 16
        %v706 = vrot.slane %v704, 7
        %v707 = vshll.u32 %v578, 16
        %v709 = vor.u32 %v706, %v707
        %v710 = vrot.slane %v706, 4
        %v712 = vshrl.u32 %v579, 16
        %v714 = vrot.slane %v712, 7
        %v715 = vshll.u32 %v579, 16
        %v717 = vor.u32 %v714, %v715
        %v718 = vsel %vm600, %v710, %v717
        %v719 = vrot.slane %v714, 4
        %v721 = vshrl.u32 %v580, 16
        %v723 = vrot.slane %v721, 7
        %v724 = vshll.u32 %v580, 16
        %v726 = vor.u32 %v723, %v724
        %v727 = vrot.slane %v723, 4
        %v729 = vshrl.u32 %v581, 16
        %v731 = vrot.slane %v729, 7
        %v732 = vshll.u32 %v581, 16
        %v734 = vor.u32 %v731, %v732
        %v735 = vsel %vm600, %v727, %v734
        %v736 = vrot.slane %v731, 4
        %v738 = vshrl.u32 %v582, 16
        %v740 = vrot.slane %v738, 7
        %v741 = vshll.u32 %v582, 16
        %v743 = vor.u32 %v740, %v741
        %v744 = vrot.slane %v740, 4
        %v746 = vshrl.u32 %v583, 16
        %v748 = vrot.slane %v746, 7
        %v749 = vshll.u32 %v583, 16
        %v751 = vor.u32 %v748, %v749
        %v752 = vsel %vm600, %v744, %v751
        %v753 = vrot.slane %v748, 4
        %v755 = vshrl.u32 %v584, 16
        %v757 = vrot.slane %v755, 7
        %v758 = vshll.u32 %v584, 16
        %v760 = vor.u32 %v757, %v758
        %v761 = vrot.slane %v757, 4
        %v763 = vshrl.u32 %v585, 16
        %v765 = vrot.slane %v763, 7
        %v766 = vshll.u32 %v585, 16
        %v768 = vor.u32 %v765, %v766
        %v769 = vsel %vm600, %v761, %v768
        %v770 = vrot.slane %v765, 4
        %v772 = vshrl.u32 %v586, 16
        %v774 = vrot.slane %v772, 7
        %v775 = vshll.u32 %v586, 16
        %v777 = vor.u32 %v774, %v775
        %v778 = vrot.slane %v774, 4
        %v780 = vshrl.u32 %v587, 16
        %v782 = vrot.slane %v780, 7
        %v783 = vshll.u32 %v587, 16
        %v785 = vor.u32 %v782, %v783
        %v786 = vsel %vm600, %v778, %v785
        %v787 = vrot.slane %v782, 4
        %v789 = vshrl.u32 %v588, 16
        %v791 = vrot.slane %v789, 7
        %v792 = vshll.u32 %v588, 16
        %v794 = vor.u32 %v791, %v792
        %v795 = vrot.slane %v791, 4
        %v797 = vshrl.u32 %v589, 16
        %v799 = vrot.slane %v797, 7
        %v800 = vshll.u32 %v589, 16
        %v802 = vor.u32 %v799, %v800
        %v803 = vsel %vm600, %v795, %v802
        %v804 = vrot.slane %v799, 4
        %v806 = vshrl.u32 %v590, 16
        %v808 = vrot.slane %v806, 7
        %v809 = vshll.u32 %v590, 16
        %v811 = vor.u32 %v808, %v809
        %v812 = vrot.slane %v808, 4
        %v814 = vshrl.u32 %v591, 16
        %v816 = vrot.slane %v814, 7
        %v817 = vshll.u32 %v591, 16
        %v819 = vor.u32 %v816, %v817
        %v820 = vsel %vm600, %v812, %v819
        %v821 = vrot.slane %v816, 4
        %v823 = vshrl.u32 %v592, 16
        %v825 = vrot.slane %v823, 7
        %v826 = vshll.u32 %v592, 16
        %v828 = vor.u32 %v825, %v826
        %v829 = vrot.slane %v825, 4
        %v831 = vshrl.u32 %v593, 16
        %v833 = vrot.slane %v831, 7
        %v834 = vshll.u32 %v593, 16
        %v836 = vor.u32 %v833, %v834
        %v837 = vsel %vm600, %v829, %v836
        %v838 = vrot.slane %v833, 4
        %v840 = vshrl.u32 %v594, 16
        %v842 = vrot.slane %v840, 7
        %v843 = vshll.u32 %v594, 16
        %v845 = vor.u32 %v842, %v843
        %v846 = vrot.slane %v842, 4
        %v848 = vshrl.u32 %v595, 16
        %v850 = vrot.slane %v848, 7
        %v851 = vshll.u32 %v595, 16
        %v853 = vor.u32 %v850, %v851
        %v854 = vsel %vm600, %v846, %v853
        %v855 = vrot.slane %v850, 4
        %v857 = vshrl.u32 %v596, 16
        %v859 = vrot.slane %v857, 7
        %v860 = vshll.u32 %v596, 16
        %v862 = vor.u32 %v859, %v860
        %v863 = vrot.slane %v859, 4
        %v865 = vshrl.u32 %v597, 16
        %v867 = vrot.slane %v865, 7
        %v868 = vshll.u32 %v597, 16
        %v870 = vor.u32 %v867, %v868
        %v871 = vsel %vm600, %v863, %v870
        %v872 = vrot.slane %v867, 4
        %s921 = scalar_lea.vmem [#allocation2], 12
        %vm922 = vcmask 1043456
        %vm923 = vsmask.f32 7938
        %vm924 = vmand %vm922, %vm923
        %v925 = vld [vmem:[%s921] sm:$0xf]
        %v926 = vsel %vm924, %v607, %v925
        %927 = vst [vmem:[%s921] sm:$0xf] %v926
        %928 = vst [vmem:[%s921 + $0x4] sm:$0xf] %v616
        %vm929 = vcmask 1040384
        %vm930 = vmand %vm929, %vm598
        %v931 = vld [vmem:[%s921 + $0x8] sm:$0x1]
        %v932 = vsel %vm930, %v617, %v931
        %933 = vst [vmem:[%s921 + $0x8] sm:$0x1] %v932
        %v934 = vld [vmem:[%s921 + $0xc] sm:$0xf]
        %v935 = vsel %vm924, %v624, %v934
        %936 = vst [vmem:[%s921 + $0xc] sm:$0xf] %v935
        %937 = vst [vmem:[%s921 + $0x10] sm:$0xf] %v633
        %v938 = vld [vmem:[%s921 + $0x14] sm:$0x1]
        %v939 = vsel %vm930, %v634, %v938
        %940 = vst [vmem:[%s921 + $0x14] sm:$0x1] %v939
        %v941 = vld [vmem:[%s921 + $0x18] sm:$0xf]
        %v942 = vsel %vm924, %v641, %v941
        %943 = vst [vmem:[%s921 + $0x18] sm:$0xf] %v942
        %944 = vst [vmem:[%s921 + $0x1c] sm:$0xf] %v650
        %v945 = vld [vmem:[%s921 + $0x20] sm:$0x1]
        %v946 = vsel %vm930, %v651, %v945
        %947 = vst [vmem:[%s921 + $0x20] sm:$0x1] %v946
        %v948 = vld [vmem:[%s921 + $0x24] sm:$0xf]
        %v949 = vsel %vm924, %v658, %v948
        %950 = vst [vmem:[%s921 + $0x24] sm:$0xf] %v949
        %951 = vst [vmem:[%s921 + $0x28] sm:$0xf] %v667
        %v952 = vld [vmem:[%s921 + $0x2c] sm:$0x1]
        %v953 = vsel %vm930, %v668, %v952
        %954 = vst [vmem:[%s921 + $0x2c] sm:$0x1] %v953
        %v955 = vld [vmem:[%s921 + $0x30] sm:$0xf]
        %v956 = vsel %vm924, %v675, %v955
        %957 = vst [vmem:[%s921 + $0x30] sm:$0xf] %v956
        %958 = vst [vmem:[%s921 + $0x34] sm:$0xf] %v684
        %v959 = vld [vmem:[%s921 + $0x38] sm:$0x1]
        %v960 = vsel %vm930, %v685, %v959
        %961 = vst [vmem:[%s921 + $0x38] sm:$0x1] %v960
        %v962 = vld [vmem:[%s921 + $0x3c] sm:$0xf]
        %v963 = vsel %vm924, %v692, %v962
        %964 = vst [vmem:[%s921 + $0x3c] sm:$0xf] %v963
        %965 = vst [vmem:[%s921 + $0x40] sm:$0xf] %v701
        %v966 = vld [vmem:[%s921 + $0x44] sm:$0x1]
        %v967 = vsel %vm930, %v702, %v966
        %968 = vst [vmem:[%s921 + $0x44] sm:$0x1] %v967
        %v969 = vld [vmem:[%s921 + $0x48] sm:$0xf]
        %v970 = vsel %vm924, %v709, %v969
        %971 = vst [vmem:[%s921 + $0x48] sm:$0xf] %v970
        %972 = vst [vmem:[%s921 + $0x4c] sm:$0xf] %v718
        %v973 = vld [vmem:[%s921 + $0x50] sm:$0x1]
        %v974 = vsel %vm930, %v719, %v973
        %975 = vst [vmem:[%s921 + $0x50] sm:$0x1] %v974
        %v976 = vld [vmem:[%s921 + $0x54] sm:$0xf]
        %v977 = vsel %vm924, %v726, %v976
        %978 = vst [vmem:[%s921 + $0x54] sm:$0xf] %v977
        %979 = vst [vmem:[%s921 + $0x58] sm:$0xf] %v735
        %v980 = vld [vmem:[%s921 + $0x5c] sm:$0x1]
        %v981 = vsel %vm930, %v736, %v980
        %982 = vst [vmem:[%s921 + $0x5c] sm:$0x1] %v981
        %v983 = vld [vmem:[%s921 + $0x60] sm:$0xf]
        %v984 = vsel %vm924, %v743, %v983
        %985 = vst [vmem:[%s921 + $0x60] sm:$0xf] %v984
        %986 = vst [vmem:[%s921 + $0x64] sm:$0xf] %v752
        %v987 = vld [vmem:[%s921 + $0x68] sm:$0x1]
        %v988 = vsel %vm930, %v753, %v987
        %989 = vst [vmem:[%s921 + $0x68] sm:$0x1] %v988
        %v990 = vld [vmem:[%s921 + $0x6c] sm:$0xf]
        %v991 = vsel %vm924, %v760, %v990
        %992 = vst [vmem:[%s921 + $0x6c] sm:$0xf] %v991
        %993 = vst [vmem:[%s921 + $0x70] sm:$0xf] %v769
        %v994 = vld [vmem:[%s921 + $0x74] sm:$0x1]
        %v995 = vsel %vm930, %v770, %v994
        %996 = vst [vmem:[%s921 + $0x74] sm:$0x1] %v995
        %v997 = vld [vmem:[%s921 + $0x78] sm:$0xf]
        %v998 = vsel %vm924, %v777, %v997
        %999 = vst [vmem:[%s921 + $0x78] sm:$0xf] %v998
        %1000 = vst [vmem:[%s921 + $0x7c] sm:$0xf] %v786
        %v1001 = vld [vmem:[%s921 + $0x80] sm:$0x1]
        %v1002 = vsel %vm930, %v787, %v1001
        %1003 = vst [vmem:[%s921 + $0x80] sm:$0x1] %v1002
        %v1004 = vld [vmem:[%s921 + $0x84] sm:$0xf]
        %v1005 = vsel %vm924, %v794, %v1004
        %1006 = vst [vmem:[%s921 + $0x84] sm:$0xf] %v1005
        %1007 = vst [vmem:[%s921 + $0x88] sm:$0xf] %v803
        %v1008 = vld [vmem:[%s921 + $0x8c] sm:$0x1]
        %v1009 = vsel %vm930, %v804, %v1008
        %1010 = vst [vmem:[%s921 + $0x8c] sm:$0x1] %v1009
        %v1011 = vld [vmem:[%s921 + $0x90] sm:$0xf]
        %v1012 = vsel %vm924, %v811, %v1011
        %1013 = vst [vmem:[%s921 + $0x90] sm:$0xf] %v1012
        %1014 = vst [vmem:[%s921 + $0x94] sm:$0xf] %v820
        %v1015 = vld [vmem:[%s921 + $0x98] sm:$0x1]
        %v1016 = vsel %vm930, %v821, %v1015
        %1017 = vst [vmem:[%s921 + $0x98] sm:$0x1] %v1016
        %v1018 = vld [vmem:[%s921 + $0x9c] sm:$0xf]
        %v1019 = vsel %vm924, %v828, %v1018
        %1020 = vst [vmem:[%s921 + $0x9c] sm:$0xf] %v1019
        %1021 = vst [vmem:[%s921 + $0xa0] sm:$0xf] %v837
        %v1022 = vld [vmem:[%s921 + $0xa4] sm:$0x1]
        %v1023 = vsel %vm930, %v838, %v1022
        %1024 = vst [vmem:[%s921 + $0xa4] sm:$0x1] %v1023
        %v1025 = vld [vmem:[%s921 + $0xa8] sm:$0xf]
        %v1026 = vsel %vm924, %v845, %v1025
        %1027 = vst [vmem:[%s921 + $0xa8] sm:$0xf] %v1026
        %1028 = vst [vmem:[%s921 + $0xac] sm:$0xf] %v854
        %v1029 = vld [vmem:[%s921 + $0xb0] sm:$0x1]
        %v1030 = vsel %vm930, %v855, %v1029
        %1031 = vst [vmem:[%s921 + $0xb0] sm:$0x1] %v1030
        %v1032 = vld [vmem:[%s921 + $0xb4] sm:$0xf]
        %v1033 = vsel %vm924, %v862, %v1032
        %1034 = vst [vmem:[%s921 + $0xb4] sm:$0xf] %v1033
        %1035 = vst [vmem:[%s921 + $0xb8] sm:$0xf] %v871
        %v1036 = vld [vmem:[%s921 + $0xbc] sm:$0x1]
        %v1037 = vsel %vm930, %v872, %v1036
        %1038 = vst [vmem:[%s921 + $0xbc] sm:$0x1] %v1037
      $region40: #{simple_model_forward.4} parent=35 // pred_fallthru
        _
      %s1039 = smul.u32 %s22, 16
      %s1040 = smul.u32 %s1039, 3
      %s1041 = smul.addr %s1040, 4
      %s1042 = scalar_lea.vmem [#allocation2], %s1041
      %v1043 = vld [vmem:[%s1042] sm:$0xf]
      %v1044 = vld [vmem:[%s1042 + $0x4] sm:$0xf]
      %v1045 = vld [vmem:[%s1042 + $0xc] sm:$0xf]
      %v1046 = vld [vmem:[%s1042 + $0x10] sm:$0xf]
      %v1047 = vld [vmem:[%s1042 + $0x18] sm:$0xf]
      %v1048 = vld [vmem:[%s1042 + $0x1c] sm:$0xf]
      %v1049 = vld [vmem:[%s1042 + $0x24] sm:$0xf]
      %v1050 = vld [vmem:[%s1042 + $0x28] sm:$0xf]
      %v1051 = vld [vmem:[%s1042 + $0x30] sm:$0xf]
      %v1052 = vld [vmem:[%s1042 + $0x34] sm:$0xf]
      %v1053 = vld [vmem:[%s1042 + $0x3c] sm:$0xf]
      %v1054 = vld [vmem:[%s1042 + $0x40] sm:$0xf]
      %v1055 = vld [vmem:[%s1042 + $0x48] sm:$0xf]
      %v1056 = vld [vmem:[%s1042 + $0x4c] sm:$0xf]
      %v1057 = vld [vmem:[%s1042 + $0x54] sm:$0xf]
      %v1058 = vld [vmem:[%s1042 + $0x58] sm:$0xf]
      %v1059 = vld [vmem:[%s1042 + $0x60] sm:$0xf]
      %v1060 = vld [vmem:[%s1042 + $0x64] sm:$0xf]
      %v1061 = vld [vmem:[%s1042 + $0x6c] sm:$0xf]
      %v1062 = vld [vmem:[%s1042 + $0x70] sm:$0xf]
      %v1063 = vld [vmem:[%s1042 + $0x78] sm:$0xf]
      %v1064 = vld [vmem:[%s1042 + $0x7c] sm:$0xf]
      %v1065 = vld [vmem:[%s1042 + $0x84] sm:$0xf]
      %v1066 = vld [vmem:[%s1042 + $0x88] sm:$0xf]
      %v1067 = vld [vmem:[%s1042 + $0x90] sm:$0xf]
      %v1068 = vld [vmem:[%s1042 + $0x94] sm:$0xf]
      %v1069 = vld [vmem:[%s1042 + $0x9c] sm:$0xf]
      %v1070 = vld [vmem:[%s1042 + $0xa0] sm:$0xf]
      %v1071 = vld [vmem:[%s1042 + $0xa8] sm:$0xf]
      %v1072 = vld [vmem:[%s1042 + $0xac] sm:$0xf]
      %v1073 = vld [vmem:[%s1042 + $0xb4] sm:$0xf]
      %v1074 = vld [vmem:[%s1042 + $0xb8] sm:$0xf]
      %v1075 = vld [vmem:[%s1] sm:$0xf]
      %v1076 = vld [vmem:[%s1 + $0x4] sm:$0xf]
      %v1077 = vld [vmem:[%s1 + $0x8] sm:$0xf]
      %v1078 = vld [vmem:[%s1 + $0xc] sm:$0xf]
      %v1079 = vld [vmem:[%s1 + $0x10] sm:$0xf]
      %v1080 = vld [vmem:[%s1 + $0x14] sm:$0xf]
      %v1081 = vld [vmem:[%s1 + $0x18] sm:$0xf]
      %v1082 = vld [vmem:[%s1 + $0x1c] sm:$0xf]
      %v1083 = vld [vmem:[%s1 + $0x20] sm:$0xf]
      %v1084 = vld [vmem:[%s1 + $0x24] sm:$0xf]
      %v1085 = vld [vmem:[%s1 + $0x28] sm:$0xf]
      %v1086 = vld [vmem:[%s1 + $0x2c] sm:$0xf]
      %v1087 = vld [vmem:[%s1 + $0x30] sm:$0xf]
      %v1088 = vld [vmem:[%s1 + $0x34] sm:$0xf]
      %v1089 = vld [vmem:[%s1 + $0x38] sm:$0xf]
      %v1090 = vld [vmem:[%s1 + $0x3c] sm:$0xf]
      %v1091 = vld [vmem:[%s1042 + $0x8] sm:$0x1]
      %v1092 = vld [vmem:[%s1042 + $0x14] sm:$0x1]
      %v1093 = vld [vmem:[%s1042 + $0x20] sm:$0x1]
      %v1094 = vld [vmem:[%s1042 + $0x2c] sm:$0x1]
      %v1095 = vld [vmem:[%s1042 + $0x38] sm:$0x1]
      %v1096 = vld [vmem:[%s1042 + $0x44] sm:$0x1]
      %v1097 = vld [vmem:[%s1042 + $0x50] sm:$0x1]
      %v1098 = vld [vmem:[%s1042 + $0x5c] sm:$0x1]
      %v1099 = vld [vmem:[%s1042 + $0x68] sm:$0x1]
      %v1100 = vld [vmem:[%s1042 + $0x74] sm:$0x1]
      %v1101 = vld [vmem:[%s1042 + $0x80] sm:$0x1]
      %v1102 = vld [vmem:[%s1042 + $0x8c] sm:$0x1]
      %v1103 = vld [vmem:[%s1042 + $0x98] sm:$0x1]
      %v1104 = vld [vmem:[%s1042 + $0xa4] sm:$0x1]
      %v1105 = vld [vmem:[%s1042 + $0xb0] sm:$0x1]
      %v1106 = vld [vmem:[%s1042 + $0xbc] sm:$0x1]
      %vm1107 = vsmask.f32 3328
      %vm1108 = vsmask.f32 7440
      %vm1109 = vmor %vm1107, %vm1108
      %v1111 = vshrl.u32 %v1043, 16
      %v1113 = vrot.slane %v1111, 4
      %v1114 = vshll.u32 %v1043, 16
      %v1116 = vrot.slane %v1114, 5
      %v1117 = vor.u32 %v1113, %v1116
      %v1118 = vrot.slane %v1117, 4
      %v1120 = vshll.u32 %v1044, 16
      %v1122 = vrot.slane %v1120, 5
      %v1123 = vsel %vm1109, %v1118, %v1122
      %v1124 = vshrl.u32 %v1044, 16
      %v1126 = vrot.slane %v1124, 4
      %v1127 = vor.u32 %v1126, %v1122
      %v1128 = vrot.slane %v1127, 4
      %v1130 = vshll.u32 %v1091, 16
      %v1132 = vrot.slane %v1130, 5
      %v1133 = vsel %vm1109, %v1128, %v1132
      %v1135 = vshrl.u32 %v1045, 16
      %v1137 = vrot.slane %v1135, 4
      %v1138 = vshll.u32 %v1045, 16
      %v1140 = vrot.slane %v1138, 5
      %v1141 = vor.u32 %v1137, %v1140
      %v1142 = vrot.slane %v1141, 4
      %v1144 = vshll.u32 %v1046, 16
      %v1146 = vrot.slane %v1144, 5
      %v1147 = vsel %vm1109, %v1142, %v1146
      %v1148 = vshrl.u32 %v1046, 16
      %v1150 = vrot.slane %v1148, 4
      %v1151 = vor.u32 %v1150, %v1146
      %v1152 = vrot.slane %v1151, 4
      %v1154 = vshll.u32 %v1092, 16
      %v1156 = vrot.slane %v1154, 5
      %v1157 = vsel %vm1109, %v1152, %v1156
      %v1159 = vshrl.u32 %v1047, 16
      %v1161 = vrot.slane %v1159, 4
      %v1162 = vshll.u32 %v1047, 16
      %v1164 = vrot.slane %v1162, 5
      %v1165 = vor.u32 %v1161, %v1164
      %v1166 = vrot.slane %v1165, 4
      %v1168 = vshll.u32 %v1048, 16
      %v1170 = vrot.slane %v1168, 5
      %v1171 = vsel %vm1109, %v1166, %v1170
      %v1172 = vshrl.u32 %v1048, 16
      %v1174 = vrot.slane %v1172, 4
      %v1175 = vor.u32 %v1174, %v1170
      %v1176 = vrot.slane %v1175, 4
      %v1178 = vshll.u32 %v1093, 16
      %v1180 = vrot.slane %v1178, 5
      %v1181 = vsel %vm1109, %v1176, %v1180
      %v1183 = vshrl.u32 %v1049, 16
      %v1185 = vrot.slane %v1183, 4
      %v1186 = vshll.u32 %v1049, 16
      %v1188 = vrot.slane %v1186, 5
      %v1189 = vor.u32 %v1185, %v1188
      %v1190 = vrot.slane %v1189, 4
      %v1192 = vshll.u32 %v1050, 16
      %v1194 = vrot.slane %v1192, 5
      %v1195 = vsel %vm1109, %v1190, %v1194
      %v1196 = vshrl.u32 %v1050, 16
      %v1198 = vrot.slane %v1196, 4
      %v1199 = vor.u32 %v1198, %v1194
      %v1200 = vrot.slane %v1199, 4
      %v1202 = vshll.u32 %v1094, 16
      %v1204 = vrot.slane %v1202, 5
      %v1205 = vsel %vm1109, %v1200, %v1204
      %v1207 = vshrl.u32 %v1051, 16
      %v1209 = vrot.slane %v1207, 4
      %v1210 = vshll.u32 %v1051, 16
      %v1212 = vrot.slane %v1210, 5
      %v1213 = vor.u32 %v1209, %v1212
      %v1214 = vrot.slane %v1213, 4
      %v1216 = vshll.u32 %v1052, 16
      %v1218 = vrot.slane %v1216, 5
      %v1219 = vsel %vm1109, %v1214, %v1218
      %v1220 = vshrl.u32 %v1052, 16
      %v1222 = vrot.slane %v1220, 4
      %v1223 = vor.u32 %v1222, %v1218
      %v1224 = vrot.slane %v1223, 4
      %v1226 = vshll.u32 %v1095, 16
      %v1228 = vrot.slane %v1226, 5
      %v1229 = vsel %vm1109, %v1224, %v1228
      %v1231 = vshrl.u32 %v1053, 16
      %v1233 = vrot.slane %v1231, 4
      %v1234 = vshll.u32 %v1053, 16
      %v1236 = vrot.slane %v1234, 5
      %v1237 = vor.u32 %v1233, %v1236
      %v1238 = vrot.slane %v1237, 4
      %v1240 = vshll.u32 %v1054, 16
      %v1242 = vrot.slane %v1240, 5
      %v1243 = vsel %vm1109, %v1238, %v1242
      %v1244 = vshrl.u32 %v1054, 16
      %v1246 = vrot.slane %v1244, 4
      %v1247 = vor.u32 %v1246, %v1242
      %v1248 = vrot.slane %v1247, 4
      %v1250 = vshll.u32 %v1096, 16
      %v1252 = vrot.slane %v1250, 5
      %v1253 = vsel %vm1109, %v1248, %v1252
      %v1255 = vshrl.u32 %v1055, 16
      %v1257 = vrot.slane %v1255, 4
      %v1258 = vshll.u32 %v1055, 16
      %v1260 = vrot.slane %v1258, 5
      %v1261 = vor.u32 %v1257, %v1260
      %v1262 = vrot.slane %v1261, 4
      %v1264 = vshll.u32 %v1056, 16
      %v1266 = vrot.slane %v1264, 5
      %v1267 = vsel %vm1109, %v1262, %v1266
      %v1268 = vshrl.u32 %v1056, 16
      %v1270 = vrot.slane %v1268, 4
      %v1271 = vor.u32 %v1270, %v1266
      %v1272 = vrot.slane %v1271, 4
      %v1274 = vshll.u32 %v1097, 16
      %v1276 = vrot.slane %v1274, 5
      %v1277 = vsel %vm1109, %v1272, %v1276
      %v1279 = vshrl.u32 %v1057, 16
      %v1281 = vrot.slane %v1279, 4
      %v1282 = vshll.u32 %v1057, 16
      %v1284 = vrot.slane %v1282, 5
      %v1285 = vor.u32 %v1281, %v1284
      %v1286 = vrot.slane %v1285, 4
      %v1288 = vshll.u32 %v1058, 16
      %v1290 = vrot.slane %v1288, 5
      %v1291 = vsel %vm1109, %v1286, %v1290
      %v1292 = vshrl.u32 %v1058, 16
      %v1294 = vrot.slane %v1292, 4
      %v1295 = vor.u32 %v1294, %v1290
      %v1296 = vrot.slane %v1295, 4
      %v1298 = vshll.u32 %v1098, 16
      %v1300 = vrot.slane %v1298, 5
      %v1301 = vsel %vm1109, %v1296, %v1300
      %v1303 = vshrl.u32 %v1059, 16
      %v1305 = vrot.slane %v1303, 4
      %v1306 = vshll.u32 %v1059, 16
      %v1308 = vrot.slane %v1306, 5
      %v1309 = vor.u32 %v1305, %v1308
      %v1310 = vrot.slane %v1309, 4
      %v1312 = vshll.u32 %v1060, 16
      %v1314 = vrot.slane %v1312, 5
      %v1315 = vsel %vm1109, %v1310, %v1314
      %v1316 = vshrl.u32 %v1060, 16
      %v1318 = vrot.slane %v1316, 4
      %v1319 = vor.u32 %v1318, %v1314
      %v1320 = vrot.slane %v1319, 4
      %v1322 = vshll.u32 %v1099, 16
      %v1324 = vrot.slane %v1322, 5
      %v1325 = vsel %vm1109, %v1320, %v1324
      %v1327 = vshrl.u32 %v1061, 16
      %v1329 = vrot.slane %v1327, 4
      %v1330 = vshll.u32 %v1061, 16
      %v1332 = vrot.slane %v1330, 5
      %v1333 = vor.u32 %v1329, %v1332
      %v1334 = vrot.slane %v1333, 4
      %v1336 = vshll.u32 %v1062, 16
      %v1338 = vrot.slane %v1336, 5
      %v1339 = vsel %vm1109, %v1334, %v1338
      %v1340 = vshrl.u32 %v1062, 16
      %v1342 = vrot.slane %v1340, 4
      %v1343 = vor.u32 %v1342, %v1338
      %v1344 = vrot.slane %v1343, 4
      %v1346 = vshll.u32 %v1100, 16
      %v1348 = vrot.slane %v1346, 5
      %v1349 = vsel %vm1109, %v1344, %v1348
      %v1351 = vshrl.u32 %v1063, 16
      %v1353 = vrot.slane %v1351, 4
      %v1354 = vshll.u32 %v1063, 16
      %v1356 = vrot.slane %v1354, 5
      %v1357 = vor.u32 %v1353, %v1356
      %v1358 = vrot.slane %v1357, 4
      %v1360 = vshll.u32 %v1064, 16
      %v1362 = vrot.slane %v1360, 5
      %v1363 = vsel %vm1109, %v1358, %v1362
      %v1364 = vshrl.u32 %v1064, 16
      %v1366 = vrot.slane %v1364, 4
      %v1367 = vor.u32 %v1366, %v1362
      %v1368 = vrot.slane %v1367, 4
      %v1370 = vshll.u32 %v1101, 16
      %v1372 = vrot.slane %v1370, 5
      %v1373 = vsel %vm1109, %v1368, %v1372
      %v1375 = vshrl.u32 %v1065, 16
      %v1377 = vrot.slane %v1375, 4
      %v1378 = vshll.u32 %v1065, 16
      %v1380 = vrot.slane %v1378, 5
      %v1381 = vor.u32 %v1377, %v1380
      %v1382 = vrot.slane %v1381, 4
      %v1384 = vshll.u32 %v1066, 16
      %v1386 = vrot.slane %v1384, 5
      %v1387 = vsel %vm1109, %v1382, %v1386
      %v1388 = vshrl.u32 %v1066, 16
      %v1390 = vrot.slane %v1388, 4
      %v1391 = vor.u32 %v1390, %v1386
      %v1392 = vrot.slane %v1391, 4
      %v1394 = vshll.u32 %v1102, 16
      %v1396 = vrot.slane %v1394, 5
      %v1397 = vsel %vm1109, %v1392, %v1396
      %v1399 = vshrl.u32 %v1067, 16
      %v1401 = vrot.slane %v1399, 4
      %v1402 = vshll.u32 %v1067, 16
      %v1404 = vrot.slane %v1402, 5
      %v1405 = vor.u32 %v1401, %v1404
      %v1406 = vrot.slane %v1405, 4
      %v1408 = vshll.u32 %v1068, 16
      %v1410 = vrot.slane %v1408, 5
      %v1411 = vsel %vm1109, %v1406, %v1410
      %v1412 = vshrl.u32 %v1068, 16
      %v1414 = vrot.slane %v1412, 4
      %v1415 = vor.u32 %v1414, %v1410
      %v1416 = vrot.slane %v1415, 4
      %v1418 = vshll.u32 %v1103, 16
      %v1420 = vrot.slane %v1418, 5
      %v1421 = vsel %vm1109, %v1416, %v1420
      %v1423 = vshrl.u32 %v1069, 16
      %v1425 = vrot.slane %v1423, 4
      %v1426 = vshll.u32 %v1069, 16
      %v1428 = vrot.slane %v1426, 5
      %v1429 = vor.u32 %v1425, %v1428
      %v1430 = vrot.slane %v1429, 4
      %v1432 = vshll.u32 %v1070, 16
      %v1434 = vrot.slane %v1432, 5
      %v1435 = vsel %vm1109, %v1430, %v1434
      %v1436 = vshrl.u32 %v1070, 16
      %v1438 = vrot.slane %v1436, 4
      %v1439 = vor.u32 %v1438, %v1434
      %v1440 = vrot.slane %v1439, 4
      %v1442 = vshll.u32 %v1104, 16
      %v1444 = vrot.slane %v1442, 5
      %v1445 = vsel %vm1109, %v1440, %v1444
      %v1447 = vshrl.u32 %v1071, 16
      %v1449 = vrot.slane %v1447, 4
      %v1450 = vshll.u32 %v1071, 16
      %v1452 = vrot.slane %v1450, 5
      %v1453 = vor.u32 %v1449, %v1452
      %v1454 = vrot.slane %v1453, 4
      %v1456 = vshll.u32 %v1072, 16
      %v1458 = vrot.slane %v1456, 5
      %v1459 = vsel %vm1109, %v1454, %v1458
      %v1460 = vshrl.u32 %v1072, 16
      %v1462 = vrot.slane %v1460, 4
      %v1463 = vor.u32 %v1462, %v1458
      %v1464 = vrot.slane %v1463, 4
      %v1466 = vshll.u32 %v1105, 16
      %v1468 = vrot.slane %v1466, 5
      %v1469 = vsel %vm1109, %v1464, %v1468
      %v1471 = vshrl.u32 %v1073, 16
      %v1473 = vrot.slane %v1471, 4
      %v1474 = vshll.u32 %v1073, 16
      %v1476 = vrot.slane %v1474, 5
      %v1477 = vor.u32 %v1473, %v1476
      %v1478 = vrot.slane %v1477, 4
      %v1480 = vshll.u32 %v1074, 16
      %v1482 = vrot.slane %v1480, 5
      %v1483 = vsel %vm1109, %v1478, %v1482
      %v1484 = vshrl.u32 %v1074, 16
      %v1486 = vrot.slane %v1484, 4
      %v1487 = vor.u32 %v1486, %v1482
      %v1488 = vrot.slane %v1487, 4
      %v1490 = vshll.u32 %v1106, 16
      %v1492 = vrot.slane %v1490, 5
      %v1493 = vsel %vm1109, %v1488, %v1492
      %s1494 = scalar_lea.vmem %s1, 64
      %v1495 = vld [vmem:[%s1494] sm:$0xf]
      %v1496 = vld [vmem:[%s1494 + $0x4] sm:$0xf]
      %v1497 = vld [vmem:[%s1494 + $0x8] sm:$0xf]
      %v1498 = vld [vmem:[%s1494 + $0xc] sm:$0xf]
      %v1499 = vld [vmem:[%s1494 + $0x10] sm:$0xf]
      %v1500 = vld [vmem:[%s1494 + $0x14] sm:$0xf]
      %v1501 = vld [vmem:[%s1494 + $0x18] sm:$0xf]
      %v1502 = vld [vmem:[%s1494 + $0x1c] sm:$0xf]
      %v1503 = vld [vmem:[%s1494 + $0x20] sm:$0xf]
      %v1504 = vld [vmem:[%s1494 + $0x24] sm:$0xf]
      %v1505 = vld [vmem:[%s1494 + $0x28] sm:$0xf]
      %v1506 = vld [vmem:[%s1494 + $0x2c] sm:$0xf]
      %v1507 = vld [vmem:[%s1494 + $0x30] sm:$0xf]
      %v1508 = vld [vmem:[%s1494 + $0x34] sm:$0xf]
      %v1509 = vld [vmem:[%s1494 + $0x38] sm:$0xf]
      %v1510 = vld [vmem:[%s1494 + $0x3c] sm:$0xf]
      %v1511 = vunpack.c.l.b16 %v1123
      %v1512 = vunpack.c.l.b16 %v1133
      %v1513 = vunpack.c.l.b16 %v1147
      %v1514 = vunpack.c.l.b16 %v1157
      %v1515 = vunpack.c.l.b16 %v1171
      %v1516 = vunpack.c.l.b16 %v1181
      %v1517 = vunpack.c.l.b16 %v1195
      %v1518 = vunpack.c.l.b16 %v1205
      %v1519 = vunpack.c.l.b16 %v1219
      %v1520 = vunpack.c.l.b16 %v1229
      %v1521 = vunpack.c.l.b16 %v1243
      %v1522 = vunpack.c.l.b16 %v1253
      %v1523 = vunpack.c.l.b16 %v1267
      %v1524 = vunpack.c.l.b16 %v1277
      %v1525 = vunpack.c.l.b16 %v1291
      %v1526 = vunpack.c.l.b16 %v1301
      %v1527 = vunpack.c.l.b16 %v1315
      %v1528 = vunpack.c.l.b16 %v1325
      %v1529 = vunpack.c.l.b16 %v1339
      %v1530 = vunpack.c.l.b16 %v1349
      %v1531 = vunpack.c.l.b16 %v1363
      %v1532 = vunpack.c.l.b16 %v1373
      %v1533 = vunpack.c.l.b16 %v1387
      %v1534 = vunpack.c.l.b16 %v1397
      %v1535 = vunpack.c.l.b16 %v1411
      %v1536 = vunpack.c.l.b16 %v1421
      %v1537 = vunpack.c.l.b16 %v1435
      %v1538 = vunpack.c.l.b16 %v1445
      %v1539 = vunpack.c.l.b16 %v1459
      %v1540 = vunpack.c.l.b16 %v1469
      %v1541 = vunpack.c.l.b16 %v1483
      %v1542 = vunpack.c.l.b16 %v1493
      %v1543 = vpack.c.b16 %v1512, %v1511
      %v1544 = vpack.c.b16 %v1514, %v1513
      %v1545 = vpack.c.b16 %v1516, %v1515
      %v1546 = vpack.c.b16 %v1518, %v1517
      %v1547 = vpack.c.b16 %v1520, %v1519
      %v1548 = vpack.c.b16 %v1522, %v1521
      %v1549 = vpack.c.b16 %v1524, %v1523
      %v1550 = vpack.c.b16 %v1526, %v1525
      %v1551 = vpack.c.b16 %v1528, %v1527
      %v1552 = vpack.c.b16 %v1530, %v1529
      %v1553 = vpack.c.b16 %v1532, %v1531
      %v1554 = vpack.c.b16 %v1534, %v1533
      %v1555 = vpack.c.b16 %v1536, %v1535
      %v1556 = vpack.c.b16 %v1538, %v1537
      %v1557 = vpack.c.b16 %v1540, %v1539
      %v1558 = vpack.c.b16 %v1542, %v1541
      %v1591 = vunpack.c.l.b16 %v1495
      %v1592 = vunpack.c.l.b16 %v1496
      %v1593 = vunpack.c.l.b16 %v1497
      %v1594 = vunpack.c.l.b16 %v1498
      %v1595 = vunpack.c.l.b16 %v1499
      %v1596 = vunpack.c.l.b16 %v1500
      %v1597 = vunpack.c.l.b16 %v1501
      %v1598 = vunpack.c.l.b16 %v1502
      %v1599 = vunpack.c.l.b16 %v1503
      %v1600 = vunpack.c.l.b16 %v1504
      %v1601 = vunpack.c.l.b16 %v1505
      %v1602 = vunpack.c.l.b16 %v1506
      %v1603 = vunpack.c.l.b16 %v1507
      %v1604 = vunpack.c.l.b16 %v1508
      %v1605 = vunpack.c.l.b16 %v1509
      %v1606 = vunpack.c.l.b16 %v1510
      %v1607 = vpack.c.b16 %v1592, %v1591
      %v1608 = vpack.c.b16 %v1594, %v1593
      %v1609 = vpack.c.b16 %v1596, %v1595
      %v1610 = vpack.c.b16 %v1598, %v1597
      %v1611 = vpack.c.b16 %v1600, %v1599
      %v1612 = vpack.c.b16 %v1602, %v1601
      %v1613 = vpack.c.b16 %v1604, %v1603
      %v1614 = vpack.c.b16 %v1606, %v1605
      %1623 = vmatprep.subr.bf16.mxu0 0
      %1624 = vmatpush1.bf16.msra.mxu0 %v1607
      %1625 = vmatprep.subr.bf16.mxu0 0
      %1626 = vmatpush1.bf16.msra.mxu0 %v1608
      %1627 = vmatprep.subr.bf16.mxu0 0
      %1628 = vmatpush1.bf16.msra.mxu0 %v1609
      %1629 = vmatprep.subr.bf16.mxu0 0
      %1630 = vmatpush1.bf16.msra.mxu0 %v1610
      %1631 = vmatprep.subr.bf16.mxu0 0
      %1632 = vmatpush1.bf16.msra.mxu0 %v1611
      %1633 = vmatprep.subr.bf16.mxu0 0
      %1634 = vmatpush1.bf16.msra.mxu0 %v1612
      %1635 = vmatprep.subr.bf16.mxu0 0
      %1636 = vmatpush1.bf16.msra.mxu0 %v1613
      %1637 = vmatprep.subr.bf16.mxu0 0
      %1638 = vmatpush1.bf16.msra.mxu0 %v1614
      %1639 = vmatprep.subr.bf16.mxu0 0
      %1640 = vmatpush1.bf16.msra.mxu0 0
      %1641 = vmatprep.subr.bf16.mxu0 0
      %1642 = vmatpush1.bf16.msra.mxu0 0
      %1643 = vmatprep.subr.bf16.mxu0 0
      %1644 = vmatpush1.bf16.msra.mxu0 0
      %1645 = vmatprep.subr.bf16.mxu0 0
      %1646 = vmatpush1.bf16.msra.mxu0 0
      %1647 = vmatprep.subr.bf16.mxu0 0
      %1648 = vmatpush1.bf16.msra.mxu0 0
      %1649 = vmatprep.subr.bf16.mxu0 0
      %1650 = vmatpush1.bf16.msra.mxu0 0
      %1651 = vmatprep.subr.bf16.mxu0 0
      %1652 = vmatpush1.bf16.msra.mxu0 0
      %1653 = vmatprep.subr.bf16.mxu0 0
      %1654 = vmatpush1.bf16.msra.mxu0 0
      %1655 = vmatprep.mubr.bf16.mxu0 0
      %1656 = vmatmul.mubr.bf16.gmra.mrb[0].mxu0 %v1543
      %v1657 = vpop.f32.mrb[0].mxu0
      %v1658 = vadd.f32 0.0, %v1657
      %v1659 = vpop.f32.mrb[0].mxu0
      %v1660 = vpop.f32.mrb[0].mxu0
      %v1661 = vadd.f32 0.0, %v1660
      %v1662 = vpop.f32.mrb[0].mxu0
      %1663 = vmatprep.mubr.bf16.mxu0 0
      %1664 = vmatmul.mubr.bf16.gmra.mrb[0].mxu0 %v1544
      %v1665 = vpop.f32.mrb[0].mxu0
      %v1666 = vadd.f32 0.0, %v1665
      %v1667 = vpop.f32.mrb[0].mxu0
      %v1668 = vpop.f32.mrb[0].mxu0
      %v1669 = vadd.f32 0.0, %v1668
      %v1670 = vpop.f32.mrb[0].mxu0
      %1671 = vmatprep.mubr.bf16.mxu0 0
      %1672 = vmatmul.mubr.bf16.gmra.mrb[0].mxu0 %v1545
      %v1673 = vpop.f32.mrb[0].mxu0
      %v1674 = vadd.f32 0.0, %v1673
      %v1675 = vpop.f32.mrb[0].mxu0
      %v1676 = vpop.f32.mrb[0].mxu0
      %v1677 = vadd.f32 0.0, %v1676
      %v1678 = vpop.f32.mrb[0].mxu0
      %1679 = vmatprep.mubr.bf16.mxu0 0
      %1680 = vmatmul.mubr.bf16.gmra.mrb[0].mxu0 %v1546
      %v1681 = vpop.f32.mrb[0].mxu0
      %v1682 = vadd.f32 0.0, %v1681
      %v1683 = vpop.f32.mrb[0].mxu0
      %v1684 = vpop.f32.mrb[0].mxu0
      %v1685 = vadd.f32 0.0, %v1684
      %v1686 = vpop.f32.mrb[0].mxu0
      %1687 = vmatprep.mubr.bf16.mxu0 0
      %1688 = vmatmul.mubr.bf16.gmra.mrb[0].mxu0 %v1547
      %v1689 = vpop.f32.mrb[0].mxu0
      %v1690 = vadd.f32 0.0, %v1689
      %v1691 = vpop.f32.mrb[0].mxu0
      %v1692 = vpop.f32.mrb[0].mxu0
      %v1693 = vadd.f32 0.0, %v1692
      %v1694 = vpop.f32.mrb[0].mxu0
      %1695 = vmatprep.mubr.bf16.mxu0 0
      %1696 = vmatmul.mubr.bf16.gmra.mrb[0].mxu0 %v1548
      %v1697 = vpop.f32.mrb[0].mxu0
      %v1698 = vadd.f32 0.0, %v1697
      %v1699 = vpop.f32.mrb[0].mxu0
      %v1700 = vpop.f32.mrb[0].mxu0
      %v1701 = vadd.f32 0.0, %v1700
      %v1702 = vpop.f32.mrb[0].mxu0
      %1703 = vmatprep.mubr.bf16.mxu0 0
      %1704 = vmatmul.mubr.bf16.gmra.mrb[0].mxu0 %v1549
      %v1705 = vpop.f32.mrb[0].mxu0
      %v1706 = vadd.f32 0.0, %v1705
      %v1707 = vpop.f32.mrb[0].mxu0
      %v1708 = vpop.f32.mrb[0].mxu0
      %v1709 = vadd.f32 0.0, %v1708
      %v1710 = vpop.f32.mrb[0].mxu0
      %1711 = vmatprep.mubr.bf16.mxu0 0
      %1712 = vmatmul.mubr.bf16.gmra.mrb[0].mxu0 %v1550
      %v1713 = vpop.f32.mrb[0].mxu0
      %v1714 = vadd.f32 0.0, %v1713
      %v1715 = vpop.f32.mrb[0].mxu0
      %v1716 = vpop.f32.mrb[0].mxu0
      %v1717 = vadd.f32 0.0, %v1716
      %v1718 = vpop.f32.mrb[0].mxu0
      %1719 = vmatprep.mubr.bf16.mxu0 0
      %1720 = vmatmul.mubr.bf16.gmra.mrb[0].mxu0 %v1551
      %v1721 = vpop.f32.mrb[0].mxu0
      %v1722 = vadd.f32 0.0, %v1721
      %v1723 = vpop.f32.mrb[0].mxu0
      %v1724 = vpop.f32.mrb[0].mxu0
      %v1725 = vadd.f32 0.0, %v1724
      %v1726 = vpop.f32.mrb[0].mxu0
      %1727 = vmatprep.mubr.bf16.mxu0 0
      %1728 = vmatmul.mubr.bf16.gmra.mrb[0].mxu0 %v1552
      %v1729 = vpop.f32.mrb[0].mxu0
      %v1730 = vadd.f32 0.0, %v1729
      %v1731 = vpop.f32.mrb[0].mxu0
      %v1732 = vpop.f32.mrb[0].mxu0
      %v1733 = vadd.f32 0.0, %v1732
      %v1734 = vpop.f32.mrb[0].mxu0
      %1735 = vmatprep.mubr.bf16.mxu0 0
      %1736 = vmatmul.mubr.bf16.gmra.mrb[0].mxu0 %v1553
      %v1737 = vpop.f32.mrb[0].mxu0
      %v1738 = vadd.f32 0.0, %v1737
      %v1739 = vpop.f32.mrb[0].mxu0
      %v1740 = vpop.f32.mrb[0].mxu0
      %v1741 = vadd.f32 0.0, %v1740
      %v1742 = vpop.f32.mrb[0].mxu0
      %1743 = vmatprep.mubr.bf16.mxu0 0
      %1744 = vmatmul.mubr.bf16.gmra.mrb[0].mxu0 %v1554
      %v1745 = vpop.f32.mrb[0].mxu0
      %v1746 = vadd.f32 0.0, %v1745
      %v1747 = vpop.f32.mrb[0].mxu0
      %v1748 = vpop.f32.mrb[0].mxu0
      %v1749 = vadd.f32 0.0, %v1748
      %v1750 = vpop.f32.mrb[0].mxu0
      %1751 = vmatprep.mubr.bf16.mxu0 0
      %1752 = vmatmul.mubr.bf16.gmra.mrb[0].mxu0 %v1555
      %v1753 = vpop.f32.mrb[0].mxu0
      %v1754 = vadd.f32 0.0, %v1753
      %v1755 = vpop.f32.mrb[0].mxu0
      %v1756 = vpop.f32.mrb[0].mxu0
      %v1757 = vadd.f32 0.0, %v1756
      %v1758 = vpop.f32.mrb[0].mxu0
      %1759 = vmatprep.mubr.bf16.mxu0 0
      %1760 = vmatmul.mubr.bf16.gmra.mrb[0].mxu0 %v1556
      %v1761 = vpop.f32.mrb[0].mxu0
      %v1762 = vadd.f32 0.0, %v1761
      %v1763 = vpop.f32.mrb[0].mxu0
      %v1764 = vpop.f32.mrb[0].mxu0
      %v1765 = vadd.f32 0.0, %v1764
      %v1766 = vpop.f32.mrb[0].mxu0
      %1767 = vmatprep.mubr.bf16.mxu0 0
      %1768 = vmatmul.mubr.bf16.gmra.mrb[0].mxu0 %v1557
      %v1769 = vpop.f32.mrb[0].mxu0
      %v1770 = vadd.f32 0.0, %v1769
      %v1771 = vpop.f32.mrb[0].mxu0
      %v1772 = vpop.f32.mrb[0].mxu0
      %v1773 = vadd.f32 0.0, %v1772
      %v1774 = vpop.f32.mrb[0].mxu0
      %1775 = vmatprep.mubr.bf16.mxu0 0
      %1776 = vmatmul.mubr.bf16.gmra.mrb[0].mxu0 %v1558
      %v1777 = vpop.f32.mrb[0].mxu0
      %v1778 = vadd.f32 0.0, %v1777
      %v1779 = vpop.f32.mrb[0].mxu0
      %v1780 = vpop.f32.mrb[0].mxu0
      %v1781 = vadd.f32 0.0, %v1780
      %v1782 = vpop.f32.mrb[0].mxu0
      %1783 = vdwg.mxu0
      %v1816 = vunpack.c.l.b16 %v1043
      %v1817 = vunpack.c.l.b16 %v1044
      %v1818 = vunpack.c.l.b16 %v1045
      %v1819 = vunpack.c.l.b16 %v1046
      %v1820 = vunpack.c.l.b16 %v1047
      %v1821 = vunpack.c.l.b16 %v1048
      %v1822 = vunpack.c.l.b16 %v1049
      %v1823 = vunpack.c.l.b16 %v1050
      %v1824 = vunpack.c.l.b16 %v1051
      %v1825 = vunpack.c.l.b16 %v1052
      %v1826 = vunpack.c.l.b16 %v1053
      %v1827 = vunpack.c.l.b16 %v1054
      %v1828 = vunpack.c.l.b16 %v1055
      %v1829 = vunpack.c.l.b16 %v1056
      %v1830 = vunpack.c.l.b16 %v1057
      %v1831 = vunpack.c.l.b16 %v1058
      %v1832 = vunpack.c.l.b16 %v1059
      %v1833 = vunpack.c.l.b16 %v1060
      %v1834 = vunpack.c.l.b16 %v1061
      %v1835 = vunpack.c.l.b16 %v1062
      %v1836 = vunpack.c.l.b16 %v1063
      %v1837 = vunpack.c.l.b16 %v1064
      %v1838 = vunpack.c.l.b16 %v1065
      %v1839 = vunpack.c.l.b16 %v1066
      %v1840 = vunpack.c.l.b16 %v1067
      %v1841 = vunpack.c.l.b16 %v1068
      %v1842 = vunpack.c.l.b16 %v1069
      %v1843 = vunpack.c.l.b16 %v1070
      %v1844 = vunpack.c.l.b16 %v1071
      %v1845 = vunpack.c.l.b16 %v1072
      %v1846 = vunpack.c.l.b16 %v1073
      %v1847 = vunpack.c.l.b16 %v1074
      %v1848 = vpack.c.b16 %v1817, %v1816
      %v1849 = vpack.c.b16 %v1819, %v1818
      %v1850 = vpack.c.b16 %v1821, %v1820
      %v1851 = vpack.c.b16 %v1823, %v1822
      %v1852 = vpack.c.b16 %v1825, %v1824
      %v1853 = vpack.c.b16 %v1827, %v1826
      %v1854 = vpack.c.b16 %v1829, %v1828
      %v1855 = vpack.c.b16 %v1831, %v1830
      %v1856 = vpack.c.b16 %v1833, %v1832
      %v1857 = vpack.c.b16 %v1835, %v1834
      %v1858 = vpack.c.b16 %v1837, %v1836
      %v1859 = vpack.c.b16 %v1839, %v1838
      %v1860 = vpack.c.b16 %v1841, %v1840
      %v1861 = vpack.c.b16 %v1843, %v1842
      %v1862 = vpack.c.b16 %v1845, %v1844
      %v1863 = vpack.c.b16 %v1847, %v1846
      %v1896 = vunpack.c.l.b16 %v1075
      %v1897 = vunpack.c.l.b16 %v1076
      %v1898 = vunpack.c.l.b16 %v1077
      %v1899 = vunpack.c.l.b16 %v1078
      %v1900 = vunpack.c.l.b16 %v1079
      %v1901 = vunpack.c.l.b16 %v1080
      %v1902 = vunpack.c.l.b16 %v1081
      %v1903 = vunpack.c.l.b16 %v1082
      %v1904 = vunpack.c.l.b16 %v1083
      %v1905 = vunpack.c.l.b16 %v1084
      %v1906 = vunpack.c.l.b16 %v1085
      %v1907 = vunpack.c.l.b16 %v1086
      %v1908 = vunpack.c.l.b16 %v1087
      %v1909 = vunpack.c.l.b16 %v1088
      %v1910 = vunpack.c.l.b16 %v1089
      %v1911 = vunpack.c.l.b16 %v1090
      %v1912 = vpack.c.b16 %v1897, %v1896
      %v1913 = vpack.c.b16 %v1899, %v1898
      %v1914 = vpack.c.b16 %v1901, %v1900
      %v1915 = vpack.c.b16 %v1903, %v1902
      %v1916 = vpack.c.b16 %v1905, %v1904
      %v1917 = vpack.c.b16 %v1907, %v1906
      %v1918 = vpack.c.b16 %v1909, %v1908
      %v1919 = vpack.c.b16 %v1911, %v1910
      %1928 = vmatprep.subr.bf16.mxu0 0
      %1929 = vmatpush1.bf16.msra.mxu0 %v1912
      %1930 = vmatprep.subr.bf16.mxu0 0
      %1931 = vmatpush1.bf16.msra.mxu0 %v1913
      %1932 = vmatprep.subr.bf16.mxu0 0
      %1933 = vmatpush1.bf16.msra.mxu0 %v1914
      %1934 = vmatprep.subr.bf16.mxu0 0
      %1935 = vmatpush1.bf16.msra.mxu0 %v1915
      %1936 = vmatprep.subr.bf16.mxu0 0
      %1937 = vmatpush1.bf16.msra.mxu0 %v1916
      %1938 = vmatprep.subr.bf16.mxu0 0
      %1939 = vmatpush1.bf16.msra.mxu0 %v1917
      %1940 = vmatprep.subr.bf16.mxu0 0
      %1941 = vmatpush1.bf16.msra.mxu0 %v1918
      %1942 = vmatprep.subr.bf16.mxu0 0
      %1943 = vmatpush1.bf16.msra.mxu0 %v1919
      %1944 = vmatprep.subr.bf16.mxu0 0
      %1945 = vmatpush1.bf16.msra.mxu0 0
      %1946 = vmatprep.subr.bf16.mxu0 0
      %1947 = vmatpush1.bf16.msra.mxu0 0
      %1948 = vmatprep.subr.bf16.mxu0 0
      %1949 = vmatpush1.bf16.msra.mxu0 0
      %1950 = vmatprep.subr.bf16.mxu0 0
      %1951 = vmatpush1.bf16.msra.mxu0 0
      %1952 = vmatprep.subr.bf16.mxu0 0
      %1953 = vmatpush1.bf16.msra.mxu0 0
      %1954 = vmatprep.subr.bf16.mxu0 0
      %1955 = vmatpush1.bf16.msra.mxu0 0
      %1956 = vmatprep.subr.bf16.mxu0 0
      %1957 = vmatpush1.bf16.msra.mxu0 0
      %1958 = vmatprep.subr.bf16.mxu0 0
      %1959 = vmatpush1.bf16.msra.mxu0 0
      %1960 = vmatprep.mubr.bf16.mxu0 0
      %1961 = vmatmul.mubr.bf16.gmra.mrb[0].mxu0 %v1848
      %v1962 = vpop.f32.mrb[0].mxu0
      %v1963 = vadd.f32 %v1658, %v1962
      %v1964 = vpop.f32.mrb[0].mxu0
      %v1965 = vpop.f32.mrb[0].mxu0
      %v1966 = vadd.f32 %v1661, %v1965
      %v1967 = vpop.f32.mrb[0].mxu0
      %1968 = vmatprep.mubr.bf16.mxu0 0
      %1969 = vmatmul.mubr.bf16.gmra.mrb[0].mxu0 %v1849
      %v1970 = vpop.f32.mrb[0].mxu0
      %v1971 = vadd.f32 %v1666, %v1970
      %v1972 = vpop.f32.mrb[0].mxu0
      %v1973 = vpop.f32.mrb[0].mxu0
      %v1974 = vadd.f32 %v1669, %v1973
      %v1975 = vpop.f32.mrb[0].mxu0
      %1976 = vmatprep.mubr.bf16.mxu0 0
      %1977 = vmatmul.mubr.bf16.gmra.mrb[0].mxu0 %v1850
      %v1978 = vpop.f32.mrb[0].mxu0
      %v1979 = vadd.f32 %v1674, %v1978
      %v1980 = vpop.f32.mrb[0].mxu0
      %v1981 = vpop.f32.mrb[0].mxu0
      %v1982 = vadd.f32 %v1677, %v1981
      %v1983 = vpop.f32.mrb[0].mxu0
      %1984 = vmatprep.mubr.bf16.mxu0 0
      %1985 = vmatmul.mubr.bf16.gmra.mrb[0].mxu0 %v1851
      %v1986 = vpop.f32.mrb[0].mxu0
      %v1987 = vadd.f32 %v1682, %v1986
      %v1988 = vpop.f32.mrb[0].mxu0
      %v1989 = vpop.f32.mrb[0].mxu0
      %v1990 = vadd.f32 %v1685, %v1989
      %v1991 = vpop.f32.mrb[0].mxu0
      %1992 = vmatprep.mubr.bf16.mxu0 0
      %1993 = vmatmul.mubr.bf16.gmra.mrb[0].mxu0 %v1852
      %v1994 = vpop.f32.mrb[0].mxu0
      %v1995 = vadd.f32 %v1690, %v1994
      %v1996 = vpop.f32.mrb[0].mxu0
      %v1997 = vpop.f32.mrb[0].mxu0
      %v1998 = vadd.f32 %v1693, %v1997
      %v1999 = vpop.f32.mrb[0].mxu0
      %2000 = vmatprep.mubr.bf16.mxu0 0
      %2001 = vmatmul.mubr.bf16.gmra.mrb[0].mxu0 %v1853
      %v2002 = vpop.f32.mrb[0].mxu0
      %v2003 = vadd.f32 %v1698, %v2002
      %v2004 = vpop.f32.mrb[0].mxu0
      %v2005 = vpop.f32.mrb[0].mxu0
      %v2006 = vadd.f32 %v1701, %v2005
      %v2007 = vpop.f32.mrb[0].mxu0
      %2008 = vmatprep.mubr.bf16.mxu0 0
      %2009 = vmatmul.mubr.bf16.gmra.mrb[0].mxu0 %v1854
      %v2010 = vpop.f32.mrb[0].mxu0
      %v2011 = vadd.f32 %v1706, %v2010
      %v2012 = vpop.f32.mrb[0].mxu0
      %v2013 = vpop.f32.mrb[0].mxu0
      %v2014 = vadd.f32 %v1709, %v2013
      %v2015 = vpop.f32.mrb[0].mxu0
      %2016 = vmatprep.mubr.bf16.mxu0 0
      %2017 = vmatmul.mubr.bf16.gmra.mrb[0].mxu0 %v1855
      %v2018 = vpop.f32.mrb[0].mxu0
      %v2019 = vadd.f32 %v1714, %v2018
      %v2020 = vpop.f32.mrb[0].mxu0
      %v2021 = vpop.f32.mrb[0].mxu0
      %v2022 = vadd.f32 %v1717, %v2021
      %v2023 = vpop.f32.mrb[0].mxu0
      %2024 = vmatprep.mubr.bf16.mxu0 0
      %2025 = vmatmul.mubr.bf16.gmra.mrb[0].mxu0 %v1856
      %v2026 = vpop.f32.mrb[0].mxu0
      %v2027 = vadd.f32 %v1722, %v2026
      %v2028 = vpop.f32.mrb[0].mxu0
      %v2029 = vpop.f32.mrb[0].mxu0
      %v2030 = vadd.f32 %v1725, %v2029
      %v2031 = vpop.f32.mrb[0].mxu0
      %2032 = vmatprep.mubr.bf16.mxu0 0
      %2033 = vmatmul.mubr.bf16.gmra.mrb[0].mxu0 %v1857
      %v2034 = vpop.f32.mrb[0].mxu0
      %v2035 = vadd.f32 %v1730, %v2034
      %v2036 = vpop.f32.mrb[0].mxu0
      %v2037 = vpop.f32.mrb[0].mxu0
      %v2038 = vadd.f32 %v1733, %v2037
      %v2039 = vpop.f32.mrb[0].mxu0
      %2040 = vmatprep.mubr.bf16.mxu0 0
      %2041 = vmatmul.mubr.bf16.gmra.mrb[0].mxu0 %v1858
      %v2042 = vpop.f32.mrb[0].mxu0
      %v2043 = vadd.f32 %v1738, %v2042
      %v2044 = vpop.f32.mrb[0].mxu0
      %v2045 = vpop.f32.mrb[0].mxu0
      %v2046 = vadd.f32 %v1741, %v2045
      %v2047 = vpop.f32.mrb[0].mxu0
      %2048 = vmatprep.mubr.bf16.mxu0 0
      %2049 = vmatmul.mubr.bf16.gmra.mrb[0].mxu0 %v1859
      %v2050 = vpop.f32.mrb[0].mxu0
      %v2051 = vadd.f32 %v1746, %v2050
      %v2052 = vpop.f32.mrb[0].mxu0
      %v2053 = vpop.f32.mrb[0].mxu0
      %v2054 = vadd.f32 %v1749, %v2053
      %v2055 = vpop.f32.mrb[0].mxu0
      %2056 = vmatprep.mubr.bf16.mxu0 0
      %2057 = vmatmul.mubr.bf16.gmra.mrb[0].mxu0 %v1860
      %v2058 = vpop.f32.mrb[0].mxu0
      %v2059 = vadd.f32 %v1754, %v2058
      %v2060 = vpop.f32.mrb[0].mxu0
      %v2061 = vpop.f32.mrb[0].mxu0
      %v2062 = vadd.f32 %v1757, %v2061
      %v2063 = vpop.f32.mrb[0].mxu0
      %2064 = vmatprep.mubr.bf16.mxu0 0
      %2065 = vmatmul.mubr.bf16.gmra.mrb[0].mxu0 %v1861
      %v2066 = vpop.f32.mrb[0].mxu0
      %v2067 = vadd.f32 %v1762, %v2066
      %v2068 = vpop.f32.mrb[0].mxu0
      %v2069 = vpop.f32.mrb[0].mxu0
      %v2070 = vadd.f32 %v1765, %v2069
      %v2071 = vpop.f32.mrb[0].mxu0
      %2072 = vmatprep.mubr.bf16.mxu0 0
      %2073 = vmatmul.mubr.bf16.gmra.mrb[0].mxu0 %v1862
      %v2074 = vpop.f32.mrb[0].mxu0
      %v2075 = vadd.f32 %v1770, %v2074
      %v2076 = vpop.f32.mrb[0].mxu0
      %v2077 = vpop.f32.mrb[0].mxu0
      %v2078 = vadd.f32 %v1773, %v2077
      %v2079 = vpop.f32.mrb[0].mxu0
      %2080 = vmatprep.mubr.bf16.mxu0 0
      %2081 = vmatmul.mubr.bf16.gmra.mrb[0].mxu0 %v1863
      %v2082 = vpop.f32.mrb[0].mxu0
      %v2083 = vadd.f32 %v1778, %v2082
      %v2084 = vpop.f32.mrb[0].mxu0
      %v2085 = vpop.f32.mrb[0].mxu0
      %v2086 = vadd.f32 %v1781, %v2085
      %v2087 = vpop.f32.mrb[0].mxu0
      %2088 = vdwg.mxu0
      %v2089 = vld [vmem:[%s1042] sm:$0xe]
      %v2090 = vld [vmem:[%s1042 + $0xc] sm:$0xe]
      %v2091 = vld [vmem:[%s1042 + $0x18] sm:$0xe]
      %v2092 = vld [vmem:[%s1042 + $0x24] sm:$0xe]
      %v2093 = vld [vmem:[%s1042 + $0x30] sm:$0xe]
      %v2094 = vld [vmem:[%s1042 + $0x3c] sm:$0xe]
      %v2095 = vld [vmem:[%s1042 + $0x48] sm:$0xe]
      %v2096 = vld [vmem:[%s1042 + $0x54] sm:$0xe]
      %v2097 = vld [vmem:[%s1042 + $0x60] sm:$0xe]
      %v2098 = vld [vmem:[%s1042 + $0x6c] sm:$0xe]
      %v2099 = vld [vmem:[%s1042 + $0x78] sm:$0xe]
      %v2100 = vld [vmem:[%s1042 + $0x84] sm:$0xe]
      %v2101 = vld [vmem:[%s1042 + $0x90] sm:$0xe]
      %v2102 = vld [vmem:[%s1042 + $0x9c] sm:$0xe]
      %v2103 = vld [vmem:[%s1042 + $0xa8] sm:$0xe]
      %v2104 = vld [vmem:[%s1042 + $0xb4] sm:$0xe]
      %vm2137 = vcmask 1042432
      %vm2138 = vcmask 1046532
      %vm2139 = vmor %vm2137, %vm2138
      %v2140 = vrot.slane %v2089, 5
      %v2141 = vrot.slane %v2140, 4
      %v2142 = vrot.slane %v1044, 5
      %v2143 = vsel %vm2139, %v2141, %v2142
      %v2144 = vrot.slane %v2142, 4
      %v2145 = vrot.slane %v1091, 5
      %v2146 = vsel %vm2139, %v2144, %v2145
      %v2147 = vrot.slane %v2090, 5
      %v2148 = vrot.slane %v2147, 4
      %v2149 = vrot.slane %v1046, 5
      %v2150 = vsel %vm2139, %v2148, %v2149
      %v2151 = vrot.slane %v2149, 4
      %v2152 = vrot.slane %v1092, 5
      %v2153 = vsel %vm2139, %v2151, %v2152
      %v2154 = vrot.slane %v2091, 5
      %v2155 = vrot.slane %v2154, 4
      %v2156 = vrot.slane %v1048, 5
      %v2157 = vsel %vm2139, %v2155, %v2156
      %v2158 = vrot.slane %v2156, 4
      %v2159 = vrot.slane %v1093, 5
      %v2160 = vsel %vm2139, %v2158, %v2159
      %v2161 = vrot.slane %v2092, 5
      %v2162 = vrot.slane %v2161, 4
      %v2163 = vrot.slane %v1050, 5
      %v2164 = vsel %vm2139, %v2162, %v2163
      %v2165 = vrot.slane %v2163, 4
      %v2166 = vrot.slane %v1094, 5
      %v2167 = vsel %vm2139, %v2165, %v2166
      %v2168 = vrot.slane %v2093, 5
      %v2169 = vrot.slane %v2168, 4
      %v2170 = vrot.slane %v1052, 5
      %v2171 = vsel %vm2139, %v2169, %v2170
      %v2172 = vrot.slane %v2170, 4
      %v2173 = vrot.slane %v1095, 5
      %v2174 = vsel %vm2139, %v2172, %v2173
      %v2175 = vrot.slane %v2094, 5
      %v2176 = vrot.slane %v2175, 4
      %v2177 = vrot.slane %v1054, 5
      %v2178 = vsel %vm2139, %v2176, %v2177
      %v2179 = vrot.slane %v2177, 4
      %v2180 = vrot.slane %v1096, 5
      %v2181 = vsel %vm2139, %v2179, %v2180
      %v2182 = vrot.slane %v2095, 5
      %v2183 = vrot.slane %v2182, 4
      %v2184 = vrot.slane %v1056, 5
      %v2185 = vsel %vm2139, %v2183, %v2184
      %v2186 = vrot.slane %v2184, 4
      %v2187 = vrot.slane %v1097, 5
      %v2188 = vsel %vm2139, %v2186, %v2187
      %v2189 = vrot.slane %v2096, 5
      %v2190 = vrot.slane %v2189, 4
      %v2191 = vrot.slane %v1058, 5
      %v2192 = vsel %vm2139, %v2190, %v2191
      %v2193 = vrot.slane %v2191, 4
      %v2194 = vrot.slane %v1098, 5
      %v2195 = vsel %vm2139, %v2193, %v2194
      %v2196 = vrot.slane %v2097, 5
      %v2197 = vrot.slane %v2196, 4
      %v2198 = vrot.slane %v1060, 5
      %v2199 = vsel %vm2139, %v2197, %v2198
      %v2200 = vrot.slane %v2198, 4
      %v2201 = vrot.slane %v1099, 5
      %v2202 = vsel %vm2139, %v2200, %v2201
      %v2203 = vrot.slane %v2098, 5
      %v2204 = vrot.slane %v2203, 4
      %v2205 = vrot.slane %v1062, 5
      %v2206 = vsel %vm2139, %v2204, %v2205
      %v2207 = vrot.slane %v2205, 4
      %v2208 = vrot.slane %v1100, 5
      %v2209 = vsel %vm2139, %v2207, %v2208
      %v2210 = vrot.slane %v2099, 5
      %v2211 = vrot.slane %v2210, 4
      %v2212 = vrot.slane %v1064, 5
      %v2213 = vsel %vm2139, %v2211, %v2212
      %v2214 = vrot.slane %v2212, 4
      %v2215 = vrot.slane %v1101, 5
      %v2216 = vsel %vm2139, %v2214, %v2215
      %v2217 = vrot.slane %v2100, 5
      %v2218 = vrot.slane %v2217, 4
      %v2219 = vrot.slane %v1066, 5
      %v2220 = vsel %vm2139, %v2218, %v2219
      %v2221 = vrot.slane %v2219, 4
      %v2222 = vrot.slane %v1102, 5
      %v2223 = vsel %vm2139, %v2221, %v2222
      %v2224 = vrot.slane %v2101, 5
      %v2225 = vrot.slane %v2224, 4
      %v2226 = vrot.slane %v1068, 5
      %v2227 = vsel %vm2139, %v2225, %v2226
      %v2228 = vrot.slane %v2226, 4
      %v2229 = vrot.slane %v1103, 5
      %v2230 = vsel %vm2139, %v2228, %v2229
      %v2231 = vrot.slane %v2102, 5
      %v2232 = vrot.slane %v2231, 4
      %v2233 = vrot.slane %v1070, 5
      %v2234 = vsel %vm2139, %v2232, %v2233
      %v2235 = vrot.slane %v2233, 4
      %v2236 = vrot.slane %v1104, 5
      %v2237 = vsel %vm2139, %v2235, %v2236
      %v2238 = vrot.slane %v2103, 5
      %v2239 = vrot.slane %v2238, 4
      %v2240 = vrot.slane %v1072, 5
      %v2241 = vsel %vm2139, %v2239, %v2240
      %v2242 = vrot.slane %v2240, 4
      %v2243 = vrot.slane %v1105, 5
      %v2244 = vsel %vm2139, %v2242, %v2243
      %v2245 = vrot.slane %v2104, 5
      %v2246 = vrot.slane %v2245, 4
      %v2247 = vrot.slane %v1074, 5
      %v2248 = vsel %vm2139, %v2246, %v2247
      %v2249 = vrot.slane %v2247, 4
      %v2250 = vrot.slane %v1106, 5
      %v2251 = vsel %vm2139, %v2249, %v2250
      %s2252 = scalar_lea.vmem %s1, 128
      %v2253 = vld [vmem:[%s2252] sm:$0xf]
      %v2254 = vld [vmem:[%s2252 + $0x4] sm:$0xf]
      %v2255 = vld [vmem:[%s2252 + $0x8] sm:$0xf]
      %v2256 = vld [vmem:[%s2252 + $0xc] sm:$0xf]
      %v2257 = vld [vmem:[%s2252 + $0x10] sm:$0xf]
      %v2258 = vld [vmem:[%s2252 + $0x14] sm:$0xf]
      %v2259 = vld [vmem:[%s2252 + $0x18] sm:$0xf]
      %v2260 = vld [vmem:[%s2252 + $0x1c] sm:$0xf]
      %v2261 = vld [vmem:[%s2252 + $0x20] sm:$0xf]
      %v2262 = vld [vmem:[%s2252 + $0x24] sm:$0xf]
      %v2263 = vld [vmem:[%s2252 + $0x28] sm:$0xf]
      %v2264 = vld [vmem:[%s2252 + $0x2c] sm:$0xf]
      %v2265 = vld [vmem:[%s2252 + $0x30] sm:$0xf]
      %v2266 = vld [vmem:[%s2252 + $0x34] sm:$0xf]
      %v2267 = vld [vmem:[%s2252 + $0x38] sm:$0xf]
      %v2268 = vld [vmem:[%s2252 + $0x3c] sm:$0xf]
      %v2269 = vunpack.c.l.b16 %v2143
      %v2270 = vunpack.c.l.b16 %v2146
      %v2271 = vunpack.c.l.b16 %v2150
      %v2272 = vunpack.c.l.b16 %v2153
      %v2273 = vunpack.c.l.b16 %v2157
      %v2274 = vunpack.c.l.b16 %v2160
      %v2275 = vunpack.c.l.b16 %v2164
      %v2276 = vunpack.c.l.b16 %v2167
      %v2277 = vunpack.c.l.b16 %v2171
      %v2278 = vunpack.c.l.b16 %v2174
      %v2279 = vunpack.c.l.b16 %v2178
      %v2280 = vunpack.c.l.b16 %v2181
      %v2281 = vunpack.c.l.b16 %v2185
      %v2282 = vunpack.c.l.b16 %v2188
      %v2283 = vunpack.c.l.b16 %v2192
      %v2284 = vunpack.c.l.b16 %v2195
      %v2285 = vunpack.c.l.b16 %v2199
      %v2286 = vunpack.c.l.b16 %v2202
      %v2287 = vunpack.c.l.b16 %v2206
      %v2288 = vunpack.c.l.b16 %v2209
      %v2289 = vunpack.c.l.b16 %v2213
      %v2290 = vunpack.c.l.b16 %v2216
      %v2291 = vunpack.c.l.b16 %v2220
      %v2292 = vunpack.c.l.b16 %v2223
      %v2293 = vunpack.c.l.b16 %v2227
      %v2294 = vunpack.c.l.b16 %v2230
      %v2295 = vunpack.c.l.b16 %v2234
      %v2296 = vunpack.c.l.b16 %v2237
      %v2297 = vunpack.c.l.b16 %v2241
      %v2298 = vunpack.c.l.b16 %v2244
      %v2299 = vunpack.c.l.b16 %v2248
      %v2300 = vunpack.c.l.b16 %v2251
      %v2301 = vpack.c.b16 %v2270, %v2269
      %v2302 = vpack.c.b16 %v2272, %v2271
      %v2303 = vpack.c.b16 %v2274, %v2273
      %v2304 = vpack.c.b16 %v2276, %v2275
      %v2305 = vpack.c.b16 %v2278, %v2277
      %v2306 = vpack.c.b16 %v2280, %v2279
      %v2307 = vpack.c.b16 %v2282, %v2281
      %v2308 = vpack.c.b16 %v2284, %v2283
      %v2309 = vpack.c.b16 %v2286, %v2285
      %v2310 = vpack.c.b16 %v2288, %v2287
      %v2311 = vpack.c.b16 %v2290, %v2289
      %v2312 = vpack.c.b16 %v2292, %v2291
      %v2313 = vpack.c.b16 %v2294, %v2293
      %v2314 = vpack.c.b16 %v2296, %v2295
      %v2315 = vpack.c.b16 %v2298, %v2297
      %v2316 = vpack.c.b16 %v2300, %v2299
      %v2349 = vunpack.c.l.b16 %v2253
      %v2350 = vunpack.c.l.b16 %v2254
      %v2351 = vunpack.c.l.b16 %v2255
      %v2352 = vunpack.c.l.b16 %v2256
      %v2353 = vunpack.c.l.b16 %v2257
      %v2354 = vunpack.c.l.b16 %v2258
      %v2355 = vunpack.c.l.b16 %v2259
      %v2356 = vunpack.c.l.b16 %v2260
      %v2357 = vunpack.c.l.b16 %v2261
      %v2358 = vunpack.c.l.b16 %v2262
      %v2359 = vunpack.c.l.b16 %v2263
      %v2360 = vunpack.c.l.b16 %v2264
      %v2361 = vunpack.c.l.b16 %v2265
      %v2362 = vunpack.c.l.b16 %v2266
      %v2363 = vunpack.c.l.b16 %v2267
      %v2364 = vunpack.c.l.b16 %v2268
      %v2365 = vpack.c.b16 %v2350, %v2349
      %v2366 = vpack.c.b16 %v2352, %v2351
      %v2367 = vpack.c.b16 %v2354, %v2353
      %v2368 = vpack.c.b16 %v2356, %v2355
      %v2369 = vpack.c.b16 %v2358, %v2357
      %v2370 = vpack.c.b16 %v2360, %v2359
      %v2371 = vpack.c.b16 %v2362, %v2361
      %v2372 = vpack.c.b16 %v2364, %v2363
      %2381 = vmatprep.subr.bf16.mxu0 0
      %2382 = vmatpush1.bf16.msra.mxu0 %v2365
      %2383 = vmatprep.subr.bf16.mxu0 0
      %2384 = vmatpush1.bf16.msra.mxu0 %v2366
      %2385 = vmatprep.subr.bf16.mxu0 0
      %2386 = vmatpush1.bf16.msra.mxu0 %v2367
      %2387 = vmatprep.subr.bf16.mxu0 0
      %2388 = vmatpush1.bf16.msra.mxu0 %v2368
      %2389 = vmatprep.subr.bf16.mxu0 0
      %2390 = vmatpush1.bf16.msra.mxu0 %v2369
      %2391 = vmatprep.subr.bf16.mxu0 0
      %2392 = vmatpush1.bf16.msra.mxu0 %v2370
      %2393 = vmatprep.subr.bf16.mxu0 0
      %2394 = vmatpush1.bf16.msra.mxu0 %v2371
      %2395 = vmatprep.subr.bf16.mxu0 0
      %2396 = vmatpush1.bf16.msra.mxu0 %v2372
      %2397 = vmatprep.subr.bf16.mxu0 0
      %2398 = vmatpush1.bf16.msra.mxu0 0
      %2399 = vmatprep.subr.bf16.mxu0 0
      %2400 = vmatpush1.bf16.msra.mxu0 0
      %2401 = vmatprep.subr.bf16.mxu0 0
      %2402 = vmatpush1.bf16.msra.mxu0 0
      %2403 = vmatprep.subr.bf16.mxu0 0
      %2404 = vmatpush1.bf16.msra.mxu0 0
      %2405 = vmatprep.subr.bf16.mxu0 0
      %2406 = vmatpush1.bf16.msra.mxu0 0
      %2407 = vmatprep.subr.bf16.mxu0 0
      %2408 = vmatpush1.bf16.msra.mxu0 0
      %2409 = vmatprep.subr.bf16.mxu0 0
      %2410 = vmatpush1.bf16.msra.mxu0 0
      %2411 = vmatprep.subr.bf16.mxu0 0
      %2412 = vmatpush1.bf16.msra.mxu0 0
      %2413 = vmatprep.mubr.bf16.mxu0 0
      %2414 = vmatmul.mubr.bf16.gmra.mrb[0].mxu0 %v2301
      %v2415 = vpop.f32.mrb[0].mxu0
      %v2416 = vadd.f32 0.0, %v2415
      %v2417 = vpop.f32.mrb[0].mxu0
      %v2418 = vpop.f32.mrb[0].mxu0
      %v2419 = vadd.f32 0.0, %v2418
      %v2420 = vpop.f32.mrb[0].mxu0
      %2421 = vmatprep.mubr.bf16.mxu0 0
      %2422 = vmatmul.mubr.bf16.gmra.mrb[0].mxu0 %v2302
      %v2423 = vpop.f32.mrb[0].mxu0
      %v2424 = vadd.f32 0.0, %v2423
      %v2425 = vpop.f32.mrb[0].mxu0
      %v2426 = vpop.f32.mrb[0].mxu0
      %v2427 = vadd.f32 0.0, %v2426
      %v2428 = vpop.f32.mrb[0].mxu0
      %2429 = vmatprep.mubr.bf16.mxu0 0
      %2430 = vmatmul.mubr.bf16.gmra.mrb[0].mxu0 %v2303
      %v2431 = vpop.f32.mrb[0].mxu0
      %v2432 = vadd.f32 0.0, %v2431
      %v2433 = vpop.f32.mrb[0].mxu0
      %v2434 = vpop.f32.mrb[0].mxu0
      %v2435 = vadd.f32 0.0, %v2434
      %v2436 = vpop.f32.mrb[0].mxu0
      %2437 = vmatprep.mubr.bf16.mxu0 0
      %2438 = vmatmul.mubr.bf16.gmra.mrb[0].mxu0 %v2304
      %v2439 = vpop.f32.mrb[0].mxu0
      %v2440 = vadd.f32 0.0, %v2439
      %v2441 = vpop.f32.mrb[0].mxu0
      %v2442 = vpop.f32.mrb[0].mxu0
      %v2443 = vadd.f32 0.0, %v2442
      %v2444 = vpop.f32.mrb[0].mxu0
      %2445 = vmatprep.mubr.bf16.mxu0 0
      %2446 = vmatmul.mubr.bf16.gmra.mrb[0].mxu0 %v2305
      %v2447 = vpop.f32.mrb[0].mxu0
      %v2448 = vadd.f32 0.0, %v2447
      %v2449 = vpop.f32.mrb[0].mxu0
      %v2450 = vpop.f32.mrb[0].mxu0
      %v2451 = vadd.f32 0.0, %v2450
      %v2452 = vpop.f32.mrb[0].mxu0
      %2453 = vmatprep.mubr.bf16.mxu0 0
      %2454 = vmatmul.mubr.bf16.gmra.mrb[0].mxu0 %v2306
      %v2455 = vpop.f32.mrb[0].mxu0
      %v2456 = vadd.f32 0.0, %v2455
      %v2457 = vpop.f32.mrb[0].mxu0
      %v2458 = vpop.f32.mrb[0].mxu0
      %v2459 = vadd.f32 0.0, %v2458
      %v2460 = vpop.f32.mrb[0].mxu0
      %2461 = vmatprep.mubr.bf16.mxu0 0
      %2462 = vmatmul.mubr.bf16.gmra.mrb[0].mxu0 %v2307
      %v2463 = vpop.f32.mrb[0].mxu0
      %v2464 = vadd.f32 0.0, %v2463
      %v2465 = vpop.f32.mrb[0].mxu0
      %v2466 = vpop.f32.mrb[0].mxu0
      %v2467 = vadd.f32 0.0, %v2466
      %v2468 = vpop.f32.mrb[0].mxu0
      %2469 = vmatprep.mubr.bf16.mxu0 0
      %2470 = vmatmul.mubr.bf16.gmra.mrb[0].mxu0 %v2308
      %v2471 = vpop.f32.mrb[0].mxu0
      %v2472 = vadd.f32 0.0, %v2471
      %v2473 = vpop.f32.mrb[0].mxu0
      %v2474 = vpop.f32.mrb[0].mxu0
      %v2475 = vadd.f32 0.0, %v2474
      %v2476 = vpop.f32.mrb[0].mxu0
      %2477 = vmatprep.mubr.bf16.mxu0 0
      %2478 = vmatmul.mubr.bf16.gmra.mrb[0].mxu0 %v2309
      %v2479 = vpop.f32.mrb[0].mxu0
      %v2480 = vadd.f32 0.0, %v2479
      %v2481 = vpop.f32.mrb[0].mxu0
      %v2482 = vpop.f32.mrb[0].mxu0
      %v2483 = vadd.f32 0.0, %v2482
      %v2484 = vpop.f32.mrb[0].mxu0
      %2485 = vmatprep.mubr.bf16.mxu0 0
      %2486 = vmatmul.mubr.bf16.gmra.mrb[0].mxu0 %v2310
      %v2487 = vpop.f32.mrb[0].mxu0
      %v2488 = vadd.f32 0.0, %v2487
      %v2489 = vpop.f32.mrb[0].mxu0
      %v2490 = vpop.f32.mrb[0].mxu0
      %v2491 = vadd.f32 0.0, %v2490
      %v2492 = vpop.f32.mrb[0].mxu0
      %2493 = vmatprep.mubr.bf16.mxu0 0
      %2494 = vmatmul.mubr.bf16.gmra.mrb[0].mxu0 %v2311
      %v2495 = vpop.f32.mrb[0].mxu0
      %v2496 = vadd.f32 0.0, %v2495
      %v2497 = vpop.f32.mrb[0].mxu0
      %v2498 = vpop.f32.mrb[0].mxu0
      %v2499 = vadd.f32 0.0, %v2498
      %v2500 = vpop.f32.mrb[0].mxu0
      %2501 = vmatprep.mubr.bf16.mxu0 0
      %2502 = vmatmul.mubr.bf16.gmra.mrb[0].mxu0 %v2312
      %v2503 = vpop.f32.mrb[0].mxu0
      %v2504 = vadd.f32 0.0, %v2503
      %v2505 = vpop.f32.mrb[0].mxu0
      %v2506 = vpop.f32.mrb[0].mxu0
      %v2507 = vadd.f32 0.0, %v2506
      %v2508 = vpop.f32.mrb[0].mxu0
      %2509 = vmatprep.mubr.bf16.mxu0 0
      %2510 = vmatmul.mubr.bf16.gmra.mrb[0].mxu0 %v2313
      %v2511 = vpop.f32.mrb[0].mxu0
      %v2512 = vadd.f32 0.0, %v2511
      %v2513 = vpop.f32.mrb[0].mxu0
      %v2514 = vpop.f32.mrb[0].mxu0
      %v2515 = vadd.f32 0.0, %v2514
      %v2516 = vpop.f32.mrb[0].mxu0
      %2517 = vmatprep.mubr.bf16.mxu0 0
      %2518 = vmatmul.mubr.bf16.gmra.mrb[0].mxu0 %v2314
      %v2519 = vpop.f32.mrb[0].mxu0
      %v2520 = vadd.f32 0.0, %v2519
      %v2521 = vpop.f32.mrb[0].mxu0
      %v2522 = vpop.f32.mrb[0].mxu0
      %v2523 = vadd.f32 0.0, %v2522
      %v2524 = vpop.f32.mrb[0].mxu0
      %2525 = vmatprep.mubr.bf16.mxu0 0
      %2526 = vmatmul.mubr.bf16.gmra.mrb[0].mxu0 %v2315
      %v2527 = vpop.f32.mrb[0].mxu0
      %v2528 = vadd.f32 0.0, %v2527
      %v2529 = vpop.f32.mrb[0].mxu0
      %v2530 = vpop.f32.mrb[0].mxu0
      %v2531 = vadd.f32 0.0, %v2530
      %v2532 = vpop.f32.mrb[0].mxu0
      %2533 = vmatprep.mubr.bf16.mxu0 0
      %2534 = vmatmul.mubr.bf16.gmra.mrb[0].mxu0 %v2316
      %v2535 = vpop.f32.mrb[0].mxu0
      %v2536 = vadd.f32 0.0, %v2535
      %v2537 = vpop.f32.mrb[0].mxu0
      %v2538 = vpop.f32.mrb[0].mxu0
      %v2539 = vadd.f32 0.0, %v2538
      %v2540 = vpop.f32.mrb[0].mxu0
      %2541 = vdwg.mxu0
      %v2542 = vadd.f32 %v1963, %v2416
      %v2543 = vadd.f32 %v1966, %v2419
      %v2544 = vadd.f32 %v1971, %v2424
      %v2545 = vadd.f32 %v1974, %v2427
      %v2546 = vadd.f32 %v1979, %v2432
      %v2547 = vadd.f32 %v1982, %v2435
      %v2548 = vadd.f32 %v1987, %v2440
      %v2549 = vadd.f32 %v1990, %v2443
      %v2550 = vadd.f32 %v1995, %v2448
      %v2551 = vadd.f32 %v1998, %v2451
      %v2552 = vadd.f32 %v2003, %v2456
      %v2553 = vadd.f32 %v2006, %v2459
      %v2554 = vadd.f32 %v2011, %v2464
      %v2555 = vadd.f32 %v2014, %v2467
      %v2556 = vadd.f32 %v2019, %v2472
      %v2557 = vadd.f32 %v2022, %v2475
      %v2558 = vadd.f32 %v2027, %v2480
      %v2559 = vadd.f32 %v2030, %v2483
      %v2560 = vadd.f32 %v2035, %v2488
      %v2561 = vadd.f32 %v2038, %v2491
      %v2562 = vadd.f32 %v2043, %v2496
      %v2563 = vadd.f32 %v2046, %v2499
      %v2564 = vadd.f32 %v2051, %v2504
      %v2565 = vadd.f32 %v2054, %v2507
      %v2566 = vadd.f32 %v2059, %v2512
      %v2567 = vadd.f32 %v2062, %v2515
      %v2568 = vadd.f32 %v2067, %v2520
      %v2569 = vadd.f32 %v2070, %v2523
      %v2570 = vadd.f32 %v2075, %v2528
      %v2571 = vadd.f32 %v2078, %v2531
      %v2572 = vadd.f32 %v2083, %v2536
      %v2573 = vadd.f32 %v2086, %v2539
      %s2574 = sadd.s32 %s1039, 1
      %s2575 = smul.u32 %s2574, 3
      %s2576 = smul.addr %s2575, 4
      %s2577 = scalar_lea.vmem [#allocation2], %s2576
      %v2578 = vld [vmem:[%s2577] sm:$0xf]
      %v2579 = vld [vmem:[%s2577 + $0x4] sm:$0xf]
      %v2580 = vld [vmem:[%s2577 + $0xc] sm:$0xf]
      %v2581 = vld [vmem:[%s2577 + $0x10] sm:$0xf]
      %v2582 = vld [vmem:[%s2577 + $0x18] sm:$0xf]
      %v2583 = vld [vmem:[%s2577 + $0x1c] sm:$0xf]
      %v2584 = vld [vmem:[%s2577 + $0x24] sm:$0xf]
      %v2585 = vld [vmem:[%s2577 + $0x28] sm:$0xf]
      %v2586 = vld [vmem:[%s2577 + $0x30] sm:$0xf]
      %v2587 = vld [vmem:[%s2577 + $0x34] sm:$0xf]
      %v2588 = vld [vmem:[%s2577 + $0x3c] sm:$0xf]
      %v2589 = vld [vmem:[%s2577 + $0x40] sm:$0xf]
      %v2590 = vld [vmem:[%s2577 + $0x48] sm:$0xf]
      %v2591 = vld [vmem:[%s2577 + $0x4c] sm:$0xf]
      %v2592 = vld [vmem:[%s2577 + $0x54] sm:$0xf]
      %v2593 = vld [vmem:[%s2577 + $0x58] sm:$0xf]
      %v2594 = vld [vmem:[%s2577 + $0x60] sm:$0xf]
      %v2595 = vld [vmem:[%s2577 + $0x64] sm:$0xf]
      %v2596 = vld [vmem:[%s2577 + $0x6c] sm:$0xf]
      %v2597 = vld [vmem:[%s2577 + $0x70] sm:$0xf]
      %v2598 = vld [vmem:[%s2577 + $0x78] sm:$0xf]
      %v2599 = vld [vmem:[%s2577 + $0x7c] sm:$0xf]
      %v2600 = vld [vmem:[%s2577 + $0x84] sm:$0xf]
      %v2601 = vld [vmem:[%s2577 + $0x88] sm:$0xf]
      %v2602 = vld [vmem:[%s2577 + $0x90] sm:$0xf]
      %v2603 = vld [vmem:[%s2577 + $0x94] sm:$0xf]
      %v2604 = vld [vmem:[%s2577 + $0x9c] sm:$0xf]
      %v2605 = vld [vmem:[%s2577 + $0xa0] sm:$0xf]
      %v2606 = vld [vmem:[%s2577 + $0xa8] sm:$0xf]
      %v2607 = vld [vmem:[%s2577 + $0xac] sm:$0xf]
      %v2608 = vld [vmem:[%s2577 + $0xb4] sm:$0xf]
      %v2609 = vld [vmem:[%s2577 + $0xb8] sm:$0xf]
      %s2610 = scalar_lea.vmem %s1, 192
      %v2611 = vld [vmem:[%s2610] sm:$0xf]
      %v2612 = vld [vmem:[%s2610 + $0x4] sm:$0xf]
      %v2613 = vld [vmem:[%s2610 + $0x8] sm:$0xf]
      %v2614 = vld [vmem:[%s2610 + $0xc] sm:$0xf]
      %v2615 = vld [vmem:[%s2610 + $0x10] sm:$0xf]
      %v2616 = vld [vmem:[%s2610 + $0x14] sm:$0xf]
      %v2617 = vld [vmem:[%s2610 + $0x18] sm:$0xf]
      %v2618 = vld [vmem:[%s2610 + $0x1c] sm:$0xf]
      %v2619 = vld [vmem:[%s2610 + $0x20] sm:$0xf]
      %v2620 = vld [vmem:[%s2610 + $0x24] sm:$0xf]
      %v2621 = vld [vmem:[%s2610 + $0x28] sm:$0xf]
      %v2622 = vld [vmem:[%s2610 + $0x2c] sm:$0xf]
      %v2623 = vld [vmem:[%s2610 + $0x30] sm:$0xf]
      %v2624 = vld [vmem:[%s2610 + $0x34] sm:$0xf]
      %v2625 = vld [vmem:[%s2610 + $0x38] sm:$0xf]
      %v2626 = vld [vmem:[%s2610 + $0x3c] sm:$0xf]
      %v2659 = vunpack.c.l.b16 %v2578
      %v2660 = vunpack.c.l.b16 %v2579
      %v2661 = vunpack.c.l.b16 %v2580
      %v2662 = vunpack.c.l.b16 %v2581
      %v2663 = vunpack.c.l.b16 %v2582
      %v2664 = vunpack.c.l.b16 %v2583
      %v2665 = vunpack.c.l.b16 %v2584
      %v2666 = vunpack.c.l.b16 %v2585
      %v2667 = vunpack.c.l.b16 %v2586
      %v2668 = vunpack.c.l.b16 %v2587
      %v2669 = vunpack.c.l.b16 %v2588
      %v2670 = vunpack.c.l.b16 %v2589
      %v2671 = vunpack.c.l.b16 %v2590
      %v2672 = vunpack.c.l.b16 %v2591
      %v2673 = vunpack.c.l.b16 %v2592
      %v2674 = vunpack.c.l.b16 %v2593
      %v2675 = vunpack.c.l.b16 %v2594
      %v2676 = vunpack.c.l.b16 %v2595
      %v2677 = vunpack.c.l.b16 %v2596
      %v2678 = vunpack.c.l.b16 %v2597
      %v2679 = vunpack.c.l.b16 %v2598
      %v2680 = vunpack.c.l.b16 %v2599
      %v2681 = vunpack.c.l.b16 %v2600
      %v2682 = vunpack.c.l.b16 %v2601
      %v2683 = vunpack.c.l.b16 %v2602
      %v2684 = vunpack.c.l.b16 %v2603
      %v2685 = vunpack.c.l.b16 %v2604
      %v2686 = vunpack.c.l.b16 %v2605
      %v2687 = vunpack.c.l.b16 %v2606
      %v2688 = vunpack.c.l.b16 %v2607
      %v2689 = vunpack.c.l.b16 %v2608
      %v2690 = vunpack.c.l.b16 %v2609
      %v2691 = vpack.c.b16 %v2660, %v2659
      %v2692 = vpack.c.b16 %v2662, %v2661
      %v2693 = vpack.c.b16 %v2664, %v2663
      %v2694 = vpack.c.b16 %v2666, %v2665
      %v2695 = vpack.c.b16 %v2668, %v2667
      %v2696 = vpack.c.b16 %v2670, %v2669
      %v2697 = vpack.c.b16 %v2672, %v2671
      %v2698 = vpack.c.b16 %v2674, %v2673
      %v2699 = vpack.c.b16 %v2676, %v2675
      %v2700 = vpack.c.b16 %v2678, %v2677
      %v2701 = vpack.c.b16 %v2680, %v2679
      %v2702 = vpack.c.b16 %v2682, %v2681
      %v2703 = vpack.c.b16 %v2684, %v2683
      %v2704 = vpack.c.b16 %v2686, %v2685
      %v2705 = vpack.c.b16 %v2688, %v2687
      %v2706 = vpack.c.b16 %v2690, %v2689
      %v2739 = vunpack.c.l.b16 %v2611
      %v2740 = vunpack.c.l.b16 %v2612
      %v2741 = vunpack.c.l.b16 %v2613
      %v2742 = vunpack.c.l.b16 %v2614
      %v2743 = vunpack.c.l.b16 %v2615
      %v2744 = vunpack.c.l.b16 %v2616
      %v2745 = vunpack.c.l.b16 %v2617
      %v2746 = vunpack.c.l.b16 %v2618
      %v2747 = vunpack.c.l.b16 %v2619
      %v2748 = vunpack.c.l.b16 %v2620
      %v2749 = vunpack.c.l.b16 %v2621
      %v2750 = vunpack.c.l.b16 %v2622
      %v2751 = vunpack.c.l.b16 %v2623
      %v2752 = vunpack.c.l.b16 %v2624
      %v2753 = vunpack.c.l.b16 %v2625
      %v2754 = vunpack.c.l.b16 %v2626
      %v2755 = vpack.c.b16 %v2740, %v2739
      %v2756 = vpack.c.b16 %v2742, %v2741
      %v2757 = vpack.c.b16 %v2744, %v2743
      %v2758 = vpack.c.b16 %v2746, %v2745
      %v2759 = vpack.c.b16 %v2748, %v2747
      %v2760 = vpack.c.b16 %v2750, %v2749
      %v2761 = vpack.c.b16 %v2752, %v2751
      %v2762 = vpack.c.b16 %v2754, %v2753
      %2771 = vmatprep.subr.bf16.mxu0 0
      %2772 = vmatpush1.bf16.msra.mxu0 %v2755
      %2773 = vmatprep.subr.bf16.mxu0 0
      %2774 = vmatpush1.bf16.msra.mxu0 %v2756
      %2775 = vmatprep.subr.bf16.mxu0 0
      %2776 = vmatpush1.bf16.msra.mxu0 %v2757
      %2777 = vmatprep.subr.bf16.mxu0 0
      %2778 = vmatpush1.bf16.msra.mxu0 %v2758
      %2779 = vmatprep.subr.bf16.mxu0 0
      %2780 = vmatpush1.bf16.msra.mxu0 %v2759
      %2781 = vmatprep.subr.bf16.mxu0 0
      %2782 = vmatpush1.bf16.msra.mxu0 %v2760
      %2783 = vmatprep.subr.bf16.mxu0 0
      %2784 = vmatpush1.bf16.msra.mxu0 %v2761
      %2785 = vmatprep.subr.bf16.mxu0 0
      %2786 = vmatpush1.bf16.msra.mxu0 %v2762
      %2787 = vmatprep.subr.bf16.mxu0 0
      %2788 = vmatpush1.bf16.msra.mxu0 0
      %2789 = vmatprep.subr.bf16.mxu0 0
      %2790 = vmatpush1.bf16.msra.mxu0 0
      %2791 = vmatprep.subr.bf16.mxu0 0
      %2792 = vmatpush1.bf16.msra.mxu0 0
      %2793 = vmatprep.subr.bf16.mxu0 0
      %2794 = vmatpush1.bf16.msra.mxu0 0
      %2795 = vmatprep.subr.bf16.mxu0 0
      %2796 = vmatpush1.bf16.msra.mxu0 0
      %2797 = vmatprep.subr.bf16.mxu0 0
      %2798 = vmatpush1.bf16.msra.mxu0 0
      %2799 = vmatprep.subr.bf16.mxu0 0
      %2800 = vmatpush1.bf16.msra.mxu0 0
      %2801 = vmatprep.subr.bf16.mxu0 0
      %2802 = vmatpush1.bf16.msra.mxu0 0
      %2803 = vmatprep.mubr.bf16.mxu0 0
      %2804 = vmatmul.mubr.bf16.gmra.mrb[0].mxu0 %v2691
      %v2805 = vpop.f32.mrb[0].mxu0
      %v2806 = vadd.f32 0.0, %v2805
      %v2807 = vpop.f32.mrb[0].mxu0
      %v2808 = vpop.f32.mrb[0].mxu0
      %v2809 = vadd.f32 0.0, %v2808
      %v2810 = vpop.f32.mrb[0].mxu0
      %2811 = vmatprep.mubr.bf16.mxu0 0
      %2812 = vmatmul.mubr.bf16.gmra.mrb[0].mxu0 %v2692
      %v2813 = vpop.f32.mrb[0].mxu0
      %v2814 = vadd.f32 0.0, %v2813
      %v2815 = vpop.f32.mrb[0].mxu0
      %v2816 = vpop.f32.mrb[0].mxu0
      %v2817 = vadd.f32 0.0, %v2816
      %v2818 = vpop.f32.mrb[0].mxu0
      %2819 = vmatprep.mubr.bf16.mxu0 0
      %2820 = vmatmul.mubr.bf16.gmra.mrb[0].mxu0 %v2693
      %v2821 = vpop.f32.mrb[0].mxu0
      %v2822 = vadd.f32 0.0, %v2821
      %v2823 = vpop.f32.mrb[0].mxu0
      %v2824 = vpop.f32.mrb[0].mxu0
      %v2825 = vadd.f32 0.0, %v2824
      %v2826 = vpop.f32.mrb[0].mxu0
      %2827 = vmatprep.mubr.bf16.mxu0 0
      %2828 = vmatmul.mubr.bf16.gmra.mrb[0].mxu0 %v2694
      %v2829 = vpop.f32.mrb[0].mxu0
      %v2830 = vadd.f32 0.0, %v2829
      %v2831 = vpop.f32.mrb[0].mxu0
      %v2832 = vpop.f32.mrb[0].mxu0
      %v2833 = vadd.f32 0.0, %v2832
      %v2834 = vpop.f32.mrb[0].mxu0
      %2835 = vmatprep.mubr.bf16.mxu0 0
      %2836 = vmatmul.mubr.bf16.gmra.mrb[0].mxu0 %v2695
      %v2837 = vpop.f32.mrb[0].mxu0
      %v2838 = vadd.f32 0.0, %v2837
      %v2839 = vpop.f32.mrb[0].mxu0
      %v2840 = vpop.f32.mrb[0].mxu0
      %v2841 = vadd.f32 0.0, %v2840
      %v2842 = vpop.f32.mrb[0].mxu0
      %2843 = vmatprep.mubr.bf16.mxu0 0
      %2844 = vmatmul.mubr.bf16.gmra.mrb[0].mxu0 %v2696
      %v2845 = vpop.f32.mrb[0].mxu0
      %v2846 = vadd.f32 0.0, %v2845
      %v2847 = vpop.f32.mrb[0].mxu0
      %v2848 = vpop.f32.mrb[0].mxu0
      %v2849 = vadd.f32 0.0, %v2848
      %v2850 = vpop.f32.mrb[0].mxu0
      %2851 = vmatprep.mubr.bf16.mxu0 0
      %2852 = vmatmul.mubr.bf16.gmra.mrb[0].mxu0 %v2697
      %v2853 = vpop.f32.mrb[0].mxu0
      %v2854 = vadd.f32 0.0, %v2853
      %v2855 = vpop.f32.mrb[0].mxu0
      %v2856 = vpop.f32.mrb[0].mxu0
      %v2857 = vadd.f32 0.0, %v2856
      %v2858 = vpop.f32.mrb[0].mxu0
      %2859 = vmatprep.mubr.bf16.mxu0 0
      %2860 = vmatmul.mubr.bf16.gmra.mrb[0].mxu0 %v2698
      %v2861 = vpop.f32.mrb[0].mxu0
      %v2862 = vadd.f32 0.0, %v2861
      %v2863 = vpop.f32.mrb[0].mxu0
      %v2864 = vpop.f32.mrb[0].mxu0
      %v2865 = vadd.f32 0.0, %v2864
      %v2866 = vpop.f32.mrb[0].mxu0
      %2867 = vmatprep.mubr.bf16.mxu0 0
      %2868 = vmatmul.mubr.bf16.gmra.mrb[0].mxu0 %v2699
      %v2869 = vpop.f32.mrb[0].mxu0
      %v2870 = vadd.f32 0.0, %v2869
      %v2871 = vpop.f32.mrb[0].mxu0
      %v2872 = vpop.f32.mrb[0].mxu0
      %v2873 = vadd.f32 0.0, %v2872
      %v2874 = vpop.f32.mrb[0].mxu0
      %2875 = vmatprep.mubr.bf16.mxu0 0
      %2876 = vmatmul.mubr.bf16.gmra.mrb[0].mxu0 %v2700
      %v2877 = vpop.f32.mrb[0].mxu0
      %v2878 = vadd.f32 0.0, %v2877
      %v2879 = vpop.f32.mrb[0].mxu0
      %v2880 = vpop.f32.mrb[0].mxu0
      %v2881 = vadd.f32 0.0, %v2880
      %v2882 = vpop.f32.mrb[0].mxu0
      %2883 = vmatprep.mubr.bf16.mxu0 0
      %2884 = vmatmul.mubr.bf16.gmra.mrb[0].mxu0 %v2701
      %v2885 = vpop.f32.mrb[0].mxu0
      %v2886 = vadd.f32 0.0, %v2885
      %v2887 = vpop.f32.mrb[0].mxu0
      %v2888 = vpop.f32.mrb[0].mxu0
      %v2889 = vadd.f32 0.0, %v2888
      %v2890 = vpop.f32.mrb[0].mxu0
      %2891 = vmatprep.mubr.bf16.mxu0 0
      %2892 = vmatmul.mubr.bf16.gmra.mrb[0].mxu0 %v2702
      %v2893 = vpop.f32.mrb[0].mxu0
      %v2894 = vadd.f32 0.0, %v2893
      %v2895 = vpop.f32.mrb[0].mxu0
      %v2896 = vpop.f32.mrb[0].mxu0
      %v2897 = vadd.f32 0.0, %v2896
      %v2898 = vpop.f32.mrb[0].mxu0
      %2899 = vmatprep.mubr.bf16.mxu0 0
      %2900 = vmatmul.mubr.bf16.gmra.mrb[0].mxu0 %v2703
      %v2901 = vpop.f32.mrb[0].mxu0
      %v2902 = vadd.f32 0.0, %v2901
      %v2903 = vpop.f32.mrb[0].mxu0
      %v2904 = vpop.f32.mrb[0].mxu0
      %v2905 = vadd.f32 0.0, %v2904
      %v2906 = vpop.f32.mrb[0].mxu0
      %2907 = vmatprep.mubr.bf16.mxu0 0
      %2908 = vmatmul.mubr.bf16.gmra.mrb[0].mxu0 %v2704
      %v2909 = vpop.f32.mrb[0].mxu0
      %v2910 = vadd.f32 0.0, %v2909
      %v2911 = vpop.f32.mrb[0].mxu0
      %v2912 = vpop.f32.mrb[0].mxu0
      %v2913 = vadd.f32 0.0, %v2912
      %v2914 = vpop.f32.mrb[0].mxu0
      %2915 = vmatprep.mubr.bf16.mxu0 0
      %2916 = vmatmul.mubr.bf16.gmra.mrb[0].mxu0 %v2705
      %v2917 = vpop.f32.mrb[0].mxu0
      %v2918 = vadd.f32 0.0, %v2917
      %v2919 = vpop.f32.mrb[0].mxu0
      %v2920 = vpop.f32.mrb[0].mxu0
      %v2921 = vadd.f32 0.0, %v2920
      %v2922 = vpop.f32.mrb[0].mxu0
      %2923 = vmatprep.mubr.bf16.mxu0 0
      %2924 = vmatmul.mubr.bf16.gmra.mrb[0].mxu0 %v2706
      %v2925 = vpop.f32.mrb[0].mxu0
      %v2926 = vadd.f32 0.0, %v2925
      %v2927 = vpop.f32.mrb[0].mxu0
      %v2928 = vpop.f32.mrb[0].mxu0
      %v2929 = vadd.f32 0.0, %v2928
      %v2930 = vpop.f32.mrb[0].mxu0
      %2931 = vdwg.mxu0
      %v2932 = vadd.f32 %v2542, %v2806
      %v2933 = vadd.f32 %v2543, %v2809
      %v2934 = vadd.f32 %v2544, %v2814
      %v2935 = vadd.f32 %v2545, %v2817
      %v2936 = vadd.f32 %v2546, %v2822
      %v2937 = vadd.f32 %v2547, %v2825
      %v2938 = vadd.f32 %v2548, %v2830
      %v2939 = vadd.f32 %v2549, %v2833
      %v2940 = vadd.f32 %v2550, %v2838
      %v2941 = vadd.f32 %v2551, %v2841
      %v2942 = vadd.f32 %v2552, %v2846
      %v2943 = vadd.f32 %v2553, %v2849
      %v2944 = vadd.f32 %v2554, %v2854
      %v2945 = vadd.f32 %v2555, %v2857
      %v2946 = vadd.f32 %v2556, %v2862
      %v2947 = vadd.f32 %v2557, %v2865
      %v2948 = vadd.f32 %v2558, %v2870
      %v2949 = vadd.f32 %v2559, %v2873
      %v2950 = vadd.f32 %v2560, %v2878
      %v2951 = vadd.f32 %v2561, %v2881
      %v2952 = vadd.f32 %v2562, %v2886
      %v2953 = vadd.f32 %v2563, %v2889
      %v2954 = vadd.f32 %v2564, %v2894
      %v2955 = vadd.f32 %v2565, %v2897
      %v2956 = vadd.f32 %v2566, %v2902
      %v2957 = vadd.f32 %v2567, %v2905
      %v2958 = vadd.f32 %v2568, %v2910
      %v2959 = vadd.f32 %v2569, %v2913
      %v2960 = vadd.f32 %v2570, %v2918
      %v2961 = vadd.f32 %v2571, %v2921
      %v2962 = vadd.f32 %v2572, %v2926
      %v2963 = vadd.f32 %v2573, %v2929
      %v2964 = vld [vmem:[%s2577] sm:$0xf]
      %v2965 = vld [vmem:[%s2577 + $0x4] sm:$0xf]
      %v2966 = vld [vmem:[%s2577 + $0x8] sm:$0x1]
      %v2967 = vld [vmem:[%s2577 + $0xc] sm:$0xf]
      %v2968 = vld [vmem:[%s2577 + $0x10] sm:$0xf]
      %v2969 = vld [vmem:[%s2577 + $0x14] sm:$0x1]
      %v2970 = vld [vmem:[%s2577 + $0x18] sm:$0xf]
      %v2971 = vld [vmem:[%s2577 + $0x1c] sm:$0xf]
      %v2972 = vld [vmem:[%s2577 + $0x20] sm:$0x1]
      %v2973 = vld [vmem:[%s2577 + $0x24] sm:$0xf]
      %v2974 = vld [vmem:[%s2577 + $0x28] sm:$0xf]
      %v2975 = vld [vmem:[%s2577 + $0x2c] sm:$0x1]
      %v2976 = vld [vmem:[%s2577 + $0x30] sm:$0xf]
      %v2977 = vld [vmem:[%s2577 + $0x34] sm:$0xf]
      %v2978 = vld [vmem:[%s2577 + $0x38] sm:$0x1]
      %v2979 = vld [vmem:[%s2577 + $0x3c] sm:$0xf]
      %v2980 = vld [vmem:[%s2577 + $0x40] sm:$0xf]
      %v2981 = vld [vmem:[%s2577 + $0x44] sm:$0x1]
      %v2982 = vld [vmem:[%s2577 + $0x48] sm:$0xf]
      %v2983 = vld [vmem:[%s2577 + $0x4c] sm:$0xf]
      %v2984 = vld [vmem:[%s2577 + $0x50] sm:$0x1]
      %v2985 = vld [vmem:[%s2577 + $0x54] sm:$0xf]
      %v2986 = vld [vmem:[%s2577 + $0x58] sm:$0xf]
      %v2987 = vld [vmem:[%s2577 + $0x5c] sm:$0x1]
      %v2988 = vld [vmem:[%s2577 + $0x60] sm:$0xf]
      %v2989 = vld [vmem:[%s2577 + $0x64] sm:$0xf]
      %v2990 = vld [vmem:[%s2577 + $0x68] sm:$0x1]
      %v2991 = vld [vmem:[%s2577 + $0x6c] sm:$0xf]
      %v2992 = vld [vmem:[%s2577 + $0x70] sm:$0xf]
      %v2993 = vld [vmem:[%s2577 + $0x74] sm:$0x1]
      %v2994 = vld [vmem:[%s2577 + $0x78] sm:$0xf]
      %v2995 = vld [vmem:[%s2577 + $0x7c] sm:$0xf]
      %v2996 = vld [vmem:[%s2577 + $0x80] sm:$0x1]
      %v2997 = vld [vmem:[%s2577 + $0x84] sm:$0xf]
      %v2998 = vld [vmem:[%s2577 + $0x88] sm:$0xf]
      %v2999 = vld [vmem:[%s2577 + $0x8c] sm:$0x1]
      %v3000 = vld [vmem:[%s2577 + $0x90] sm:$0xf]
      %v3001 = vld [vmem:[%s2577 + $0x94] sm:$0xf]
      %v3002 = vld [vmem:[%s2577 + $0x98] sm:$0x1]
      %v3003 = vld [vmem:[%s2577 + $0x9c] sm:$0xf]
      %v3004 = vld [vmem:[%s2577 + $0xa0] sm:$0xf]
      %v3005 = vld [vmem:[%s2577 + $0xa4] sm:$0x1]
      %v3006 = vld [vmem:[%s2577 + $0xa8] sm:$0xf]
      %v3007 = vld [vmem:[%s2577 + $0xac] sm:$0xf]
      %v3008 = vld [vmem:[%s2577 + $0xb0] sm:$0x1]
      %v3009 = vld [vmem:[%s2577 + $0xb4] sm:$0xf]
      %v3010 = vld [vmem:[%s2577 + $0xb8] sm:$0xf]
      %v3011 = vld [vmem:[%s2577 + $0xbc] sm:$0x1]
      %v3013 = vshrl.u32 %v2964, 16
      %v3015 = vrot.slane %v3013, 4
      %v3016 = vshll.u32 %v2964, 16
      %v3018 = vrot.slane %v3016, 5
      %v3019 = vor.u32 %v3015, %v3018
      %v3020 = vrot.slane %v3019, 4
      %v3022 = vshll.u32 %v2965, 16
      %v3024 = vrot.slane %v3022, 5
      %v3025 = vsel %vm1109, %v3020, %v3024
      %v3026 = vshrl.u32 %v2965, 16
      %v3028 = vrot.slane %v3026, 4
      %v3029 = vor.u32 %v3028, %v3024
      %v3030 = vrot.slane %v3029, 4
      %v3032 = vshll.u32 %v2966, 16
      %v3034 = vrot.slane %v3032, 5
      %v3035 = vsel %vm1109, %v3030, %v3034
      %v3037 = vshrl.u32 %v2967, 16
      %v3039 = vrot.slane %v3037, 4
      %v3040 = vshll.u32 %v2967, 16
      %v3042 = vrot.slane %v3040, 5
      %v3043 = vor.u32 %v3039, %v3042
      %v3044 = vrot.slane %v3043, 4
      %v3046 = vshll.u32 %v2968, 16
      %v3048 = vrot.slane %v3046, 5
      %v3049 = vsel %vm1109, %v3044, %v3048
      %v3050 = vshrl.u32 %v2968, 16
      %v3052 = vrot.slane %v3050, 4
      %v3053 = vor.u32 %v3052, %v3048
      %v3054 = vrot.slane %v3053, 4
      %v3056 = vshll.u32 %v2969, 16
      %v3058 = vrot.slane %v3056, 5
      %v3059 = vsel %vm1109, %v3054, %v3058
      %v3061 = vshrl.u32 %v2970, 16
      %v3063 = vrot.slane %v3061, 4
      %v3064 = vshll.u32 %v2970, 16
      %v3066 = vrot.slane %v3064, 5
      %v3067 = vor.u32 %v3063, %v3066
      %v3068 = vrot.slane %v3067, 4
      %v3070 = vshll.u32 %v2971, 16
      %v3072 = vrot.slane %v3070, 5
      %v3073 = vsel %vm1109, %v3068, %v3072
      %v3074 = vshrl.u32 %v2971, 16
      %v3076 = vrot.slane %v3074, 4
      %v3077 = vor.u32 %v3076, %v3072
      %v3078 = vrot.slane %v3077, 4
      %v3080 = vshll.u32 %v2972, 16
      %v3082 = vrot.slane %v3080, 5
      %v3083 = vsel %vm1109, %v3078, %v3082
      %v3085 = vshrl.u32 %v2973, 16
      %v3087 = vrot.slane %v3085, 4
      %v3088 = vshll.u32 %v2973, 16
      %v3090 = vrot.slane %v3088, 5
      %v3091 = vor.u32 %v3087, %v3090
      %v3092 = vrot.slane %v3091, 4
      %v3094 = vshll.u32 %v2974, 16
      %v3096 = vrot.slane %v3094, 5
      %v3097 = vsel %vm1109, %v3092, %v3096
      %v3098 = vshrl.u32 %v2974, 16
      %v3100 = vrot.slane %v3098, 4
      %v3101 = vor.u32 %v3100, %v3096
      %v3102 = vrot.slane %v3101, 4
      %v3104 = vshll.u32 %v2975, 16
      %v3106 = vrot.slane %v3104, 5
      %v3107 = vsel %vm1109, %v3102, %v3106
      %v3109 = vshrl.u32 %v2976, 16
      %v3111 = vrot.slane %v3109, 4
      %v3112 = vshll.u32 %v2976, 16
      %v3114 = vrot.slane %v3112, 5
      %v3115 = vor.u32 %v3111, %v3114
      %v3116 = vrot.slane %v3115, 4
      %v3118 = vshll.u32 %v2977, 16
      %v3120 = vrot.slane %v3118, 5
      %v3121 = vsel %vm1109, %v3116, %v3120
      %v3122 = vshrl.u32 %v2977, 16
      %v3124 = vrot.slane %v3122, 4
      %v3125 = vor.u32 %v3124, %v3120
      %v3126 = vrot.slane %v3125, 4
      %v3128 = vshll.u32 %v2978, 16
      %v3130 = vrot.slane %v3128, 5
      %v3131 = vsel %vm1109, %v3126, %v3130
      %v3133 = vshrl.u32 %v2979, 16
      %v3135 = vrot.slane %v3133, 4
      %v3136 = vshll.u32 %v2979, 16
      %v3138 = vrot.slane %v3136, 5
      %v3139 = vor.u32 %v3135, %v3138
      %v3140 = vrot.slane %v3139, 4
      %v3142 = vshll.u32 %v2980, 16
      %v3144 = vrot.slane %v3142, 5
      %v3145 = vsel %vm1109, %v3140, %v3144
      %v3146 = vshrl.u32 %v2980, 16
      %v3148 = vrot.slane %v3146, 4
      %v3149 = vor.u32 %v3148, %v3144
      %v3150 = vrot.slane %v3149, 4
      %v3152 = vshll.u32 %v2981, 16
      %v3154 = vrot.slane %v3152, 5
      %v3155 = vsel %vm1109, %v3150, %v3154
      %v3157 = vshrl.u32 %v2982, 16
      %v3159 = vrot.slane %v3157, 4
      %v3160 = vshll.u32 %v2982, 16
      %v3162 = vrot.slane %v3160, 5
      %v3163 = vor.u32 %v3159, %v3162
      %v3164 = vrot.slane %v3163, 4
      %v3166 = vshll.u32 %v2983, 16
      %v3168 = vrot.slane %v3166, 5
      %v3169 = vsel %vm1109, %v3164, %v3168
      %v3170 = vshrl.u32 %v2983, 16
      %v3172 = vrot.slane %v3170, 4
      %v3173 = vor.u32 %v3172, %v3168
      %v3174 = vrot.slane %v3173, 4
      %v3176 = vshll.u32 %v2984, 16
      %v3178 = vrot.slane %v3176, 5
      %v3179 = vsel %vm1109, %v3174, %v3178
      %v3181 = vshrl.u32 %v2985, 16
      %v3183 = vrot.slane %v3181, 4
      %v3184 = vshll.u32 %v2985, 16
      %v3186 = vrot.slane %v3184, 5
      %v3187 = vor.u32 %v3183, %v3186
      %v3188 = vrot.slane %v3187, 4
      %v3190 = vshll.u32 %v2986, 16
      %v3192 = vrot.slane %v3190, 5
      %v3193 = vsel %vm1109, %v3188, %v3192
      %v3194 = vshrl.u32 %v2986, 16
      %v3196 = vrot.slane %v3194, 4
      %v3197 = vor.u32 %v3196, %v3192
      %v3198 = vrot.slane %v3197, 4
      %v3200 = vshll.u32 %v2987, 16
      %v3202 = vrot.slane %v3200, 5
      %v3203 = vsel %vm1109, %v3198, %v3202
      %v3205 = vshrl.u32 %v2988, 16
      %v3207 = vrot.slane %v3205, 4
      %v3208 = vshll.u32 %v2988, 16
      %v3210 = vrot.slane %v3208, 5
      %v3211 = vor.u32 %v3207, %v3210
      %v3212 = vrot.slane %v3211, 4
      %v3214 = vshll.u32 %v2989, 16
      %v3216 = vrot.slane %v3214, 5
      %v3217 = vsel %vm1109, %v3212, %v3216
      %v3218 = vshrl.u32 %v2989, 16
      %v3220 = vrot.slane %v3218, 4
      %v3221 = vor.u32 %v3220, %v3216
      %v3222 = vrot.slane %v3221, 4
      %v3224 = vshll.u32 %v2990, 16
      %v3226 = vrot.slane %v3224, 5
      %v3227 = vsel %vm1109, %v3222, %v3226
      %v3229 = vshrl.u32 %v2991, 16
      %v3231 = vrot.slane %v3229, 4
      %v3232 = vshll.u32 %v2991, 16
      %v3234 = vrot.slane %v3232, 5
      %v3235 = vor.u32 %v3231, %v3234
      %v3236 = vrot.slane %v3235, 4
      %v3238 = vshll.u32 %v2992, 16
      %v3240 = vrot.slane %v3238, 5
      %v3241 = vsel %vm1109, %v3236, %v3240
      %v3242 = vshrl.u32 %v2992, 16
      %v3244 = vrot.slane %v3242, 4
      %v3245 = vor.u32 %v3244, %v3240
      %v3246 = vrot.slane %v3245, 4
      %v3248 = vshll.u32 %v2993, 16
      %v3250 = vrot.slane %v3248, 5
      %v3251 = vsel %vm1109, %v3246, %v3250
      %v3253 = vshrl.u32 %v2994, 16
      %v3255 = vrot.slane %v3253, 4
      %v3256 = vshll.u32 %v2994, 16
      %v3258 = vrot.slane %v3256, 5
      %v3259 = vor.u32 %v3255, %v3258
      %v3260 = vrot.slane %v3259, 4
      %v3262 = vshll.u32 %v2995, 16
      %v3264 = vrot.slane %v3262, 5
      %v3265 = vsel %vm1109, %v3260, %v3264
      %v3266 = vshrl.u32 %v2995, 16
      %v3268 = vrot.slane %v3266, 4
      %v3269 = vor.u32 %v3268, %v3264
      %v3270 = vrot.slane %v3269, 4
      %v3272 = vshll.u32 %v2996, 16
      %v3274 = vrot.slane %v3272, 5
      %v3275 = vsel %vm1109, %v3270, %v3274
      %v3277 = vshrl.u32 %v2997, 16
      %v3279 = vrot.slane %v3277, 4
      %v3280 = vshll.u32 %v2997, 16
      %v3282 = vrot.slane %v3280, 5
      %v3283 = vor.u32 %v3279, %v3282
      %v3284 = vrot.slane %v3283, 4
      %v3286 = vshll.u32 %v2998, 16
      %v3288 = vrot.slane %v3286, 5
      %v3289 = vsel %vm1109, %v3284, %v3288
      %v3290 = vshrl.u32 %v2998, 16
      %v3292 = vrot.slane %v3290, 4
      %v3293 = vor.u32 %v3292, %v3288
      %v3294 = vrot.slane %v3293, 4
      %v3296 = vshll.u32 %v2999, 16
      %v3298 = vrot.slane %v3296, 5
      %v3299 = vsel %vm1109, %v3294, %v3298
      %v3301 = vshrl.u32 %v3000, 16
      %v3303 = vrot.slane %v3301, 4
      %v3304 = vshll.u32 %v3000, 16
      %v3306 = vrot.slane %v3304, 5
      %v3307 = vor.u32 %v3303, %v3306
      %v3308 = vrot.slane %v3307, 4
      %v3310 = vshll.u32 %v3001, 16
      %v3312 = vrot.slane %v3310, 5
      %v3313 = vsel %vm1109, %v3308, %v3312
      %v3314 = vshrl.u32 %v3001, 16
      %v3316 = vrot.slane %v3314, 4
      %v3317 = vor.u32 %v3316, %v3312
      %v3318 = vrot.slane %v3317, 4
      %v3320 = vshll.u32 %v3002, 16
      %v3322 = vrot.slane %v3320, 5
      %v3323 = vsel %vm1109, %v3318, %v3322
      %v3325 = vshrl.u32 %v3003, 16
      %v3327 = vrot.slane %v3325, 4
      %v3328 = vshll.u32 %v3003, 16
      %v3330 = vrot.slane %v3328, 5
      %v3331 = vor.u32 %v3327, %v3330
      %v3332 = vrot.slane %v3331, 4
      %v3334 = vshll.u32 %v3004, 16
      %v3336 = vrot.slane %v3334, 5
      %v3337 = vsel %vm1109, %v3332, %v3336
      %v3338 = vshrl.u32 %v3004, 16
      %v3340 = vrot.slane %v3338, 4
      %v3341 = vor.u32 %v3340, %v3336
      %v3342 = vrot.slane %v3341, 4
      %v3344 = vshll.u32 %v3005, 16
      %v3346 = vrot.slane %v3344, 5
      %v3347 = vsel %vm1109, %v3342, %v3346
      %v3349 = vshrl.u32 %v3006, 16
      %v3351 = vrot.slane %v3349, 4
      %v3352 = vshll.u32 %v3006, 16
      %v3354 = vrot.slane %v3352, 5
      %v3355 = vor.u32 %v3351, %v3354
      %v3356 = vrot.slane %v3355, 4
      %v3358 = vshll.u32 %v3007, 16
      %v3360 = vrot.slane %v3358, 5
      %v3361 = vsel %vm1109, %v3356, %v3360
      %v3362 = vshrl.u32 %v3007, 16
      %v3364 = vrot.slane %v3362, 4
      %v3365 = vor.u32 %v3364, %v3360
      %v3366 = vrot.slane %v3365, 4
      %v3368 = vshll.u32 %v3008, 16
      %v3370 = vrot.slane %v3368, 5
      %v3371 = vsel %vm1109, %v3366, %v3370
      %v3373 = vshrl.u32 %v3009, 16
      %v3375 = vrot.slane %v3373, 4
      %v3376 = vshll.u32 %v3009, 16
      %v3378 = vrot.slane %v3376, 5
      %v3379 = vor.u32 %v3375, %v3378
      %v3380 = vrot.slane %v3379, 4
      %v3382 = vshll.u32 %v3010, 16
      %v3384 = vrot.slane %v3382, 5
      %v3385 = vsel %vm1109, %v3380, %v3384
      %v3386 = vshrl.u32 %v3010, 16
      %v3388 = vrot.slane %v3386, 4
      %v3389 = vor.u32 %v3388, %v3384
      %v3390 = vrot.slane %v3389, 4
      %v3392 = vshll.u32 %v3011, 16
      %v3394 = vrot.slane %v3392, 5
      %v3395 = vsel %vm1109, %v3390, %v3394
      %s3396 = scalar_lea.vmem %s1, 256
      %v3397 = vld [vmem:[%s3396] sm:$0xf]
      %v3398 = vld [vmem:[%s3396 + $0x4] sm:$0xf]
      %v3399 = vld [vmem:[%s3396 + $0x8] sm:$0xf]
      %v3400 = vld [vmem:[%s3396 + $0xc] sm:$0xf]
      %v3401 = vld [vmem:[%s3396 + $0x10] sm:$0xf]
      %v3402 = vld [vmem:[%s3396 + $0x14] sm:$0xf]
      %v3403 = vld [vmem:[%s3396 + $0x18] sm:$0xf]
      %v3404 = vld [vmem:[%s3396 + $0x1c] sm:$0xf]
      %v3405 = vld [vmem:[%s3396 + $0x20] sm:$0xf]
      %v3406 = vld [vmem:[%s3396 + $0x24] sm:$0xf]
      %v3407 = vld [vmem:[%s3396 + $0x28] sm:$0xf]
      %v3408 = vld [vmem:[%s3396 + $0x2c] sm:$0xf]
      %v3409 = vld [vmem:[%s3396 + $0x30] sm:$0xf]
      %v3410 = vld [vmem:[%s3396 + $0x34] sm:$0xf]
      %v3411 = vld [vmem:[%s3396 + $0x38] sm:$0xf]
      %v3412 = vld [vmem:[%s3396 + $0x3c] sm:$0xf]
      %v3413 = vunpack.c.l.b16 %v3025
      %v3414 = vunpack.c.l.b16 %v3035
      %v3415 = vunpack.c.l.b16 %v3049
      %v3416 = vunpack.c.l.b16 %v3059
      %v3417 = vunpack.c.l.b16 %v3073
      %v3418 = vunpack.c.l.b16 %v3083
      %v3419 = vunpack.c.l.b16 %v3097
      %v3420 = vunpack.c.l.b16 %v3107
      %v3421 = vunpack.c.l.b16 %v3121
      %v3422 = vunpack.c.l.b16 %v3131
      %v3423 = vunpack.c.l.b16 %v3145
      %v3424 = vunpack.c.l.b16 %v3155
      %v3425 = vunpack.c.l.b16 %v3169
      %v3426 = vunpack.c.l.b16 %v3179
      %v3427 = vunpack.c.l.b16 %v3193
      %v3428 = vunpack.c.l.b16 %v3203
      %v3429 = vunpack.c.l.b16 %v3217
      %v3430 = vunpack.c.l.b16 %v3227
      %v3431 = vunpack.c.l.b16 %v3241
      %v3432 = vunpack.c.l.b16 %v3251
      %v3433 = vunpack.c.l.b16 %v3265
      %v3434 = vunpack.c.l.b16 %v3275
      %v3435 = vunpack.c.l.b16 %v3289
      %v3436 = vunpack.c.l.b16 %v3299
      %v3437 = vunpack.c.l.b16 %v3313
      %v3438 = vunpack.c.l.b16 %v3323
      %v3439 = vunpack.c.l.b16 %v3337
      %v3440 = vunpack.c.l.b16 %v3347
      %v3441 = vunpack.c.l.b16 %v3361
      %v3442 = vunpack.c.l.b16 %v3371
      %v3443 = vunpack.c.l.b16 %v3385
      %v3444 = vunpack.c.l.b16 %v3395
      %v3445 = vpack.c.b16 %v3414, %v3413
      %v3446 = vpack.c.b16 %v3416, %v3415
      %v3447 = vpack.c.b16 %v3418, %v3417
      %v3448 = vpack.c.b16 %v3420, %v3419
      %v3449 = vpack.c.b16 %v3422, %v3421
      %v3450 = vpack.c.b16 %v3424, %v3423
      %v3451 = vpack.c.b16 %v3426, %v3425
      %v3452 = vpack.c.b16 %v3428, %v3427
      %v3453 = vpack.c.b16 %v3430, %v3429
      %v3454 = vpack.c.b16 %v3432, %v3431
      %v3455 = vpack.c.b16 %v3434, %v3433
      %v3456 = vpack.c.b16 %v3436, %v3435
      %v3457 = vpack.c.b16 %v3438, %v3437
      %v3458 = vpack.c.b16 %v3440, %v3439
      %v3459 = vpack.c.b16 %v3442, %v3441
      %v3460 = vpack.c.b16 %v3444, %v3443
      %v3493 = vunpack.c.l.b16 %v3397
      %v3494 = vunpack.c.l.b16 %v3398
      %v3495 = vunpack.c.l.b16 %v3399
      %v3496 = vunpack.c.l.b16 %v3400
      %v3497 = vunpack.c.l.b16 %v3401
      %v3498 = vunpack.c.l.b16 %v3402
      %v3499 = vunpack.c.l.b16 %v3403
      %v3500 = vunpack.c.l.b16 %v3404
      %v3501 = vunpack.c.l.b16 %v3405
      %v3502 = vunpack.c.l.b16 %v3406
      %v3503 = vunpack.c.l.b16 %v3407
      %v3504 = vunpack.c.l.b16 %v3408
      %v3505 = vunpack.c.l.b16 %v3409
      %v3506 = vunpack.c.l.b16 %v3410
      %v3507 = vunpack.c.l.b16 %v3411
      %v3508 = vunpack.c.l.b16 %v3412
      %v3509 = vpack.c.b16 %v3494, %v3493
      %v3510 = vpack.c.b16 %v3496, %v3495
      %v3511 = vpack.c.b16 %v3498, %v3497
      %v3512 = vpack.c.b16 %v3500, %v3499
      %v3513 = vpack.c.b16 %v3502, %v3501
      %v3514 = vpack.c.b16 %v3504, %v3503
      %v3515 = vpack.c.b16 %v3506, %v3505
      %v3516 = vpack.c.b16 %v3508, %v3507
      %3525 = vmatprep.subr.bf16.mxu0 0
      %3526 = vmatpush1.bf16.msra.mxu0 %v3509
      %3527 = vmatprep.subr.bf16.mxu0 0
      %3528 = vmatpush1.bf16.msra.mxu0 %v3510
      %3529 = vmatprep.subr.bf16.mxu0 0
      %3530 = vmatpush1.bf16.msra.mxu0 %v3511
      %3531 = vmatprep.subr.bf16.mxu0 0
      %3532 = vmatpush1.bf16.msra.mxu0 %v3512
      %3533 = vmatprep.subr.bf16.mxu0 0
      %3534 = vmatpush1.bf16.msra.mxu0 %v3513
      %3535 = vmatprep.subr.bf16.mxu0 0
      %3536 = vmatpush1.bf16.msra.mxu0 %v3514
      %3537 = vmatprep.subr.bf16.mxu0 0
      %3538 = vmatpush1.bf16.msra.mxu0 %v3515
      %3539 = vmatprep.subr.bf16.mxu0 0
      %3540 = vmatpush1.bf16.msra.mxu0 %v3516
      %3541 = vmatprep.subr.bf16.mxu0 0
      %3542 = vmatpush1.bf16.msra.mxu0 0
      %3543 = vmatprep.subr.bf16.mxu0 0
      %3544 = vmatpush1.bf16.msra.mxu0 0
      %3545 = vmatprep.subr.bf16.mxu0 0
      %3546 = vmatpush1.bf16.msra.mxu0 0
      %3547 = vmatprep.subr.bf16.mxu0 0
      %3548 = vmatpush1.bf16.msra.mxu0 0
      %3549 = vmatprep.subr.bf16.mxu0 0
      %3550 = vmatpush1.bf16.msra.mxu0 0
      %3551 = vmatprep.subr.bf16.mxu0 0
      %3552 = vmatpush1.bf16.msra.mxu0 0
      %3553 = vmatprep.subr.bf16.mxu0 0
      %3554 = vmatpush1.bf16.msra.mxu0 0
      %3555 = vmatprep.subr.bf16.mxu0 0
      %3556 = vmatpush1.bf16.msra.mxu0 0
      %3557 = vmatprep.mubr.bf16.mxu0 0
      %3558 = vmatmul.mubr.bf16.gmra.mrb[0].mxu0 %v3445
      %v3559 = vpop.f32.mrb[0].mxu0
      %v3560 = vadd.f32 0.0, %v3559
      %v3561 = vpop.f32.mrb[0].mxu0
      %v3562 = vpop.f32.mrb[0].mxu0
      %v3563 = vadd.f32 0.0, %v3562
      %v3564 = vpop.f32.mrb[0].mxu0
      %3565 = vmatprep.mubr.bf16.mxu0 0
      %3566 = vmatmul.mubr.bf16.gmra.mrb[0].mxu0 %v3446
      %v3567 = vpop.f32.mrb[0].mxu0
      %v3568 = vadd.f32 0.0, %v3567
      %v3569 = vpop.f32.mrb[0].mxu0
      %v3570 = vpop.f32.mrb[0].mxu0
      %v3571 = vadd.f32 0.0, %v3570
      %v3572 = vpop.f32.mrb[0].mxu0
      %3573 = vmatprep.mubr.bf16.mxu0 0
      %3574 = vmatmul.mubr.bf16.gmra.mrb[0].mxu0 %v3447
      %v3575 = vpop.f32.mrb[0].mxu0
      %v3576 = vadd.f32 0.0, %v3575
      %v3577 = vpop.f32.mrb[0].mxu0
      %v3578 = vpop.f32.mrb[0].mxu0
      %v3579 = vadd.f32 0.0, %v3578
      %v3580 = vpop.f32.mrb[0].mxu0
      %3581 = vmatprep.mubr.bf16.mxu0 0
      %3582 = vmatmul.mubr.bf16.gmra.mrb[0].mxu0 %v3448
      %v3583 = vpop.f32.mrb[0].mxu0
      %v3584 = vadd.f32 0.0, %v3583
      %v3585 = vpop.f32.mrb[0].mxu0
      %v3586 = vpop.f32.mrb[0].mxu0
      %v3587 = vadd.f32 0.0, %v3586
      %v3588 = vpop.f32.mrb[0].mxu0
      %3589 = vmatprep.mubr.bf16.mxu0 0
      %3590 = vmatmul.mubr.bf16.gmra.mrb[0].mxu0 %v3449
      %v3591 = vpop.f32.mrb[0].mxu0
      %v3592 = vadd.f32 0.0, %v3591
      %v3593 = vpop.f32.mrb[0].mxu0
      %v3594 = vpop.f32.mrb[0].mxu0
      %v3595 = vadd.f32 0.0, %v3594
      %v3596 = vpop.f32.mrb[0].mxu0
      %3597 = vmatprep.mubr.bf16.mxu0 0
      %3598 = vmatmul.mubr.bf16.gmra.mrb[0].mxu0 %v3450
      %v3599 = vpop.f32.mrb[0].mxu0
      %v3600 = vadd.f32 0.0, %v3599
      %v3601 = vpop.f32.mrb[0].mxu0
      %v3602 = vpop.f32.mrb[0].mxu0
      %v3603 = vadd.f32 0.0, %v3602
      %v3604 = vpop.f32.mrb[0].mxu0
      %3605 = vmatprep.mubr.bf16.mxu0 0
      %3606 = vmatmul.mubr.bf16.gmra.mrb[0].mxu0 %v3451
      %v3607 = vpop.f32.mrb[0].mxu0
      %v3608 = vadd.f32 0.0, %v3607
      %v3609 = vpop.f32.mrb[0].mxu0
      %v3610 = vpop.f32.mrb[0].mxu0
      %v3611 = vadd.f32 0.0, %v3610
      %v3612 = vpop.f32.mrb[0].mxu0
      %3613 = vmatprep.mubr.bf16.mxu0 0
      %3614 = vmatmul.mubr.bf16.gmra.mrb[0].mxu0 %v3452
      %v3615 = vpop.f32.mrb[0].mxu0
      %v3616 = vadd.f32 0.0, %v3615
      %v3617 = vpop.f32.mrb[0].mxu0
      %v3618 = vpop.f32.mrb[0].mxu0
      %v3619 = vadd.f32 0.0, %v3618
      %v3620 = vpop.f32.mrb[0].mxu0
      %3621 = vmatprep.mubr.bf16.mxu0 0
      %3622 = vmatmul.mubr.bf16.gmra.mrb[0].mxu0 %v3453
      %v3623 = vpop.f32.mrb[0].mxu0
      %v3624 = vadd.f32 0.0, %v3623
      %v3625 = vpop.f32.mrb[0].mxu0
      %v3626 = vpop.f32.mrb[0].mxu0
      %v3627 = vadd.f32 0.0, %v3626
      %v3628 = vpop.f32.mrb[0].mxu0
      %3629 = vmatprep.mubr.bf16.mxu0 0
      %3630 = vmatmul.mubr.bf16.gmra.mrb[0].mxu0 %v3454
      %v3631 = vpop.f32.mrb[0].mxu0
      %v3632 = vadd.f32 0.0, %v3631
      %v3633 = vpop.f32.mrb[0].mxu0
      %v3634 = vpop.f32.mrb[0].mxu0
      %v3635 = vadd.f32 0.0, %v3634
      %v3636 = vpop.f32.mrb[0].mxu0
      %3637 = vmatprep.mubr.bf16.mxu0 0
      %3638 = vmatmul.mubr.bf16.gmra.mrb[0].mxu0 %v3455
      %v3639 = vpop.f32.mrb[0].mxu0
      %v3640 = vadd.f32 0.0, %v3639
      %v3641 = vpop.f32.mrb[0].mxu0
      %v3642 = vpop.f32.mrb[0].mxu0
      %v3643 = vadd.f32 0.0, %v3642
      %v3644 = vpop.f32.mrb[0].mxu0
      %3645 = vmatprep.mubr.bf16.mxu0 0
      %3646 = vmatmul.mubr.bf16.gmra.mrb[0].mxu0 %v3456
      %v3647 = vpop.f32.mrb[0].mxu0
      %v3648 = vadd.f32 0.0, %v3647
      %v3649 = vpop.f32.mrb[0].mxu0
      %v3650 = vpop.f32.mrb[0].mxu0
      %v3651 = vadd.f32 0.0, %v3650
      %v3652 = vpop.f32.mrb[0].mxu0
      %3653 = vmatprep.mubr.bf16.mxu0 0
      %3654 = vmatmul.mubr.bf16.gmra.mrb[0].mxu0 %v3457
      %v3655 = vpop.f32.mrb[0].mxu0
      %v3656 = vadd.f32 0.0, %v3655
      %v3657 = vpop.f32.mrb[0].mxu0
      %v3658 = vpop.f32.mrb[0].mxu0
      %v3659 = vadd.f32 0.0, %v3658
      %v3660 = vpop.f32.mrb[0].mxu0
      %3661 = vmatprep.mubr.bf16.mxu0 0
      %3662 = vmatmul.mubr.bf16.gmra.mrb[0].mxu0 %v3458
      %v3663 = vpop.f32.mrb[0].mxu0
      %v3664 = vadd.f32 0.0, %v3663
      %v3665 = vpop.f32.mrb[0].mxu0
      %v3666 = vpop.f32.mrb[0].mxu0
      %v3667 = vadd.f32 0.0, %v3666
      %v3668 = vpop.f32.mrb[0].mxu0
      %3669 = vmatprep.mubr.bf16.mxu0 0
      %3670 = vmatmul.mubr.bf16.gmra.mrb[0].mxu0 %v3459
      %v3671 = vpop.f32.mrb[0].mxu0
      %v3672 = vadd.f32 0.0, %v3671
      %v3673 = vpop.f32.mrb[0].mxu0
      %v3674 = vpop.f32.mrb[0].mxu0
      %v3675 = vadd.f32 0.0, %v3674
      %v3676 = vpop.f32.mrb[0].mxu0
      %3677 = vmatprep.mubr.bf16.mxu0 0
      %3678 = vmatmul.mubr.bf16.gmra.mrb[0].mxu0 %v3460
      %v3679 = vpop.f32.mrb[0].mxu0
      %v3680 = vadd.f32 0.0, %v3679
      %v3681 = vpop.f32.mrb[0].mxu0
      %v3682 = vpop.f32.mrb[0].mxu0
      %v3683 = vadd.f32 0.0, %v3682
      %v3684 = vpop.f32.mrb[0].mxu0
      %3685 = vdwg.mxu0
      %v3686 = vadd.f32 %v2932, %v3560
      %v3687 = vadd.f32 %v2933, %v3563
      %v3688 = vadd.f32 %v2934, %v3568
      %v3689 = vadd.f32 %v2935, %v3571
      %v3690 = vadd.f32 %v2936, %v3576
      %v3691 = vadd.f32 %v2937, %v3579
      %v3692 = vadd.f32 %v2938, %v3584
      %v3693 = vadd.f32 %v2939, %v3587
      %v3694 = vadd.f32 %v2940, %v3592
      %v3695 = vadd.f32 %v2941, %v3595
      %v3696 = vadd.f32 %v2942, %v3600
      %v3697 = vadd.f32 %v2943, %v3603
      %v3698 = vadd.f32 %v2944, %v3608
      %v3699 = vadd.f32 %v2945, %v3611
      %v3700 = vadd.f32 %v2946, %v3616
      %v3701 = vadd.f32 %v2947, %v3619
      %v3702 = vadd.f32 %v2948, %v3624
      %v3703 = vadd.f32 %v2949, %v3627
      %v3704 = vadd.f32 %v2950, %v3632
      %v3705 = vadd.f32 %v2951, %v3635
      %v3706 = vadd.f32 %v2952, %v3640
      %v3707 = vadd.f32 %v2953, %v3643
      %v3708 = vadd.f32 %v2954, %v3648
      %v3709 = vadd.f32 %v2955, %v3651
      %v3710 = vadd.f32 %v2956, %v3656
      %v3711 = vadd.f32 %v2957, %v3659
      %v3712 = vadd.f32 %v2958, %v3664
      %v3713 = vadd.f32 %v2959, %v3667
      %v3714 = vadd.f32 %v2960, %v3672
      %v3715 = vadd.f32 %v2961, %v3675
      %v3716 = vadd.f32 %v2962, %v3680
      %v3717 = vadd.f32 %v2963, %v3683
      %v3718 = vld [vmem:[%s2577] sm:$0xe]
      %v3719 = vld [vmem:[%s2577 + $0xc] sm:$0xe]
      %v3720 = vld [vmem:[%s2577 + $0x18] sm:$0xe]
      %v3721 = vld [vmem:[%s2577 + $0x24] sm:$0xe]
      %v3722 = vld [vmem:[%s2577 + $0x30] sm:$0xe]
      %v3723 = vld [vmem:[%s2577 + $0x3c] sm:$0xe]
      %v3724 = vld [vmem:[%s2577 + $0x48] sm:$0xe]
      %v3725 = vld [vmem:[%s2577 + $0x54] sm:$0xe]
      %v3726 = vld [vmem:[%s2577 + $0x60] sm:$0xe]
      %v3727 = vld [vmem:[%s2577 + $0x6c] sm:$0xe]
      %v3728 = vld [vmem:[%s2577 + $0x78] sm:$0xe]
      %v3729 = vld [vmem:[%s2577 + $0x84] sm:$0xe]
      %v3730 = vld [vmem:[%s2577 + $0x90] sm:$0xe]
      %v3731 = vld [vmem:[%s2577 + $0x9c] sm:$0xe]
      %v3732 = vld [vmem:[%s2577 + $0xa8] sm:$0xe]
      %v3733 = vld [vmem:[%s2577 + $0xb4] sm:$0xe]
      %v3782 = vrot.slane %v3718, 5
      %v3783 = vrot.slane %v3782, 4
      %v3784 = vrot.slane %v2965, 5
      %v3785 = vsel %vm2139, %v3783, %v3784
      %v3786 = vrot.slane %v3784, 4
      %v3787 = vrot.slane %v2966, 5
      %v3788 = vsel %vm2139, %v3786, %v3787
      %v3789 = vrot.slane %v3719, 5
      %v3790 = vrot.slane %v3789, 4
      %v3791 = vrot.slane %v2968, 5
      %v3792 = vsel %vm2139, %v3790, %v3791
      %v3793 = vrot.slane %v3791, 4
      %v3794 = vrot.slane %v2969, 5
      %v3795 = vsel %vm2139, %v3793, %v3794
      %v3796 = vrot.slane %v3720, 5
      %v3797 = vrot.slane %v3796, 4
      %v3798 = vrot.slane %v2971, 5
      %v3799 = vsel %vm2139, %v3797, %v3798
      %v3800 = vrot.slane %v3798, 4
      %v3801 = vrot.slane %v2972, 5
      %v3802 = vsel %vm2139, %v3800, %v3801
      %v3803 = vrot.slane %v3721, 5
      %v3804 = vrot.slane %v3803, 4
      %v3805 = vrot.slane %v2974, 5
      %v3806 = vsel %vm2139, %v3804, %v3805
      %v3807 = vrot.slane %v3805, 4
      %v3808 = vrot.slane %v2975, 5
      %v3809 = vsel %vm2139, %v3807, %v3808
      %v3810 = vrot.slane %v3722, 5
      %v3811 = vrot.slane %v3810, 4
      %v3812 = vrot.slane %v2977, 5
      %v3813 = vsel %vm2139, %v3811, %v3812
      %v3814 = vrot.slane %v3812, 4
      %v3815 = vrot.slane %v2978, 5
      %v3816 = vsel %vm2139, %v3814, %v3815
      %v3817 = vrot.slane %v3723, 5
      %v3818 = vrot.slane %v3817, 4
      %v3819 = vrot.slane %v2980, 5
      %v3820 = vsel %vm2139, %v3818, %v3819
      %v3821 = vrot.slane %v3819, 4
      %v3822 = vrot.slane %v2981, 5
      %v3823 = vsel %vm2139, %v3821, %v3822
      %v3824 = vrot.slane %v3724, 5
      %v3825 = vrot.slane %v3824, 4
      %v3826 = vrot.slane %v2983, 5
      %v3827 = vsel %vm2139, %v3825, %v3826
      %v3828 = vrot.slane %v3826, 4
      %v3829 = vrot.slane %v2984, 5
      %v3830 = vsel %vm2139, %v3828, %v3829
      %v3831 = vrot.slane %v3725, 5
      %v3832 = vrot.slane %v3831, 4
      %v3833 = vrot.slane %v2986, 5
      %v3834 = vsel %vm2139, %v3832, %v3833
      %v3835 = vrot.slane %v3833, 4
      %v3836 = vrot.slane %v2987, 5
      %v3837 = vsel %vm2139, %v3835, %v3836
      %v3838 = vrot.slane %v3726, 5
      %v3839 = vrot.slane %v3838, 4
      %v3840 = vrot.slane %v2989, 5
      %v3841 = vsel %vm2139, %v3839, %v3840
      %v3842 = vrot.slane %v3840, 4
      %v3843 = vrot.slane %v2990, 5
      %v3844 = vsel %vm2139, %v3842, %v3843
      %v3845 = vrot.slane %v3727, 5
      %v3846 = vrot.slane %v3845, 4
      %v3847 = vrot.slane %v2992, 5
      %v3848 = vsel %vm2139, %v3846, %v3847
      %v3849 = vrot.slane %v3847, 4
      %v3850 = vrot.slane %v2993, 5
      %v3851 = vsel %vm2139, %v3849, %v3850
      %v3852 = vrot.slane %v3728, 5
      %v3853 = vrot.slane %v3852, 4
      %v3854 = vrot.slane %v2995, 5
      %v3855 = vsel %vm2139, %v3853, %v3854
      %v3856 = vrot.slane %v3854, 4
      %v3857 = vrot.slane %v2996, 5
      %v3858 = vsel %vm2139, %v3856, %v3857
      %v3859 = vrot.slane %v3729, 5
      %v3860 = vrot.slane %v3859, 4
      %v3861 = vrot.slane %v2998, 5
      %v3862 = vsel %vm2139, %v3860, %v3861
      %v3863 = vrot.slane %v3861, 4
      %v3864 = vrot.slane %v2999, 5
      %v3865 = vsel %vm2139, %v3863, %v3864
      %v3866 = vrot.slane %v3730, 5
      %v3867 = vrot.slane %v3866, 4
      %v3868 = vrot.slane %v3001, 5
      %v3869 = vsel %vm2139, %v3867, %v3868
      %v3870 = vrot.slane %v3868, 4
      %v3871 = vrot.slane %v3002, 5
      %v3872 = vsel %vm2139, %v3870, %v3871
      %v3873 = vrot.slane %v3731, 5
      %v3874 = vrot.slane %v3873, 4
      %v3875 = vrot.slane %v3004, 5
      %v3876 = vsel %vm2139, %v3874, %v3875
      %v3877 = vrot.slane %v3875, 4
      %v3878 = vrot.slane %v3005, 5
      %v3879 = vsel %vm2139, %v3877, %v3878
      %v3880 = vrot.slane %v3732, 5
      %v3881 = vrot.slane %v3880, 4
      %v3882 = vrot.slane %v3007, 5
      %v3883 = vsel %vm2139, %v3881, %v3882
      %v3884 = vrot.slane %v3882, 4
      %v3885 = vrot.slane %v3008, 5
      %v3886 = vsel %vm2139, %v3884, %v3885
      %v3887 = vrot.slane %v3733, 5
      %v3888 = vrot.slane %v3887, 4
      %v3889 = vrot.slane %v3010, 5
      %v3890 = vsel %vm2139, %v3888, %v3889
      %v3891 = vrot.slane %v3889, 4
      %v3892 = vrot.slane %v3011, 5
      %v3893 = vsel %vm2139, %v3891, %v3892
      %s3894 = scalar_lea.vmem %s1, 320
      %v3895 = vld [vmem:[%s3894] sm:$0xf]
      %v3896 = vld [vmem:[%s3894 + $0x4] sm:$0xf]
      %v3897 = vld [vmem:[%s3894 + $0x8] sm:$0xf]
      %v3898 = vld [vmem:[%s3894 + $0xc] sm:$0xf]
      %v3899 = vld [vmem:[%s3894 + $0x10] sm:$0xf]
      %v3900 = vld [vmem:[%s3894 + $0x14] sm:$0xf]
      %v3901 = vld [vmem:[%s3894 + $0x18] sm:$0xf]
      %v3902 = vld [vmem:[%s3894 + $0x1c] sm:$0xf]
      %v3903 = vld [vmem:[%s3894 + $0x20] sm:$0xf]
      %v3904 = vld [vmem:[%s3894 + $0x24] sm:$0xf]
      %v3905 = vld [vmem:[%s3894 + $0x28] sm:$0xf]
      %v3906 = vld [vmem:[%s3894 + $0x2c] sm:$0xf]
      %v3907 = vld [vmem:[%s3894 + $0x30] sm:$0xf]
      %v3908 = vld [vmem:[%s3894 + $0x34] sm:$0xf]
      %v3909 = vld [vmem:[%s3894 + $0x38] sm:$0xf]
      %v3910 = vld [vmem:[%s3894 + $0x3c] sm:$0xf]
      %v3911 = vunpack.c.l.b16 %v3785
      %v3912 = vunpack.c.l.b16 %v3788
      %v3913 = vunpack.c.l.b16 %v3792
      %v3914 = vunpack.c.l.b16 %v3795
      %v3915 = vunpack.c.l.b16 %v3799
      %v3916 = vunpack.c.l.b16 %v3802
      %v3917 = vunpack.c.l.b16 %v3806
      %v3918 = vunpack.c.l.b16 %v3809
      %v3919 = vunpack.c.l.b16 %v3813
      %v3920 = vunpack.c.l.b16 %v3816
      %v3921 = vunpack.c.l.b16 %v3820
      %v3922 = vunpack.c.l.b16 %v3823
      %v3923 = vunpack.c.l.b16 %v3827
      %v3924 = vunpack.c.l.b16 %v3830
      %v3925 = vunpack.c.l.b16 %v3834
      %v3926 = vunpack.c.l.b16 %v3837
      %v3927 = vunpack.c.l.b16 %v3841
      %v3928 = vunpack.c.l.b16 %v3844
      %v3929 = vunpack.c.l.b16 %v3848
      %v3930 = vunpack.c.l.b16 %v3851
      %v3931 = vunpack.c.l.b16 %v3855
      %v3932 = vunpack.c.l.b16 %v3858
      %v3933 = vunpack.c.l.b16 %v3862
      %v3934 = vunpack.c.l.b16 %v3865
      %v3935 = vunpack.c.l.b16 %v3869
      %v3936 = vunpack.c.l.b16 %v3872
      %v3937 = vunpack.c.l.b16 %v3876
      %v3938 = vunpack.c.l.b16 %v3879
      %v3939 = vunpack.c.l.b16 %v3883
      %v3940 = vunpack.c.l.b16 %v3886
      %v3941 = vunpack.c.l.b16 %v3890
      %v3942 = vunpack.c.l.b16 %v3893
      %v3943 = vpack.c.b16 %v3912, %v3911
      %v3944 = vpack.c.b16 %v3914, %v3913
      %v3945 = vpack.c.b16 %v3916, %v3915
      %v3946 = vpack.c.b16 %v3918, %v3917
      %v3947 = vpack.c.b16 %v3920, %v3919
      %v3948 = vpack.c.b16 %v3922, %v3921
      %v3949 = vpack.c.b16 %v3924, %v3923
      %v3950 = vpack.c.b16 %v3926, %v3925
      %v3951 = vpack.c.b16 %v3928, %v3927
      %v3952 = vpack.c.b16 %v3930, %v3929
      %v3953 = vpack.c.b16 %v3932, %v3931
      %v3954 = vpack.c.b16 %v3934, %v3933
      %v3955 = vpack.c.b16 %v3936, %v3935
      %v3956 = vpack.c.b16 %v3938, %v3937
      %v3957 = vpack.c.b16 %v3940, %v3939
      %v3958 = vpack.c.b16 %v3942, %v3941
      %v3991 = vunpack.c.l.b16 %v3895
      %v3992 = vunpack.c.l.b16 %v3896
      %v3993 = vunpack.c.l.b16 %v3897
      %v3994 = vunpack.c.l.b16 %v3898
      %v3995 = vunpack.c.l.b16 %v3899
      %v3996 = vunpack.c.l.b16 %v3900
      %v3997 = vunpack.c.l.b16 %v3901
      %v3998 = vunpack.c.l.b16 %v3902
      %v3999 = vunpack.c.l.b16 %v3903
      %v4000 = vunpack.c.l.b16 %v3904
      %v4001 = vunpack.c.l.b16 %v3905
      %v4002 = vunpack.c.l.b16 %v3906
      %v4003 = vunpack.c.l.b16 %v3907
      %v4004 = vunpack.c.l.b16 %v3908
      %v4005 = vunpack.c.l.b16 %v3909
      %v4006 = vunpack.c.l.b16 %v3910
      %v4007 = vpack.c.b16 %v3992, %v3991
      %v4008 = vpack.c.b16 %v3994, %v3993
      %v4009 = vpack.c.b16 %v3996, %v3995
      %v4010 = vpack.c.b16 %v3998, %v3997
      %v4011 = vpack.c.b16 %v4000, %v3999
      %v4012 = vpack.c.b16 %v4002, %v4001
      %v4013 = vpack.c.b16 %v4004, %v4003
      %v4014 = vpack.c.b16 %v4006, %v4005
      %4023 = vmatprep.subr.bf16.mxu0 0
      %4024 = vmatpush1.bf16.msra.mxu0 %v4007
      %4025 = vmatprep.subr.bf16.mxu0 0
      %4026 = vmatpush1.bf16.msra.mxu0 %v4008
      %4027 = vmatprep.subr.bf16.mxu0 0
      %4028 = vmatpush1.bf16.msra.mxu0 %v4009
      %4029 = vmatprep.subr.bf16.mxu0 0
      %4030 = vmatpush1.bf16.msra.mxu0 %v4010
      %4031 = vmatprep.subr.bf16.mxu0 0
      %4032 = vmatpush1.bf16.msra.mxu0 %v4011
      %4033 = vmatprep.subr.bf16.mxu0 0
      %4034 = vmatpush1.bf16.msra.mxu0 %v4012
      %4035 = vmatprep.subr.bf16.mxu0 0
      %4036 = vmatpush1.bf16.msra.mxu0 %v4013
      %4037 = vmatprep.subr.bf16.mxu0 0
      %4038 = vmatpush1.bf16.msra.mxu0 %v4014
      %4039 = vmatprep.subr.bf16.mxu0 0
      %4040 = vmatpush1.bf16.msra.mxu0 0
      %4041 = vmatprep.subr.bf16.mxu0 0
      %4042 = vmatpush1.bf16.msra.mxu0 0
      %4043 = vmatprep.subr.bf16.mxu0 0
      %4044 = vmatpush1.bf16.msra.mxu0 0
      %4045 = vmatprep.subr.bf16.mxu0 0
      %4046 = vmatpush1.bf16.msra.mxu0 0
      %4047 = vmatprep.subr.bf16.mxu0 0
      %4048 = vmatpush1.bf16.msra.mxu0 0
      %4049 = vmatprep.subr.bf16.mxu0 0
      %4050 = vmatpush1.bf16.msra.mxu0 0
      %4051 = vmatprep.subr.bf16.mxu0 0
      %4052 = vmatpush1.bf16.msra.mxu0 0
      %4053 = vmatprep.subr.bf16.mxu0 0
      %4054 = vmatpush1.bf16.msra.mxu0 0
      %4055 = vmatprep.mubr.bf16.mxu0 0
      %4056 = vmatmul.mubr.bf16.gmra.mrb[0].mxu0 %v3943
      %v4057 = vpop.f32.mrb[0].mxu0
      %v4058 = vadd.f32 0.0, %v4057
      %v4059 = vpop.f32.mrb[0].mxu0
      %v4060 = vpop.f32.mrb[0].mxu0
      %v4061 = vadd.f32 0.0, %v4060
      %v4062 = vpop.f32.mrb[0].mxu0
      %4063 = vmatprep.mubr.bf16.mxu0 0
      %4064 = vmatmul.mubr.bf16.gmra.mrb[0].mxu0 %v3944
      %v4065 = vpop.f32.mrb[0].mxu0
      %v4066 = vadd.f32 0.0, %v4065
      %v4067 = vpop.f32.mrb[0].mxu0
      %v4068 = vpop.f32.mrb[0].mxu0
      %v4069 = vadd.f32 0.0, %v4068
      %v4070 = vpop.f32.mrb[0].mxu0
      %4071 = vmatprep.mubr.bf16.mxu0 0
      %4072 = vmatmul.mubr.bf16.gmra.mrb[0].mxu0 %v3945
      %v4073 = vpop.f32.mrb[0].mxu0
      %v4074 = vadd.f32 0.0, %v4073
      %v4075 = vpop.f32.mrb[0].mxu0
      %v4076 = vpop.f32.mrb[0].mxu0
      %v4077 = vadd.f32 0.0, %v4076
      %v4078 = vpop.f32.mrb[0].mxu0
      %4079 = vmatprep.mubr.bf16.mxu0 0
      %4080 = vmatmul.mubr.bf16.gmra.mrb[0].mxu0 %v3946
      %v4081 = vpop.f32.mrb[0].mxu0
      %v4082 = vadd.f32 0.0, %v4081
      %v4083 = vpop.f32.mrb[0].mxu0
      %v4084 = vpop.f32.mrb[0].mxu0
      %v4085 = vadd.f32 0.0, %v4084
      %v4086 = vpop.f32.mrb[0].mxu0
      %4087 = vmatprep.mubr.bf16.mxu0 0
      %4088 = vmatmul.mubr.bf16.gmra.mrb[0].mxu0 %v3947
      %v4089 = vpop.f32.mrb[0].mxu0
      %v4090 = vadd.f32 0.0, %v4089
      %v4091 = vpop.f32.mrb[0].mxu0
      %v4092 = vpop.f32.mrb[0].mxu0
      %v4093 = vadd.f32 0.0, %v4092
      %v4094 = vpop.f32.mrb[0].mxu0
      %4095 = vmatprep.mubr.bf16.mxu0 0
      %4096 = vmatmul.mubr.bf16.gmra.mrb[0].mxu0 %v3948
      %v4097 = vpop.f32.mrb[0].mxu0
      %v4098 = vadd.f32 0.0, %v4097
      %v4099 = vpop.f32.mrb[0].mxu0
      %v4100 = vpop.f32.mrb[0].mxu0
      %v4101 = vadd.f32 0.0, %v4100
      %v4102 = vpop.f32.mrb[0].mxu0
      %4103 = vmatprep.mubr.bf16.mxu0 0
      %4104 = vmatmul.mubr.bf16.gmra.mrb[0].mxu0 %v3949
      %v4105 = vpop.f32.mrb[0].mxu0
      %v4106 = vadd.f32 0.0, %v4105
      %v4107 = vpop.f32.mrb[0].mxu0
      %v4108 = vpop.f32.mrb[0].mxu0
      %v4109 = vadd.f32 0.0, %v4108
      %v4110 = vpop.f32.mrb[0].mxu0
      %4111 = vmatprep.mubr.bf16.mxu0 0
      %4112 = vmatmul.mubr.bf16.gmra.mrb[0].mxu0 %v3950
      %v4113 = vpop.f32.mrb[0].mxu0
      %v4114 = vadd.f32 0.0, %v4113
      %v4115 = vpop.f32.mrb[0].mxu0
      %v4116 = vpop.f32.mrb[0].mxu0
      %v4117 = vadd.f32 0.0, %v4116
      %v4118 = vpop.f32.mrb[0].mxu0
      %4119 = vmatprep.mubr.bf16.mxu0 0
      %4120 = vmatmul.mubr.bf16.gmra.mrb[0].mxu0 %v3951
      %v4121 = vpop.f32.mrb[0].mxu0
      %v4122 = vadd.f32 0.0, %v4121
      %v4123 = vpop.f32.mrb[0].mxu0
      %v4124 = vpop.f32.mrb[0].mxu0
      %v4125 = vadd.f32 0.0, %v4124
      %v4126 = vpop.f32.mrb[0].mxu0
      %4127 = vmatprep.mubr.bf16.mxu0 0
      %4128 = vmatmul.mubr.bf16.gmra.mrb[0].mxu0 %v3952
      %v4129 = vpop.f32.mrb[0].mxu0
      %v4130 = vadd.f32 0.0, %v4129
      %v4131 = vpop.f32.mrb[0].mxu0
      %v4132 = vpop.f32.mrb[0].mxu0
      %v4133 = vadd.f32 0.0, %v4132
      %v4134 = vpop.f32.mrb[0].mxu0
      %4135 = vmatprep.mubr.bf16.mxu0 0
      %4136 = vmatmul.mubr.bf16.gmra.mrb[0].mxu0 %v3953
      %v4137 = vpop.f32.mrb[0].mxu0
      %v4138 = vadd.f32 0.0, %v4137
      %v4139 = vpop.f32.mrb[0].mxu0
      %v4140 = vpop.f32.mrb[0].mxu0
      %v4141 = vadd.f32 0.0, %v4140
      %v4142 = vpop.f32.mrb[0].mxu0
      %4143 = vmatprep.mubr.bf16.mxu0 0
      %4144 = vmatmul.mubr.bf16.gmra.mrb[0].mxu0 %v3954
      %v4145 = vpop.f32.mrb[0].mxu0
      %v4146 = vadd.f32 0.0, %v4145
      %v4147 = vpop.f32.mrb[0].mxu0
      %v4148 = vpop.f32.mrb[0].mxu0
      %v4149 = vadd.f32 0.0, %v4148
      %v4150 = vpop.f32.mrb[0].mxu0
      %4151 = vmatprep.mubr.bf16.mxu0 0
      %4152 = vmatmul.mubr.bf16.gmra.mrb[0].mxu0 %v3955
      %v4153 = vpop.f32.mrb[0].mxu0
      %v4154 = vadd.f32 0.0, %v4153
      %v4155 = vpop.f32.mrb[0].mxu0
      %v4156 = vpop.f32.mrb[0].mxu0
      %v4157 = vadd.f32 0.0, %v4156
      %v4158 = vpop.f32.mrb[0].mxu0
      %4159 = vmatprep.mubr.bf16.mxu0 0
      %4160 = vmatmul.mubr.bf16.gmra.mrb[0].mxu0 %v3956
      %v4161 = vpop.f32.mrb[0].mxu0
      %v4162 = vadd.f32 0.0, %v4161
      %v4163 = vpop.f32.mrb[0].mxu0
      %v4164 = vpop.f32.mrb[0].mxu0
      %v4165 = vadd.f32 0.0, %v4164
      %v4166 = vpop.f32.mrb[0].mxu0
      %4167 = vmatprep.mubr.bf16.mxu0 0
      %4168 = vmatmul.mubr.bf16.gmra.mrb[0].mxu0 %v3957
      %v4169 = vpop.f32.mrb[0].mxu0
      %v4170 = vadd.f32 0.0, %v4169
      %v4171 = vpop.f32.mrb[0].mxu0
      %v4172 = vpop.f32.mrb[0].mxu0
      %v4173 = vadd.f32 0.0, %v4172
      %v4174 = vpop.f32.mrb[0].mxu0
      %4175 = vmatprep.mubr.bf16.mxu0 0
      %4176 = vmatmul.mubr.bf16.gmra.mrb[0].mxu0 %v3958
      %v4177 = vpop.f32.mrb[0].mxu0
      %v4178 = vadd.f32 0.0, %v4177
      %v4179 = vpop.f32.mrb[0].mxu0
      %v4180 = vpop.f32.mrb[0].mxu0
      %v4181 = vadd.f32 0.0, %v4180
      %v4182 = vpop.f32.mrb[0].mxu0
      %4183 = vdwg.mxu0
      %v4184 = vadd.f32 %v3686, %v4058
      %v4185 = vadd.f32 %v3687, %v4061
      %v4186 = vadd.f32 %v3688, %v4066
      %v4187 = vadd.f32 %v3689, %v4069
      %v4188 = vadd.f32 %v3690, %v4074
      %v4189 = vadd.f32 %v3691, %v4077
      %v4190 = vadd.f32 %v3692, %v4082
      %v4191 = vadd.f32 %v3693, %v4085
      %v4192 = vadd.f32 %v3694, %v4090
      %v4193 = vadd.f32 %v3695, %v4093
      %v4194 = vadd.f32 %v3696, %v4098
      %v4195 = vadd.f32 %v3697, %v4101
      %v4196 = vadd.f32 %v3698, %v4106
      %v4197 = vadd.f32 %v3699, %v4109
      %v4198 = vadd.f32 %v3700, %v4114
      %v4199 = vadd.f32 %v3701, %v4117
      %v4200 = vadd.f32 %v3702, %v4122
      %v4201 = vadd.f32 %v3703, %v4125
      %v4202 = vadd.f32 %v3704, %v4130
      %v4203 = vadd.f32 %v3705, %v4133
      %v4204 = vadd.f32 %v3706, %v4138
      %v4205 = vadd.f32 %v3707, %v4141
      %v4206 = vadd.f32 %v3708, %v4146
      %v4207 = vadd.f32 %v3709, %v4149
      %v4208 = vadd.f32 %v3710, %v4154
      %v4209 = vadd.f32 %v3711, %v4157
      %v4210 = vadd.f32 %v3712, %v4162
      %v4211 = vadd.f32 %v3713, %v4165
      %v4212 = vadd.f32 %v3714, %v4170
      %v4213 = vadd.f32 %v3715, %v4173
      %v4214 = vadd.f32 %v3716, %v4178
      %v4215 = vadd.f32 %v3717, %v4181
      %s4216 = sadd.s32 %s1039, 2
      %s4217 = smul.u32 %s4216, 3
      %s4218 = smul.addr %s4217, 4
      %s4219 = scalar_lea.vmem [#allocation2], %s4218
      %v4220 = vld [vmem:[%s4219] sm:$0xf]
      %v4221 = vld [vmem:[%s4219 + $0x4] sm:$0xf]
      %v4222 = vld [vmem:[%s4219 + $0xc] sm:$0xf]
      %v4223 = vld [vmem:[%s4219 + $0x10] sm:$0xf]
      %v4224 = vld [vmem:[%s4219 + $0x18] sm:$0xf]
      %v4225 = vld [vmem:[%s4219 + $0x1c] sm:$0xf]
      %v4226 = vld [vmem:[%s4219 + $0x24] sm:$0xf]
      %v4227 = vld [vmem:[%s4219 + $0x28] sm:$0xf]
      %v4228 = vld [vmem:[%s4219 + $0x30] sm:$0xf]
      %v4229 = vld [vmem:[%s4219 + $0x34] sm:$0xf]
      %v4230 = vld [vmem:[%s4219 + $0x3c] sm:$0xf]
      %v4231 = vld [vmem:[%s4219 + $0x40] sm:$0xf]
      %v4232 = vld [vmem:[%s4219 + $0x48] sm:$0xf]
      %v4233 = vld [vmem:[%s4219 + $0x4c] sm:$0xf]
      %v4234 = vld [vmem:[%s4219 + $0x54] sm:$0xf]
      %v4235 = vld [vmem:[%s4219 + $0x58] sm:$0xf]
      %v4236 = vld [vmem:[%s4219 + $0x60] sm:$0xf]
      %v4237 = vld [vmem:[%s4219 + $0x64] sm:$0xf]
      %v4238 = vld [vmem:[%s4219 + $0x6c] sm:$0xf]
      %v4239 = vld [vmem:[%s4219 + $0x70] sm:$0xf]
      %v4240 = vld [vmem:[%s4219 + $0x78] sm:$0xf]
      %v4241 = vld [vmem:[%s4219 + $0x7c] sm:$0xf]
      %v4242 = vld [vmem:[%s4219 + $0x84] sm:$0xf]
      %v4243 = vld [vmem:[%s4219 + $0x88] sm:$0xf]
      %v4244 = vld [vmem:[%s4219 + $0x90] sm:$0xf]
      %v4245 = vld [vmem:[%s4219 + $0x94] sm:$0xf]
      %v4246 = vld [vmem:[%s4219 + $0x9c] sm:$0xf]
      %v4247 = vld [vmem:[%s4219 + $0xa0] sm:$0xf]
      %v4248 = vld [vmem:[%s4219 + $0xa8] sm:$0xf]
      %v4249 = vld [vmem:[%s4219 + $0xac] sm:$0xf]
      %v4250 = vld [vmem:[%s4219 + $0xb4] sm:$0xf]
      %v4251 = vld [vmem:[%s4219 + $0xb8] sm:$0xf]
      %s4252 = scalar_lea.vmem %s1, 384
      %v4253 = vld [vmem:[%s4252] sm:$0xf]
      %v4254 = vld [vmem:[%s4252 + $0x4] sm:$0xf]
      %v4255 = vld [vmem:[%s4252 + $0x8] sm:$0xf]
      %v4256 = vld [vmem:[%s4252 + $0xc] sm:$0xf]
      %v4257 = vld [vmem:[%s4252 + $0x10] sm:$0xf]
      %v4258 = vld [vmem:[%s4252 + $0x14] sm:$0xf]
      %v4259 = vld [vmem:[%s4252 + $0x18] sm:$0xf]
      %v4260 = vld [vmem:[%s4252 + $0x1c] sm:$0xf]
      %v4261 = vld [vmem:[%s4252 + $0x20] sm:$0xf]
      %v4262 = vld [vmem:[%s4252 + $0x24] sm:$0xf]
      %v4263 = vld [vmem:[%s4252 + $0x28] sm:$0xf]
      %v4264 = vld [vmem:[%s4252 + $0x2c] sm:$0xf]
      %v4265 = vld [vmem:[%s4252 + $0x30] sm:$0xf]
      %v4266 = vld [vmem:[%s4252 + $0x34] sm:$0xf]
      %v4267 = vld [vmem:[%s4252 + $0x38] sm:$0xf]
      %v4268 = vld [vmem:[%s4252 + $0x3c] sm:$0xf]
      %v4301 = vunpack.c.l.b16 %v4220
      %v4302 = vunpack.c.l.b16 %v4221
      %v4303 = vunpack.c.l.b16 %v4222
      %v4304 = vunpack.c.l.b16 %v4223
      %v4305 = vunpack.c.l.b16 %v4224
      %v4306 = vunpack.c.l.b16 %v4225
      %v4307 = vunpack.c.l.b16 %v4226
      %v4308 = vunpack.c.l.b16 %v4227
      %v4309 = vunpack.c.l.b16 %v4228
      %v4310 = vunpack.c.l.b16 %v4229
      %v4311 = vunpack.c.l.b16 %v4230
      %v4312 = vunpack.c.l.b16 %v4231
      %v4313 = vunpack.c.l.b16 %v4232
      %v4314 = vunpack.c.l.b16 %v4233
      %v4315 = vunpack.c.l.b16 %v4234
      %v4316 = vunpack.c.l.b16 %v4235
      %v4317 = vunpack.c.l.b16 %v4236
      %v4318 = vunpack.c.l.b16 %v4237
      %v4319 = vunpack.c.l.b16 %v4238
      %v4320 = vunpack.c.l.b16 %v4239
      %v4321 = vunpack.c.l.b16 %v4240
      %v4322 = vunpack.c.l.b16 %v4241
      %v4323 = vunpack.c.l.b16 %v4242
      %v4324 = vunpack.c.l.b16 %v4243
      %v4325 = vunpack.c.l.b16 %v4244
      %v4326 = vunpack.c.l.b16 %v4245
      %v4327 = vunpack.c.l.b16 %v4246
      %v4328 = vunpack.c.l.b16 %v4247
      %v4329 = vunpack.c.l.b16 %v4248
      %v4330 = vunpack.c.l.b16 %v4249
      %v4331 = vunpack.c.l.b16 %v4250
      %v4332 = vunpack.c.l.b16 %v4251
      %v4333 = vpack.c.b16 %v4302, %v4301
      %v4334 = vpack.c.b16 %v4304, %v4303
      %v4335 = vpack.c.b16 %v4306, %v4305
      %v4336 = vpack.c.b16 %v4308, %v4307
      %v4337 = vpack.c.b16 %v4310, %v4309
      %v4338 = vpack.c.b16 %v4312, %v4311
      %v4339 = vpack.c.b16 %v4314, %v4313
      %v4340 = vpack.c.b16 %v4316, %v4315
      %v4341 = vpack.c.b16 %v4318, %v4317
      %v4342 = vpack.c.b16 %v4320, %v4319
      %v4343 = vpack.c.b16 %v4322, %v4321
      %v4344 = vpack.c.b16 %v4324, %v4323
      %v4345 = vpack.c.b16 %v4326, %v4325
      %v4346 = vpack.c.b16 %v4328, %v4327
      %v4347 = vpack.c.b16 %v4330, %v4329
      %v4348 = vpack.c.b16 %v4332, %v4331
      %v4381 = vunpack.c.l.b16 %v4253
      %v4382 = vunpack.c.l.b16 %v4254
      %v4383 = vunpack.c.l.b16 %v4255
      %v4384 = vunpack.c.l.b16 %v4256
      %v4385 = vunpack.c.l.b16 %v4257
      %v4386 = vunpack.c.l.b16 %v4258
      %v4387 = vunpack.c.l.b16 %v4259
      %v4388 = vunpack.c.l.b16 %v4260
      %v4389 = vunpack.c.l.b16 %v4261
      %v4390 = vunpack.c.l.b16 %v4262
      %v4391 = vunpack.c.l.b16 %v4263
      %v4392 = vunpack.c.l.b16 %v4264
      %v4393 = vunpack.c.l.b16 %v4265
      %v4394 = vunpack.c.l.b16 %v4266
      %v4395 = vunpack.c.l.b16 %v4267
      %v4396 = vunpack.c.l.b16 %v4268
      %v4397 = vpack.c.b16 %v4382, %v4381
      %v4398 = vpack.c.b16 %v4384, %v4383
      %v4399 = vpack.c.b16 %v4386, %v4385
      %v4400 = vpack.c.b16 %v4388, %v4387
      %v4401 = vpack.c.b16 %v4390, %v4389
      %v4402 = vpack.c.b16 %v4392, %v4391
      %v4403 = vpack.c.b16 %v4394, %v4393
      %v4404 = vpack.c.b16 %v4396, %v4395
      %4413 = vmatprep.subr.bf16.mxu0 0
      %4414 = vmatpush1.bf16.msra.mxu0 %v4397
      %4415 = vmatprep.subr.bf16.mxu0 0
      %4416 = vmatpush1.bf16.msra.mxu0 %v4398
      %4417 = vmatprep.subr.bf16.mxu0 0
      %4418 = vmatpush1.bf16.msra.mxu0 %v4399
      %4419 = vmatprep.subr.bf16.mxu0 0
      %4420 = vmatpush1.bf16.msra.mxu0 %v4400
      %4421 = vmatprep.subr.bf16.mxu0 0
      %4422 = vmatpush1.bf16.msra.mxu0 %v4401
      %4423 = vmatprep.subr.bf16.mxu0 0
      %4424 = vmatpush1.bf16.msra.mxu0 %v4402
      %4425 = vmatprep.subr.bf16.mxu0 0
      %4426 = vmatpush1.bf16.msra.mxu0 %v4403
      %4427 = vmatprep.subr.bf16.mxu0 0
      %4428 = vmatpush1.bf16.msra.mxu0 %v4404
      %4429 = vmatprep.subr.bf16.mxu0 0
      %4430 = vmatpush1.bf16.msra.mxu0 0
      %4431 = vmatprep.subr.bf16.mxu0 0
      %4432 = vmatpush1.bf16.msra.mxu0 0
      %4433 = vmatprep.subr.bf16.mxu0 0
      %4434 = vmatpush1.bf16.msra.mxu0 0
      %4435 = vmatprep.subr.bf16.mxu0 0
      %4436 = vmatpush1.bf16.msra.mxu0 0
      %4437 = vmatprep.subr.bf16.mxu0 0
      %4438 = vmatpush1.bf16.msra.mxu0 0
      %4439 = vmatprep.subr.bf16.mxu0 0
      %4440 = vmatpush1.bf16.msra.mxu0 0
      %4441 = vmatprep.subr.bf16.mxu0 0
      %4442 = vmatpush1.bf16.msra.mxu0 0
      %4443 = vmatprep.subr.bf16.mxu0 0
      %4444 = vmatpush1.bf16.msra.mxu0 0
      %4445 = vmatprep.mubr.bf16.mxu0 0
      %4446 = vmatmul.mubr.bf16.gmra.mrb[0].mxu0 %v4333
      %v4447 = vpop.f32.mrb[0].mxu0
      %v4448 = vadd.f32 0.0, %v4447
      %v4449 = vpop.f32.mrb[0].mxu0
      %v4450 = vpop.f32.mrb[0].mxu0
      %v4451 = vadd.f32 0.0, %v4450
      %v4452 = vpop.f32.mrb[0].mxu0
      %4453 = vmatprep.mubr.bf16.mxu0 0
      %4454 = vmatmul.mubr.bf16.gmra.mrb[0].mxu0 %v4334
      %v4455 = vpop.f32.mrb[0].mxu0
      %v4456 = vadd.f32 0.0, %v4455
      %v4457 = vpop.f32.mrb[0].mxu0
      %v4458 = vpop.f32.mrb[0].mxu0
      %v4459 = vadd.f32 0.0, %v4458
      %v4460 = vpop.f32.mrb[0].mxu0
      %4461 = vmatprep.mubr.bf16.mxu0 0
      %4462 = vmatmul.mubr.bf16.gmra.mrb[0].mxu0 %v4335
      %v4463 = vpop.f32.mrb[0].mxu0
      %v4464 = vadd.f32 0.0, %v4463
      %v4465 = vpop.f32.mrb[0].mxu0
      %v4466 = vpop.f32.mrb[0].mxu0
      %v4467 = vadd.f32 0.0, %v4466
      %v4468 = vpop.f32.mrb[0].mxu0
      %4469 = vmatprep.mubr.bf16.mxu0 0
      %4470 = vmatmul.mubr.bf16.gmra.mrb[0].mxu0 %v4336
      %v4471 = vpop.f32.mrb[0].mxu0
      %v4472 = vadd.f32 0.0, %v4471
      %v4473 = vpop.f32.mrb[0].mxu0
      %v4474 = vpop.f32.mrb[0].mxu0
      %v4475 = vadd.f32 0.0, %v4474
      %v4476 = vpop.f32.mrb[0].mxu0
      %4477 = vmatprep.mubr.bf16.mxu0 0
      %4478 = vmatmul.mubr.bf16.gmra.mrb[0].mxu0 %v4337
      %v4479 = vpop.f32.mrb[0].mxu0
      %v4480 = vadd.f32 0.0, %v4479
      %v4481 = vpop.f32.mrb[0].mxu0
      %v4482 = vpop.f32.mrb[0].mxu0
      %v4483 = vadd.f32 0.0, %v4482
      %v4484 = vpop.f32.mrb[0].mxu0
      %4485 = vmatprep.mubr.bf16.mxu0 0
      %4486 = vmatmul.mubr.bf16.gmra.mrb[0].mxu0 %v4338
      %v4487 = vpop.f32.mrb[0].mxu0
      %v4488 = vadd.f32 0.0, %v4487
      %v4489 = vpop.f32.mrb[0].mxu0
      %v4490 = vpop.f32.mrb[0].mxu0
      %v4491 = vadd.f32 0.0, %v4490
      %v4492 = vpop.f32.mrb[0].mxu0
      %4493 = vmatprep.mubr.bf16.mxu0 0
      %4494 = vmatmul.mubr.bf16.gmra.mrb[0].mxu0 %v4339
      %v4495 = vpop.f32.mrb[0].mxu0
      %v4496 = vadd.f32 0.0, %v4495
      %v4497 = vpop.f32.mrb[0].mxu0
      %v4498 = vpop.f32.mrb[0].mxu0
      %v4499 = vadd.f32 0.0, %v4498
      %v4500 = vpop.f32.mrb[0].mxu0
      %4501 = vmatprep.mubr.bf16.mxu0 0
      %4502 = vmatmul.mubr.bf16.gmra.mrb[0].mxu0 %v4340
      %v4503 = vpop.f32.mrb[0].mxu0
      %v4504 = vadd.f32 0.0, %v4503
      %v4505 = vpop.f32.mrb[0].mxu0
      %v4506 = vpop.f32.mrb[0].mxu0
      %v4507 = vadd.f32 0.0, %v4506
      %v4508 = vpop.f32.mrb[0].mxu0
      %4509 = vmatprep.mubr.bf16.mxu0 0
      %4510 = vmatmul.mubr.bf16.gmra.mrb[0].mxu0 %v4341
      %v4511 = vpop.f32.mrb[0].mxu0
      %v4512 = vadd.f32 0.0, %v4511
      %v4513 = vpop.f32.mrb[0].mxu0
      %v4514 = vpop.f32.mrb[0].mxu0
      %v4515 = vadd.f32 0.0, %v4514
      %v4516 = vpop.f32.mrb[0].mxu0
      %4517 = vmatprep.mubr.bf16.mxu0 0
      %4518 = vmatmul.mubr.bf16.gmra.mrb[0].mxu0 %v4342
      %v4519 = vpop.f32.mrb[0].mxu0
      %v4520 = vadd.f32 0.0, %v4519
      %v4521 = vpop.f32.mrb[0].mxu0
      %v4522 = vpop.f32.mrb[0].mxu0
      %v4523 = vadd.f32 0.0, %v4522
      %v4524 = vpop.f32.mrb[0].mxu0
      %4525 = vmatprep.mubr.bf16.mxu0 0
      %4526 = vmatmul.mubr.bf16.gmra.mrb[0].mxu0 %v4343
      %v4527 = vpop.f32.mrb[0].mxu0
      %v4528 = vadd.f32 0.0, %v4527
      %v4529 = vpop.f32.mrb[0].mxu0
      %v4530 = vpop.f32.mrb[0].mxu0
      %v4531 = vadd.f32 0.0, %v4530
      %v4532 = vpop.f32.mrb[0].mxu0
      %4533 = vmatprep.mubr.bf16.mxu0 0
      %4534 = vmatmul.mubr.bf16.gmra.mrb[0].mxu0 %v4344
      %v4535 = vpop.f32.mrb[0].mxu0
      %v4536 = vadd.f32 0.0, %v4535
      %v4537 = vpop.f32.mrb[0].mxu0
      %v4538 = vpop.f32.mrb[0].mxu0
      %v4539 = vadd.f32 0.0, %v4538
      %v4540 = vpop.f32.mrb[0].mxu0
      %4541 = vmatprep.mubr.bf16.mxu0 0
      %4542 = vmatmul.mubr.bf16.gmra.mrb[0].mxu0 %v4345
      %v4543 = vpop.f32.mrb[0].mxu0
      %v4544 = vadd.f32 0.0, %v4543
      %v4545 = vpop.f32.mrb[0].mxu0
      %v4546 = vpop.f32.mrb[0].mxu0
      %v4547 = vadd.f32 0.0, %v4546
      %v4548 = vpop.f32.mrb[0].mxu0
      %4549 = vmatprep.mubr.bf16.mxu0 0
      %4550 = vmatmul.mubr.bf16.gmra.mrb[0].mxu0 %v4346
      %v4551 = vpop.f32.mrb[0].mxu0
      %v4552 = vadd.f32 0.0, %v4551
      %v4553 = vpop.f32.mrb[0].mxu0
      %v4554 = vpop.f32.mrb[0].mxu0
      %v4555 = vadd.f32 0.0, %v4554
      %v4556 = vpop.f32.mrb[0].mxu0
      %4557 = vmatprep.mubr.bf16.mxu0 0
      %4558 = vmatmul.mubr.bf16.gmra.mrb[0].mxu0 %v4347
      %v4559 = vpop.f32.mrb[0].mxu0
      %v4560 = vadd.f32 0.0, %v4559
      %v4561 = vpop.f32.mrb[0].mxu0
      %v4562 = vpop.f32.mrb[0].mxu0
      %v4563 = vadd.f32 0.0, %v4562
      %v4564 = vpop.f32.mrb[0].mxu0
      %4565 = vmatprep.mubr.bf16.mxu0 0
      %4566 = vmatmul.mubr.bf16.gmra.mrb[0].mxu0 %v4348
      %v4567 = vpop.f32.mrb[0].mxu0
      %v4568 = vadd.f32 0.0, %v4567
      %v4569 = vpop.f32.mrb[0].mxu0
      %v4570 = vpop.f32.mrb[0].mxu0
      %v4571 = vadd.f32 0.0, %v4570
      %v4572 = vpop.f32.mrb[0].mxu0
      %4573 = vdwg.mxu0
      %v4574 = vadd.f32 %v4184, %v4448
      %v4575 = vadd.f32 %v4185, %v4451
      %v4576 = vadd.f32 %v4186, %v4456
      %v4577 = vadd.f32 %v4187, %v4459
      %v4578 = vadd.f32 %v4188, %v4464
      %v4579 = vadd.f32 %v4189, %v4467
      %v4580 = vadd.f32 %v4190, %v4472
      %v4581 = vadd.f32 %v4191, %v4475
      %v4582 = vadd.f32 %v4192, %v4480
      %v4583 = vadd.f32 %v4193, %v4483
      %v4584 = vadd.f32 %v4194, %v4488
      %v4585 = vadd.f32 %v4195, %v4491
      %v4586 = vadd.f32 %v4196, %v4496
      %v4587 = vadd.f32 %v4197, %v4499
      %v4588 = vadd.f32 %v4198, %v4504
      %v4589 = vadd.f32 %v4199, %v4507
      %v4590 = vadd.f32 %v4200, %v4512
      %v4591 = vadd.f32 %v4201, %v4515
      %v4592 = vadd.f32 %v4202, %v4520
      %v4593 = vadd.f32 %v4203, %v4523
      %v4594 = vadd.f32 %v4204, %v4528
      %v4595 = vadd.f32 %v4205, %v4531
      %v4596 = vadd.f32 %v4206, %v4536
      %v4597 = vadd.f32 %v4207, %v4539
      %v4598 = vadd.f32 %v4208, %v4544
      %v4599 = vadd.f32 %v4209, %v4547
      %v4600 = vadd.f32 %v4210, %v4552
      %v4601 = vadd.f32 %v4211, %v4555
      %v4602 = vadd.f32 %v4212, %v4560
      %v4603 = vadd.f32 %v4213, %v4563
      %v4604 = vadd.f32 %v4214, %v4568
      %v4605 = vadd.f32 %v4215, %v4571
      %v4606 = vld [vmem:[%s4219] sm:$0xf]
      %v4607 = vld [vmem:[%s4219 + $0x4] sm:$0xf]
      %v4608 = vld [vmem:[%s4219 + $0x8] sm:$0x1]
      %v4609 = vld [vmem:[%s4219 + $0xc] sm:$0xf]
      %v4610 = vld [vmem:[%s4219 + $0x10] sm:$0xf]
      %v4611 = vld [vmem:[%s4219 + $0x14] sm:$0x1]
      %v4612 = vld [vmem:[%s4219 + $0x18] sm:$0xf]
      %v4613 = vld [vmem:[%s4219 + $0x1c] sm:$0xf]
      %v4614 = vld [vmem:[%s4219 + $0x20] sm:$0x1]
      %v4615 = vld [vmem:[%s4219 + $0x24] sm:$0xf]
      %v4616 = vld [vmem:[%s4219 + $0x28] sm:$0xf]
      %v4617 = vld [vmem:[%s4219 + $0x2c] sm:$0x1]
      %v4618 = vld [vmem:[%s4219 + $0x30] sm:$0xf]
      %v4619 = vld [vmem:[%s4219 + $0x34] sm:$0xf]
      %v4620 = vld [vmem:[%s4219 + $0x38] sm:$0x1]
      %v4621 = vld [vmem:[%s4219 + $0x3c] sm:$0xf]
      %v4622 = vld [vmem:[%s4219 + $0x40] sm:$0xf]
      %v4623 = vld [vmem:[%s4219 + $0x44] sm:$0x1]
      %v4624 = vld [vmem:[%s4219 + $0x48] sm:$0xf]
      %v4625 = vld [vmem:[%s4219 + $0x4c] sm:$0xf]
      %v4626 = vld [vmem:[%s4219 + $0x50] sm:$0x1]
      %v4627 = vld [vmem:[%s4219 + $0x54] sm:$0xf]
      %v4628 = vld [vmem:[%s4219 + $0x58] sm:$0xf]
      %v4629 = vld [vmem:[%s4219 + $0x5c] sm:$0x1]
      %v4630 = vld [vmem:[%s4219 + $0x60] sm:$0xf]
      %v4631 = vld [vmem:[%s4219 + $0x64] sm:$0xf]
      %v4632 = vld [vmem:[%s4219 + $0x68] sm:$0x1]
      %v4633 = vld [vmem:[%s4219 + $0x6c] sm:$0xf]
      %v4634 = vld [vmem:[%s4219 + $0x70] sm:$0xf]
      %v4635 = vld [vmem:[%s4219 + $0x74] sm:$0x1]
      %v4636 = vld [vmem:[%s4219 + $0x78] sm:$0xf]
      %v4637 = vld [vmem:[%s4219 + $0x7c] sm:$0xf]
      %v4638 = vld [vmem:[%s4219 + $0x80] sm:$0x1]
      %v4639 = vld [vmem:[%s4219 + $0x84] sm:$0xf]
      %v4640 = vld [vmem:[%s4219 + $0x88] sm:$0xf]
      %v4641 = vld [vmem:[%s4219 + $0x8c] sm:$0x1]
      %v4642 = vld [vmem:[%s4219 + $0x90] sm:$0xf]
      %v4643 = vld [vmem:[%s4219 + $0x94] sm:$0xf]
      %v4644 = vld [vmem:[%s4219 + $0x98] sm:$0x1]
      %v4645 = vld [vmem:[%s4219 + $0x9c] sm:$0xf]
      %v4646 = vld [vmem:[%s4219 + $0xa0] sm:$0xf]
      %v4647 = vld [vmem:[%s4219 + $0xa4] sm:$0x1]
      %v4648 = vld [vmem:[%s4219 + $0xa8] sm:$0xf]
      %v4649 = vld [vmem:[%s4219 + $0xac] sm:$0xf]
      %v4650 = vld [vmem:[%s4219 + $0xb0] sm:$0x1]
      %v4651 = vld [vmem:[%s4219 + $0xb4] sm:$0xf]
      %v4652 = vld [vmem:[%s4219 + $0xb8] sm:$0xf]
      %v4653 = vld [vmem:[%s4219 + $0xbc] sm:$0x1]
      %v4655 = vshrl.u32 %v4606, 16
      %v4657 = vrot.slane %v4655, 4
      %v4658 = vshll.u32 %v4606, 16
      %v4660 = vrot.slane %v4658, 5
      %v4661 = vor.u32 %v4657, %v4660
      %v4662 = vrot.slane %v4661, 4
      %v4664 = vshll.u32 %v4607, 16
      %v4666 = vrot.slane %v4664, 5
      %v4667 = vsel %vm1109, %v4662, %v4666
      %v4668 = vshrl.u32 %v4607, 16
      %v4670 = vrot.slane %v4668, 4
      %v4671 = vor.u32 %v4670, %v4666
      %v4672 = vrot.slane %v4671, 4
      %v4674 = vshll.u32 %v4608, 16
      %v4676 = vrot.slane %v4674, 5
      %v4677 = vsel %vm1109, %v4672, %v4676
      %v4679 = vshrl.u32 %v4609, 16
      %v4681 = vrot.slane %v4679, 4
      %v4682 = vshll.u32 %v4609, 16
      %v4684 = vrot.slane %v4682, 5
      %v4685 = vor.u32 %v4681, %v4684
      %v4686 = vrot.slane %v4685, 4
      %v4688 = vshll.u32 %v4610, 16
      %v4690 = vrot.slane %v4688, 5
      %v4691 = vsel %vm1109, %v4686, %v4690
      %v4692 = vshrl.u32 %v4610, 16
      %v4694 = vrot.slane %v4692, 4
      %v4695 = vor.u32 %v4694, %v4690
      %v4696 = vrot.slane %v4695, 4
      %v4698 = vshll.u32 %v4611, 16
      %v4700 = vrot.slane %v4698, 5
      %v4701 = vsel %vm1109, %v4696, %v4700
      %v4703 = vshrl.u32 %v4612, 16
      %v4705 = vrot.slane %v4703, 4
      %v4706 = vshll.u32 %v4612, 16
      %v4708 = vrot.slane %v4706, 5
      %v4709 = vor.u32 %v4705, %v4708
      %v4710 = vrot.slane %v4709, 4
      %v4712 = vshll.u32 %v4613, 16
      %v4714 = vrot.slane %v4712, 5
      %v4715 = vsel %vm1109, %v4710, %v4714
      %v4716 = vshrl.u32 %v4613, 16
      %v4718 = vrot.slane %v4716, 4
      %v4719 = vor.u32 %v4718, %v4714
      %v4720 = vrot.slane %v4719, 4
      %v4722 = vshll.u32 %v4614, 16
      %v4724 = vrot.slane %v4722, 5
      %v4725 = vsel %vm1109, %v4720, %v4724
      %v4727 = vshrl.u32 %v4615, 16
      %v4729 = vrot.slane %v4727, 4
      %v4730 = vshll.u32 %v4615, 16
      %v4732 = vrot.slane %v4730, 5
      %v4733 = vor.u32 %v4729, %v4732
      %v4734 = vrot.slane %v4733, 4
      %v4736 = vshll.u32 %v4616, 16
      %v4738 = vrot.slane %v4736, 5
      %v4739 = vsel %vm1109, %v4734, %v4738
      %v4740 = vshrl.u32 %v4616, 16
      %v4742 = vrot.slane %v4740, 4
      %v4743 = vor.u32 %v4742, %v4738
      %v4744 = vrot.slane %v4743, 4
      %v4746 = vshll.u32 %v4617, 16
      %v4748 = vrot.slane %v4746, 5
      %v4749 = vsel %vm1109, %v4744, %v4748
      %v4751 = vshrl.u32 %v4618, 16
      %v4753 = vrot.slane %v4751, 4
      %v4754 = vshll.u32 %v4618, 16
      %v4756 = vrot.slane %v4754, 5
      %v4757 = vor.u32 %v4753, %v4756
      %v4758 = vrot.slane %v4757, 4
      %v4760 = vshll.u32 %v4619, 16
      %v4762 = vrot.slane %v4760, 5
      %v4763 = vsel %vm1109, %v4758, %v4762
      %v4764 = vshrl.u32 %v4619, 16
      %v4766 = vrot.slane %v4764, 4
      %v4767 = vor.u32 %v4766, %v4762
      %v4768 = vrot.slane %v4767, 4
      %v4770 = vshll.u32 %v4620, 16
      %v4772 = vrot.slane %v4770, 5
      %v4773 = vsel %vm1109, %v4768, %v4772
      %v4775 = vshrl.u32 %v4621, 16
      %v4777 = vrot.slane %v4775, 4
      %v4778 = vshll.u32 %v4621, 16
      %v4780 = vrot.slane %v4778, 5
      %v4781 = vor.u32 %v4777, %v4780
      %v4782 = vrot.slane %v4781, 4
      %v4784 = vshll.u32 %v4622, 16
      %v4786 = vrot.slane %v4784, 5
      %v4787 = vsel %vm1109, %v4782, %v4786
      %v4788 = vshrl.u32 %v4622, 16
      %v4790 = vrot.slane %v4788, 4
      %v4791 = vor.u32 %v4790, %v4786
      %v4792 = vrot.slane %v4791, 4
      %v4794 = vshll.u32 %v4623, 16
      %v4796 = vrot.slane %v4794, 5
      %v4797 = vsel %vm1109, %v4792, %v4796
      %v4799 = vshrl.u32 %v4624, 16
      %v4801 = vrot.slane %v4799, 4
      %v4802 = vshll.u32 %v4624, 16
      %v4804 = vrot.slane %v4802, 5
      %v4805 = vor.u32 %v4801, %v4804
      %v4806 = vrot.slane %v4805, 4
      %v4808 = vshll.u32 %v4625, 16
      %v4810 = vrot.slane %v4808, 5
      %v4811 = vsel %vm1109, %v4806, %v4810
      %v4812 = vshrl.u32 %v4625, 16
      %v4814 = vrot.slane %v4812, 4
      %v4815 = vor.u32 %v4814, %v4810
      %v4816 = vrot.slane %v4815, 4
      %v4818 = vshll.u32 %v4626, 16
      %v4820 = vrot.slane %v4818, 5
      %v4821 = vsel %vm1109, %v4816, %v4820
      %v4823 = vshrl.u32 %v4627, 16
      %v4825 = vrot.slane %v4823, 4
      %v4826 = vshll.u32 %v4627, 16
      %v4828 = vrot.slane %v4826, 5
      %v4829 = vor.u32 %v4825, %v4828
      %v4830 = vrot.slane %v4829, 4
      %v4832 = vshll.u32 %v4628, 16
      %v4834 = vrot.slane %v4832, 5
      %v4835 = vsel %vm1109, %v4830, %v4834
      %v4836 = vshrl.u32 %v4628, 16
      %v4838 = vrot.slane %v4836, 4
      %v4839 = vor.u32 %v4838, %v4834
      %v4840 = vrot.slane %v4839, 4
      %v4842 = vshll.u32 %v4629, 16
      %v4844 = vrot.slane %v4842, 5
      %v4845 = vsel %vm1109, %v4840, %v4844
      %v4847 = vshrl.u32 %v4630, 16
      %v4849 = vrot.slane %v4847, 4
      %v4850 = vshll.u32 %v4630, 16
      %v4852 = vrot.slane %v4850, 5
      %v4853 = vor.u32 %v4849, %v4852
      %v4854 = vrot.slane %v4853, 4
      %v4856 = vshll.u32 %v4631, 16
      %v4858 = vrot.slane %v4856, 5
      %v4859 = vsel %vm1109, %v4854, %v4858
      %v4860 = vshrl.u32 %v4631, 16
      %v4862 = vrot.slane %v4860, 4
      %v4863 = vor.u32 %v4862, %v4858
      %v4864 = vrot.slane %v4863, 4
      %v4866 = vshll.u32 %v4632, 16
      %v4868 = vrot.slane %v4866, 5
      %v4869 = vsel %vm1109, %v4864, %v4868
      %v4871 = vshrl.u32 %v4633, 16
      %v4873 = vrot.slane %v4871, 4
      %v4874 = vshll.u32 %v4633, 16
      %v4876 = vrot.slane %v4874, 5
      %v4877 = vor.u32 %v4873, %v4876
      %v4878 = vrot.slane %v4877, 4
      %v4880 = vshll.u32 %v4634, 16
      %v4882 = vrot.slane %v4880, 5
      %v4883 = vsel %vm1109, %v4878, %v4882
      %v4884 = vshrl.u32 %v4634, 16
      %v4886 = vrot.slane %v4884, 4
      %v4887 = vor.u32 %v4886, %v4882
      %v4888 = vrot.slane %v4887, 4
      %v4890 = vshll.u32 %v4635, 16
      %v4892 = vrot.slane %v4890, 5
      %v4893 = vsel %vm1109, %v4888, %v4892
      %v4895 = vshrl.u32 %v4636, 16
      %v4897 = vrot.slane %v4895, 4
      %v4898 = vshll.u32 %v4636, 16
      %v4900 = vrot.slane %v4898, 5
      %v4901 = vor.u32 %v4897, %v4900
      %v4902 = vrot.slane %v4901, 4
      %v4904 = vshll.u32 %v4637, 16
      %v4906 = vrot.slane %v4904, 5
      %v4907 = vsel %vm1109, %v4902, %v4906
      %v4908 = vshrl.u32 %v4637, 16
      %v4910 = vrot.slane %v4908, 4
      %v4911 = vor.u32 %v4910, %v4906
      %v4912 = vrot.slane %v4911, 4
      %v4914 = vshll.u32 %v4638, 16
      %v4916 = vrot.slane %v4914, 5
      %v4917 = vsel %vm1109, %v4912, %v4916
      %v4919 = vshrl.u32 %v4639, 16
      %v4921 = vrot.slane %v4919, 4
      %v4922 = vshll.u32 %v4639, 16
      %v4924 = vrot.slane %v4922, 5
      %v4925 = vor.u32 %v4921, %v4924
      %v4926 = vrot.slane %v4925, 4
      %v4928 = vshll.u32 %v4640, 16
      %v4930 = vrot.slane %v4928, 5
      %v4931 = vsel %vm1109, %v4926, %v4930
      %v4932 = vshrl.u32 %v4640, 16
      %v4934 = vrot.slane %v4932, 4
      %v4935 = vor.u32 %v4934, %v4930
      %v4936 = vrot.slane %v4935, 4
      %v4938 = vshll.u32 %v4641, 16
      %v4940 = vrot.slane %v4938, 5
      %v4941 = vsel %vm1109, %v4936, %v4940
      %v4943 = vshrl.u32 %v4642, 16
      %v4945 = vrot.slane %v4943, 4
      %v4946 = vshll.u32 %v4642, 16
      %v4948 = vrot.slane %v4946, 5
      %v4949 = vor.u32 %v4945, %v4948
      %v4950 = vrot.slane %v4949, 4
      %v4952 = vshll.u32 %v4643, 16
      %v4954 = vrot.slane %v4952, 5
      %v4955 = vsel %vm1109, %v4950, %v4954
      %v4956 = vshrl.u32 %v4643, 16
      %v4958 = vrot.slane %v4956, 4
      %v4959 = vor.u32 %v4958, %v4954
      %v4960 = vrot.slane %v4959, 4
      %v4962 = vshll.u32 %v4644, 16
      %v4964 = vrot.slane %v4962, 5
      %v4965 = vsel %vm1109, %v4960, %v4964
      %v4967 = vshrl.u32 %v4645, 16
      %v4969 = vrot.slane %v4967, 4
      %v4970 = vshll.u32 %v4645, 16
      %v4972 = vrot.slane %v4970, 5
      %v4973 = vor.u32 %v4969, %v4972
      %v4974 = vrot.slane %v4973, 4
      %v4976 = vshll.u32 %v4646, 16
      %v4978 = vrot.slane %v4976, 5
      %v4979 = vsel %vm1109, %v4974, %v4978
      %v4980 = vshrl.u32 %v4646, 16
      %v4982 = vrot.slane %v4980, 4
      %v4983 = vor.u32 %v4982, %v4978
      %v4984 = vrot.slane %v4983, 4
      %v4986 = vshll.u32 %v4647, 16
      %v4988 = vrot.slane %v4986, 5
      %v4989 = vsel %vm1109, %v4984, %v4988
      %v4991 = vshrl.u32 %v4648, 16
      %v4993 = vrot.slane %v4991, 4
      %v4994 = vshll.u32 %v4648, 16
      %v4996 = vrot.slane %v4994, 5
      %v4997 = vor.u32 %v4993, %v4996
      %v4998 = vrot.slane %v4997, 4
      %v5000 = vshll.u32 %v4649, 16
      %v5002 = vrot.slane %v5000, 5
      %v5003 = vsel %vm1109, %v4998, %v5002
      %v5004 = vshrl.u32 %v4649, 16
      %v5006 = vrot.slane %v5004, 4
      %v5007 = vor.u32 %v5006, %v5002
      %v5008 = vrot.slane %v5007, 4
      %v5010 = vshll.u32 %v4650, 16
      %v5012 = vrot.slane %v5010, 5
      %v5013 = vsel %vm1109, %v5008, %v5012
      %v5015 = vshrl.u32 %v4651, 16
      %v5017 = vrot.slane %v5015, 4
      %v5018 = vshll.u32 %v4651, 16
      %v5020 = vrot.slane %v5018, 5
      %v5021 = vor.u32 %v5017, %v5020
      %v5022 = vrot.slane %v5021, 4
      %v5024 = vshll.u32 %v4652, 16
      %v5026 = vrot.slane %v5024, 5
      %v5027 = vsel %vm1109, %v5022, %v5026
      %v5028 = vshrl.u32 %v4652, 16
      %v5030 = vrot.slane %v5028, 4
      %v5031 = vor.u32 %v5030, %v5026
      %v5032 = vrot.slane %v5031, 4
      %v5034 = vshll.u32 %v4653, 16
      %v5036 = vrot.slane %v5034, 5
      %v5037 = vsel %vm1109, %v5032, %v5036
      %s5038 = scalar_lea.vmem %s1, 448
      %v5039 = vld [vmem:[%s5038] sm:$0xf]
      %v5040 = vld [vmem:[%s5038 + $0x4] sm:$0xf]
      %v5041 = vld [vmem:[%s5038 + $0x8] sm:$0xf]
      %v5042 = vld [vmem:[%s5038 + $0xc] sm:$0xf]
      %v5043 = vld [vmem:[%s5038 + $0x10] sm:$0xf]
      %v5044 = vld [vmem:[%s5038 + $0x14] sm:$0xf]
      %v5045 = vld [vmem:[%s5038 + $0x18] sm:$0xf]
      %v5046 = vld [vmem:[%s5038 + $0x1c] sm:$0xf]
      %v5047 = vld [vmem:[%s5038 + $0x20] sm:$0xf]
      %v5048 = vld [vmem:[%s5038 + $0x24] sm:$0xf]
      %v5049 = vld [vmem:[%s5038 + $0x28] sm:$0xf]
      %v5050 = vld [vmem:[%s5038 + $0x2c] sm:$0xf]
      %v5051 = vld [vmem:[%s5038 + $0x30] sm:$0xf]
      %v5052 = vld [vmem:[%s5038 + $0x34] sm:$0xf]
      %v5053 = vld [vmem:[%s5038 + $0x38] sm:$0xf]
      %v5054 = vld [vmem:[%s5038 + $0x3c] sm:$0xf]
      %v5055 = vunpack.c.l.b16 %v4667
      %v5056 = vunpack.c.l.b16 %v4677
      %v5057 = vunpack.c.l.b16 %v4691
      %v5058 = vunpack.c.l.b16 %v4701
      %v5059 = vunpack.c.l.b16 %v4715
      %v5060 = vunpack.c.l.b16 %v4725
      %v5061 = vunpack.c.l.b16 %v4739
      %v5062 = vunpack.c.l.b16 %v4749
      %v5063 = vunpack.c.l.b16 %v4763
      %v5064 = vunpack.c.l.b16 %v4773
      %v5065 = vunpack.c.l.b16 %v4787
      %v5066 = vunpack.c.l.b16 %v4797
      %v5067 = vunpack.c.l.b16 %v4811
      %v5068 = vunpack.c.l.b16 %v4821
      %v5069 = vunpack.c.l.b16 %v4835
      %v5070 = vunpack.c.l.b16 %v4845
      %v5071 = vunpack.c.l.b16 %v4859
      %v5072 = vunpack.c.l.b16 %v4869
      %v5073 = vunpack.c.l.b16 %v4883
      %v5074 = vunpack.c.l.b16 %v4893
      %v5075 = vunpack.c.l.b16 %v4907
      %v5076 = vunpack.c.l.b16 %v4917
      %v5077 = vunpack.c.l.b16 %v4931
      %v5078 = vunpack.c.l.b16 %v4941
      %v5079 = vunpack.c.l.b16 %v4955
      %v5080 = vunpack.c.l.b16 %v4965
      %v5081 = vunpack.c.l.b16 %v4979
      %v5082 = vunpack.c.l.b16 %v4989
      %v5083 = vunpack.c.l.b16 %v5003
      %v5084 = vunpack.c.l.b16 %v5013
      %v5085 = vunpack.c.l.b16 %v5027
      %v5086 = vunpack.c.l.b16 %v5037
      %v5087 = vpack.c.b16 %v5056, %v5055
      %v5088 = vpack.c.b16 %v5058, %v5057
      %v5089 = vpack.c.b16 %v5060, %v5059
      %v5090 = vpack.c.b16 %v5062, %v5061
      %v5091 = vpack.c.b16 %v5064, %v5063
      %v5092 = vpack.c.b16 %v5066, %v5065
      %v5093 = vpack.c.b16 %v5068, %v5067
      %v5094 = vpack.c.b16 %v5070, %v5069
      %v5095 = vpack.c.b16 %v5072, %v5071
      %v5096 = vpack.c.b16 %v5074, %v5073
      %v5097 = vpack.c.b16 %v5076, %v5075
      %v5098 = vpack.c.b16 %v5078, %v5077
      %v5099 = vpack.c.b16 %v5080, %v5079
      %v5100 = vpack.c.b16 %v5082, %v5081
      %v5101 = vpack.c.b16 %v5084, %v5083
      %v5102 = vpack.c.b16 %v5086, %v5085
      %v5135 = vunpack.c.l.b16 %v5039
      %v5136 = vunpack.c.l.b16 %v5040
      %v5137 = vunpack.c.l.b16 %v5041
      %v5138 = vunpack.c.l.b16 %v5042
      %v5139 = vunpack.c.l.b16 %v5043
      %v5140 = vunpack.c.l.b16 %v5044
      %v5141 = vunpack.c.l.b16 %v5045
      %v5142 = vunpack.c.l.b16 %v5046
      %v5143 = vunpack.c.l.b16 %v5047
      %v5144 = vunpack.c.l.b16 %v5048
      %v5145 = vunpack.c.l.b16 %v5049
      %v5146 = vunpack.c.l.b16 %v5050
      %v5147 = vunpack.c.l.b16 %v5051
      %v5148 = vunpack.c.l.b16 %v5052
      %v5149 = vunpack.c.l.b16 %v5053
      %v5150 = vunpack.c.l.b16 %v5054
      %v5151 = vpack.c.b16 %v5136, %v5135
      %v5152 = vpack.c.b16 %v5138, %v5137
      %v5153 = vpack.c.b16 %v5140, %v5139
      %v5154 = vpack.c.b16 %v5142, %v5141
      %v5155 = vpack.c.b16 %v5144, %v5143
      %v5156 = vpack.c.b16 %v5146, %v5145
      %v5157 = vpack.c.b16 %v5148, %v5147
      %v5158 = vpack.c.b16 %v5150, %v5149
      %5167 = vmatprep.subr.bf16.mxu0 0
      %5168 = vmatpush1.bf16.msra.mxu0 %v5151
      %5169 = vmatprep.subr.bf16.mxu0 0
      %5170 = vmatpush1.bf16.msra.mxu0 %v5152
      %5171 = vmatprep.subr.bf16.mxu0 0
      %5172 = vmatpush1.bf16.msra.mxu0 %v5153
      %5173 = vmatprep.subr.bf16.mxu0 0
      %5174 = vmatpush1.bf16.msra.mxu0 %v5154
      %5175 = vmatprep.subr.bf16.mxu0 0
      %5176 = vmatpush1.bf16.msra.mxu0 %v5155
      %5177 = vmatprep.subr.bf16.mxu0 0
      %5178 = vmatpush1.bf16.msra.mxu0 %v5156
      %5179 = vmatprep.subr.bf16.mxu0 0
      %5180 = vmatpush1.bf16.msra.mxu0 %v5157
      %5181 = vmatprep.subr.bf16.mxu0 0
      %5182 = vmatpush1.bf16.msra.mxu0 %v5158
      %5183 = vmatprep.subr.bf16.mxu0 0
      %5184 = vmatpush1.bf16.msra.mxu0 0
      %5185 = vmatprep.subr.bf16.mxu0 0
      %5186 = vmatpush1.bf16.msra.mxu0 0
      %5187 = vmatprep.subr.bf16.mxu0 0
      %5188 = vmatpush1.bf16.msra.mxu0 0
      %5189 = vmatprep.subr.bf16.mxu0 0
      %5190 = vmatpush1.bf16.msra.mxu0 0
      %5191 = vmatprep.subr.bf16.mxu0 0
      %5192 = vmatpush1.bf16.msra.mxu0 0
      %5193 = vmatprep.subr.bf16.mxu0 0
      %5194 = vmatpush1.bf16.msra.mxu0 0
      %5195 = vmatprep.subr.bf16.mxu0 0
      %5196 = vmatpush1.bf16.msra.mxu0 0
      %5197 = vmatprep.subr.bf16.mxu0 0
      %5198 = vmatpush1.bf16.msra.mxu0 0
      %5199 = vmatprep.mubr.bf16.mxu0 0
      %5200 = vmatmul.mubr.bf16.gmra.mrb[0].mxu0 %v5087
      %v5201 = vpop.f32.mrb[0].mxu0
      %v5202 = vadd.f32 0.0, %v5201
      %v5203 = vpop.f32.mrb[0].mxu0
      %v5204 = vpop.f32.mrb[0].mxu0
      %v5205 = vadd.f32 0.0, %v5204
      %v5206 = vpop.f32.mrb[0].mxu0
      %5207 = vmatprep.mubr.bf16.mxu0 0
      %5208 = vmatmul.mubr.bf16.gmra.mrb[0].mxu0 %v5088
      %v5209 = vpop.f32.mrb[0].mxu0
      %v5210 = vadd.f32 0.0, %v5209
      %v5211 = vpop.f32.mrb[0].mxu0
      %v5212 = vpop.f32.mrb[0].mxu0
      %v5213 = vadd.f32 0.0, %v5212
      %v5214 = vpop.f32.mrb[0].mxu0
      %5215 = vmatprep.mubr.bf16.mxu0 0
      %5216 = vmatmul.mubr.bf16.gmra.mrb[0].mxu0 %v5089
      %v5217 = vpop.f32.mrb[0].mxu0
      %v5218 = vadd.f32 0.0, %v5217
      %v5219 = vpop.f32.mrb[0].mxu0
      %v5220 = vpop.f32.mrb[0].mxu0
      %v5221 = vadd.f32 0.0, %v5220
      %v5222 = vpop.f32.mrb[0].mxu0
      %5223 = vmatprep.mubr.bf16.mxu0 0
      %5224 = vmatmul.mubr.bf16.gmra.mrb[0].mxu0 %v5090
      %v5225 = vpop.f32.mrb[0].mxu0
      %v5226 = vadd.f32 0.0, %v5225
      %v5227 = vpop.f32.mrb[0].mxu0
      %v5228 = vpop.f32.mrb[0].mxu0
      %v5229 = vadd.f32 0.0, %v5228
      %v5230 = vpop.f32.mrb[0].mxu0
      %5231 = vmatprep.mubr.bf16.mxu0 0
      %5232 = vmatmul.mubr.bf16.gmra.mrb[0].mxu0 %v5091
      %v5233 = vpop.f32.mrb[0].mxu0
      %v5234 = vadd.f32 0.0, %v5233
      %v5235 = vpop.f32.mrb[0].mxu0
      %v5236 = vpop.f32.mrb[0].mxu0
      %v5237 = vadd.f32 0.0, %v5236
      %v5238 = vpop.f32.mrb[0].mxu0
      %5239 = vmatprep.mubr.bf16.mxu0 0
      %5240 = vmatmul.mubr.bf16.gmra.mrb[0].mxu0 %v5092
      %v5241 = vpop.f32.mrb[0].mxu0
      %v5242 = vadd.f32 0.0, %v5241
      %v5243 = vpop.f32.mrb[0].mxu0
      %v5244 = vpop.f32.mrb[0].mxu0
      %v5245 = vadd.f32 0.0, %v5244
      %v5246 = vpop.f32.mrb[0].mxu0
      %5247 = vmatprep.mubr.bf16.mxu0 0
      %5248 = vmatmul.mubr.bf16.gmra.mrb[0].mxu0 %v5093
      %v5249 = vpop.f32.mrb[0].mxu0
      %v5250 = vadd.f32 0.0, %v5249
      %v5251 = vpop.f32.mrb[0].mxu0
      %v5252 = vpop.f32.mrb[0].mxu0
      %v5253 = vadd.f32 0.0, %v5252
      %v5254 = vpop.f32.mrb[0].mxu0
      %5255 = vmatprep.mubr.bf16.mxu0 0
      %5256 = vmatmul.mubr.bf16.gmra.mrb[0].mxu0 %v5094
      %v5257 = vpop.f32.mrb[0].mxu0
      %v5258 = vadd.f32 0.0, %v5257
      %v5259 = vpop.f32.mrb[0].mxu0
      %v5260 = vpop.f32.mrb[0].mxu0
      %v5261 = vadd.f32 0.0, %v5260
      %v5262 = vpop.f32.mrb[0].mxu0
      %5263 = vmatprep.mubr.bf16.mxu0 0
      %5264 = vmatmul.mubr.bf16.gmra.mrb[0].mxu0 %v5095
      %v5265 = vpop.f32.mrb[0].mxu0
      %v5266 = vadd.f32 0.0, %v5265
      %v5267 = vpop.f32.mrb[0].mxu0
      %v5268 = vpop.f32.mrb[0].mxu0
      %v5269 = vadd.f32 0.0, %v5268
      %v5270 = vpop.f32.mrb[0].mxu0
      %5271 = vmatprep.mubr.bf16.mxu0 0
      %5272 = vmatmul.mubr.bf16.gmra.mrb[0].mxu0 %v5096
      %v5273 = vpop.f32.mrb[0].mxu0
      %v5274 = vadd.f32 0.0, %v5273
      %v5275 = vpop.f32.mrb[0].mxu0
      %v5276 = vpop.f32.mrb[0].mxu0
      %v5277 = vadd.f32 0.0, %v5276
      %v5278 = vpop.f32.mrb[0].mxu0
      %5279 = vmatprep.mubr.bf16.mxu0 0
      %5280 = vmatmul.mubr.bf16.gmra.mrb[0].mxu0 %v5097
      %v5281 = vpop.f32.mrb[0].mxu0
      %v5282 = vadd.f32 0.0, %v5281
      %v5283 = vpop.f32.mrb[0].mxu0
      %v5284 = vpop.f32.mrb[0].mxu0
      %v5285 = vadd.f32 0.0, %v5284
      %v5286 = vpop.f32.mrb[0].mxu0
      %5287 = vmatprep.mubr.bf16.mxu0 0
      %5288 = vmatmul.mubr.bf16.gmra.mrb[0].mxu0 %v5098
      %v5289 = vpop.f32.mrb[0].mxu0
      %v5290 = vadd.f32 0.0, %v5289
      %v5291 = vpop.f32.mrb[0].mxu0
      %v5292 = vpop.f32.mrb[0].mxu0
      %v5293 = vadd.f32 0.0, %v5292
      %v5294 = vpop.f32.mrb[0].mxu0
      %5295 = vmatprep.mubr.bf16.mxu0 0
      %5296 = vmatmul.mubr.bf16.gmra.mrb[0].mxu0 %v5099
      %v5297 = vpop.f32.mrb[0].mxu0
      %v5298 = vadd.f32 0.0, %v5297
      %v5299 = vpop.f32.mrb[0].mxu0
      %v5300 = vpop.f32.mrb[0].mxu0
      %v5301 = vadd.f32 0.0, %v5300
      %v5302 = vpop.f32.mrb[0].mxu0
      %5303 = vmatprep.mubr.bf16.mxu0 0
      %5304 = vmatmul.mubr.bf16.gmra.mrb[0].mxu0 %v5100
      %v5305 = vpop.f32.mrb[0].mxu0
      %v5306 = vadd.f32 0.0, %v5305
      %v5307 = vpop.f32.mrb[0].mxu0
      %v5308 = vpop.f32.mrb[0].mxu0
      %v5309 = vadd.f32 0.0, %v5308
      %v5310 = vpop.f32.mrb[0].mxu0
      %5311 = vmatprep.mubr.bf16.mxu0 0
      %5312 = vmatmul.mubr.bf16.gmra.mrb[0].mxu0 %v5101
      %v5313 = vpop.f32.mrb[0].mxu0
      %v5314 = vadd.f32 0.0, %v5313
      %v5315 = vpop.f32.mrb[0].mxu0
      %v5316 = vpop.f32.mrb[0].mxu0
      %v5317 = vadd.f32 0.0, %v5316
      %v5318 = vpop.f32.mrb[0].mxu0
      %5319 = vmatprep.mubr.bf16.mxu0 0
      %5320 = vmatmul.mubr.bf16.gmra.mrb[0].mxu0 %v5102
      %v5321 = vpop.f32.mrb[0].mxu0
      %v5322 = vadd.f32 0.0, %v5321
      %v5323 = vpop.f32.mrb[0].mxu0
      %v5324 = vpop.f32.mrb[0].mxu0
      %v5325 = vadd.f32 0.0, %v5324
      %v5326 = vpop.f32.mrb[0].mxu0
      %5327 = vdwg.mxu0
      %v5328 = vadd.f32 %v4574, %v5202
      %v5329 = vadd.f32 %v4575, %v5205
      %v5330 = vadd.f32 %v4576, %v5210
      %v5331 = vadd.f32 %v4577, %v5213
      %v5332 = vadd.f32 %v4578, %v5218
      %v5333 = vadd.f32 %v4579, %v5221
      %v5334 = vadd.f32 %v4580, %v5226
      %v5335 = vadd.f32 %v4581, %v5229
      %v5336 = vadd.f32 %v4582, %v5234
      %v5337 = vadd.f32 %v4583, %v5237
      %v5338 = vadd.f32 %v4584, %v5242
      %v5339 = vadd.f32 %v4585, %v5245
      %v5340 = vadd.f32 %v4586, %v5250
      %v5341 = vadd.f32 %v4587, %v5253
      %v5342 = vadd.f32 %v4588, %v5258
      %v5343 = vadd.f32 %v4589, %v5261
      %v5344 = vadd.f32 %v4590, %v5266
      %v5345 = vadd.f32 %v4591, %v5269
      %v5346 = vadd.f32 %v4592, %v5274
      %v5347 = vadd.f32 %v4593, %v5277
      %v5348 = vadd.f32 %v4594, %v5282
      %v5349 = vadd.f32 %v4595, %v5285
      %v5350 = vadd.f32 %v4596, %v5290
      %v5351 = vadd.f32 %v4597, %v5293
      %v5352 = vadd.f32 %v4598, %v5298
      %v5353 = vadd.f32 %v4599, %v5301
      %v5354 = vadd.f32 %v4600, %v5306
      %v5355 = vadd.f32 %v4601, %v5309
      %v5356 = vadd.f32 %v4602, %v5314
      %v5357 = vadd.f32 %v4603, %v5317
      %v5358 = vadd.f32 %v4604, %v5322
      %v5359 = vadd.f32 %v4605, %v5325
      %v5360 = vld [vmem:[%s4219] sm:$0xe]
      %v5361 = vld [vmem:[%s4219 + $0xc] sm:$0xe]
      %v5362 = vld [vmem:[%s4219 + $0x18] sm:$0xe]
      %v5363 = vld [vmem:[%s4219 + $0x24] sm:$0xe]
      %v5364 = vld [vmem:[%s4219 + $0x30] sm:$0xe]
      %v5365 = vld [vmem:[%s4219 + $0x3c] sm:$0xe]
      %v5366 = vld [vmem:[%s4219 + $0x48] sm:$0xe]
      %v5367 = vld [vmem:[%s4219 + $0x54] sm:$0xe]
      %v5368 = vld [vmem:[%s4219 + $0x60] sm:$0xe]
      %v5369 = vld [vmem:[%s4219 + $0x6c] sm:$0xe]
      %v5370 = vld [vmem:[%s4219 + $0x78] sm:$0xe]
      %v5371 = vld [vmem:[%s4219 + $0x84] sm:$0xe]
      %v5372 = vld [vmem:[%s4219 + $0x90] sm:$0xe]
      %v5373 = vld [vmem:[%s4219 + $0x9c] sm:$0xe]
      %v5374 = vld [vmem:[%s4219 + $0xa8] sm:$0xe]
      %v5375 = vld [vmem:[%s4219 + $0xb4] sm:$0xe]
      %v5424 = vrot.slane %v5360, 5
      %v5425 = vrot.slane %v5424, 4
      %v5426 = vrot.slane %v4607, 5
      %v5427 = vsel %vm2139, %v5425, %v5426
      %v5428 = vrot.slane %v5426, 4
      %v5429 = vrot.slane %v4608, 5
      %v5430 = vsel %vm2139, %v5428, %v5429
      %v5431 = vrot.slane %v5361, 5
      %v5432 = vrot.slane %v5431, 4
      %v5433 = vrot.slane %v4610, 5
      %v5434 = vsel %vm2139, %v5432, %v5433
      %v5435 = vrot.slane %v5433, 4
      %v5436 = vrot.slane %v4611, 5
      %v5437 = vsel %vm2139, %v5435, %v5436
      %v5438 = vrot.slane %v5362, 5
      %v5439 = vrot.slane %v5438, 4
      %v5440 = vrot.slane %v4613, 5
      %v5441 = vsel %vm2139, %v5439, %v5440
      %v5442 = vrot.slane %v5440, 4
      %v5443 = vrot.slane %v4614, 5
      %v5444 = vsel %vm2139, %v5442, %v5443
      %v5445 = vrot.slane %v5363, 5
      %v5446 = vrot.slane %v5445, 4
      %v5447 = vrot.slane %v4616, 5
      %v5448 = vsel %vm2139, %v5446, %v5447
      %v5449 = vrot.slane %v5447, 4
      %v5450 = vrot.slane %v4617, 5
      %v5451 = vsel %vm2139, %v5449, %v5450
      %v5452 = vrot.slane %v5364, 5
      %v5453 = vrot.slane %v5452, 4
      %v5454 = vrot.slane %v4619, 5
      %v5455 = vsel %vm2139, %v5453, %v5454
      %v5456 = vrot.slane %v5454, 4
      %v5457 = vrot.slane %v4620, 5
      %v5458 = vsel %vm2139, %v5456, %v5457
      %v5459 = vrot.slane %v5365, 5
      %v5460 = vrot.slane %v5459, 4
      %v5461 = vrot.slane %v4622, 5
      %v5462 = vsel %vm2139, %v5460, %v5461
      %v5463 = vrot.slane %v5461, 4
      %v5464 = vrot.slane %v4623, 5
      %v5465 = vsel %vm2139, %v5463, %v5464
      %v5466 = vrot.slane %v5366, 5
      %v5467 = vrot.slane %v5466, 4
      %v5468 = vrot.slane %v4625, 5
      %v5469 = vsel %vm2139, %v5467, %v5468
      %v5470 = vrot.slane %v5468, 4
      %v5471 = vrot.slane %v4626, 5
      %v5472 = vsel %vm2139, %v5470, %v5471
      %v5473 = vrot.slane %v5367, 5
      %v5474 = vrot.slane %v5473, 4
      %v5475 = vrot.slane %v4628, 5
      %v5476 = vsel %vm2139, %v5474, %v5475
      %v5477 = vrot.slane %v5475, 4
      %v5478 = vrot.slane %v4629, 5
      %v5479 = vsel %vm2139, %v5477, %v5478
      %v5480 = vrot.slane %v5368, 5
      %v5481 = vrot.slane %v5480, 4
      %v5482 = vrot.slane %v4631, 5
      %v5483 = vsel %vm2139, %v5481, %v5482
      %v5484 = vrot.slane %v5482, 4
      %v5485 = vrot.slane %v4632, 5
      %v5486 = vsel %vm2139, %v5484, %v5485
      %v5487 = vrot.slane %v5369, 5
      %v5488 = vrot.slane %v5487, 4
      %v5489 = vrot.slane %v4634, 5
      %v5490 = vsel %vm2139, %v5488, %v5489
      %v5491 = vrot.slane %v5489, 4
      %v5492 = vrot.slane %v4635, 5
      %v5493 = vsel %vm2139, %v5491, %v5492
      %v5494 = vrot.slane %v5370, 5
      %v5495 = vrot.slane %v5494, 4
      %v5496 = vrot.slane %v4637, 5
      %v5497 = vsel %vm2139, %v5495, %v5496
      %v5498 = vrot.slane %v5496, 4
      %v5499 = vrot.slane %v4638, 5
      %v5500 = vsel %vm2139, %v5498, %v5499
      %v5501 = vrot.slane %v5371, 5
      %v5502 = vrot.slane %v5501, 4
      %v5503 = vrot.slane %v4640, 5
      %v5504 = vsel %vm2139, %v5502, %v5503
      %v5505 = vrot.slane %v5503, 4
      %v5506 = vrot.slane %v4641, 5
      %v5507 = vsel %vm2139, %v5505, %v5506
      %v5508 = vrot.slane %v5372, 5
      %v5509 = vrot.slane %v5508, 4
      %v5510 = vrot.slane %v4643, 5
      %v5511 = vsel %vm2139, %v5509, %v5510
      %v5512 = vrot.slane %v5510, 4
      %v5513 = vrot.slane %v4644, 5
      %v5514 = vsel %vm2139, %v5512, %v5513
      %v5515 = vrot.slane %v5373, 5
      %v5516 = vrot.slane %v5515, 4
      %v5517 = vrot.slane %v4646, 5
      %v5518 = vsel %vm2139, %v5516, %v5517
      %v5519 = vrot.slane %v5517, 4
      %v5520 = vrot.slane %v4647, 5
      %v5521 = vsel %vm2139, %v5519, %v5520
      %v5522 = vrot.slane %v5374, 5
      %v5523 = vrot.slane %v5522, 4
      %v5524 = vrot.slane %v4649, 5
      %v5525 = vsel %vm2139, %v5523, %v5524
      %v5526 = vrot.slane %v5524, 4
      %v5527 = vrot.slane %v4650, 5
      %v5528 = vsel %vm2139, %v5526, %v5527
      %v5529 = vrot.slane %v5375, 5
      %v5530 = vrot.slane %v5529, 4
      %v5531 = vrot.slane %v4652, 5
      %v5532 = vsel %vm2139, %v5530, %v5531
      %v5533 = vrot.slane %v5531, 4
      %v5534 = vrot.slane %v4653, 5
      %v5535 = vsel %vm2139, %v5533, %v5534
      %s5536 = scalar_lea.vmem %s1, 512
      %v5537 = vld [vmem:[%s5536] sm:$0xf]
      %v5538 = vld [vmem:[%s5536 + $0x4] sm:$0xf]
      %v5539 = vld [vmem:[%s5536 + $0x8] sm:$0xf]
      %v5540 = vld [vmem:[%s5536 + $0xc] sm:$0xf]
      %v5541 = vld [vmem:[%s5536 + $0x10] sm:$0xf]
      %v5542 = vld [vmem:[%s5536 + $0x14] sm:$0xf]
      %v5543 = vld [vmem:[%s5536 + $0x18] sm:$0xf]
      %v5544 = vld [vmem:[%s5536 + $0x1c] sm:$0xf]
      %v5545 = vld [vmem:[%s5536 + $0x20] sm:$0xf]
      %v5546 = vld [vmem:[%s5536 + $0x24] sm:$0xf]
      %v5547 = vld [vmem:[%s5536 + $0x28] sm:$0xf]
      %v5548 = vld [vmem:[%s5536 + $0x2c] sm:$0xf]
      %v5549 = vld [vmem:[%s5536 + $0x30] sm:$0xf]
      %v5550 = vld [vmem:[%s5536 + $0x34] sm:$0xf]
      %v5551 = vld [vmem:[%s5536 + $0x38] sm:$0xf]
      %v5552 = vld [vmem:[%s5536 + $0x3c] sm:$0xf]
      %v5553 = vunpack.c.l.b16 %v5427
      %v5554 = vunpack.c.l.b16 %v5430
      %v5555 = vunpack.c.l.b16 %v5434
      %v5556 = vunpack.c.l.b16 %v5437
      %v5557 = vunpack.c.l.b16 %v5441
      %v5558 = vunpack.c.l.b16 %v5444
      %v5559 = vunpack.c.l.b16 %v5448
      %v5560 = vunpack.c.l.b16 %v5451
      %v5561 = vunpack.c.l.b16 %v5455
      %v5562 = vunpack.c.l.b16 %v5458
      %v5563 = vunpack.c.l.b16 %v5462
      %v5564 = vunpack.c.l.b16 %v5465
      %v5565 = vunpack.c.l.b16 %v5469
      %v5566 = vunpack.c.l.b16 %v5472
      %v5567 = vunpack.c.l.b16 %v5476
      %v5568 = vunpack.c.l.b16 %v5479
      %v5569 = vunpack.c.l.b16 %v5483
      %v5570 = vunpack.c.l.b16 %v5486
      %v5571 = vunpack.c.l.b16 %v5490
      %v5572 = vunpack.c.l.b16 %v5493
      %v5573 = vunpack.c.l.b16 %v5497
      %v5574 = vunpack.c.l.b16 %v5500
      %v5575 = vunpack.c.l.b16 %v5504
      %v5576 = vunpack.c.l.b16 %v5507
      %v5577 = vunpack.c.l.b16 %v5511
      %v5578 = vunpack.c.l.b16 %v5514
      %v5579 = vunpack.c.l.b16 %v5518
      %v5580 = vunpack.c.l.b16 %v5521
      %v5581 = vunpack.c.l.b16 %v5525
      %v5582 = vunpack.c.l.b16 %v5528
      %v5583 = vunpack.c.l.b16 %v5532
      %v5584 = vunpack.c.l.b16 %v5535
      %v5585 = vpack.c.b16 %v5554, %v5553
      %v5586 = vpack.c.b16 %v5556, %v5555
      %v5587 = vpack.c.b16 %v5558, %v5557
      %v5588 = vpack.c.b16 %v5560, %v5559
      %v5589 = vpack.c.b16 %v5562, %v5561
      %v5590 = vpack.c.b16 %v5564, %v5563
      %v5591 = vpack.c.b16 %v5566, %v5565
      %v5592 = vpack.c.b16 %v5568, %v5567
      %v5593 = vpack.c.b16 %v5570, %v5569
      %v5594 = vpack.c.b16 %v5572, %v5571
      %v5595 = vpack.c.b16 %v5574, %v5573
      %v5596 = vpack.c.b16 %v5576, %v5575
      %v5597 = vpack.c.b16 %v5578, %v5577
      %v5598 = vpack.c.b16 %v5580, %v5579
      %v5599 = vpack.c.b16 %v5582, %v5581
      %v5600 = vpack.c.b16 %v5584, %v5583
      %v5633 = vunpack.c.l.b16 %v5537
      %v5634 = vunpack.c.l.b16 %v5538
      %v5635 = vunpack.c.l.b16 %v5539
      %v5636 = vunpack.c.l.b16 %v5540
      %v5637 = vunpack.c.l.b16 %v5541
      %v5638 = vunpack.c.l.b16 %v5542
      %v5639 = vunpack.c.l.b16 %v5543
      %v5640 = vunpack.c.l.b16 %v5544
      %v5641 = vunpack.c.l.b16 %v5545
      %v5642 = vunpack.c.l.b16 %v5546
      %v5643 = vunpack.c.l.b16 %v5547
      %v5644 = vunpack.c.l.b16 %v5548
      %v5645 = vunpack.c.l.b16 %v5549
      %v5646 = vunpack.c.l.b16 %v5550
      %v5647 = vunpack.c.l.b16 %v5551
      %v5648 = vunpack.c.l.b16 %v5552
      %v5649 = vpack.c.b16 %v5634, %v5633
      %v5650 = vpack.c.b16 %v5636, %v5635
      %v5651 = vpack.c.b16 %v5638, %v5637
      %v5652 = vpack.c.b16 %v5640, %v5639
      %v5653 = vpack.c.b16 %v5642, %v5641
      %v5654 = vpack.c.b16 %v5644, %v5643
      %v5655 = vpack.c.b16 %v5646, %v5645
      %v5656 = vpack.c.b16 %v5648, %v5647
      %5665 = vmatprep.subr.bf16.mxu0 0
      %5666 = vmatpush1.bf16.msra.mxu0 %v5649
      %5667 = vmatprep.subr.bf16.mxu0 0
      %5668 = vmatpush1.bf16.msra.mxu0 %v5650
      %5669 = vmatprep.subr.bf16.mxu0 0
      %5670 = vmatpush1.bf16.msra.mxu0 %v5651
      %5671 = vmatprep.subr.bf16.mxu0 0
      %5672 = vmatpush1.bf16.msra.mxu0 %v5652
      %5673 = vmatprep.subr.bf16.mxu0 0
      %5674 = vmatpush1.bf16.msra.mxu0 %v5653
      %5675 = vmatprep.subr.bf16.mxu0 0
      %5676 = vmatpush1.bf16.msra.mxu0 %v5654
      %5677 = vmatprep.subr.bf16.mxu0 0
      %5678 = vmatpush1.bf16.msra.mxu0 %v5655
      %5679 = vmatprep.subr.bf16.mxu0 0
      %5680 = vmatpush1.bf16.msra.mxu0 %v5656
      %5681 = vmatprep.subr.bf16.mxu0 0
      %5682 = vmatpush1.bf16.msra.mxu0 0
      %5683 = vmatprep.subr.bf16.mxu0 0
      %5684 = vmatpush1.bf16.msra.mxu0 0
      %5685 = vmatprep.subr.bf16.mxu0 0
      %5686 = vmatpush1.bf16.msra.mxu0 0
      %5687 = vmatprep.subr.bf16.mxu0 0
      %5688 = vmatpush1.bf16.msra.mxu0 0
      %5689 = vmatprep.subr.bf16.mxu0 0
      %5690 = vmatpush1.bf16.msra.mxu0 0
      %5691 = vmatprep.subr.bf16.mxu0 0
      %5692 = vmatpush1.bf16.msra.mxu0 0
      %5693 = vmatprep.subr.bf16.mxu0 0
      %5694 = vmatpush1.bf16.msra.mxu0 0
      %5695 = vmatprep.subr.bf16.mxu0 0
      %5696 = vmatpush1.bf16.msra.mxu0 0
      %5697 = vmatprep.mubr.bf16.mxu0 0
      %5698 = vmatmul.mubr.bf16.gmra.mrb[0].mxu0 %v5585
      %v5699 = vpop.f32.mrb[0].mxu0
      %v5700 = vadd.f32 0.0, %v5699
      %v5701 = vpop.f32.mrb[0].mxu0
      %v5702 = vpop.f32.mrb[0].mxu0
      %v5703 = vadd.f32 0.0, %v5702
      %v5704 = vpop.f32.mrb[0].mxu0
      %5705 = vmatprep.mubr.bf16.mxu0 0
      %5706 = vmatmul.mubr.bf16.gmra.mrb[0].mxu0 %v5586
      %v5707 = vpop.f32.mrb[0].mxu0
      %v5708 = vadd.f32 0.0, %v5707
      %v5709 = vpop.f32.mrb[0].mxu0
      %v5710 = vpop.f32.mrb[0].mxu0
      %v5711 = vadd.f32 0.0, %v5710
      %v5712 = vpop.f32.mrb[0].mxu0
      %5713 = vmatprep.mubr.bf16.mxu0 0
      %5714 = vmatmul.mubr.bf16.gmra.mrb[0].mxu0 %v5587
      %v5715 = vpop.f32.mrb[0].mxu0
      %v5716 = vadd.f32 0.0, %v5715
      %v5717 = vpop.f32.mrb[0].mxu0
      %v5718 = vpop.f32.mrb[0].mxu0
      %v5719 = vadd.f32 0.0, %v5718
      %v5720 = vpop.f32.mrb[0].mxu0
      %5721 = vmatprep.mubr.bf16.mxu0 0
      %5722 = vmatmul.mubr.bf16.gmra.mrb[0].mxu0 %v5588
      %v5723 = vpop.f32.mrb[0].mxu0
      %v5724 = vadd.f32 0.0, %v5723
      %v5725 = vpop.f32.mrb[0].mxu0
      %v5726 = vpop.f32.mrb[0].mxu0
      %v5727 = vadd.f32 0.0, %v5726
      %v5728 = vpop.f32.mrb[0].mxu0
      %5729 = vmatprep.mubr.bf16.mxu0 0
      %5730 = vmatmul.mubr.bf16.gmra.mrb[0].mxu0 %v5589
      %v5731 = vpop.f32.mrb[0].mxu0
      %v5732 = vadd.f32 0.0, %v5731
      %v5733 = vpop.f32.mrb[0].mxu0
      %v5734 = vpop.f32.mrb[0].mxu0
      %v5735 = vadd.f32 0.0, %v5734
      %v5736 = vpop.f32.mrb[0].mxu0
      %5737 = vmatprep.mubr.bf16.mxu0 0
      %5738 = vmatmul.mubr.bf16.gmra.mrb[0].mxu0 %v5590
      %v5739 = vpop.f32.mrb[0].mxu0
      %v5740 = vadd.f32 0.0, %v5739
      %v5741 = vpop.f32.mrb[0].mxu0
      %v5742 = vpop.f32.mrb[0].mxu0
      %v5743 = vadd.f32 0.0, %v5742
      %v5744 = vpop.f32.mrb[0].mxu0
      %5745 = vmatprep.mubr.bf16.mxu0 0
      %5746 = vmatmul.mubr.bf16.gmra.mrb[0].mxu0 %v5591
      %v5747 = vpop.f32.mrb[0].mxu0
      %v5748 = vadd.f32 0.0, %v5747
      %v5749 = vpop.f32.mrb[0].mxu0
      %v5750 = vpop.f32.mrb[0].mxu0
      %v5751 = vadd.f32 0.0, %v5750
      %v5752 = vpop.f32.mrb[0].mxu0
      %5753 = vmatprep.mubr.bf16.mxu0 0
      %5754 = vmatmul.mubr.bf16.gmra.mrb[0].mxu0 %v5592
      %v5755 = vpop.f32.mrb[0].mxu0
      %v5756 = vadd.f32 0.0, %v5755
      %v5757 = vpop.f32.mrb[0].mxu0
      %v5758 = vpop.f32.mrb[0].mxu0
      %v5759 = vadd.f32 0.0, %v5758
      %v5760 = vpop.f32.mrb[0].mxu0
      %5761 = vmatprep.mubr.bf16.mxu0 0
      %5762 = vmatmul.mubr.bf16.gmra.mrb[0].mxu0 %v5593
      %v5763 = vpop.f32.mrb[0].mxu0
      %v5764 = vadd.f32 0.0, %v5763
      %v5765 = vpop.f32.mrb[0].mxu0
      %v5766 = vpop.f32.mrb[0].mxu0
      %v5767 = vadd.f32 0.0, %v5766
      %v5768 = vpop.f32.mrb[0].mxu0
      %5769 = vmatprep.mubr.bf16.mxu0 0
      %5770 = vmatmul.mubr.bf16.gmra.mrb[0].mxu0 %v5594
      %v5771 = vpop.f32.mrb[0].mxu0
      %v5772 = vadd.f32 0.0, %v5771
      %v5773 = vpop.f32.mrb[0].mxu0
      %v5774 = vpop.f32.mrb[0].mxu0
      %v5775 = vadd.f32 0.0, %v5774
      %v5776 = vpop.f32.mrb[0].mxu0
      %5777 = vmatprep.mubr.bf16.mxu0 0
      %5778 = vmatmul.mubr.bf16.gmra.mrb[0].mxu0 %v5595
      %v5779 = vpop.f32.mrb[0].mxu0
      %v5780 = vadd.f32 0.0, %v5779
      %v5781 = vpop.f32.mrb[0].mxu0
      %v5782 = vpop.f32.mrb[0].mxu0
      %v5783 = vadd.f32 0.0, %v5782
      %v5784 = vpop.f32.mrb[0].mxu0
      %5785 = vmatprep.mubr.bf16.mxu0 0
      %5786 = vmatmul.mubr.bf16.gmra.mrb[0].mxu0 %v5596
      %v5787 = vpop.f32.mrb[0].mxu0
      %v5788 = vadd.f32 0.0, %v5787
      %v5789 = vpop.f32.mrb[0].mxu0
      %v5790 = vpop.f32.mrb[0].mxu0
      %v5791 = vadd.f32 0.0, %v5790
      %v5792 = vpop.f32.mrb[0].mxu0
      %5793 = vmatprep.mubr.bf16.mxu0 0
      %5794 = vmatmul.mubr.bf16.gmra.mrb[0].mxu0 %v5597
      %v5795 = vpop.f32.mrb[0].mxu0
      %v5796 = vadd.f32 0.0, %v5795
      %v5797 = vpop.f32.mrb[0].mxu0
      %v5798 = vpop.f32.mrb[0].mxu0
      %v5799 = vadd.f32 0.0, %v5798
      %v5800 = vpop.f32.mrb[0].mxu0
      %5801 = vmatprep.mubr.bf16.mxu0 0
      %5802 = vmatmul.mubr.bf16.gmra.mrb[0].mxu0 %v5598
      %v5803 = vpop.f32.mrb[0].mxu0
      %v5804 = vadd.f32 0.0, %v5803
      %v5805 = vpop.f32.mrb[0].mxu0
      %v5806 = vpop.f32.mrb[0].mxu0
      %v5807 = vadd.f32 0.0, %v5806
      %v5808 = vpop.f32.mrb[0].mxu0
      %5809 = vmatprep.mubr.bf16.mxu0 0
      %5810 = vmatmul.mubr.bf16.gmra.mrb[0].mxu0 %v5599
      %v5811 = vpop.f32.mrb[0].mxu0
      %v5812 = vadd.f32 0.0, %v5811
      %v5813 = vpop.f32.mrb[0].mxu0
      %v5814 = vpop.f32.mrb[0].mxu0
      %v5815 = vadd.f32 0.0, %v5814
      %v5816 = vpop.f32.mrb[0].mxu0
      %5817 = vmatprep.mubr.bf16.mxu0 0
      %5818 = vmatmul.mubr.bf16.gmra.mrb[0].mxu0 %v5600
      %v5819 = vpop.f32.mrb[0].mxu0
      %v5820 = vadd.f32 0.0, %v5819
      %v5821 = vpop.f32.mrb[0].mxu0
      %v5822 = vpop.f32.mrb[0].mxu0
      %v5823 = vadd.f32 0.0, %v5822
      %v5824 = vpop.f32.mrb[0].mxu0
      %5825 = vdwg.mxu0
      %v5826 = vadd.f32 %v5328, %v5700
      %v5827 = vadd.f32 %v5329, %v5703
      %v5828 = vadd.f32 %v5330, %v5708
      %v5829 = vadd.f32 %v5331, %v5711
      %v5830 = vadd.f32 %v5332, %v5716
      %v5831 = vadd.f32 %v5333, %v5719
      %v5832 = vadd.f32 %v5334, %v5724
      %v5833 = vadd.f32 %v5335, %v5727
      %v5834 = vadd.f32 %v5336, %v5732
      %v5835 = vadd.f32 %v5337, %v5735
      %v5836 = vadd.f32 %v5338, %v5740
      %v5837 = vadd.f32 %v5339, %v5743
      %v5838 = vadd.f32 %v5340, %v5748
      %v5839 = vadd.f32 %v5341, %v5751
      %v5840 = vadd.f32 %v5342, %v5756
      %v5841 = vadd.f32 %v5343, %v5759
      %v5842 = vadd.f32 %v5344, %v5764
      %v5843 = vadd.f32 %v5345, %v5767
      %v5844 = vadd.f32 %v5346, %v5772
      %v5845 = vadd.f32 %v5347, %v5775
      %v5846 = vadd.f32 %v5348, %v5780
      %v5847 = vadd.f32 %v5349, %v5783
      %v5848 = vadd.f32 %v5350, %v5788
      %v5849 = vadd.f32 %v5351, %v5791
      %v5850 = vadd.f32 %v5352, %v5796
      %v5851 = vadd.f32 %v5353, %v5799
      %v5852 = vadd.f32 %v5354, %v5804
      %v5853 = vadd.f32 %v5355, %v5807
      %v5854 = vadd.f32 %v5356, %v5812
      %v5855 = vadd.f32 %v5357, %v5815
      %v5856 = vadd.f32 %v5358, %v5820
      %v5857 = vadd.f32 %v5359, %v5823
      %v5858 = vpack.c.bf16 %v5827, %v5826
      %v5859 = vpack.c.bf16 %v5829, %v5828
      %v5860 = vpack.c.bf16 %v5831, %v5830
      %v5861 = vpack.c.bf16 %v5833, %v5832
      %v5862 = vpack.c.bf16 %v5835, %v5834
      %v5863 = vpack.c.bf16 %v5837, %v5836
      %v5864 = vpack.c.bf16 %v5839, %v5838
      %v5865 = vpack.c.bf16 %v5841, %v5840
      %v5866 = vpack.c.bf16 %v5843, %v5842
      %v5867 = vpack.c.bf16 %v5845, %v5844
      %v5868 = vpack.c.bf16 %v5847, %v5846
      %v5869 = vpack.c.bf16 %v5849, %v5848
      %v5870 = vpack.c.bf16 %v5851, %v5850
      %v5871 = vpack.c.bf16 %v5853, %v5852
      %v5872 = vpack.c.bf16 %v5855, %v5854
      %v5873 = vpack.c.bf16 %v5857, %v5856
      %v5890 = vunpack.c.l.b16 %v5858
      %v5891 = vunpack.c.h.b16 %v5858
      %v5892 = vunpack.c.l.b16 %v5859
      %v5893 = vunpack.c.h.b16 %v5859
      %v5894 = vunpack.c.l.b16 %v5860
      %v5895 = vunpack.c.h.b16 %v5860
      %v5896 = vunpack.c.l.b16 %v5861
      %v5897 = vunpack.c.h.b16 %v5861
      %v5898 = vunpack.c.l.b16 %v5862
      %v5899 = vunpack.c.h.b16 %v5862
      %v5900 = vunpack.c.l.b16 %v5863
      %v5901 = vunpack.c.h.b16 %v5863
      %v5902 = vunpack.c.l.b16 %v5864
      %v5903 = vunpack.c.h.b16 %v5864
      %v5904 = vunpack.c.l.b16 %v5865
      %v5905 = vunpack.c.h.b16 %v5865
      %v5906 = vunpack.c.l.b16 %v5866
      %v5907 = vunpack.c.h.b16 %v5866
      %v5908 = vunpack.c.l.b16 %v5867
      %v5909 = vunpack.c.h.b16 %v5867
      %v5910 = vunpack.c.l.b16 %v5868
      %v5911 = vunpack.c.h.b16 %v5868
      %v5912 = vunpack.c.l.b16 %v5869
      %v5913 = vunpack.c.h.b16 %v5869
      %v5914 = vunpack.c.l.b16 %v5870
      %v5915 = vunpack.c.h.b16 %v5870
      %v5916 = vunpack.c.l.b16 %v5871
      %v5917 = vunpack.c.h.b16 %v5871
      %v5918 = vunpack.c.l.b16 %v5872
      %v5919 = vunpack.c.h.b16 %v5872
      %v5920 = vunpack.c.l.b16 %v5873
      %v5921 = vunpack.c.h.b16 %v5873
      %v5922 = vpack.c.b16 %v5890, %v5890
      %v5923 = vpack.c.b16 %v5891, %v5891
      %v5924 = vpack.c.b16 %v5892, %v5892
      %v5925 = vpack.c.b16 %v5893, %v5893
      %v5926 = vpack.c.b16 %v5894, %v5894
      %v5927 = vpack.c.b16 %v5895, %v5895
      %v5928 = vpack.c.b16 %v5896, %v5896
      %v5929 = vpack.c.b16 %v5897, %v5897
      %v5930 = vpack.c.b16 %v5898, %v5898
      %v5931 = vpack.c.b16 %v5899, %v5899
      %v5932 = vpack.c.b16 %v5900, %v5900
      %v5933 = vpack.c.b16 %v5901, %v5901
      %v5934 = vpack.c.b16 %v5902, %v5902
      %v5935 = vpack.c.b16 %v5903, %v5903
      %v5936 = vpack.c.b16 %v5904, %v5904
      %v5937 = vpack.c.b16 %v5905, %v5905
      %v5938 = vpack.c.b16 %v5906, %v5906
      %v5939 = vpack.c.b16 %v5907, %v5907
      %v5940 = vpack.c.b16 %v5908, %v5908
      %v5941 = vpack.c.b16 %v5909, %v5909
      %v5942 = vpack.c.b16 %v5910, %v5910
      %v5943 = vpack.c.b16 %v5911, %v5911
      %v5944 = vpack.c.b16 %v5912, %v5912
      %v5945 = vpack.c.b16 %v5913, %v5913
      %v5946 = vpack.c.b16 %v5914, %v5914
      %v5947 = vpack.c.b16 %v5915, %v5915
      %v5948 = vpack.c.b16 %v5916, %v5916
      %v5949 = vpack.c.b16 %v5917, %v5917
      %v5950 = vpack.c.b16 %v5918, %v5918
      %v5951 = vpack.c.b16 %v5919, %v5919
      %v5952 = vpack.c.b16 %v5920, %v5920
      %v5953 = vpack.c.b16 %v5921, %v5921
      %5986 = vst [vmem:[%s260] sm:$0xf] %v5922
      %5987 = vst [vmem:[%s260 + $0x4] sm:$0xf] %v5923
      %5988 = vst [vmem:[%s260 + $0x8] sm:$0xf] %v5924
      %5989 = vst [vmem:[%s260 + $0xc] sm:$0xf] %v5925
      %5990 = vst [vmem:[%s260 + $0x10] sm:$0xf] %v5926
      %5991 = vst [vmem:[%s260 + $0x14] sm:$0xf] %v5927
      %5992 = vst [vmem:[%s260 + $0x18] sm:$0xf] %v5928
      %5993 = vst [vmem:[%s260 + $0x1c] sm:$0xf] %v5929
      %5994 = vst [vmem:[%s260 + $0x20] sm:$0xf] %v5930
      %5995 = vst [vmem:[%s260 + $0x24] sm:$0xf] %v5931
      %5996 = vst [vmem:[%s260 + $0x28] sm:$0xf] %v5932
      %5997 = vst [vmem:[%s260 + $0x2c] sm:$0xf] %v5933
      %5998 = vst [vmem:[%s260 + $0x30] sm:$0xf] %v5934
      %5999 = vst [vmem:[%s260 + $0x34] sm:$0xf] %v5935
      %6000 = vst [vmem:[%s260 + $0x38] sm:$0xf] %v5936
      %6001 = vst [vmem:[%s260 + $0x3c] sm:$0xf] %v5937
      %6002 = vst [vmem:[%s260 + $0x40] sm:$0xf] %v5938
      %6003 = vst [vmem:[%s260 + $0x44] sm:$0xf] %v5939
      %6004 = vst [vmem:[%s260 + $0x48] sm:$0xf] %v5940
      %6005 = vst [vmem:[%s260 + $0x4c] sm:$0xf] %v5941
      %6006 = vst [vmem:[%s260 + $0x50] sm:$0xf] %v5942
      %6007 = vst [vmem:[%s260 + $0x54] sm:$0xf] %v5943
      %6008 = vst [vmem:[%s260 + $0x58] sm:$0xf] %v5944
      %6009 = vst [vmem:[%s260 + $0x5c] sm:$0xf] %v5945
      %6010 = vst [vmem:[%s260 + $0x60] sm:$0xf] %v5946
      %6011 = vst [vmem:[%s260 + $0x64] sm:$0xf] %v5947
      %6012 = vst [vmem:[%s260 + $0x68] sm:$0xf] %v5948
      %6013 = vst [vmem:[%s260 + $0x6c] sm:$0xf] %v5949
      %6014 = vst [vmem:[%s260 + $0x70] sm:$0xf] %v5950
      %6015 = vst [vmem:[%s260 + $0x74] sm:$0xf] %v5951
      %6016 = vst [vmem:[%s260 + $0x78] sm:$0xf] %v5952
      %6017 = vst [vmem:[%s260 + $0x7c] sm:$0xf] %v5953
      %v6018 = vadd.f32 %v5826, %v5827
      %v6019 = vadd.f32 %v6018, %v5828
      %v6020 = vadd.f32 %v6019, %v5829
      %v6021 = vadd.f32 %v6020, %v5830
      %v6022 = vadd.f32 %v6021, %v5831
      %v6023 = vadd.f32 %v6022, %v5832
      %v6024 = vadd.f32 %v6023, %v5833
      %v6025 = vadd.f32 %v6024, %v5834
      %v6026 = vadd.f32 %v6025, %v5835
      %v6027 = vadd.f32 %v6026, %v5836
      %v6028 = vadd.f32 %v6027, %v5837
      %v6029 = vadd.f32 %v6028, %v5838
      %v6030 = vadd.f32 %v6029, %v5839
      %v6031 = vadd.f32 %v6030, %v5840
      %v6032 = vadd.f32 %v6031, %v5841
      %v6033 = vadd.f32 %v6032, %v5842
      %v6034 = vadd.f32 %v6033, %v5843
      %v6035 = vadd.f32 %v6034, %v5844
      %v6036 = vadd.f32 %v6035, %v5845
      %v6037 = vadd.f32 %v6036, %v5846
      %v6038 = vadd.f32 %v6037, %v5847
      %v6039 = vadd.f32 %v6038, %v5848
      %v6040 = vadd.f32 %v6039, %v5849
      %v6041 = vadd.f32 %v6040, %v5850
      %v6042 = vadd.f32 %v6041, %v5851
      %v6043 = vadd.f32 %v6042, %v5852
      %v6044 = vadd.f32 %v6043, %v5853
      %v6045 = vadd.f32 %v6044, %v5854
      %v6046 = vadd.f32 %v6045, %v5855
      %v6047 = vadd.f32 %v6046, %v5856
      %v6048 = vadd.f32 %v6047, %v5857
      %v6049 = vrot.slane %v6048, 4
      %v6050 = vadd.f32 %v6048, %v6049
      %v6051 = vrot.slane %v6050, 2
      %v6052 = vadd.f32 %v6050, %v6051
      %v6053 = vrot.slane %v6052, 1
      %v6054 = vadd.f32 %v6052, %v6053
      %v6055 = vmul.f32 %v6054, 0.00390625
      %v6056 = vsub.f32 %v5826, %v6055
      %v6057 = vsub.f32 %v5827, %v6055
      %v6058 = vsub.f32 %v5828, %v6055
      %v6059 = vsub.f32 %v5829, %v6055
      %v6060 = vsub.f32 %v5830, %v6055
      %v6061 = vsub.f32 %v5831, %v6055
      %v6062 = vsub.f32 %v5832, %v6055
      %v6063 = vsub.f32 %v5833, %v6055
      %v6064 = vsub.f32 %v5834, %v6055
      %v6065 = vsub.f32 %v5835, %v6055
      %v6066 = vsub.f32 %v5836, %v6055
      %v6067 = vsub.f32 %v5837, %v6055
      %v6068 = vsub.f32 %v5838, %v6055
      %v6069 = vsub.f32 %v5839, %v6055
      %v6070 = vsub.f32 %v5840, %v6055
      %v6071 = vsub.f32 %v5841, %v6055
      %v6072 = vsub.f32 %v5842, %v6055
      %v6073 = vsub.f32 %v5843, %v6055
      %v6074 = vsub.f32 %v5844, %v6055
      %v6075 = vsub.f32 %v5845, %v6055
      %v6076 = vsub.f32 %v5846, %v6055
      %v6077 = vsub.f32 %v5847, %v6055
      %v6078 = vsub.f32 %v5848, %v6055
      %v6079 = vsub.f32 %v5849, %v6055
      %v6080 = vsub.f32 %v5850, %v6055
      %v6081 = vsub.f32 %v5851, %v6055
      %v6082 = vsub.f32 %v5852, %v6055
      %v6083 = vsub.f32 %v5853, %v6055
      %v6084 = vsub.f32 %v5854, %v6055
      %v6085 = vsub.f32 %v5855, %v6055
      %v6086 = vsub.f32 %v5856, %v6055
      %v6087 = vsub.f32 %v5857, %v6055
      %v6088 = vmul.f32 %v6056, %v6056
      %v6089 = vmul.f32 %v6057, %v6057
      %v6090 = vmul.f32 %v6058, %v6058
      %v6091 = vmul.f32 %v6059, %v6059
      %v6092 = vmul.f32 %v6060, %v6060
      %v6093 = vmul.f32 %v6061, %v6061
      %v6094 = vmul.f32 %v6062, %v6062
      %v6095 = vmul.f32 %v6063, %v6063
      %v6096 = vmul.f32 %v6064, %v6064
      %v6097 = vmul.f32 %v6065, %v6065
      %v6098 = vmul.f32 %v6066, %v6066
      %v6099 = vmul.f32 %v6067, %v6067
      %v6100 = vmul.f32 %v6068, %v6068
      %v6101 = vmul.f32 %v6069, %v6069
      %v6102 = vmul.f32 %v6070, %v6070
      %v6103 = vmul.f32 %v6071, %v6071
      %v6104 = vmul.f32 %v6072, %v6072
      %v6105 = vmul.f32 %v6073, %v6073
      %v6106 = vmul.f32 %v6074, %v6074
      %v6107 = vmul.f32 %v6075, %v6075
      %v6108 = vmul.f32 %v6076, %v6076
      %v6109 = vmul.f32 %v6077, %v6077
      %v6110 = vmul.f32 %v6078, %v6078
      %v6111 = vmul.f32 %v6079, %v6079
      %v6112 = vmul.f32 %v6080, %v6080
      %v6113 = vmul.f32 %v6081, %v6081
      %v6114 = vmul.f32 %v6082, %v6082
      %v6115 = vmul.f32 %v6083, %v6083
      %v6116 = vmul.f32 %v6084, %v6084
      %v6117 = vmul.f32 %v6085, %v6085
      %v6118 = vmul.f32 %v6086, %v6086
      %v6119 = vmul.f32 %v6087, %v6087
      %v6120 = vadd.f32 %v6088, %v6089
      %v6121 = vadd.f32 %v6120, %v6090
      %v6122 = vadd.f32 %v6121, %v6091
      %v6123 = vadd.f32 %v6122, %v6092
      %v6124 = vadd.f32 %v6123, %v6093
      %v6125 = vadd.f32 %v6124, %v6094
      %v6126 = vadd.f32 %v6125, %v6095
      %v6127 = vadd.f32 %v6126, %v6096
      %v6128 = vadd.f32 %v6127, %v6097
      %v6129 = vadd.f32 %v6128, %v6098
      %v6130 = vadd.f32 %v6129, %v6099
      %v6131 = vadd.f32 %v6130, %v6100
      %v6132 = vadd.f32 %v6131, %v6101
      %v6133 = vadd.f32 %v6132, %v6102
      %v6134 = vadd.f32 %v6133, %v6103
      %v6135 = vadd.f32 %v6134, %v6104
      %v6136 = vadd.f32 %v6135, %v6105
      %v6137 = vadd.f32 %v6136, %v6106
      %v6138 = vadd.f32 %v6137, %v6107
      %v6139 = vadd.f32 %v6138, %v6108
      %v6140 = vadd.f32 %v6139, %v6109
      %v6141 = vadd.f32 %v6140, %v6110
      %v6142 = vadd.f32 %v6141, %v6111
      %v6143 = vadd.f32 %v6142, %v6112
      %v6144 = vadd.f32 %v6143, %v6113
      %v6145 = vadd.f32 %v6144, %v6114
      %v6146 = vadd.f32 %v6145, %v6115
      %v6147 = vadd.f32 %v6146, %v6116
      %v6148 = vadd.f32 %v6147, %v6117
      %v6149 = vadd.f32 %v6148, %v6118
      %v6150 = vadd.f32 %v6149, %v6119
      %v6151 = vrot.slane %v6150, 4
      %v6152 = vadd.f32 %v6150, %v6151
      %v6153 = vrot.slane %v6152, 2
      %v6154 = vadd.f32 %v6152, %v6153
      %v6155 = vrot.slane %v6154, 1
      %v6156 = vadd.f32 %v6154, %v6155
      %6157 = vst [vmem:[%s268] sm:$0x1] %v6054
      %6158 = vst [vmem:[%s268 + $0x1] sm:$0x1] %v6156
      %s6159 = smul.u32 16, %s22
      %p6160 = scmp.lt.s32.totalorder %s21, 1
      %s6161 = scalar_select %p6160, %s21, 1
      %p6162 = scmp.lt.s32.totalorder %s6159, 15
      %s6163 = scalar_select %p6162, %s6159, 15
      %s6164 = smul.addr %s6163, 2
      %s6165 = smul.addr %s6161, 32
      %s6166 = sadd.s32 %s6164, %s6165
      %s6167 = smul.addr %s6166, 4
      %s6168 = scalar_lea.vmem %s4, %s6167
      %p6169 = scmp.lt.s32.totalorder %s21, 1
      %s6170 = scalar_select %p6169, %s21, 1
      %p6171 = scmp.lt.s32.totalorder %s22, 0
      %s6172 = scalar_select %p6171, %s22, 0
      %s6173 = sadd.s32 %s6172, %s6170
      %s6174 = smul.addr %s6173, 2
      %s6175 = scalar_lea.vmem %s5, %s6174
      // Predicated region
      $region41: #{simple_model_forward.4} parent=35 // pred_check
        %p6176 = pneg %p138
      $region42: #{simple_model_forward.4} parent=35 // pred_check_branch
        %6178 = sbr.rel (%p6176) target = $region44
      $region43: #{simple_model_forward.4} parent=35 // pred_region
        %s6179 = smul.u32 16, %s22
      $region44: #{simple_model_forward.4} parent=35 // pred_fallthru
        _
      // Predicated region
      $region45: #{simple_model_forward.4} parent=35 // pred_check
        %p6180 = pneg %p166
      $region46: #{simple_model_forward.4} parent=35 // pred_check_branch
        %6182 = sbr.rel (%p6180) target = $region48
      $region47: #{simple_model_forward.4} parent=35 // pred_region
        _
      $region48: #{simple_model_forward.4} parent=35 // pred_fallthru
        _
    $region36: #{simple_model_forward.4} parent=5 // pred_fallthru
      _
    %p6183 = scmp.le.s32.totalorder 2, %s12
    // Predicated region
    $region49: #{simple_model_forward.4} parent=5 // pred_check
      %p6184 = pneg %p6183
    $region50: #{simple_model_forward.4} parent=5 // pred_check_branch
      %6186 = sbr.rel (%p6184) target = $region52
    $region51: #{simple_model_forward.4} parent=5 // pred_region
      %s6187 = ssub.s32 %s12, 2
      // Predicated region
      $region53: #{simple_model_forward.4} parent=51 // pred_check
        %p6188 = pneg %p144
      $region54: #{simple_model_forward.4} parent=51 // pred_check_branch
        %6190 = sbr.rel (%p6188) target = $region56
      $region55: #{simple_model_forward.4} parent=51 // pred_region
        %s6191 = smul.u32 16, %s24
        %p6192 = scmp.lt.s32.totalorder %s23, 1
        %s6193 = scalar_select %p6192, %s23, 1
        %p6194 = scmp.lt.s32.totalorder %s6191, 15
        %s6195 = scalar_select %p6194, %s6191, 15
        %s6196 = smul.addr %s6195, 2
        %s6197 = smul.addr %s6193, 32
        %s6198 = sadd.s32 %s6196, %s6197
        %s6199 = smul.addr %s6198, 4
        %s6200 = scalar_lea.vmem %s4, %s6199
      $region56: #{simple_model_forward.4} parent=51 // pred_fallthru
        _
      // Predicated region
      $region57: #{simple_model_forward.4} parent=51 // pred_check
        %p6201 = pneg %p172
      $region58: #{simple_model_forward.4} parent=51 // pred_check_branch
        %6203 = sbr.rel (%p6201) target = $region60
      $region59: #{simple_model_forward.4} parent=51 // pred_region
        %p6204 = scmp.lt.s32.totalorder %s23, 1
        %s6205 = scalar_select %p6204, %s23, 1
        %p6206 = scmp.lt.s32.totalorder %s24, 0
        %s6207 = scalar_select %p6206, %s24, 0
        %s6208 = sadd.s32 %s6207, %s6205
        %s6209 = smul.addr %s6208, 2
        %s6210 = scalar_lea.vmem %s5, %s6209
      $region60: #{simple_model_forward.4} parent=51 // pred_fallthru
        _
    $region52: #{simple_model_forward.4} parent=5 // pred_fallthru
      _
  $region6: #{simple_model_forward.4} parent=0 // loop_footer
    %s16 = sadd.s32 1, %s12
  $region7: #{simple_model_forward.4} parent=0 // loop_footer_branch
    %11 = sbr.rel target = $region3
  $region8: #{simple_model_forward.4} parent=0 // loop_exit
    _

</llo_original>
